<compile_context>
chip_gen: v7x
topology: tpu7x:2x2x1
jax: 0.10.0
libtpu: 0.0.40
codegen_flags: <defaults>
</compile_context>

<pallas_src>
import math

import numpy as np
import jax
import jax.numpy as jnp
from jax.experimental import pallas as pl
from jax.experimental.pallas import tpu as pltpu


N_LATENT = 32
DATA_LEN = 128   # encoder /4 downsample + flatten must feed Reshape((-1, 1, 32))


# ---------------------------------------------------------------------------
# The single fused kernel: both encoders + reparam + both decoders
# ---------------------------------------------------------------------------
def _vae_fused_kernel(
        x_ref, eps_ref,
        we1, be1, we2, we3, be3, we4, we5m, be5m, we5l, be5l,
        wd1, bd1, wd2, wd3, bd3, wd4, wd5m, bd5m, wd5l, bd5l,
        s1, s2, u1, u2,
        zmu_ref, zlv_ref, z_ref, xmu_ref, xlv_ref):
    """One batch element per grid step.  Activations are (L, C) channels-last.

    Weight refs w* have shape (3, Cin_t, Cout_t): one right-multiply matrix per
    conv tap, with the mu / logvar branches fused (block-diagonal) along the
    channel axes.  s1/s2 are maxpool even-row selection matrices, u1/u2 the
    align_corners=False linear 2x upsample matrices.
    """

    def mm(a, b):
        # (M, K) @ (K, N); degenerate K == 1 as an outer-product broadcast.
        if a.shape[-1] == 1:
            return a * b
        return jnp.dot(a, b, preferred_element_type=jnp.float32)

    def circ_conv(h, w_ref, b_ref=None, pre_relu=False):
        """Circular k=3, dil=1 conv along the length (sublane) axis + bias + ReLU."""
        if pre_relu:
            h = jnp.maximum(h, 0.0)
        n = h.shape[0]
        hm = jnp.concatenate([h[n - 1:, :], h[:n - 1, :]], axis=0)  # h[(l-1) % n]
        hp = jnp.concatenate([h[1:, :], h[:1, :]], axis=0)          # h[(l+1) % n]
        y = mm(hm, w_ref[0]) + mm(h, w_ref[1]) + mm(hp, w_ref[2])
        if b_ref is not None:
            y = y + b_ref[...]
        return jnp.maximum(y, 0.0)

    def maxpool2(y, sel_ref):
        """MaxPool1d(2, 2): max over adjacent rows, then even-row selection."""
        y_next = jnp.concatenate([y[1:, :], y[:1, :]], axis=0)
        return mm(sel_ref[...], jnp.maximum(y, y_next))

    # --- fused (mu | logvar) encoder: (128, 1) -> two (32, 1) latents --------
    h = circ_conv(x_ref[0], we1, be1)                       # (128, 64)
    h = maxpool2(circ_conv(h, we2, pre_relu=True), s1)      # (64, 64)
    h = circ_conv(h, we3, be3)                              # (64, 128)
    h = maxpool2(circ_conv(h, we4, pre_relu=True), s2)      # (32, 128)
    zmu = circ_conv(h, we5m, be5m)                          # (32, 1)  mu head
    zlv = circ_conv(h, we5l, be5l)                          # (32, 1)  logvar head
    zmu_ref[0] = zmu
    zlv_ref[0] = zlv

    # --- reparameterization: z = mu + exp(0.5 * logvar) * eps ---------------
    z = zmu + jnp.exp(0.5 * zlv) * eps_ref[0]               # (32, 1)
    z_ref[0] = z

    # --- fused (mu | logvar) decoder: (32, 1) -> two (128, 1) outputs -------
    h = circ_conv(z, wd1, bd1)                              # (32, 128)
    h = mm(u1[...], circ_conv(h, wd2, pre_relu=True))       # (64, 128)   2x upsample
    h = circ_conv(h, wd3, bd3)                              # (64, 64)
    h = mm(u2[...], circ_conv(h, wd4, pre_relu=True))       # (128, 64)   2x upsample
    xmu_ref[0] = circ_conv(h, wd5m, bd5m)                   # (128, 1)  mu head
    xlv_ref[0] = circ_conv(h, wd5l, bd5l)                   # (128, 1)  logvar head


# ---------------------------------------------------------------------------
# Wrapper: one pallas_call for the whole forward
# ---------------------------------------------------------------------------
_PACKED_ORDER = (
    'we1', 'be1', 'we2', 'we3', 'be3', 'we4', 'we5m', 'be5m', 'we5l', 'be5l',
    'wd1', 'bd1', 'wd2', 'wd3', 'bd3', 'wd4', 'wd5m', 'bd5m', 'wd5l', 'bd5l',
    's1', 's2', 'u1', 'u2',
)


def _full_spec(a):
    zeros = (0,) * a.ndim
    return pl.BlockSpec(a.shape, lambda i: zeros)


def rom_vae_dilated_forward(packed, x_ncl, eps):
    """x_ncl: (B, 1, 128) NCL like PyTorch; eps: (B, 32) reparam noise.

    Returns (zmu, zlogvar, z, xmu, xlogvar) exactly like the PyTorch module
    (xmu/xlogvar in NCL (B, 1, 128)).
    """
    B, _, L = x_ncl.shape
    x_lc = x_ncl.astype(jnp.float32).reshape(B, L, 1)          # C == 1: free reshape
    eps_c = eps.astype(jnp.float32).reshape(B, N_LATENT, 1)
    w_args = [packed[k] for k in _PACKED_ORDER]

    def bspec(n):
        return pl.BlockSpec((1, n, 1), lambda i: (i, 0, 0))

    out_shape = (
        jax.ShapeDtypeStruct((B, N_LATENT, 1), jnp.float32),   # zmu
        jax.ShapeDtypeStruct((B, N_LATENT, 1), jnp.float32),   # zlogvar
        jax.ShapeDtypeStruct((B, N_LATENT, 1), jnp.float32),   # z
        jax.ShapeDtypeStruct((B, L, 1), jnp.float32),          # xmu
        jax.ShapeDtypeStruct((B, L, 1), jnp.float32),          # xlogvar
    )

    o_zmu, o_zlv, o_z, o_xmu, o_xlv = pl.pallas_call(
        _vae_fused_kernel,
        out_shape=out_shape,
        grid=(B,),
        in_specs=[bspec(L), bspec(N_LATENT)] + [_full_spec(a) for a in w_args],
        out_specs=(bspec(N_LATENT), bspec(N_LATENT), bspec(N_LATENT),
                   bspec(L), bspec(L)),
        compiler_params=pltpu.CompilerParams(
            dimension_semantics=("parallel",)),                # v7x: batch over 2 TCs
    )(x_lc, eps_c, *w_args)

    return (o_zmu.reshape(B, N_LATENT),
            o_zlv.reshape(B, N_LATENT),
            o_z.reshape(B, N_LATENT),
            o_xmu.reshape(B, 1, L),        # (B, L, 1) -> NCL, free (C == 1)
            o_xlv.reshape(B, 1, L))


# ---------------------------------------------------------------------------
# Parameter init (deterministic, Conv1d-style uniform fan-in bound)
# ---------------------------------------------------------------------------
def init_conv(key, cout, cin, bias):
    k1, k2 = jax.random.split(key)
    bound = 1.0 / math.sqrt(cin * 3)
    w = jax.random.uniform(k1, (cout, cin, 3), jnp.float32, -bound, bound)
    b = jax.random.uniform(k2, (cout,), jnp.float32, -bound, bound) if bias else None
    return w, b


def make_encoder_params(key):
    ks = jax.random.split(key, 5)
    return {
        'dil1': init_conv(ks[0], 32, 1, True),
        'enc1': init_conv(ks[1], 32, 32, False),
        'dil2': init_conv(ks[2], 64, 32, True),
        'enc2': init_conv(ks[3], 64, 64, False),
        'dil3': init_conv(ks[4], 1, 64, True),
    }


def make_decoder_params(key):
    ks = jax.random.split(key, 5)
    return {
        'dil1': init_conv(ks[0], 64, 1, True),
        'dec1': init_conv(ks[1], 64, 64, False),
        'dil2': init_conv(ks[2], 32, 64, True),
        'dec2': init_conv(ks[3], 32, 32, False),
        'dil3': init_conv(ks[4], 1, 32, True),
    }


# ---------------------------------------------------------------------------
# One-time parameter packing (hoisted out of the forward)
# ---------------------------------------------------------------------------
def pool_select_mat(L):
    """(L//2, L): selects even rows (used after the in-kernel pair-max)."""
    S = np.zeros((L // 2, L), np.float32)
    S[np.arange(L // 2), 2 * np.arange(L // 2)] = 1.0
    return jnp.asarray(S)


def upsample_linear_mat(L):
    """(2L, L): nn.Upsample(scale_factor=2, mode='linear', align_corners=False)."""
    U = np.zeros((2 * L, L), np.float32)
    for j in range(2 * L):
        src = max((j + 0.5) * 0.5 - 0.5, 0.0)
        i0 = int(math.floor(src))
        i1 = min(i0 + 1, L - 1)
        lam = src - i0
        U[j, i0] += 1.0 - lam
        U[j, i1] += lam
    return jnp.asarray(U)


def _pack_conv_pair(pm, plv, *, share_input):
    """Fuse the mu/logvar Conv1d weights of one layer along the channel axes.

    Returns (w, bias): w is (3, Cin_t, Cout_t) — one right-multiply matrix per
    tap, the two branches concatenated along Cout and block-diagonal along Cin
    (unless both branches read the same shared input channels).
    """
    (wm, bm), (wl, bl) = pm, plv
    wm = np.asarray(wm, np.float32)
    wl = np.asarray(wl, np.float32)
    cout, cin = wm.shape[0], wm.shape[1]
    taps = []
    for k in range(3):
        a = wm[:, :, k].T                                    # (Cin, Cout)
        c = wl[:, :, k].T
        if share_input:
            taps.append(np.concatenate([a, c], axis=1))      # (Cin, 2*Cout)
        else:
            zero = np.zeros((cin, cout), np.float32)
            taps.append(np.block([[a, zero], [zero, c]]))    # (2*Cin, 2*Cout)
    w = jnp.asarray(np.stack(taps, axis=0))
    if bm is None:
        return w, None
    bias = np.concatenate([np.asarray(bm, np.float32), np.asarray(bl, np.float32)])
    return w, jnp.asarray(bias[None, :])


def _pack_conv_tail(p, cin_total, cin_offset):
    """Single-branch 1-channel head reading [offset, offset+Cin) of the fused input."""
    w, b = p
    w = np.asarray(w, np.float32)                            # (1, Cin, 3)
    cin = w.shape[1]
    taps = []
    for k in range(3):
        full = np.zeros((cin_total, 1), np.float32)
        full[cin_offset:cin_offset + cin, :] = w[:, :, k].T
        taps.append(full)
    bias = jnp.asarray(np.asarray(b, np.float32).reshape(1, 1))
    return jnp.asarray(np.stack(taps, axis=0)), bias


def pack_model(params):
    em, el = params['E1_m'], params['E1_lv']
    dm, dl = params['D1_m'], params['D1_lv']
    p = {}
    # encoder (mu | logvar fused): 1 -> 64 -> 64 -> 128 -> 128 -> 1+1 channels
    p['we1'], p['be1'] = _pack_conv_pair(em['dil1'], el['dil1'], share_input=True)
    p['we2'], _ = _pack_conv_pair(em['enc1'], el['enc1'], share_input=False)
    p['we3'], p['be3'] = _pack_conv_pair(em['dil2'], el['dil2'], share_input=False)
    p['we4'], _ = _pack_conv_pair(em['enc2'], el['enc2'], share_input=False)
    p['we5m'], p['be5m'] = _pack_conv_tail(em['dil3'], 128, 0)
    p['we5l'], p['be5l'] = _pack_conv_tail(el['dil3'], 128, 64)
    # decoder (mu | logvar fused): 1 -> 128 -> 128 -> 64 -> 64 -> 1+1 channels
    p['wd1'], p['bd1'] = _pack_conv_pair(dm['dil1'], dl['dil1'], share_input=True)
    p['wd2'], _ = _pack_conv_pair(dm['dec1'], dl['dec1'], share_input=False)
    p['wd3'], p['bd3'] = _pack_conv_pair(dm['dil2'], dl['dil2'], share_input=False)
    p['wd4'], _ = _pack_conv_pair(dm['dec2'], dl['dec2'], share_input=False)
    p['wd5m'], p['bd5m'] = _pack_conv_tail(dm['dil3'], 64, 0)
    p['wd5l'], p['bd5l'] = _pack_conv_tail(dl['dil3'], 64, 32)
    # pooling / upsampling matrices
    p['s1'] = pool_select_mat(DATA_LEN)            # (64, 128)
    p['s2'] = pool_select_mat(DATA_LEN // 2)       # (32, 64)
    p['u1'] = upsample_linear_mat(N_LATENT)        # (64, 32)
    p['u2'] = upsample_linear_mat(2 * N_LATENT)    # (128, 64)
    return p


# ---------------------------------------------------------------------------
# Plain-JAX reference of the (unfused) PyTorch graph, used for self-checking
# ---------------------------------------------------------------------------
def _ref_circ_conv(x, w, b):
    hi = jax.lax.Precision.HIGHEST
    hm = jnp.roll(x, 1, axis=1)
    hp = jnp.roll(x, -1, axis=1)
    y = (jnp.einsum('blc,oc->blo', hm, w[:, :, 0], precision=hi)
         + jnp.einsum('blc,oc->blo', x, w[:, :, 1], precision=hi)
         + jnp.einsum('blc,oc->blo', hp, w[:, :, 2], precision=hi))
    return y if b is None else y + b


def _ref_pool(h):
    B, L, C = h.shape
    return jnp.max(h.reshape(B, L // 2, 2, C), axis=2)


def _ref_encoder(p, x):
    r = jax.nn.relu
    h = r(_ref_circ_conv(x, *p['dil1']))
    h = _ref_pool(r(_ref_circ_conv(r(h), p['enc1'][0], None)))
    h = r(_ref_circ_conv(h, *p['dil2']))
    h = _ref_pool(r(_ref_circ_conv(r(h), p['enc2'][0], None)))
    h = r(_ref_circ_conv(h, *p['dil3']))
    return h.reshape(h.shape[0], -1)


def _ref_decoder(p, z, U32, U64):
    r = jax.nn.relu
    hi = jax.lax.Precision.HIGHEST
    h = z.reshape(z.shape[0], N_LATENT, 1)
    h = r(_ref_circ_conv(h, *p['dil1']))
    h = jnp.einsum('ml,blc->bmc', U32, r(_ref_circ_conv(r(h), p['dec1'][0], None)),
                   precision=hi)
    h = r(_ref_circ_conv(h, *p['dil2']))
    h = jnp.einsum('ml,blc->bmc', U64, r(_ref_circ_conv(r(h), p['dec2'][0], None)),
                   precision=hi)
    h = r(_ref_circ_conv(h, *p['dil3']))
    return jnp.transpose(h, (0, 2, 1))


def _ref_forward(params, x_ncl, eps):
    x = jnp.transpose(x_ncl, (0, 2, 1)).astype(jnp.float32)
    zmu = _ref_encoder(params['E1_m'], x)
    zlv = _ref_encoder(params['E1_lv'], x)
    z = zmu + jnp.exp(0.5 * zlv) * eps
    U32 = upsample_linear_mat(N_LATENT)
    U64 = upsample_linear_mat(2 * N_LATENT)
    xmu = _ref_decoder(params['D1_m'], z, U32, U64)
    xlv = _ref_decoder(params['D1_lv'], z, U32, U64)
    return zmu, zlv, z, xmu, xlv


# ---------------------------------------------------------------------------
if __name__ == "__main__":
    key = jax.random.PRNGKey(0)
    k_em, k_elv, k_dm, k_dlv, k_x, k_eps = jax.random.split(key, 6)
    B = 2

    params = {
        'E1_m': make_encoder_params(k_em),
        'E1_lv': make_encoder_params(k_elv),
        'D1_m': make_decoder_params(k_dm),
        'D1_lv': make_decoder_params(k_dlv),
    }
    packed = pack_model(params)   # one-time packing, outside the jitted forward

    x = jax.random.normal(k_x, (B, 1, DATA_LEN), jnp.float32)       # NCL input
    # TODO(synk): torch.randn eps is replaced by an explicit noise input.
    eps = jax.random.normal(k_eps, (B, N_LATENT), jnp.float32)

    fwd = jax.jit(rom_vae_dilated_forward)
    zmu, zlogvar, z, xmu, xlogvar = fwd(packed, x, eps)
    jax.block_until_ready((zmu, zlogvar, z, xmu, xlogvar))

    assert zmu.shape == (B, N_LATENT) and zlogvar.shape == (B, N_LATENT)
    assert z.shape == (B, N_LATENT)
    assert xmu.shape == (B, 1, DATA_LEN) and xlogvar.shape == (B, 1, DATA_LEN)
    assert all(bool(jnp.all(jnp.isfinite(a)))
               for a in (zmu, zlogvar, z, xmu, xlogvar))

    # self-check against the plain-JAX reference of the unfused PyTorch graph
    refs = _ref_forward(params, x, eps)
    for got, want in zip((zmu, zlogvar, z, xmu, xlogvar), refs):
        assert bool(jnp.allclose(got, want, rtol=5e-2, atol=5e-2)), \
            float(jnp.max(jnp.abs(got - want)))

    print("KERNEL_OK")
</pallas_src>

<mosaic_0001>
module attributes {stable_mosaic.version = 11 : i64} {
  func.func @_vae_fused_kernel(%arg0: i32, %arg1: memref<1x128x1xf32, #tpu.memory_space<vmem>>, %arg2: memref<1x32x1xf32, #tpu.memory_space<vmem>>, %arg3: memref<3x1x64xf32, #tpu.memory_space<vmem>>, %arg4: memref<1x64xf32, #tpu.memory_space<vmem>>, %arg5: memref<3x64x64xf32, #tpu.memory_space<vmem>>, %arg6: memref<3x64x128xf32, #tpu.memory_space<vmem>>, %arg7: memref<1x128xf32, #tpu.memory_space<vmem>>, %arg8: memref<3x128x128xf32, #tpu.memory_space<vmem>>, %arg9: memref<3x128x1xf32, #tpu.memory_space<vmem>>, %arg10: memref<1x1xf32, #tpu.memory_space<vmem>>, %arg11: memref<3x128x1xf32, #tpu.memory_space<vmem>>, %arg12: memref<1x1xf32, #tpu.memory_space<vmem>>, %arg13: memref<3x1x128xf32, #tpu.memory_space<vmem>>, %arg14: memref<1x128xf32, #tpu.memory_space<vmem>>, %arg15: memref<3x128x128xf32, #tpu.memory_space<vmem>>, %arg16: memref<3x128x64xf32, #tpu.memory_space<vmem>>, %arg17: memref<1x64xf32, #tpu.memory_space<vmem>>, %arg18: memref<3x64x64xf32, #tpu.memory_space<vmem>>, %arg19: memref<3x64x1xf32, #tpu.memory_space<vmem>>, %arg20: memref<1x1xf32, #tpu.memory_space<vmem>>, %arg21: memref<3x64x1xf32, #tpu.memory_space<vmem>>, %arg22: memref<1x1xf32, #tpu.memory_space<vmem>>, %arg23: memref<64x128xf32, #tpu.memory_space<vmem>>, %arg24: memref<32x64xf32, #tpu.memory_space<vmem>>, %arg25: memref<64x32xf32, #tpu.memory_space<vmem>>, %arg26: memref<128x64xf32, #tpu.memory_space<vmem>>, %arg27: memref<1x32x1xf32, #tpu.memory_space<vmem>>, %arg28: memref<1x32x1xf32, #tpu.memory_space<vmem>>, %arg29: memref<1x32x1xf32, #tpu.memory_space<vmem>>, %arg30: memref<1x128x1xf32, #tpu.memory_space<vmem>>, %arg31: memref<1x128x1xf32, #tpu.memory_space<vmem>>) attributes {dimension_semantics = [#tpu.dimension_semantics<parallel>], iteration_bounds = array<i64: 2>, scalar_prefetch = 0 : i64, scratch_operands = 0 : i64, tpu.core_type = #tpu.core_type<tc>, window_params = [{transform_indices = @transform_0, window_bounds = array<i64: 1, 128, 1>}, {transform_indices = @transform_1, window_bounds = array<i64: 1, 32, 1>}, {pipeline_mode = #tpu.pipeline_mode<synchronous>, transform_indices = @transform_2, window_bounds = array<i64: 3, 1, 64>}, {pipeline_mode = #tpu.pipeline_mode<synchronous>, transform_indices = @transform_3, window_bounds = array<i64: 1, 64>}, {pipeline_mode = #tpu.pipeline_mode<synchronous>, transform_indices = @transform_4, window_bounds = array<i64: 3, 64, 64>}, {pipeline_mode = #tpu.pipeline_mode<synchronous>, transform_indices = @transform_5, window_bounds = array<i64: 3, 64, 128>}, {pipeline_mode = #tpu.pipeline_mode<synchronous>, transform_indices = @transform_6, window_bounds = array<i64: 1, 128>}, {pipeline_mode = #tpu.pipeline_mode<synchronous>, transform_indices = @transform_7, window_bounds = array<i64: 3, 128, 128>}, {pipeline_mode = #tpu.pipeline_mode<synchronous>, transform_indices = @transform_8, window_bounds = array<i64: 3, 128, 1>}, {pipeline_mode = #tpu.pipeline_mode<synchronous>, transform_indices = @transform_9, window_bounds = array<i64: 1, 1>}, {pipeline_mode = #tpu.pipeline_mode<synchronous>, transform_indices = @transform_10, window_bounds = array<i64: 3, 128, 1>}, {pipeline_mode = #tpu.pipeline_mode<synchronous>, transform_indices = @transform_11, window_bounds = array<i64: 1, 1>}, {pipeline_mode = #tpu.pipeline_mode<synchronous>, transform_indices = @transform_12, window_bounds = array<i64: 3, 1, 128>}, {pipeline_mode = #tpu.pipeline_mode<synchronous>, transform_indices = @transform_13, window_bounds = array<i64: 1, 128>}, {pipeline_mode = #tpu.pipeline_mode<synchronous>, transform_indices = @transform_14, window_bounds = array<i64: 3, 128, 128>}, {pipeline_mode = #tpu.pipeline_mode<synchronous>, transform_indices = @transform_15, window_bounds = array<i64: 3, 128, 64>}, {pipeline_mode = #tpu.pipeline_mode<synchronous>, transform_indices = @transform_16, window_bounds = array<i64: 1, 64>}, {pipeline_mode = #tpu.pipeline_mode<synchronous>, transform_indices = @transform_17, window_bounds = array<i64: 3, 64, 64>}, {pipeline_mode = #tpu.pipeline_mode<synchronous>, transform_indices = @transform_18, window_bounds = array<i64: 3, 64, 1>}, {pipeline_mode = #tpu.pipeline_mode<synchronous>, transform_indices = @transform_19, window_bounds = array<i64: 1, 1>}, {pipeline_mode = #tpu.pipeline_mode<synchronous>, transform_indices = @transform_20, window_bounds = array<i64: 3, 64, 1>}, {pipeline_mode = #tpu.pipeline_mode<synchronous>, transform_indices = @transform_21, window_bounds = array<i64: 1, 1>}, {pipeline_mode = #tpu.pipeline_mode<synchronous>, transform_indices = @transform_22, window_bounds = array<i64: 64, 128>}, {pipeline_mode = #tpu.pipeline_mode<synchronous>, transform_indices = @transform_23, window_bounds = array<i64: 32, 64>}, {pipeline_mode = #tpu.pipeline_mode<synchronous>, transform_indices = @transform_24, window_bounds = array<i64: 64, 32>}, {pipeline_mode = #tpu.pipeline_mode<synchronous>, transform_indices = @transform_25, window_bounds = array<i64: 128, 64>}, {transform_indices = @transform_26, window_bounds = array<i64: 1, 32, 1>}, {transform_indices = @transform_27, window_bounds = array<i64: 1, 32, 1>}, {transform_indices = @transform_28, window_bounds = array<i64: 1, 32, 1>}, {transform_indices = @transform_29, window_bounds = array<i64: 1, 128, 1>}, {transform_indices = @transform_30, window_bounds = array<i64: 1, 128, 1>}]} {
    %c0 = arith.constant 0 : index
    %c0_0 = arith.constant 0 : index
    %c0_1 = arith.constant 0 : index
    %0 = vector.load %arg1[%c0, %c0_0, %c0_1] : memref<1x128x1xf32, #tpu.memory_space<vmem>>, vector<1x128x1xf32>
    %1 = vector.shape_cast %0 : vector<1x128x1xf32> to vector<128x1xf32>
    %2 = vector.extract_strided_slice %1 {offsets = [127, 0], sizes = [1, 1], strides = [1, 1]} : vector<128x1xf32> to vector<1x1xf32>
    %3 = vector.extract_strided_slice %1 {offsets = [0, 0], sizes = [127, 1], strides = [1, 1]} : vector<128x1xf32> to vector<127x1xf32>
    %4 = tpu.concatenate %2, %3 in 0 : vector<1x1xf32>, vector<127x1xf32> -> vector<128x1xf32>
    %5 = vector.extract_strided_slice %1 {offsets = [1, 0], sizes = [127, 1], strides = [1, 1]} : vector<128x1xf32> to vector<127x1xf32>
    %6 = vector.extract_strided_slice %1 {offsets = [0, 0], sizes = [1, 1], strides = [1, 1]} : vector<128x1xf32> to vector<1x1xf32>
    %7 = tpu.concatenate %5, %6 in 0 : vector<127x1xf32>, vector<1x1xf32> -> vector<128x1xf32>
    %c0_2 = arith.constant 0 : index
    %c0_3 = arith.constant 0 : index
    %c0_4 = arith.constant 0 : index
    %8 = vector.load %arg3[%c0_2, %c0_3, %c0_4] : memref<3x1x64xf32, #tpu.memory_space<vmem>>, vector<1x1x64xf32>
    %9 = vector.shape_cast %8 : vector<1x1x64xf32> to vector<1x64xf32>
    %10 = vector.broadcast %4 : vector<128x1xf32> to vector<128x64xf32>
    %11 = vector.broadcast %9 : vector<1x64xf32> to vector<128x64xf32>
    %12 = arith.mulf %10, %11 : vector<128x64xf32>
    %c1 = arith.constant 1 : index
    %c0_5 = arith.constant 0 : index
    %c0_6 = arith.constant 0 : index
    %13 = vector.load %arg3[%c1, %c0_5, %c0_6] : memref<3x1x64xf32, #tpu.memory_space<vmem>>, vector<1x1x64xf32>
    %14 = vector.shape_cast %13 : vector<1x1x64xf32> to vector<1x64xf32>
    %15 = vector.broadcast %1 : vector<128x1xf32> to vector<128x64xf32>
    %16 = vector.broadcast %14 : vector<1x64xf32> to vector<128x64xf32>
    %17 = arith.mulf %15, %16 : vector<128x64xf32>
    %18 = arith.addf %12, %17 : vector<128x64xf32>
    %c2 = arith.constant 2 : index
    %c0_7 = arith.constant 0 : index
    %c0_8 = arith.constant 0 : index
    %19 = vector.load %arg3[%c2, %c0_7, %c0_8] : memref<3x1x64xf32, #tpu.memory_space<vmem>>, vector<1x1x64xf32>
    %20 = vector.shape_cast %19 : vector<1x1x64xf32> to vector<1x64xf32>
    %21 = vector.broadcast %7 : vector<128x1xf32> to vector<128x64xf32>
    %22 = vector.broadcast %20 : vector<1x64xf32> to vector<128x64xf32>
    %23 = arith.mulf %21, %22 : vector<128x64xf32>
    %24 = arith.addf %18, %23 : vector<128x64xf32>
    %c0_9 = arith.constant 0 : index
    %c0_10 = arith.constant 0 : index
    %25 = vector.load %arg4[%c0_9, %c0_10] : memref<1x64xf32, #tpu.memory_space<vmem>>, vector<1x64xf32>
    %26 = vector.broadcast %25 : vector<1x64xf32> to vector<128x64xf32>
    %27 = arith.addf %24, %26 : vector<128x64xf32>
    %cst = arith.constant 0.000000e+00 : f32
    %28 = vector.broadcast %cst : f32 to vector<128x64xf32>
    %29 = arith.maximumf %27, %28 : vector<128x64xf32>
    %cst_11 = arith.constant 0.000000e+00 : f32
    %30 = vector.broadcast %cst_11 : f32 to vector<128x64xf32>
    %31 = arith.maximumf %29, %30 : vector<128x64xf32>
    %32 = vector.extract_strided_slice %31 {offsets = [127, 0], sizes = [1, 64], strides = [1, 1]} : vector<128x64xf32> to vector<1x64xf32>
    %33 = vector.extract_strided_slice %31 {offsets = [0, 0], sizes = [127, 64], strides = [1, 1]} : vector<128x64xf32> to vector<127x64xf32>
    %34 = tpu.concatenate %32, %33 in 0 : vector<1x64xf32>, vector<127x64xf32> -> vector<128x64xf32>
    %35 = vector.extract_strided_slice %31 {offsets = [1, 0], sizes = [127, 64], strides = [1, 1]} : vector<128x64xf32> to vector<127x64xf32>
    %36 = vector.extract_strided_slice %31 {offsets = [0, 0], sizes = [1, 64], strides = [1, 1]} : vector<128x64xf32> to vector<1x64xf32>
    %37 = tpu.concatenate %35, %36 in 0 : vector<127x64xf32>, vector<1x64xf32> -> vector<128x64xf32>
    %c0_12 = arith.constant 0 : index
    %c0_13 = arith.constant 0 : index
    %c0_14 = arith.constant 0 : index
    %38 = vector.load %arg5[%c0_12, %c0_13, %c0_14] : memref<3x64x64xf32, #tpu.memory_space<vmem>>, vector<1x64x64xf32>
    %39 = vector.shape_cast %38 : vector<1x64x64xf32> to vector<64x64xf32>
    %cst_15 = arith.constant dense<0.000000e+00> : vector<128x64xf32>
    %40 = tpu.matmul %34, %39, %cst_15 {dimension_numbers = #tpu.dot_dimension_numbers<[1], [0], [0], [1], [0, 0, 1, 1], [], []>} : vector<128x64xf32>, vector<64x64xf32>, vector<128x64xf32> -> vector<128x64xf32>
    %c1_16 = arith.constant 1 : index
    %c0_17 = arith.constant 0 : index
    %c0_18 = arith.constant 0 : index
    %41 = vector.load %arg5[%c1_16, %c0_17, %c0_18] : memref<3x64x64xf32, #tpu.memory_space<vmem>>, vector<1x64x64xf32>
    %42 = vector.shape_cast %41 : vector<1x64x64xf32> to vector<64x64xf32>
    %cst_19 = arith.constant dense<0.000000e+00> : vector<128x64xf32>
    %43 = tpu.matmul %31, %42, %cst_19 {dimension_numbers = #tpu.dot_dimension_numbers<[1], [0], [0], [1], [0, 0, 1, 1], [], []>} : vector<128x64xf32>, vector<64x64xf32>, vector<128x64xf32> -> vector<128x64xf32>
    %44 = arith.addf %40, %43 : vector<128x64xf32>
    %c2_20 = arith.constant 2 : index
    %c0_21 = arith.constant 0 : index
    %c0_22 = arith.constant 0 : index
    %45 = vector.load %arg5[%c2_20, %c0_21, %c0_22] : memref<3x64x64xf32, #tpu.memory_space<vmem>>, vector<1x64x64xf32>
    %46 = vector.shape_cast %45 : vector<1x64x64xf32> to vector<64x64xf32>
    %cst_23 = arith.constant dense<0.000000e+00> : vector<128x64xf32>
    %47 = tpu.matmul %37, %46, %cst_23 {dimension_numbers = #tpu.dot_dimension_numbers<[1], [0], [0], [1], [0, 0, 1, 1], [], []>} : vector<128x64xf32>, vector<64x64xf32>, vector<128x64xf32> -> vector<128x64xf32>
    %48 = arith.addf %44, %47 : vector<128x64xf32>
    %cst_24 = arith.constant 0.000000e+00 : f32
    %49 = vector.broadcast %cst_24 : f32 to vector<128x64xf32>
    %50 = arith.maximumf %48, %49 : vector<128x64xf32>
    %51 = vector.extract_strided_slice %50 {offsets = [1, 0], sizes = [127, 64], strides = [1, 1]} : vector<128x64xf32> to vector<127x64xf32>
    %52 = vector.extract_strided_slice %50 {offsets = [0, 0], sizes = [1, 64], strides = [1, 1]} : vector<128x64xf32> to vector<1x64xf32>
    %53 = tpu.concatenate %51, %52 in 0 : vector<127x64xf32>, vector<1x64xf32> -> vector<128x64xf32>
    %c0_25 = arith.constant 0 : index
    %c0_26 = arith.constant 0 : index
    %54 = vector.load %arg23[%c0_25, %c0_26] : memref<64x128xf32, #tpu.memory_space<vmem>>, vector<64x128xf32>
    %55 = arith.maximumf %50, %53 : vector<128x64xf32>
    %cst_27 = arith.constant dense<0.000000e+00> : vector<64x64xf32>
    %56 = tpu.matmul %54, %55, %cst_27 {dimension_numbers = #tpu.dot_dimension_numbers<[1], [0], [0], [1], [0, 0, 1, 1], [], []>} : vector<64x128xf32>, vector<128x64xf32>, vector<64x64xf32> -> vector<64x64xf32>
    %57 = vector.extract_strided_slice %56 {offsets = [63, 0], sizes = [1, 64], strides = [1, 1]} : vector<64x64xf32> to vector<1x64xf32>
    %58 = vector.extract_strided_slice %56 {offsets = [0, 0], sizes = [63, 64], strides = [1, 1]} : vector<64x64xf32> to vector<63x64xf32>
    %59 = tpu.concatenate %57, %58 in 0 : vector<1x64xf32>, vector<63x64xf32> -> vector<64x64xf32>
    %60 = vector.extract_strided_slice %56 {offsets = [1, 0], sizes = [63, 64], strides = [1, 1]} : vector<64x64xf32> to vector<63x64xf32>
    %61 = vector.extract_strided_slice %56 {offsets = [0, 0], sizes = [1, 64], strides = [1, 1]} : vector<64x64xf32> to vector<1x64xf32>
    %62 = tpu.concatenate %60, %61 in 0 : vector<63x64xf32>, vector<1x64xf32> -> vector<64x64xf32>
    %c0_28 = arith.constant 0 : index
    %c0_29 = arith.constant 0 : index
    %c0_30 = arith.constant 0 : index
    %63 = vector.load %arg6[%c0_28, %c0_29, %c0_30] : memref<3x64x128xf32, #tpu.memory_space<vmem>>, vector<1x64x128xf32>
    %64 = vector.shape_cast %63 : vector<1x64x128xf32> to vector<64x128xf32>
    %cst_31 = arith.constant dense<0.000000e+00> : vector<64x128xf32>
    %65 = tpu.matmul %59, %64, %cst_31 {dimension_numbers = #tpu.dot_dimension_numbers<[1], [0], [0], [1], [0, 0, 1, 1], [], []>} : vector<64x64xf32>, vector<64x128xf32>, vector<64x128xf32> -> vector<64x128xf32>
    %c1_32 = arith.constant 1 : index
    %c0_33 = arith.constant 0 : index
    %c0_34 = arith.constant 0 : index
    %66 = vector.load %arg6[%c1_32, %c0_33, %c0_34] : memref<3x64x128xf32, #tpu.memory_space<vmem>>, vector<1x64x128xf32>
    %67 = vector.shape_cast %66 : vector<1x64x128xf32> to vector<64x128xf32>
    %cst_35 = arith.constant dense<0.000000e+00> : vector<64x128xf32>
    %68 = tpu.matmul %56, %67, %cst_35 {dimension_numbers = #tpu.dot_dimension_numbers<[1], [0], [0], [1], [0, 0, 1, 1], [], []>} : vector<64x64xf32>, vector<64x128xf32>, vector<64x128xf32> -> vector<64x128xf32>
    %69 = arith.addf %65, %68 : vector<64x128xf32>
    %c2_36 = arith.constant 2 : index
    %c0_37 = arith.constant 0 : index
    %c0_38 = arith.constant 0 : index
    %70 = vector.load %arg6[%c2_36, %c0_37, %c0_38] : memref<3x64x128xf32, #tpu.memory_space<vmem>>, vector<1x64x128xf32>
    %71 = vector.shape_cast %70 : vector<1x64x128xf32> to vector<64x128xf32>
    %cst_39 = arith.constant dense<0.000000e+00> : vector<64x128xf32>
    %72 = tpu.matmul %62, %71, %cst_39 {dimension_numbers = #tpu.dot_dimension_numbers<[1], [0], [0], [1], [0, 0, 1, 1], [], []>} : vector<64x64xf32>, vector<64x128xf32>, vector<64x128xf32> -> vector<64x128xf32>
    %73 = arith.addf %69, %72 : vector<64x128xf32>
    %c0_40 = arith.constant 0 : index
    %c0_41 = arith.constant 0 : index
    %74 = vector.load %arg7[%c0_40, %c0_41] : memref<1x128xf32, #tpu.memory_space<vmem>>, vector<1x128xf32>
    %75 = vector.broadcast %74 : vector<1x128xf32> to vector<64x128xf32>
    %76 = arith.addf %73, %75 : vector<64x128xf32>
    %cst_42 = arith.constant 0.000000e+00 : f32
    %77 = vector.broadcast %cst_42 : f32 to vector<64x128xf32>
    %78 = arith.maximumf %76, %77 : vector<64x128xf32>
    %cst_43 = arith.constant 0.000000e+00 : f32
    %79 = vector.broadcast %cst_43 : f32 to vector<64x128xf32>
    %80 = arith.maximumf %78, %79 : vector<64x128xf32>
    %81 = vector.extract_strided_slice %80 {offsets = [63, 0], sizes = [1, 128], strides = [1, 1]} : vector<64x128xf32> to vector<1x128xf32>
    %82 = vector.extract_strided_slice %80 {offsets = [0, 0], sizes = [63, 128], strides = [1, 1]} : vector<64x128xf32> to vector<63x128xf32>
    %83 = tpu.concatenate %81, %82 in 0 : vector<1x128xf32>, vector<63x128xf32> -> vector<64x128xf32>
    %84 = vector.extract_strided_slice %80 {offsets = [1, 0], sizes = [63, 128], strides = [1, 1]} : vector<64x128xf32> to vector<63x128xf32>
    %85 = vector.extract_strided_slice %80 {offsets = [0, 0], sizes = [1, 128], strides = [1, 1]} : vector<64x128xf32> to vector<1x128xf32>
    %86 = tpu.concatenate %84, %85 in 0 : vector<63x128xf32>, vector<1x128xf32> -> vector<64x128xf32>
    %c0_44 = arith.constant 0 : index
    %c0_45 = arith.constant 0 : index
    %c0_46 = arith.constant 0 : index
    %87 = vector.load %arg8[%c0_44, %c0_45, %c0_46] : memref<3x128x128xf32, #tpu.memory_space<vmem>>, vector<1x128x128xf32>
    %88 = vector.shape_cast %87 : vector<1x128x128xf32> to vector<128x128xf32>
    %cst_47 = arith.constant dense<0.000000e+00> : vector<64x128xf32>
    %89 = tpu.matmul %83, %88, %cst_47 {dimension_numbers = #tpu.dot_dimension_numbers<[1], [0], [0], [1], [0, 0, 1, 1], [], []>} : vector<64x128xf32>, vector<128x128xf32>, vector<64x128xf32> -> vector<64x128xf32>
    %c1_48 = arith.constant 1 : index
    %c0_49 = arith.constant 0 : index
    %c0_50 = arith.constant 0 : index
    %90 = vector.load %arg8[%c1_48, %c0_49, %c0_50] : memref<3x128x128xf32, #tpu.memory_space<vmem>>, vector<1x128x128xf32>
    %91 = vector.shape_cast %90 : vector<1x128x128xf32> to vector<128x128xf32>
    %cst_51 = arith.constant dense<0.000000e+00> : vector<64x128xf32>
    %92 = tpu.matmul %80, %91, %cst_51 {dimension_numbers = #tpu.dot_dimension_numbers<[1], [0], [0], [1], [0, 0, 1, 1], [], []>} : vector<64x128xf32>, vector<128x128xf32>, vector<64x128xf32> -> vector<64x128xf32>
    %93 = arith.addf %89, %92 : vector<64x128xf32>
    %c2_52 = arith.constant 2 : index
    %c0_53 = arith.constant 0 : index
    %c0_54 = arith.constant 0 : index
    %94 = vector.load %arg8[%c2_52, %c0_53, %c0_54] : memref<3x128x128xf32, #tpu.memory_space<vmem>>, vector<1x128x128xf32>
    %95 = vector.shape_cast %94 : vector<1x128x128xf32> to vector<128x128xf32>
    %cst_55 = arith.constant dense<0.000000e+00> : vector<64x128xf32>
    %96 = tpu.matmul %86, %95, %cst_55 {dimension_numbers = #tpu.dot_dimension_numbers<[1], [0], [0], [1], [0, 0, 1, 1], [], []>} : vector<64x128xf32>, vector<128x128xf32>, vector<64x128xf32> -> vector<64x128xf32>
    %97 = arith.addf %93, %96 : vector<64x128xf32>
    %cst_56 = arith.constant 0.000000e+00 : f32
    %98 = vector.broadcast %cst_56 : f32 to vector<64x128xf32>
    %99 = arith.maximumf %97, %98 : vector<64x128xf32>
    %100 = vector.extract_strided_slice %99 {offsets = [1, 0], sizes = [63, 128], strides = [1, 1]} : vector<64x128xf32> to vector<63x128xf32>
    %101 = vector.extract_strided_slice %99 {offsets = [0, 0], sizes = [1, 128], strides = [1, 1]} : vector<64x128xf32> to vector<1x128xf32>
    %102 = tpu.concatenate %100, %101 in 0 : vector<63x128xf32>, vector<1x128xf32> -> vector<64x128xf32>
    %c0_57 = arith.constant 0 : index
    %c0_58 = arith.constant 0 : index
    %103 = vector.load %arg24[%c0_57, %c0_58] : memref<32x64xf32, #tpu.memory_space<vmem>>, vector<32x64xf32>
    %104 = arith.maximumf %99, %102 : vector<64x128xf32>
    %cst_59 = arith.constant dense<0.000000e+00> : vector<32x128xf32>
    %105 = tpu.matmul %103, %104, %cst_59 {dimension_numbers = #tpu.dot_dimension_numbers<[1], [0], [0], [1], [0, 0, 1, 1], [], []>} : vector<32x64xf32>, vector<64x128xf32>, vector<32x128xf32> -> vector<32x128xf32>
    %106 = vector.extract_strided_slice %105 {offsets = [31, 0], sizes = [1, 128], strides = [1, 1]} : vector<32x128xf32> to vector<1x128xf32>
    %107 = vector.extract_strided_slice %105 {offsets = [0, 0], sizes = [31, 128], strides = [1, 1]} : vector<32x128xf32> to vector<31x128xf32>
    %108 = tpu.concatenate %106, %107 in 0 : vector<1x128xf32>, vector<31x128xf32> -> vector<32x128xf32>
    %109 = vector.extract_strided_slice %105 {offsets = [1, 0], sizes = [31, 128], strides = [1, 1]} : vector<32x128xf32> to vector<31x128xf32>
    %110 = vector.extract_strided_slice %105 {offsets = [0, 0], sizes = [1, 128], strides = [1, 1]} : vector<32x128xf32> to vector<1x128xf32>
    %111 = tpu.concatenate %109, %110 in 0 : vector<31x128xf32>, vector<1x128xf32> -> vector<32x128xf32>
    %c0_60 = arith.constant 0 : index
    %c0_61 = arith.constant 0 : index
    %c0_62 = arith.constant 0 : index
    %112 = vector.load %arg9[%c0_60, %c0_61, %c0_62] : memref<3x128x1xf32, #tpu.memory_space<vmem>>, vector<1x128x1xf32>
    %113 = vector.shape_cast %112 : vector<1x128x1xf32> to vector<128x1xf32>
    %cst_63 = arith.constant dense<0.000000e+00> : vector<32x1xf32>
    %114 = tpu.matmul %108, %113, %cst_63 {dimension_numbers = #tpu.dot_dimension_numbers<[1], [0], [0], [1], [0, 0, 1, 1], [], []>} : vector<32x128xf32>, vector<128x1xf32>, vector<32x1xf32> -> vector<32x1xf32>
    %c1_64 = arith.constant 1 : index
    %c0_65 = arith.constant 0 : index
    %c0_66 = arith.constant 0 : index
    %115 = vector.load %arg9[%c1_64, %c0_65, %c0_66] : memref<3x128x1xf32, #tpu.memory_space<vmem>>, vector<1x128x1xf32>
    %116 = vector.shape_cast %115 : vector<1x128x1xf32> to vector<128x1xf32>
    %cst_67 = arith.constant dense<0.000000e+00> : vector<32x1xf32>
    %117 = tpu.matmul %105, %116, %cst_67 {dimension_numbers = #tpu.dot_dimension_numbers<[1], [0], [0], [1], [0, 0, 1, 1], [], []>} : vector<32x128xf32>, vector<128x1xf32>, vector<32x1xf32> -> vector<32x1xf32>
    %118 = arith.addf %114, %117 : vector<32x1xf32>
    %c2_68 = arith.constant 2 : index
    %c0_69 = arith.constant 0 : index
    %c0_70 = arith.constant 0 : index
    %119 = vector.load %arg9[%c2_68, %c0_69, %c0_70] : memref<3x128x1xf32, #tpu.memory_space<vmem>>, vector<1x128x1xf32>
    %120 = vector.shape_cast %119 : vector<1x128x1xf32> to vector<128x1xf32>
    %cst_71 = arith.constant dense<0.000000e+00> : vector<32x1xf32>
    %121 = tpu.matmul %111, %120, %cst_71 {dimension_numbers = #tpu.dot_dimension_numbers<[1], [0], [0], [1], [0, 0, 1, 1], [], []>} : vector<32x128xf32>, vector<128x1xf32>, vector<32x1xf32> -> vector<32x1xf32>
    %122 = arith.addf %118, %121 : vector<32x1xf32>
    %c0_72 = arith.constant 0 : index
    %c0_73 = arith.constant 0 : index
    %123 = vector.load %arg10[%c0_72, %c0_73] : memref<1x1xf32, #tpu.memory_space<vmem>>, vector<1x1xf32>
    %124 = vector.broadcast %123 : vector<1x1xf32> to vector<32x1xf32>
    %125 = arith.addf %122, %124 : vector<32x1xf32>
    %cst_74 = arith.constant 0.000000e+00 : f32
    %126 = vector.broadcast %cst_74 : f32 to vector<32x1xf32>
    %127 = arith.maximumf %125, %126 : vector<32x1xf32>
    %128 = vector.extract_strided_slice %105 {offsets = [31, 0], sizes = [1, 128], strides = [1, 1]} : vector<32x128xf32> to vector<1x128xf32>
    %129 = vector.extract_strided_slice %105 {offsets = [0, 0], sizes = [31, 128], strides = [1, 1]} : vector<32x128xf32> to vector<31x128xf32>
    %130 = tpu.concatenate %128, %129 in 0 : vector<1x128xf32>, vector<31x128xf32> -> vector<32x128xf32>
    %131 = vector.extract_strided_slice %105 {offsets = [1, 0], sizes = [31, 128], strides = [1, 1]} : vector<32x128xf32> to vector<31x128xf32>
    %132 = vector.extract_strided_slice %105 {offsets = [0, 0], sizes = [1, 128], strides = [1, 1]} : vector<32x128xf32> to vector<1x128xf32>
    %133 = tpu.concatenate %131, %132 in 0 : vector<31x128xf32>, vector<1x128xf32> -> vector<32x128xf32>
    %c0_75 = arith.constant 0 : index
    %c0_76 = arith.constant 0 : index
    %c0_77 = arith.constant 0 : index
    %134 = vector.load %arg11[%c0_75, %c0_76, %c0_77] : memref<3x128x1xf32, #tpu.memory_space<vmem>>, vector<1x128x1xf32>
    %135 = vector.shape_cast %134 : vector<1x128x1xf32> to vector<128x1xf32>
    %cst_78 = arith.constant dense<0.000000e+00> : vector<32x1xf32>
    %136 = tpu.matmul %130, %135, %cst_78 {dimension_numbers = #tpu.dot_dimension_numbers<[1], [0], [0], [1], [0, 0, 1, 1], [], []>} : vector<32x128xf32>, vector<128x1xf32>, vector<32x1xf32> -> vector<32x1xf32>
    %c1_79 = arith.constant 1 : index
    %c0_80 = arith.constant 0 : index
    %c0_81 = arith.constant 0 : index
    %137 = vector.load %arg11[%c1_79, %c0_80, %c0_81] : memref<3x128x1xf32, #tpu.memory_space<vmem>>, vector<1x128x1xf32>
    %138 = vector.shape_cast %137 : vector<1x128x1xf32> to vector<128x1xf32>
    %cst_82 = arith.constant dense<0.000000e+00> : vector<32x1xf32>
    %139 = tpu.matmul %105, %138, %cst_82 {dimension_numbers = #tpu.dot_dimension_numbers<[1], [0], [0], [1], [0, 0, 1, 1], [], []>} : vector<32x128xf32>, vector<128x1xf32>, vector<32x1xf32> -> vector<32x1xf32>
    %140 = arith.addf %136, %139 : vector<32x1xf32>
    %c2_83 = arith.constant 2 : index
    %c0_84 = arith.constant 0 : index
    %c0_85 = arith.constant 0 : index
    %141 = vector.load %arg11[%c2_83, %c0_84, %c0_85] : memref<3x128x1xf32, #tpu.memory_space<vmem>>, vector<1x128x1xf32>
    %142 = vector.shape_cast %141 : vector<1x128x1xf32> to vector<128x1xf32>
    %cst_86 = arith.constant dense<0.000000e+00> : vector<32x1xf32>
    %143 = tpu.matmul %133, %142, %cst_86 {dimension_numbers = #tpu.dot_dimension_numbers<[1], [0], [0], [1], [0, 0, 1, 1], [], []>} : vector<32x128xf32>, vector<128x1xf32>, vector<32x1xf32> -> vector<32x1xf32>
    %144 = arith.addf %140, %143 : vector<32x1xf32>
    %c0_87 = arith.constant 0 : index
    %c0_88 = arith.constant 0 : index
    %145 = vector.load %arg12[%c0_87, %c0_88] : memref<1x1xf32, #tpu.memory_space<vmem>>, vector<1x1xf32>
    %146 = vector.broadcast %145 : vector<1x1xf32> to vector<32x1xf32>
    %147 = arith.addf %144, %146 : vector<32x1xf32>
    %cst_89 = arith.constant 0.000000e+00 : f32
    %148 = vector.broadcast %cst_89 : f32 to vector<32x1xf32>
    %149 = arith.maximumf %147, %148 : vector<32x1xf32>
    %c0_90 = arith.constant 0 : index
    %c0_91 = arith.constant 0 : index
    %c0_92 = arith.constant 0 : index
    %150 = vector.load %arg27[%c0_90, %c0_91, %c0_92] : memref<1x32x1xf32, #tpu.memory_space<vmem>>, vector<1x32x1xf32>
    %151 = vector.shape_cast %150 : vector<1x32x1xf32> to vector<32x1xf32>
    %152 = vector.shape_cast %127 : vector<32x1xf32> to vector<1x32x1xf32>
    tpu.vector_store %arg27[%c0_90, %c0_91, %c0_92], %152 {strides = array<i32>} : memref<1x32x1xf32, #tpu.memory_space<vmem>>, vector<1x32x1xf32>,
    %c0_93 = arith.constant 0 : index
    %c0_94 = arith.constant 0 : index
    %c0_95 = arith.constant 0 : index
    %153 = vector.load %arg28[%c0_93, %c0_94, %c0_95] : memref<1x32x1xf32, #tpu.memory_space<vmem>>, vector<1x32x1xf32>
    %154 = vector.shape_cast %153 : vector<1x32x1xf32> to vector<32x1xf32>
    %155 = vector.shape_cast %149 : vector<32x1xf32> to vector<1x32x1xf32>
    tpu.vector_store %arg28[%c0_93, %c0_94, %c0_95], %155 {strides = array<i32>} : memref<1x32x1xf32, #tpu.memory_space<vmem>>, vector<1x32x1xf32>,
    %cst_96 = arith.constant 5.000000e-01 : f32
    %156 = vector.broadcast %cst_96 : f32 to vector<32x1xf32>
    %157 = arith.mulf %156, %149 : vector<32x1xf32>
    %158 = math.exp %157 : vector<32x1xf32>
    %c0_97 = arith.constant 0 : index
    %c0_98 = arith.constant 0 : index
    %c0_99 = arith.constant 0 : index
    %159 = vector.load %arg2[%c0_97, %c0_98, %c0_99] : memref<1x32x1xf32, #tpu.memory_space<vmem>>, vector<1x32x1xf32>
    %160 = vector.shape_cast %159 : vector<1x32x1xf32> to vector<32x1xf32>
    %161 = arith.mulf %158, %160 : vector<32x1xf32>
    %162 = arith.addf %127, %161 : vector<32x1xf32>
    %c0_100 = arith.constant 0 : index
    %c0_101 = arith.constant 0 : index
    %c0_102 = arith.constant 0 : index
    %163 = vector.load %arg29[%c0_100, %c0_101, %c0_102] : memref<1x32x1xf32, #tpu.memory_space<vmem>>, vector<1x32x1xf32>
    %164 = vector.shape_cast %163 : vector<1x32x1xf32> to vector<32x1xf32>
    %165 = vector.shape_cast %162 : vector<32x1xf32> to vector<1x32x1xf32>
    tpu.vector_store %arg29[%c0_100, %c0_101, %c0_102], %165 {strides = array<i32>} : memref<1x32x1xf32, #tpu.memory_space<vmem>>, vector<1x32x1xf32>,
    %166 = vector.extract_strided_slice %162 {offsets = [31, 0], sizes = [1, 1], strides = [1, 1]} : vector<32x1xf32> to vector<1x1xf32>
    %167 = vector.extract_strided_slice %162 {offsets = [0, 0], sizes = [31, 1], strides = [1, 1]} : vector<32x1xf32> to vector<31x1xf32>
    %168 = tpu.concatenate %166, %167 in 0 : vector<1x1xf32>, vector<31x1xf32> -> vector<32x1xf32>
    %169 = vector.extract_strided_slice %162 {offsets = [1, 0], sizes = [31, 1], strides = [1, 1]} : vector<32x1xf32> to vector<31x1xf32>
    %170 = vector.extract_strided_slice %162 {offsets = [0, 0], sizes = [1, 1], strides = [1, 1]} : vector<32x1xf32> to vector<1x1xf32>
    %171 = tpu.concatenate %169, %170 in 0 : vector<31x1xf32>, vector<1x1xf32> -> vector<32x1xf32>
    %c0_103 = arith.constant 0 : index
    %c0_104 = arith.constant 0 : index
    %c0_105 = arith.constant 0 : index
    %172 = vector.load %arg13[%c0_103, %c0_104, %c0_105] : memref<3x1x128xf32, #tpu.memory_space<vmem>>, vector<1x1x128xf32>
    %173 = vector.shape_cast %172 : vector<1x1x128xf32> to vector<1x128xf32>
    %174 = vector.broadcast %168 : vector<32x1xf32> to vector<32x128xf32>
    %175 = vector.broadcast %173 : vector<1x128xf32> to vector<32x128xf32>
    %176 = arith.mulf %174, %175 : vector<32x128xf32>
    %c1_106 = arith.constant 1 : index
    %c0_107 = arith.constant 0 : index
    %c0_108 = arith.constant 0 : index
    %177 = vector.load %arg13[%c1_106, %c0_107, %c0_108] : memref<3x1x128xf32, #tpu.memory_space<vmem>>, vector<1x1x128xf32>
    %178 = vector.shape_cast %177 : vector<1x1x128xf32> to vector<1x128xf32>
    %179 = vector.broadcast %162 : vector<32x1xf32> to vector<32x128xf32>
    %180 = vector.broadcast %178 : vector<1x128xf32> to vector<32x128xf32>
    %181 = arith.mulf %179, %180 : vector<32x128xf32>
    %182 = arith.addf %176, %181 : vector<32x128xf32>
    %c2_109 = arith.constant 2 : index
    %c0_110 = arith.constant 0 : index
    %c0_111 = arith.constant 0 : index
    %183 = vector.load %arg13[%c2_109, %c0_110, %c0_111] : memref<3x1x128xf32, #tpu.memory_space<vmem>>, vector<1x1x128xf32>
    %184 = vector.shape_cast %183 : vector<1x1x128xf32> to vector<1x128xf32>
    %185 = vector.broadcast %171 : vector<32x1xf32> to vector<32x128xf32>
    %186 = vector.broadcast %184 : vector<1x128xf32> to vector<32x128xf32>
    %187 = arith.mulf %185, %186 : vector<32x128xf32>
    %188 = arith.addf %182, %187 : vector<32x128xf32>
    %c0_112 = arith.constant 0 : index
    %c0_113 = arith.constant 0 : index
    %189 = vector.load %arg14[%c0_112, %c0_113] : memref<1x128xf32, #tpu.memory_space<vmem>>, vector<1x128xf32>
    %190 = vector.broadcast %189 : vector<1x128xf32> to vector<32x128xf32>
    %191 = arith.addf %188, %190 : vector<32x128xf32>
    %cst_114 = arith.constant 0.000000e+00 : f32
    %192 = vector.broadcast %cst_114 : f32 to vector<32x128xf32>
    %193 = arith.maximumf %191, %192 : vector<32x128xf32>
    %c0_115 = arith.constant 0 : index
    %c0_116 = arith.constant 0 : index
    %194 = vector.load %arg25[%c0_115, %c0_116] : memref<64x32xf32, #tpu.memory_space<vmem>>, vector<64x32xf32>
    %cst_117 = arith.constant 0.000000e+00 : f32
    %195 = vector.broadcast %cst_117 : f32 to vector<32x128xf32>
    %196 = arith.maximumf %193, %195 : vector<32x128xf32>
    %197 = vector.extract_strided_slice %196 {offsets = [31, 0], sizes = [1, 128], strides = [1, 1]} : vector<32x128xf32> to vector<1x128xf32>
    %198 = vector.extract_strided_slice %196 {offsets = [0, 0], sizes = [31, 128], strides = [1, 1]} : vector<32x128xf32> to vector<31x128xf32>
    %199 = tpu.concatenate %197, %198 in 0 : vector<1x128xf32>, vector<31x128xf32> -> vector<32x128xf32>
    %200 = vector.extract_strided_slice %196 {offsets = [1, 0], sizes = [31, 128], strides = [1, 1]} : vector<32x128xf32> to vector<31x128xf32>
    %201 = vector.extract_strided_slice %196 {offsets = [0, 0], sizes = [1, 128], strides = [1, 1]} : vector<32x128xf32> to vector<1x128xf32>
    %202 = tpu.concatenate %200, %201 in 0 : vector<31x128xf32>, vector<1x128xf32> -> vector<32x128xf32>
    %c0_118 = arith.constant 0 : index
    %c0_119 = arith.constant 0 : index
    %c0_120 = arith.constant 0 : index
    %203 = vector.load %arg15[%c0_118, %c0_119, %c0_120] : memref<3x128x128xf32, #tpu.memory_space<vmem>>, vector<1x128x128xf32>
    %204 = vector.shape_cast %203 : vector<1x128x128xf32> to vector<128x128xf32>
    %cst_121 = arith.constant dense<0.000000e+00> : vector<32x128xf32>
    %205 = tpu.matmul %199, %204, %cst_121 {dimension_numbers = #tpu.dot_dimension_numbers<[1], [0], [0], [1], [0, 0, 1, 1], [], []>} : vector<32x128xf32>, vector<128x128xf32>, vector<32x128xf32> -> vector<32x128xf32>
    %c1_122 = arith.constant 1 : index
    %c0_123 = arith.constant 0 : index
    %c0_124 = arith.constant 0 : index
    %206 = vector.load %arg15[%c1_122, %c0_123, %c0_124] : memref<3x128x128xf32, #tpu.memory_space<vmem>>, vector<1x128x128xf32>
    %207 = vector.shape_cast %206 : vector<1x128x128xf32> to vector<128x128xf32>
    %cst_125 = arith.constant dense<0.000000e+00> : vector<32x128xf32>
    %208 = tpu.matmul %196, %207, %cst_125 {dimension_numbers = #tpu.dot_dimension_numbers<[1], [0], [0], [1], [0, 0, 1, 1], [], []>} : vector<32x128xf32>, vector<128x128xf32>, vector<32x128xf32> -> vector<32x128xf32>
    %209 = arith.addf %205, %208 : vector<32x128xf32>
    %c2_126 = arith.constant 2 : index
    %c0_127 = arith.constant 0 : index
    %c0_128 = arith.constant 0 : index
    %210 = vector.load %arg15[%c2_126, %c0_127, %c0_128] : memref<3x128x128xf32, #tpu.memory_space<vmem>>, vector<1x128x128xf32>
    %211 = vector.shape_cast %210 : vector<1x128x128xf32> to vector<128x128xf32>
    %cst_129 = arith.constant dense<0.000000e+00> : vector<32x128xf32>
    %212 = tpu.matmul %202, %211, %cst_129 {dimension_numbers = #tpu.dot_dimension_numbers<[1], [0], [0], [1], [0, 0, 1, 1], [], []>} : vector<32x128xf32>, vector<128x128xf32>, vector<32x128xf32> -> vector<32x128xf32>
    %213 = arith.addf %209, %212 : vector<32x128xf32>
    %cst_130 = arith.constant 0.000000e+00 : f32
    %214 = vector.broadcast %cst_130 : f32 to vector<32x128xf32>
    %215 = arith.maximumf %213, %214 : vector<32x128xf32>
    %cst_131 = arith.constant dense<0.000000e+00> : vector<64x128xf32>
    %216 = tpu.matmul %194, %215, %cst_131 {dimension_numbers = #tpu.dot_dimension_numbers<[1], [0], [0], [1], [0, 0, 1, 1], [], []>} : vector<64x32xf32>, vector<32x128xf32>, vector<64x128xf32> -> vector<64x128xf32>
    %217 = vector.extract_strided_slice %216 {offsets = [63, 0], sizes = [1, 128], strides = [1, 1]} : vector<64x128xf32> to vector<1x128xf32>
    %218 = vector.extract_strided_slice %216 {offsets = [0, 0], sizes = [63, 128], strides = [1, 1]} : vector<64x128xf32> to vector<63x128xf32>
    %219 = tpu.concatenate %217, %218 in 0 : vector<1x128xf32>, vector<63x128xf32> -> vector<64x128xf32>
    %220 = vector.extract_strided_slice %216 {offsets = [1, 0], sizes = [63, 128], strides = [1, 1]} : vector<64x128xf32> to vector<63x128xf32>
    %221 = vector.extract_strided_slice %216 {offsets = [0, 0], sizes = [1, 128], strides = [1, 1]} : vector<64x128xf32> to vector<1x128xf32>
    %222 = tpu.concatenate %220, %221 in 0 : vector<63x128xf32>, vector<1x128xf32> -> vector<64x128xf32>
    %c0_132 = arith.constant 0 : index
    %c0_133 = arith.constant 0 : index
    %c0_134 = arith.constant 0 : index
    %223 = vector.load %arg16[%c0_132, %c0_133, %c0_134] : memref<3x128x64xf32, #tpu.memory_space<vmem>>, vector<1x128x64xf32>
    %224 = vector.shape_cast %223 : vector<1x128x64xf32> to vector<128x64xf32>
    %cst_135 = arith.constant dense<0.000000e+00> : vector<64x64xf32>
    %225 = tpu.matmul %219, %224, %cst_135 {dimension_numbers = #tpu.dot_dimension_numbers<[1], [0], [0], [1], [0, 0, 1, 1], [], []>} : vector<64x128xf32>, vector<128x64xf32>, vector<64x64xf32> -> vector<64x64xf32>
    %c1_136 = arith.constant 1 : index
    %c0_137 = arith.constant 0 : index
    %c0_138 = arith.constant 0 : index
    %226 = vector.load %arg16[%c1_136, %c0_137, %c0_138] : memref<3x128x64xf32, #tpu.memory_space<vmem>>, vector<1x128x64xf32>
    %227 = vector.shape_cast %226 : vector<1x128x64xf32> to vector<128x64xf32>
    %cst_139 = arith.constant dense<0.000000e+00> : vector<64x64xf32>
    %228 = tpu.matmul %216, %227, %cst_139 {dimension_numbers = #tpu.dot_dimension_numbers<[1], [0], [0], [1], [0, 0, 1, 1], [], []>} : vector<64x128xf32>, vector<128x64xf32>, vector<64x64xf32> -> vector<64x64xf32>
    %229 = arith.addf %225, %228 : vector<64x64xf32>
    %c2_140 = arith.constant 2 : index
    %c0_141 = arith.constant 0 : index
    %c0_142 = arith.constant 0 : index
    %230 = vector.load %arg16[%c2_140, %c0_141, %c0_142] : memref<3x128x64xf32, #tpu.memory_space<vmem>>, vector<1x128x64xf32>
    %231 = vector.shape_cast %230 : vector<1x128x64xf32> to vector<128x64xf32>
    %cst_143 = arith.constant dense<0.000000e+00> : vector<64x64xf32>
    %232 = tpu.matmul %222, %231, %cst_143 {dimension_numbers = #tpu.dot_dimension_numbers<[1], [0], [0], [1], [0, 0, 1, 1], [], []>} : vector<64x128xf32>, vector<128x64xf32>, vector<64x64xf32> -> vector<64x64xf32>
    %233 = arith.addf %229, %232 : vector<64x64xf32>
    %c0_144 = arith.constant 0 : index
    %c0_145 = arith.constant 0 : index
    %234 = vector.load %arg17[%c0_144, %c0_145] : memref<1x64xf32, #tpu.memory_space<vmem>>, vector<1x64xf32>
    %235 = vector.broadcast %234 : vector<1x64xf32> to vector<64x64xf32>
    %236 = arith.addf %233, %235 : vector<64x64xf32>
    %cst_146 = arith.constant 0.000000e+00 : f32
    %237 = vector.broadcast %cst_146 : f32 to vector<64x64xf32>
    %238 = arith.maximumf %236, %237 : vector<64x64xf32>
    %c0_147 = arith.constant 0 : index
    %c0_148 = arith.constant 0 : index
    %239 = vector.load %arg26[%c0_147, %c0_148] : memref<128x64xf32, #tpu.memory_space<vmem>>, vector<128x64xf32>
    %cst_149 = arith.constant 0.000000e+00 : f32
    %240 = vector.broadcast %cst_149 : f32 to vector<64x64xf32>
    %241 = arith.maximumf %238, %240 : vector<64x64xf32>
    %242 = vector.extract_strided_slice %241 {offsets = [63, 0], sizes = [1, 64], strides = [1, 1]} : vector<64x64xf32> to vector<1x64xf32>
    %243 = vector.extract_strided_slice %241 {offsets = [0, 0], sizes = [63, 64], strides = [1, 1]} : vector<64x64xf32> to vector<63x64xf32>
    %244 = tpu.concatenate %242, %243 in 0 : vector<1x64xf32>, vector<63x64xf32> -> vector<64x64xf32>
    %245 = vector.extract_strided_slice %241 {offsets = [1, 0], sizes = [63, 64], strides = [1, 1]} : vector<64x64xf32> to vector<63x64xf32>
    %246 = vector.extract_strided_slice %241 {offsets = [0, 0], sizes = [1, 64], strides = [1, 1]} : vector<64x64xf32> to vector<1x64xf32>
    %247 = tpu.concatenate %245, %246 in 0 : vector<63x64xf32>, vector<1x64xf32> -> vector<64x64xf32>
    %c0_150 = arith.constant 0 : index
    %c0_151 = arith.constant 0 : index
    %c0_152 = arith.constant 0 : index
    %248 = vector.load %arg18[%c0_150, %c0_151, %c0_152] : memref<3x64x64xf32, #tpu.memory_space<vmem>>, vector<1x64x64xf32>
    %249 = vector.shape_cast %248 : vector<1x64x64xf32> to vector<64x64xf32>
    %cst_153 = arith.constant dense<0.000000e+00> : vector<64x64xf32>
    %250 = tpu.matmul %244, %249, %cst_153 {dimension_numbers = #tpu.dot_dimension_numbers<[1], [0], [0], [1], [0, 0, 1, 1], [], []>} : vector<64x64xf32>, vector<64x64xf32>, vector<64x64xf32> -> vector<64x64xf32>
    %c1_154 = arith.constant 1 : index
    %c0_155 = arith.constant 0 : index
    %c0_156 = arith.constant 0 : index
    %251 = vector.load %arg18[%c1_154, %c0_155, %c0_156] : memref<3x64x64xf32, #tpu.memory_space<vmem>>, vector<1x64x64xf32>
    %252 = vector.shape_cast %251 : vector<1x64x64xf32> to vector<64x64xf32>
    %cst_157 = arith.constant dense<0.000000e+00> : vector<64x64xf32>
    %253 = tpu.matmul %241, %252, %cst_157 {dimension_numbers = #tpu.dot_dimension_numbers<[1], [0], [0], [1], [0, 0, 1, 1], [], []>} : vector<64x64xf32>, vector<64x64xf32>, vector<64x64xf32> -> vector<64x64xf32>
    %254 = arith.addf %250, %253 : vector<64x64xf32>
    %c2_158 = arith.constant 2 : index
    %c0_159 = arith.constant 0 : index
    %c0_160 = arith.constant 0 : index
    %255 = vector.load %arg18[%c2_158, %c0_159, %c0_160] : memref<3x64x64xf32, #tpu.memory_space<vmem>>, vector<1x64x64xf32>
    %256 = vector.shape_cast %255 : vector<1x64x64xf32> to vector<64x64xf32>
    %cst_161 = arith.constant dense<0.000000e+00> : vector<64x64xf32>
    %257 = tpu.matmul %247, %256, %cst_161 {dimension_numbers = #tpu.dot_dimension_numbers<[1], [0], [0], [1], [0, 0, 1, 1], [], []>} : vector<64x64xf32>, vector<64x64xf32>, vector<64x64xf32> -> vector<64x64xf32>
    %258 = arith.addf %254, %257 : vector<64x64xf32>
    %cst_162 = arith.constant 0.000000e+00 : f32
    %259 = vector.broadcast %cst_162 : f32 to vector<64x64xf32>
    %260 = arith.maximumf %258, %259 : vector<64x64xf32>
    %cst_163 = arith.constant dense<0.000000e+00> : vector<128x64xf32>
    %261 = tpu.matmul %239, %260, %cst_163 {dimension_numbers = #tpu.dot_dimension_numbers<[1], [0], [0], [1], [0, 0, 1, 1], [], []>} : vector<128x64xf32>, vector<64x64xf32>, vector<128x64xf32> -> vector<128x64xf32>
    %262 = vector.extract_strided_slice %261 {offsets = [127, 0], sizes = [1, 64], strides = [1, 1]} : vector<128x64xf32> to vector<1x64xf32>
    %263 = vector.extract_strided_slice %261 {offsets = [0, 0], sizes = [127, 64], strides = [1, 1]} : vector<128x64xf32> to vector<127x64xf32>
    %264 = tpu.concatenate %262, %263 in 0 : vector<1x64xf32>, vector<127x64xf32> -> vector<128x64xf32>
    %265 = vector.extract_strided_slice %261 {offsets = [1, 0], sizes = [127, 64], strides = [1, 1]} : vector<128x64xf32> to vector<127x64xf32>
    %266 = vector.extract_strided_slice %261 {offsets = [0, 0], sizes = [1, 64], strides = [1, 1]} : vector<128x64xf32> to vector<1x64xf32>
    %267 = tpu.concatenate %265, %266 in 0 : vector<127x64xf32>, vector<1x64xf32> -> vector<128x64xf32>
    %c0_164 = arith.constant 0 : index
    %c0_165 = arith.constant 0 : index
    %c0_166 = arith.constant 0 : index
    %268 = vector.load %arg19[%c0_164, %c0_165, %c0_166] : memref<3x64x1xf32, #tpu.memory_space<vmem>>, vector<1x64x1xf32>
    %269 = vector.shape_cast %268 : vector<1x64x1xf32> to vector<64x1xf32>
    %cst_167 = arith.constant dense<0.000000e+00> : vector<128x1xf32>
    %270 = tpu.matmul %264, %269, %cst_167 {dimension_numbers = #tpu.dot_dimension_numbers<[1], [0], [0], [1], [0, 0, 1, 1], [], []>} : vector<128x64xf32>, vector<64x1xf32>, vector<128x1xf32> -> vector<128x1xf32>
    %c1_168 = arith.constant 1 : index
    %c0_169 = arith.constant 0 : index
    %c0_170 = arith.constant 0 : index
    %271 = vector.load %arg19[%c1_168, %c0_169, %c0_170] : memref<3x64x1xf32, #tpu.memory_space<vmem>>, vector<1x64x1xf32>
    %272 = vector.shape_cast %271 : vector<1x64x1xf32> to vector<64x1xf32>
    %cst_171 = arith.constant dense<0.000000e+00> : vector<128x1xf32>
    %273 = tpu.matmul %261, %272, %cst_171 {dimension_numbers = #tpu.dot_dimension_numbers<[1], [0], [0], [1], [0, 0, 1, 1], [], []>} : vector<128x64xf32>, vector<64x1xf32>, vector<128x1xf32> -> vector<128x1xf32>
    %274 = arith.addf %270, %273 : vector<128x1xf32>
    %c2_172 = arith.constant 2 : index
    %c0_173 = arith.constant 0 : index
    %c0_174 = arith.constant 0 : index
    %275 = vector.load %arg19[%c2_172, %c0_173, %c0_174] : memref<3x64x1xf32, #tpu.memory_space<vmem>>, vector<1x64x1xf32>
    %276 = vector.shape_cast %275 : vector<1x64x1xf32> to vector<64x1xf32>
    %cst_175 = arith.constant dense<0.000000e+00> : vector<128x1xf32>
    %277 = tpu.matmul %267, %276, %cst_175 {dimension_numbers = #tpu.dot_dimension_numbers<[1], [0], [0], [1], [0, 0, 1, 1], [], []>} : vector<128x64xf32>, vector<64x1xf32>, vector<128x1xf32> -> vector<128x1xf32>
    %278 = arith.addf %274, %277 : vector<128x1xf32>
    %c0_176 = arith.constant 0 : index
    %c0_177 = arith.constant 0 : index
    %279 = vector.load %arg20[%c0_176, %c0_177] : memref<1x1xf32, #tpu.memory_space<vmem>>, vector<1x1xf32>
    %280 = vector.broadcast %279 : vector<1x1xf32> to vector<128x1xf32>
    %281 = arith.addf %278, %280 : vector<128x1xf32>
    %cst_178 = arith.constant 0.000000e+00 : f32
    %282 = vector.broadcast %cst_178 : f32 to vector<128x1xf32>
    %283 = arith.maximumf %281, %282 : vector<128x1xf32>
    %c0_179 = arith.constant 0 : index
    %c0_180 = arith.constant 0 : index
    %c0_181 = arith.constant 0 : index
    %284 = vector.load %arg30[%c0_179, %c0_180, %c0_181] : memref<1x128x1xf32, #tpu.memory_space<vmem>>, vector<1x128x1xf32>
    %285 = vector.shape_cast %284 : vector<1x128x1xf32> to vector<128x1xf32>
    %286 = vector.shape_cast %283 : vector<128x1xf32> to vector<1x128x1xf32>
    tpu.vector_store %arg30[%c0_179, %c0_180, %c0_181], %286 {strides = array<i32>} : memref<1x128x1xf32, #tpu.memory_space<vmem>>, vector<1x128x1xf32>,
    %287 = vector.extract_strided_slice %261 {offsets = [127, 0], sizes = [1, 64], strides = [1, 1]} : vector<128x64xf32> to vector<1x64xf32>
    %288 = vector.extract_strided_slice %261 {offsets = [0, 0], sizes = [127, 64], strides = [1, 1]} : vector<128x64xf32> to vector<127x64xf32>
    %289 = tpu.concatenate %287, %288 in 0 : vector<1x64xf32>, vector<127x64xf32> -> vector<128x64xf32>
    %290 = vector.extract_strided_slice %261 {offsets = [1, 0], sizes = [127, 64], strides = [1, 1]} : vector<128x64xf32> to vector<127x64xf32>
    %291 = vector.extract_strided_slice %261 {offsets = [0, 0], sizes = [1, 64], strides = [1, 1]} : vector<128x64xf32> to vector<1x64xf32>
    %292 = tpu.concatenate %290, %291 in 0 : vector<127x64xf32>, vector<1x64xf32> -> vector<128x64xf32>
    %c0_182 = arith.constant 0 : index
    %c0_183 = arith.constant 0 : index
    %c0_184 = arith.constant 0 : index
    %293 = vector.load %arg21[%c0_182, %c0_183, %c0_184] : memref<3x64x1xf32, #tpu.memory_space<vmem>>, vector<1x64x1xf32>
    %294 = vector.shape_cast %293 : vector<1x64x1xf32> to vector<64x1xf32>
    %cst_185 = arith.constant dense<0.000000e+00> : vector<128x1xf32>
    %295 = tpu.matmul %289, %294, %cst_185 {dimension_numbers = #tpu.dot_dimension_numbers<[1], [0], [0], [1], [0, 0, 1, 1], [], []>} : vector<128x64xf32>, vector<64x1xf32>, vector<128x1xf32> -> vector<128x1xf32>
    %c1_186 = arith.constant 1 : index
    %c0_187 = arith.constant 0 : index
    %c0_188 = arith.constant 0 : index
    %296 = vector.load %arg21[%c1_186, %c0_187, %c0_188] : memref<3x64x1xf32, #tpu.memory_space<vmem>>, vector<1x64x1xf32>
    %297 = vector.shape_cast %296 : vector<1x64x1xf32> to vector<64x1xf32>
    %cst_189 = arith.constant dense<0.000000e+00> : vector<128x1xf32>
    %298 = tpu.matmul %261, %297, %cst_189 {dimension_numbers = #tpu.dot_dimension_numbers<[1], [0], [0], [1], [0, 0, 1, 1], [], []>} : vector<128x64xf32>, vector<64x1xf32>, vector<128x1xf32> -> vector<128x1xf32>
    %299 = arith.addf %295, %298 : vector<128x1xf32>
    %c2_190 = arith.constant 2 : index
    %c0_191 = arith.constant 0 : index
    %c0_192 = arith.constant 0 : index
    %300 = vector.load %arg21[%c2_190, %c0_191, %c0_192] : memref<3x64x1xf32, #tpu.memory_space<vmem>>, vector<1x64x1xf32>
    %301 = vector.shape_cast %300 : vector<1x64x1xf32> to vector<64x1xf32>
    %cst_193 = arith.constant dense<0.000000e+00> : vector<128x1xf32>
    %302 = tpu.matmul %292, %301, %cst_193 {dimension_numbers = #tpu.dot_dimension_numbers<[1], [0], [0], [1], [0, 0, 1, 1], [], []>} : vector<128x64xf32>, vector<64x1xf32>, vector<128x1xf32> -> vector<128x1xf32>
    %303 = arith.addf %299, %302 : vector<128x1xf32>
    %c0_194 = arith.constant 0 : index
    %c0_195 = arith.constant 0 : index
    %304 = vector.load %arg22[%c0_194, %c0_195] : memref<1x1xf32, #tpu.memory_space<vmem>>, vector<1x1xf32>
    %305 = vector.broadcast %304 : vector<1x1xf32> to vector<128x1xf32>
    %306 = arith.addf %303, %305 : vector<128x1xf32>
    %cst_196 = arith.constant 0.000000e+00 : f32
    %307 = vector.broadcast %cst_196 : f32 to vector<128x1xf32>
    %308 = arith.maximumf %306, %307 : vector<128x1xf32>
    %c0_197 = arith.constant 0 : index
    %c0_198 = arith.constant 0 : index
    %c0_199 = arith.constant 0 : index
    %309 = vector.load %arg31[%c0_197, %c0_198, %c0_199] : memref<1x128x1xf32, #tpu.memory_space<vmem>>, vector<1x128x1xf32>
    %310 = vector.shape_cast %309 : vector<1x128x1xf32> to vector<128x1xf32>
    %311 = vector.shape_cast %308 : vector<128x1xf32> to vector<1x128x1xf32>
    tpu.vector_store %arg31[%c0_197, %c0_198, %c0_199], %311 {strides = array<i32>} : memref<1x128x1xf32, #tpu.memory_space<vmem>>, vector<1x128x1xf32>,
    return
  }
  func.func @transform_0(%arg0: i32) -> (i32, i32, i32) {
    %c0_i32 = arith.constant 0 : i32
    %c0_i32_0 = arith.constant 0 : i32
    %c0_i32_1 = arith.constant 0 : i32
    return %arg0, %c0_i32, %c0_i32_0 : i32, i32, i32
  }
  func.func @transform_1(%arg0: i32) -> (i32, i32, i32) {
    %c0_i32 = arith.constant 0 : i32
    %c0_i32_0 = arith.constant 0 : i32
    %c0_i32_1 = arith.constant 0 : i32
    return %arg0, %c0_i32, %c0_i32_0 : i32, i32, i32
  }
  func.func @transform_2(%arg0: i32) -> (i32, i32, i32) {
    %c0_i32 = arith.constant 0 : i32
    %c0_i32_0 = arith.constant 0 : i32
    %c0_i32_1 = arith.constant 0 : i32
    %c0_i32_2 = arith.constant 0 : i32
    return %c0_i32, %c0_i32_0, %c0_i32_1 : i32, i32, i32
  }
  func.func @transform_3(%arg0: i32) -> (i32, i32) {
    %c0_i32 = arith.constant 0 : i32
    %c0_i32_0 = arith.constant 0 : i32
    %c0_i32_1 = arith.constant 0 : i32
    return %c0_i32, %c0_i32_0 : i32, i32
  }
  func.func @transform_4(%arg0: i32) -> (i32, i32, i32) {
    %c0_i32 = arith.constant 0 : i32
    %c0_i32_0 = arith.constant 0 : i32
    %c0_i32_1 = arith.constant 0 : i32
    %c0_i32_2 = arith.constant 0 : i32
    return %c0_i32, %c0_i32_0, %c0_i32_1 : i32, i32, i32
  }
  func.func @transform_5(%arg0: i32) -> (i32, i32, i32) {
    %c0_i32 = arith.constant 0 : i32
    %c0_i32_0 = arith.constant 0 : i32
    %c0_i32_1 = arith.constant 0 : i32
    %c0_i32_2 = arith.constant 0 : i32
    return %c0_i32, %c0_i32_0, %c0_i32_1 : i32, i32, i32
  }
  func.func @transform_6(%arg0: i32) -> (i32, i32) {
    %c0_i32 = arith.constant 0 : i32
    %c0_i32_0 = arith.constant 0 : i32
    %c0_i32_1 = arith.constant 0 : i32
    return %c0_i32, %c0_i32_0 : i32, i32
  }
  func.func @transform_7(%arg0: i32) -> (i32, i32, i32) {
    %c0_i32 = arith.constant 0 : i32
    %c0_i32_0 = arith.constant 0 : i32
    %c0_i32_1 = arith.constant 0 : i32
    %c0_i32_2 = arith.constant 0 : i32
    return %c0_i32, %c0_i32_0, %c0_i32_1 : i32, i32, i32
  }
  func.func @transform_8(%arg0: i32) -> (i32, i32, i32) {
    %c0_i32 = arith.constant 0 : i32
    %c0_i32_0 = arith.constant 0 : i32
    %c0_i32_1 = arith.constant 0 : i32
    %c0_i32_2 = arith.constant 0 : i32
    return %c0_i32, %c0_i32_0, %c0_i32_1 : i32, i32, i32
  }
  func.func @transform_9(%arg0: i32) -> (i32, i32) {
    %c0_i32 = arith.constant 0 : i32
    %c0_i32_0 = arith.constant 0 : i32
    %c0_i32_1 = arith.constant 0 : i32
    return %c0_i32, %c0_i32_0 : i32, i32
  }
  func.func @transform_10(%arg0: i32) -> (i32, i32, i32) {
    %c0_i32 = arith.constant 0 : i32
    %c0_i32_0 = arith.constant 0 : i32
    %c0_i32_1 = arith.constant 0 : i32
    %c0_i32_2 = arith.constant 0 : i32
    return %c0_i32, %c0_i32_0, %c0_i32_1 : i32, i32, i32
  }
  func.func @transform_11(%arg0: i32) -> (i32, i32) {
    %c0_i32 = arith.constant 0 : i32
    %c0_i32_0 = arith.constant 0 : i32
    %c0_i32_1 = arith.constant 0 : i32
    return %c0_i32, %c0_i32_0 : i32, i32
  }
  func.func @transform_12(%arg0: i32) -> (i32, i32, i32) {
    %c0_i32 = arith.constant 0 : i32
    %c0_i32_0 = arith.constant 0 : i32
    %c0_i32_1 = arith.constant 0 : i32
    %c0_i32_2 = arith.constant 0 : i32
    return %c0_i32, %c0_i32_0, %c0_i32_1 : i32, i32, i32
  }
  func.func @transform_13(%arg0: i32) -> (i32, i32) {
    %c0_i32 = arith.constant 0 : i32
    %c0_i32_0 = arith.constant 0 : i32
    %c0_i32_1 = arith.constant 0 : i32
    return %c0_i32, %c0_i32_0 : i32, i32
  }
  func.func @transform_14(%arg0: i32) -> (i32, i32, i32) {
    %c0_i32 = arith.constant 0 : i32
    %c0_i32_0 = arith.constant 0 : i32
    %c0_i32_1 = arith.constant 0 : i32
    %c0_i32_2 = arith.constant 0 : i32
    return %c0_i32, %c0_i32_0, %c0_i32_1 : i32, i32, i32
  }
  func.func @transform_15(%arg0: i32) -> (i32, i32, i32) {
    %c0_i32 = arith.constant 0 : i32
    %c0_i32_0 = arith.constant 0 : i32
    %c0_i32_1 = arith.constant 0 : i32
    %c0_i32_2 = arith.constant 0 : i32
    return %c0_i32, %c0_i32_0, %c0_i32_1 : i32, i32, i32
  }
  func.func @transform_16(%arg0: i32) -> (i32, i32) {
    %c0_i32 = arith.constant 0 : i32
    %c0_i32_0 = arith.constant 0 : i32
    %c0_i32_1 = arith.constant 0 : i32
    return %c0_i32, %c0_i32_0 : i32, i32
  }
  func.func @transform_17(%arg0: i32) -> (i32, i32, i32) {
    %c0_i32 = arith.constant 0 : i32
    %c0_i32_0 = arith.constant 0 : i32
    %c0_i32_1 = arith.constant 0 : i32
    %c0_i32_2 = arith.constant 0 : i32
    return %c0_i32, %c0_i32_0, %c0_i32_1 : i32, i32, i32
  }
  func.func @transform_18(%arg0: i32) -> (i32, i32, i32) {
    %c0_i32 = arith.constant 0 : i32
    %c0_i32_0 = arith.constant 0 : i32
    %c0_i32_1 = arith.constant 0 : i32
    %c0_i32_2 = arith.constant 0 : i32
    return %c0_i32, %c0_i32_0, %c0_i32_1 : i32, i32, i32
  }
  func.func @transform_19(%arg0: i32) -> (i32, i32) {
    %c0_i32 = arith.constant 0 : i32
    %c0_i32_0 = arith.constant 0 : i32
    %c0_i32_1 = arith.constant 0 : i32
    return %c0_i32, %c0_i32_0 : i32, i32
  }
  func.func @transform_20(%arg0: i32) -> (i32, i32, i32) {
    %c0_i32 = arith.constant 0 : i32
    %c0_i32_0 = arith.constant 0 : i32
    %c0_i32_1 = arith.constant 0 : i32
    %c0_i32_2 = arith.constant 0 : i32
    return %c0_i32, %c0_i32_0, %c0_i32_1 : i32, i32, i32
  }
  func.func @transform_21(%arg0: i32) -> (i32, i32) {
    %c0_i32 = arith.constant 0 : i32
    %c0_i32_0 = arith.constant 0 : i32
    %c0_i32_1 = arith.constant 0 : i32
    return %c0_i32, %c0_i32_0 : i32, i32
  }
  func.func @transform_22(%arg0: i32) -> (i32, i32) {
    %c0_i32 = arith.constant 0 : i32
    %c0_i32_0 = arith.constant 0 : i32
    %c0_i32_1 = arith.constant 0 : i32
    return %c0_i32, %c0_i32_0 : i32, i32
  }
  func.func @transform_23(%arg0: i32) -> (i32, i32) {
    %c0_i32 = arith.constant 0 : i32
    %c0_i32_0 = arith.constant 0 : i32
    %c0_i32_1 = arith.constant 0 : i32
    return %c0_i32, %c0_i32_0 : i32, i32
  }
  func.func @transform_24(%arg0: i32) -> (i32, i32) {
    %c0_i32 = arith.constant 0 : i32
    %c0_i32_0 = arith.constant 0 : i32
    %c0_i32_1 = arith.constant 0 : i32
    return %c0_i32, %c0_i32_0 : i32, i32
  }
  func.func @transform_25(%arg0: i32) -> (i32, i32) {
    %c0_i32 = arith.constant 0 : i32
    %c0_i32_0 = arith.constant 0 : i32
    %c0_i32_1 = arith.constant 0 : i32
    return %c0_i32, %c0_i32_0 : i32, i32
  }
  func.func @transform_26(%arg0: i32) -> (i32, i32, i32) {
    %c0_i32 = arith.constant 0 : i32
    %c0_i32_0 = arith.constant 0 : i32
    %c0_i32_1 = arith.constant 0 : i32
    return %arg0, %c0_i32, %c0_i32_0 : i32, i32, i32
  }
  func.func @transform_27(%arg0: i32) -> (i32, i32, i32) {
    %c0_i32 = arith.constant 0 : i32
    %c0_i32_0 = arith.constant 0 : i32
    %c0_i32_1 = arith.constant 0 : i32
    return %arg0, %c0_i32, %c0_i32_0 : i32, i32, i32
  }
  func.func @transform_28(%arg0: i32) -> (i32, i32, i32) {
    %c0_i32 = arith.constant 0 : i32
    %c0_i32_0 = arith.constant 0 : i32
    %c0_i32_1 = arith.constant 0 : i32
    return %arg0, %c0_i32, %c0_i32_0 : i32, i32, i32
  }
  func.func @transform_29(%arg0: i32) -> (i32, i32, i32) {
    %c0_i32 = arith.constant 0 : i32
    %c0_i32_0 = arith.constant 0 : i32
    %c0_i32_1 = arith.constant 0 : i32
    return %arg0, %c0_i32, %c0_i32_0 : i32, i32, i32
  }
  func.func @transform_30(%arg0: i32) -> (i32, i32, i32) {
    %c0_i32 = arith.constant 0 : i32
    %c0_i32_0 = arith.constant 0 : i32
    %c0_i32_1 = arith.constant 0 : i32
    return %arg0, %c0_i32, %c0_i32_0 : i32, i32, i32
  }
}

</mosaic_0001>

<llo_original>
// kernel: rom_vae_dilated_forward.1
$region0: #{rom_vae_dilated_forward.1}
  #allocation0 [shape = 'u32[]', space=smem, size = 0x4, offset = 0x4, fixed_abs, tag = 'smem constant byte address 0x4 - core index']
  #allocation1 [shape = 'u32[144,128]{1,0:T(1,128)}', space=vmem, size = 0x12000, scoped, tag = 'internal scratch']
  #allocation2 [shape = 'f32[1,1]{1,0:T(1,128)S(1)}', space=vmem, size = 0x200, scoped, tag = 'scoped memory for rom_vae_dilated_forward.1']
  #allocation3 [shape = 'f32[1,1]{1,0:T(1,128)S(1)}', space=vmem, size = 0x200, scoped, tag = 'scoped memory for rom_vae_dilated_forward.1']
  #allocation4 [shape = 'f32[1,1]{1,0:T(1,128)S(1)}', space=vmem, size = 0x200, scoped, tag = 'scoped memory for rom_vae_dilated_forward.1']
  #allocation5 [shape = 'f32[1,1]{1,0:T(1,128)S(1)}', space=vmem, size = 0x200, scoped, tag = 'scoped memory for rom_vae_dilated_forward.1']
  %s0 = inlined_call_operand.smem [shape: u32[31], index: -1, kind: input, shape index: {}]
  %s1 = sld [smem:[%s0]]
  %s2 = scalar_lea.smem %s0, 1
  %s3 = sld [smem:[%s2]]
  %s4 = scalar_lea.smem %s0, 2
  %s5 = sld [smem:[%s4]]
  %s6 = scalar_lea.smem %s0, 3
  %s7 = sld [smem:[%s6]]
  %s8 = scalar_lea.smem %s0, 4
  %s9 = sld [smem:[%s8]]
  %s10 = scalar_lea.smem %s0, 5
  %s11 = sld [smem:[%s10]]
  %s12 = scalar_lea.smem %s0, 6
  %s13 = sld [smem:[%s12]]
  %s14 = scalar_lea.smem %s0, 7
  %s15 = sld [smem:[%s14]]
  %s16 = scalar_lea.smem %s0, 8
  %s17 = sld [smem:[%s16]]
  %s18 = scalar_lea.smem %s0, 9
  %s19 = sld [smem:[%s18]]
  %s20 = scalar_lea.smem %s0, 10
  %s21 = sld [smem:[%s20]]
  %s22 = scalar_lea.smem %s0, 11
  %s23 = sld [smem:[%s22]]
  %s24 = scalar_lea.smem %s0, 12
  %s25 = sld [smem:[%s24]]
  %s26 = scalar_lea.smem %s0, 13
  %s27 = sld [smem:[%s26]]
  %s28 = scalar_lea.smem %s0, 14
  %s29 = sld [smem:[%s28]]
  %s30 = scalar_lea.smem %s0, 15
  %s31 = sld [smem:[%s30]]
  %s32 = scalar_lea.smem %s0, 16
  %s33 = sld [smem:[%s32]]
  %s34 = scalar_lea.smem %s0, 17
  %s35 = sld [smem:[%s34]]
  %s36 = scalar_lea.smem %s0, 18
  %s37 = sld [smem:[%s36]]
  %s38 = scalar_lea.smem %s0, 19
  %s39 = sld [smem:[%s38]]
  %s40 = scalar_lea.smem %s0, 20
  %s41 = sld [smem:[%s40]]
  %s42 = scalar_lea.smem %s0, 21
  %s43 = sld [smem:[%s42]]
  %s44 = scalar_lea.smem %s0, 22
  %s45 = sld [smem:[%s44]]
  %s46 = scalar_lea.smem %s0, 23
  %s47 = sld [smem:[%s46]]
  %s48 = scalar_lea.smem %s0, 24
  %s49 = sld [smem:[%s48]]
  %s50 = scalar_lea.smem %s0, 25
  %s51 = sld [smem:[%s50]]
  %s52 = scalar_lea.smem %s0, 26
  %s53 = sld [smem:[%s52]]
  %s54 = scalar_lea.smem %s0, 27
  %s55 = sld [smem:[%s54]]
  %s56 = scalar_lea.smem %s0, 28
  %s57 = sld [smem:[%s56]]
  %s58 = scalar_lea.smem %s0, 29
  %s59 = sld [smem:[%s58]]
  %s60 = scalar_lea.smem %s0, 30
  %s61 = sld [smem:[%s60]]
  %62 = xla_tuple %s53, %s55, %s57, %s59, %s61
  %s63 = sld [smem:[#allocation0]]
  $region169: #{rom_vae_dilated_forward.1} parent=0
    _
  %s65 = ssub.s32 1, %s63
  %s66 = scalar_select 0, %s65, %s63
  %v67 = vstv %s19
  %68 = vst [vmem:[#allocation2] sm:$0x1] %v67
  %v69 = vstv %s23
  %70 = vst [vmem:[#allocation3] sm:$0x1] %v69
  %v71 = vstv %s39
  %72 = vst [vmem:[#allocation4] sm:$0x1] %v71
  %v73 = vstv %s43
  %74 = vst [vmem:[#allocation5] sm:$0x1] %v73
  loop: start=0, step=1, limit=4
  $region2: #{rom_vae_dilated_forward.1} parent=0 // loop_pre_header
    _
  $region3: #{rom_vae_dilated_forward.1} parent=0 // loop_header
    %s76 = sphi 0, %s80
    %p77 = scmp.ge.s32.totalorder %s76, 4
    %s86 = sphi 0, %s88
    %s89 = sphi 0, %s86
    %s90 = sphi 0, %s89
    %s106 = sphi 0, %s90
    %s112 = sphi 0, %s114
    %s115 = sphi 0, %s112
    %s116 = sphi 0, %s115
    %s132 = sphi 0, %s116
    %s136 = sphi 0, %s136
    %s138 = sphi 0, %s136
    %s139 = sphi 0, %s138
    %s153 = sphi 0, %s139
    %s157 = sphi 0, %s157
    %s159 = sphi 0, %s157
    %s160 = sphi 0, %s159
    %s174 = sphi 0, %s160
    %s178 = sphi 0, %s178
    %s180 = sphi 0, %s178
    %s181 = sphi 0, %s180
    %s195 = sphi 0, %s181
    %s199 = sphi 0, %s199
    %s201 = sphi 0, %s199
    %s202 = sphi 0, %s201
    %s216 = sphi 0, %s202
    %s220 = sphi 0, %s220
    %s222 = sphi 0, %s220
    %s223 = sphi 0, %s222
    %s237 = sphi 0, %s223
    %s241 = sphi 0, %s241
    %s243 = sphi 0, %s241
    %s244 = sphi 0, %s243
    %s258 = sphi 0, %s244
    %s262 = sphi 0, %s262
    %s264 = sphi 0, %s262
    %s265 = sphi 0, %s264
    %s279 = sphi 0, %s265
    %s283 = sphi 0, %s283
    %s285 = sphi 0, %s283
    %s286 = sphi 0, %s285
    %s300 = sphi 0, %s286
    %s304 = sphi 0, %s304
    %s306 = sphi 0, %s304
    %s307 = sphi 0, %s306
    %s321 = sphi 0, %s307
    %s325 = sphi 0, %s325
    %s327 = sphi 0, %s325
    %s328 = sphi 0, %s327
    %s342 = sphi 0, %s328
    %s346 = sphi 0, %s346
    %s348 = sphi 0, %s346
    %s349 = sphi 0, %s348
    %s363 = sphi 0, %s349
    %s367 = sphi 0, %s367
    %s369 = sphi 0, %s367
    %s370 = sphi 0, %s369
    %s384 = sphi 0, %s370
    %s388 = sphi 0, %s388
    %s390 = sphi 0, %s388
    %s391 = sphi 0, %s390
    %s405 = sphi 0, %s391
    %s409 = sphi 0, %s409
    %s411 = sphi 0, %s409
    %s412 = sphi 0, %s411
    %s426 = sphi 0, %s412
    %s430 = sphi 0, %s430
    %s432 = sphi 0, %s430
    %s433 = sphi 0, %s432
    %s447 = sphi 0, %s433
    %s451 = sphi 0, %s451
    %s453 = sphi 0, %s451
    %s454 = sphi 0, %s453
    %s468 = sphi 0, %s454
    %s472 = sphi 0, %s472
    %s474 = sphi 0, %s472
    %s475 = sphi 0, %s474
    %s489 = sphi 0, %s475
    %s493 = sphi 0, %s493
    %s495 = sphi 0, %s493
    %s496 = sphi 0, %s495
    %s510 = sphi 0, %s496
    %s514 = sphi 0, %s514
    %s516 = sphi 0, %s514
    %s517 = sphi 0, %s516
    %s531 = sphi 0, %s517
    %s535 = sphi 0, %s535
    %s537 = sphi 0, %s535
    %s538 = sphi 0, %s537
    %s552 = sphi 0, %s538
    %s556 = sphi 0, %s556
    %s558 = sphi 0, %s556
    %s559 = sphi 0, %s558
    %s573 = sphi 0, %s559
    %s577 = sphi 0, %s577
    %s579 = sphi 0, %s577
    %s580 = sphi 0, %s579
    %s594 = sphi 0, %s580
    %s598 = sphi 0, %s598
    %s600 = sphi 0, %s598
    %s601 = sphi 0, %s600
    %s615 = sphi 0, %s601
    %s619 = sphi 0, %s619
    %s621 = sphi 0, %s619
    %s622 = sphi 0, %s621
    %s636 = sphi 0, %s622
    %s642 = sphi 0, %s644
    %s645 = sphi 0, %s642
    %s646 = sphi 0, %s645
    %s662 = sphi 0, %s646
    %s668 = sphi 0, %s670
    %s671 = sphi 0, %s668
    %s672 = sphi 0, %s671
    %s688 = sphi 0, %s672
    %s694 = sphi 0, %s696
    %s697 = sphi 0, %s694
    %s698 = sphi 0, %s697
    %s714 = sphi 0, %s698
    %s720 = sphi 0, %s722
    %s723 = sphi 0, %s720
    %s724 = sphi 0, %s723
    %s740 = sphi 0, %s724
    %s746 = sphi 0, %s748
    %s749 = sphi 0, %s746
    %s750 = sphi 0, %s749
    %s766 = sphi 0, %s750
  $region4: #{rom_vae_dilated_forward.1} parent=0 // loop_header_branch
    %79 = sbr.rel (%p77) target = $region8
  $region5: #{rom_vae_dilated_forward.1} parent=0 // loop_body
    %s81 = ssub.s32 %s76, 1
    %s82 = ssub.s32 %s76, 2
    %s83 = sadd.s32 %s76, 1
    %s84 = ssub.s32 %s76, %s83
    %p85 = scmp.eq.s32.totalorder %s84, 0
    %s87 = sadd.s32 %s86, 1
    %s88 = scalar_select %p85, %s86, %s87
    %p91 = pneg %p85
    %p92 = scmp.eq.s32.totalorder %s76, 1
    %p93 = por %p91, %p92
    %p94 = scmp.ne.s32.totalorder %s86, %s89
    %p95 = scmp.eq.s32.totalorder %s76, 0
    %p96 = por %p94, %p95
    %p97 = scmp.ne.s32.totalorder %s86, %s89
    %p98 = scmp.eq.s32.totalorder %s81, 1
    %p99 = por %p97, %p98
    %p100 = scmp.ne.s32.totalorder %s89, %s90
    %p101 = scmp.eq.s32.totalorder %s81, 0
    %p102 = por %p100, %p101
    %p103 = scmp.ne.s32.totalorder %s89, %s90
    %p104 = scmp.eq.s32.totalorder %s82, 1
    %p105 = por %p103, %p104
    %p107 = scmp.ne.s32.totalorder %s90, %s106
    %p108 = scmp.eq.s32.totalorder %s82, 0
    %p109 = por %p107, %p108
    %s110 = ssub.s32 %s76, %s83
    %p111 = scmp.eq.s32.totalorder %s110, 0
    %s113 = sadd.s32 %s112, 1
    %s114 = scalar_select %p111, %s112, %s113
    %p117 = pneg %p111
    %p118 = scmp.eq.s32.totalorder %s76, 1
    %p119 = por %p117, %p118
    %p120 = scmp.ne.s32.totalorder %s112, %s115
    %p121 = scmp.eq.s32.totalorder %s76, 0
    %p122 = por %p120, %p121
    %p123 = scmp.ne.s32.totalorder %s112, %s115
    %p124 = scmp.eq.s32.totalorder %s81, 1
    %p125 = por %p123, %p124
    %p126 = scmp.ne.s32.totalorder %s115, %s116
    %p127 = scmp.eq.s32.totalorder %s81, 0
    %p128 = por %p126, %p127
    %p129 = scmp.ne.s32.totalorder %s115, %s116
    %p130 = scmp.eq.s32.totalorder %s82, 1
    %p131 = por %p129, %p130
    %p133 = scmp.ne.s32.totalorder %s116, %s132
    %p134 = scmp.eq.s32.totalorder %s82, 0
    %p135 = por %p133, %p134
    %s137 = sadd.s32 %s136, 1
    %p140 = scmp.eq.s32.totalorder %s76, 1
    %p141 = scmp.ne.s32.totalorder %s136, %s138
    %p142 = scmp.eq.s32.totalorder %s76, 0
    %p143 = por %p141, %p142
    %p144 = scmp.ne.s32.totalorder %s136, %s138
    %p145 = scmp.eq.s32.totalorder %s81, 1
    %p146 = por %p144, %p145
    %p147 = scmp.ne.s32.totalorder %s138, %s139
    %p148 = scmp.eq.s32.totalorder %s81, 0
    %p149 = por %p147, %p148
    %p150 = scmp.ne.s32.totalorder %s138, %s139
    %p151 = scmp.eq.s32.totalorder %s82, 1
    %p152 = por %p150, %p151
    %p154 = scmp.ne.s32.totalorder %s139, %s153
    %p155 = scmp.eq.s32.totalorder %s82, 0
    %p156 = por %p154, %p155
    %s158 = sadd.s32 %s157, 1
    %p161 = scmp.eq.s32.totalorder %s76, 1
    %p162 = scmp.ne.s32.totalorder %s157, %s159
    %p163 = scmp.eq.s32.totalorder %s76, 0
    %p164 = por %p162, %p163
    %p165 = scmp.ne.s32.totalorder %s157, %s159
    %p166 = scmp.eq.s32.totalorder %s81, 1
    %p167 = por %p165, %p166
    %p168 = scmp.ne.s32.totalorder %s159, %s160
    %p169 = scmp.eq.s32.totalorder %s81, 0
    %p170 = por %p168, %p169
    %p171 = scmp.ne.s32.totalorder %s159, %s160
    %p172 = scmp.eq.s32.totalorder %s82, 1
    %p173 = por %p171, %p172
    %p175 = scmp.ne.s32.totalorder %s160, %s174
    %p176 = scmp.eq.s32.totalorder %s82, 0
    %p177 = por %p175, %p176
    %s179 = sadd.s32 %s178, 1
    %p182 = scmp.eq.s32.totalorder %s76, 1
    %p183 = scmp.ne.s32.totalorder %s178, %s180
    %p184 = scmp.eq.s32.totalorder %s76, 0
    %p185 = por %p183, %p184
    %p186 = scmp.ne.s32.totalorder %s178, %s180
    %p187 = scmp.eq.s32.totalorder %s81, 1
    %p188 = por %p186, %p187
    %p189 = scmp.ne.s32.totalorder %s180, %s181
    %p190 = scmp.eq.s32.totalorder %s81, 0
    %p191 = por %p189, %p190
    %p192 = scmp.ne.s32.totalorder %s180, %s181
    %p193 = scmp.eq.s32.totalorder %s82, 1
    %p194 = por %p192, %p193
    %p196 = scmp.ne.s32.totalorder %s181, %s195
    %p197 = scmp.eq.s32.totalorder %s82, 0
    %p198 = por %p196, %p197
    %s200 = sadd.s32 %s199, 1
    %p203 = scmp.eq.s32.totalorder %s76, 1
    %p204 = scmp.ne.s32.totalorder %s199, %s201
    %p205 = scmp.eq.s32.totalorder %s76, 0
    %p206 = por %p204, %p205
    %p207 = scmp.ne.s32.totalorder %s199, %s201
    %p208 = scmp.eq.s32.totalorder %s81, 1
    %p209 = por %p207, %p208
    %p210 = scmp.ne.s32.totalorder %s201, %s202
    %p211 = scmp.eq.s32.totalorder %s81, 0
    %p212 = por %p210, %p211
    %p213 = scmp.ne.s32.totalorder %s201, %s202
    %p214 = scmp.eq.s32.totalorder %s82, 1
    %p215 = por %p213, %p214
    %p217 = scmp.ne.s32.totalorder %s202, %s216
    %p218 = scmp.eq.s32.totalorder %s82, 0
    %p219 = por %p217, %p218
    %s221 = sadd.s32 %s220, 1
    %p224 = scmp.eq.s32.totalorder %s76, 1
    %p225 = scmp.ne.s32.totalorder %s220, %s222
    %p226 = scmp.eq.s32.totalorder %s76, 0
    %p227 = por %p225, %p226
    %p228 = scmp.ne.s32.totalorder %s220, %s222
    %p229 = scmp.eq.s32.totalorder %s81, 1
    %p230 = por %p228, %p229
    %p231 = scmp.ne.s32.totalorder %s222, %s223
    %p232 = scmp.eq.s32.totalorder %s81, 0
    %p233 = por %p231, %p232
    %p234 = scmp.ne.s32.totalorder %s222, %s223
    %p235 = scmp.eq.s32.totalorder %s82, 1
    %p236 = por %p234, %p235
    %p238 = scmp.ne.s32.totalorder %s223, %s237
    %p239 = scmp.eq.s32.totalorder %s82, 0
    %p240 = por %p238, %p239
    %s242 = sadd.s32 %s241, 1
    %p245 = scmp.eq.s32.totalorder %s76, 1
    %p246 = scmp.ne.s32.totalorder %s241, %s243
    %p247 = scmp.eq.s32.totalorder %s76, 0
    %p248 = por %p246, %p247
    %p249 = scmp.ne.s32.totalorder %s241, %s243
    %p250 = scmp.eq.s32.totalorder %s81, 1
    %p251 = por %p249, %p250
    %p252 = scmp.ne.s32.totalorder %s243, %s244
    %p253 = scmp.eq.s32.totalorder %s81, 0
    %p254 = por %p252, %p253
    %p255 = scmp.ne.s32.totalorder %s243, %s244
    %p256 = scmp.eq.s32.totalorder %s82, 1
    %p257 = por %p255, %p256
    %p259 = scmp.ne.s32.totalorder %s244, %s258
    %p260 = scmp.eq.s32.totalorder %s82, 0
    %p261 = por %p259, %p260
    %s263 = sadd.s32 %s262, 1
    %p266 = scmp.eq.s32.totalorder %s76, 1
    %p267 = scmp.ne.s32.totalorder %s262, %s264
    %p268 = scmp.eq.s32.totalorder %s76, 0
    %p269 = por %p267, %p268
    %p270 = scmp.ne.s32.totalorder %s262, %s264
    %p271 = scmp.eq.s32.totalorder %s81, 1
    %p272 = por %p270, %p271
    %p273 = scmp.ne.s32.totalorder %s264, %s265
    %p274 = scmp.eq.s32.totalorder %s81, 0
    %p275 = por %p273, %p274
    %p276 = scmp.ne.s32.totalorder %s264, %s265
    %p277 = scmp.eq.s32.totalorder %s82, 1
    %p278 = por %p276, %p277
    %p280 = scmp.ne.s32.totalorder %s265, %s279
    %p281 = scmp.eq.s32.totalorder %s82, 0
    %p282 = por %p280, %p281
    %s284 = sadd.s32 %s283, 1
    %p287 = scmp.eq.s32.totalorder %s76, 1
    %p288 = scmp.ne.s32.totalorder %s283, %s285
    %p289 = scmp.eq.s32.totalorder %s76, 0
    %p290 = por %p288, %p289
    %p291 = scmp.ne.s32.totalorder %s283, %s285
    %p292 = scmp.eq.s32.totalorder %s81, 1
    %p293 = por %p291, %p292
    %p294 = scmp.ne.s32.totalorder %s285, %s286
    %p295 = scmp.eq.s32.totalorder %s81, 0
    %p296 = por %p294, %p295
    %p297 = scmp.ne.s32.totalorder %s285, %s286
    %p298 = scmp.eq.s32.totalorder %s82, 1
    %p299 = por %p297, %p298
    %p301 = scmp.ne.s32.totalorder %s286, %s300
    %p302 = scmp.eq.s32.totalorder %s82, 0
    %p303 = por %p301, %p302
    %s305 = sadd.s32 %s304, 1
    %p308 = scmp.eq.s32.totalorder %s76, 1
    %p309 = scmp.ne.s32.totalorder %s304, %s306
    %p310 = scmp.eq.s32.totalorder %s76, 0
    %p311 = por %p309, %p310
    %p312 = scmp.ne.s32.totalorder %s304, %s306
    %p313 = scmp.eq.s32.totalorder %s81, 1
    %p314 = por %p312, %p313
    %p315 = scmp.ne.s32.totalorder %s306, %s307
    %p316 = scmp.eq.s32.totalorder %s81, 0
    %p317 = por %p315, %p316
    %p318 = scmp.ne.s32.totalorder %s306, %s307
    %p319 = scmp.eq.s32.totalorder %s82, 1
    %p320 = por %p318, %p319
    %p322 = scmp.ne.s32.totalorder %s307, %s321
    %p323 = scmp.eq.s32.totalorder %s82, 0
    %p324 = por %p322, %p323
    %s326 = sadd.s32 %s325, 1
    %p329 = scmp.eq.s32.totalorder %s76, 1
    %p330 = scmp.ne.s32.totalorder %s325, %s327
    %p331 = scmp.eq.s32.totalorder %s76, 0
    %p332 = por %p330, %p331
    %p333 = scmp.ne.s32.totalorder %s325, %s327
    %p334 = scmp.eq.s32.totalorder %s81, 1
    %p335 = por %p333, %p334
    %p336 = scmp.ne.s32.totalorder %s327, %s328
    %p337 = scmp.eq.s32.totalorder %s81, 0
    %p338 = por %p336, %p337
    %p339 = scmp.ne.s32.totalorder %s327, %s328
    %p340 = scmp.eq.s32.totalorder %s82, 1
    %p341 = por %p339, %p340
    %p343 = scmp.ne.s32.totalorder %s328, %s342
    %p344 = scmp.eq.s32.totalorder %s82, 0
    %p345 = por %p343, %p344
    %s347 = sadd.s32 %s346, 1
    %p350 = scmp.eq.s32.totalorder %s76, 1
    %p351 = scmp.ne.s32.totalorder %s346, %s348
    %p352 = scmp.eq.s32.totalorder %s76, 0
    %p353 = por %p351, %p352
    %p354 = scmp.ne.s32.totalorder %s346, %s348
    %p355 = scmp.eq.s32.totalorder %s81, 1
    %p356 = por %p354, %p355
    %p357 = scmp.ne.s32.totalorder %s348, %s349
    %p358 = scmp.eq.s32.totalorder %s81, 0
    %p359 = por %p357, %p358
    %p360 = scmp.ne.s32.totalorder %s348, %s349
    %p361 = scmp.eq.s32.totalorder %s82, 1
    %p362 = por %p360, %p361
    %p364 = scmp.ne.s32.totalorder %s349, %s363
    %p365 = scmp.eq.s32.totalorder %s82, 0
    %p366 = por %p364, %p365
    %s368 = sadd.s32 %s367, 1
    %p371 = scmp.eq.s32.totalorder %s76, 1
    %p372 = scmp.ne.s32.totalorder %s367, %s369
    %p373 = scmp.eq.s32.totalorder %s76, 0
    %p374 = por %p372, %p373
    %p375 = scmp.ne.s32.totalorder %s367, %s369
    %p376 = scmp.eq.s32.totalorder %s81, 1
    %p377 = por %p375, %p376
    %p378 = scmp.ne.s32.totalorder %s369, %s370
    %p379 = scmp.eq.s32.totalorder %s81, 0
    %p380 = por %p378, %p379
    %p381 = scmp.ne.s32.totalorder %s369, %s370
    %p382 = scmp.eq.s32.totalorder %s82, 1
    %p383 = por %p381, %p382
    %p385 = scmp.ne.s32.totalorder %s370, %s384
    %p386 = scmp.eq.s32.totalorder %s82, 0
    %p387 = por %p385, %p386
    %s389 = sadd.s32 %s388, 1
    %p392 = scmp.eq.s32.totalorder %s76, 1
    %p393 = scmp.ne.s32.totalorder %s388, %s390
    %p394 = scmp.eq.s32.totalorder %s76, 0
    %p395 = por %p393, %p394
    %p396 = scmp.ne.s32.totalorder %s388, %s390
    %p397 = scmp.eq.s32.totalorder %s81, 1
    %p398 = por %p396, %p397
    %p399 = scmp.ne.s32.totalorder %s390, %s391
    %p400 = scmp.eq.s32.totalorder %s81, 0
    %p401 = por %p399, %p400
    %p402 = scmp.ne.s32.totalorder %s390, %s391
    %p403 = scmp.eq.s32.totalorder %s82, 1
    %p404 = por %p402, %p403
    %p406 = scmp.ne.s32.totalorder %s391, %s405
    %p407 = scmp.eq.s32.totalorder %s82, 0
    %p408 = por %p406, %p407
    %s410 = sadd.s32 %s409, 1
    %p413 = scmp.eq.s32.totalorder %s76, 1
    %p414 = scmp.ne.s32.totalorder %s409, %s411
    %p415 = scmp.eq.s32.totalorder %s76, 0
    %p416 = por %p414, %p415
    %p417 = scmp.ne.s32.totalorder %s409, %s411
    %p418 = scmp.eq.s32.totalorder %s81, 1
    %p419 = por %p417, %p418
    %p420 = scmp.ne.s32.totalorder %s411, %s412
    %p421 = scmp.eq.s32.totalorder %s81, 0
    %p422 = por %p420, %p421
    %p423 = scmp.ne.s32.totalorder %s411, %s412
    %p424 = scmp.eq.s32.totalorder %s82, 1
    %p425 = por %p423, %p424
    %p427 = scmp.ne.s32.totalorder %s412, %s426
    %p428 = scmp.eq.s32.totalorder %s82, 0
    %p429 = por %p427, %p428
    %s431 = sadd.s32 %s430, 1
    %p434 = scmp.eq.s32.totalorder %s76, 1
    %p435 = scmp.ne.s32.totalorder %s430, %s432
    %p436 = scmp.eq.s32.totalorder %s76, 0
    %p437 = por %p435, %p436
    %p438 = scmp.ne.s32.totalorder %s430, %s432
    %p439 = scmp.eq.s32.totalorder %s81, 1
    %p440 = por %p438, %p439
    %p441 = scmp.ne.s32.totalorder %s432, %s433
    %p442 = scmp.eq.s32.totalorder %s81, 0
    %p443 = por %p441, %p442
    %p444 = scmp.ne.s32.totalorder %s432, %s433
    %p445 = scmp.eq.s32.totalorder %s82, 1
    %p446 = por %p444, %p445
    %p448 = scmp.ne.s32.totalorder %s433, %s447
    %p449 = scmp.eq.s32.totalorder %s82, 0
    %p450 = por %p448, %p449
    %s452 = sadd.s32 %s451, 1
    %p455 = scmp.eq.s32.totalorder %s76, 1
    %p456 = scmp.ne.s32.totalorder %s451, %s453
    %p457 = scmp.eq.s32.totalorder %s76, 0
    %p458 = por %p456, %p457
    %p459 = scmp.ne.s32.totalorder %s451, %s453
    %p460 = scmp.eq.s32.totalorder %s81, 1
    %p461 = por %p459, %p460
    %p462 = scmp.ne.s32.totalorder %s453, %s454
    %p463 = scmp.eq.s32.totalorder %s81, 0
    %p464 = por %p462, %p463
    %p465 = scmp.ne.s32.totalorder %s453, %s454
    %p466 = scmp.eq.s32.totalorder %s82, 1
    %p467 = por %p465, %p466
    %p469 = scmp.ne.s32.totalorder %s454, %s468
    %p470 = scmp.eq.s32.totalorder %s82, 0
    %p471 = por %p469, %p470
    %s473 = sadd.s32 %s472, 1
    %p476 = scmp.eq.s32.totalorder %s76, 1
    %p477 = scmp.ne.s32.totalorder %s472, %s474
    %p478 = scmp.eq.s32.totalorder %s76, 0
    %p479 = por %p477, %p478
    %p480 = scmp.ne.s32.totalorder %s472, %s474
    %p481 = scmp.eq.s32.totalorder %s81, 1
    %p482 = por %p480, %p481
    %p483 = scmp.ne.s32.totalorder %s474, %s475
    %p484 = scmp.eq.s32.totalorder %s81, 0
    %p485 = por %p483, %p484
    %p486 = scmp.ne.s32.totalorder %s474, %s475
    %p487 = scmp.eq.s32.totalorder %s82, 1
    %p488 = por %p486, %p487
    %p490 = scmp.ne.s32.totalorder %s475, %s489
    %p491 = scmp.eq.s32.totalorder %s82, 0
    %p492 = por %p490, %p491
    %s494 = sadd.s32 %s493, 1
    %p497 = scmp.eq.s32.totalorder %s76, 1
    %p498 = scmp.ne.s32.totalorder %s493, %s495
    %p499 = scmp.eq.s32.totalorder %s76, 0
    %p500 = por %p498, %p499
    %p501 = scmp.ne.s32.totalorder %s493, %s495
    %p502 = scmp.eq.s32.totalorder %s81, 1
    %p503 = por %p501, %p502
    %p504 = scmp.ne.s32.totalorder %s495, %s496
    %p505 = scmp.eq.s32.totalorder %s81, 0
    %p506 = por %p504, %p505
    %p507 = scmp.ne.s32.totalorder %s495, %s496
    %p508 = scmp.eq.s32.totalorder %s82, 1
    %p509 = por %p507, %p508
    %p511 = scmp.ne.s32.totalorder %s496, %s510
    %p512 = scmp.eq.s32.totalorder %s82, 0
    %p513 = por %p511, %p512
    %s515 = sadd.s32 %s514, 1
    %p518 = scmp.eq.s32.totalorder %s76, 1
    %p519 = scmp.ne.s32.totalorder %s514, %s516
    %p520 = scmp.eq.s32.totalorder %s76, 0
    %p521 = por %p519, %p520
    %p522 = scmp.ne.s32.totalorder %s514, %s516
    %p523 = scmp.eq.s32.totalorder %s81, 1
    %p524 = por %p522, %p523
    %p525 = scmp.ne.s32.totalorder %s516, %s517
    %p526 = scmp.eq.s32.totalorder %s81, 0
    %p527 = por %p525, %p526
    %p528 = scmp.ne.s32.totalorder %s516, %s517
    %p529 = scmp.eq.s32.totalorder %s82, 1
    %p530 = por %p528, %p529
    %p532 = scmp.ne.s32.totalorder %s517, %s531
    %p533 = scmp.eq.s32.totalorder %s82, 0
    %p534 = por %p532, %p533
    %s536 = sadd.s32 %s535, 1
    %p539 = scmp.eq.s32.totalorder %s76, 1
    %p540 = scmp.ne.s32.totalorder %s535, %s537
    %p541 = scmp.eq.s32.totalorder %s76, 0
    %p542 = por %p540, %p541
    %p543 = scmp.ne.s32.totalorder %s535, %s537
    %p544 = scmp.eq.s32.totalorder %s81, 1
    %p545 = por %p543, %p544
    %p546 = scmp.ne.s32.totalorder %s537, %s538
    %p547 = scmp.eq.s32.totalorder %s81, 0
    %p548 = por %p546, %p547
    %p549 = scmp.ne.s32.totalorder %s537, %s538
    %p550 = scmp.eq.s32.totalorder %s82, 1
    %p551 = por %p549, %p550
    %p553 = scmp.ne.s32.totalorder %s538, %s552
    %p554 = scmp.eq.s32.totalorder %s82, 0
    %p555 = por %p553, %p554
    %s557 = sadd.s32 %s556, 1
    %p560 = scmp.eq.s32.totalorder %s76, 1
    %p561 = scmp.ne.s32.totalorder %s556, %s558
    %p562 = scmp.eq.s32.totalorder %s76, 0
    %p563 = por %p561, %p562
    %p564 = scmp.ne.s32.totalorder %s556, %s558
    %p565 = scmp.eq.s32.totalorder %s81, 1
    %p566 = por %p564, %p565
    %p567 = scmp.ne.s32.totalorder %s558, %s559
    %p568 = scmp.eq.s32.totalorder %s81, 0
    %p569 = por %p567, %p568
    %p570 = scmp.ne.s32.totalorder %s558, %s559
    %p571 = scmp.eq.s32.totalorder %s82, 1
    %p572 = por %p570, %p571
    %p574 = scmp.ne.s32.totalorder %s559, %s573
    %p575 = scmp.eq.s32.totalorder %s82, 0
    %p576 = por %p574, %p575
    %s578 = sadd.s32 %s577, 1
    %p581 = scmp.eq.s32.totalorder %s76, 1
    %p582 = scmp.ne.s32.totalorder %s577, %s579
    %p583 = scmp.eq.s32.totalorder %s76, 0
    %p584 = por %p582, %p583
    %p585 = scmp.ne.s32.totalorder %s577, %s579
    %p586 = scmp.eq.s32.totalorder %s81, 1
    %p587 = por %p585, %p586
    %p588 = scmp.ne.s32.totalorder %s579, %s580
    %p589 = scmp.eq.s32.totalorder %s81, 0
    %p590 = por %p588, %p589
    %p591 = scmp.ne.s32.totalorder %s579, %s580
    %p592 = scmp.eq.s32.totalorder %s82, 1
    %p593 = por %p591, %p592
    %p595 = scmp.ne.s32.totalorder %s580, %s594
    %p596 = scmp.eq.s32.totalorder %s82, 0
    %p597 = por %p595, %p596
    %s599 = sadd.s32 %s598, 1
    %p602 = scmp.eq.s32.totalorder %s76, 1
    %p603 = scmp.ne.s32.totalorder %s598, %s600
    %p604 = scmp.eq.s32.totalorder %s76, 0
    %p605 = por %p603, %p604
    %p606 = scmp.ne.s32.totalorder %s598, %s600
    %p607 = scmp.eq.s32.totalorder %s81, 1
    %p608 = por %p606, %p607
    %p609 = scmp.ne.s32.totalorder %s600, %s601
    %p610 = scmp.eq.s32.totalorder %s81, 0
    %p611 = por %p609, %p610
    %p612 = scmp.ne.s32.totalorder %s600, %s601
    %p613 = scmp.eq.s32.totalorder %s82, 1
    %p614 = por %p612, %p613
    %p616 = scmp.ne.s32.totalorder %s601, %s615
    %p617 = scmp.eq.s32.totalorder %s82, 0
    %p618 = por %p616, %p617
    %s620 = sadd.s32 %s619, 1
    %p623 = scmp.eq.s32.totalorder %s76, 1
    %p624 = scmp.ne.s32.totalorder %s619, %s621
    %p625 = scmp.eq.s32.totalorder %s76, 0
    %p626 = por %p624, %p625
    %p627 = scmp.ne.s32.totalorder %s619, %s621
    %p628 = scmp.eq.s32.totalorder %s81, 1
    %p629 = por %p627, %p628
    %p630 = scmp.ne.s32.totalorder %s621, %s622
    %p631 = scmp.eq.s32.totalorder %s81, 0
    %p632 = por %p630, %p631
    %p633 = scmp.ne.s32.totalorder %s621, %s622
    %p634 = scmp.eq.s32.totalorder %s82, 1
    %p635 = por %p633, %p634
    %p637 = scmp.ne.s32.totalorder %s622, %s636
    %p638 = scmp.eq.s32.totalorder %s82, 0
    %p639 = por %p637, %p638
    %s640 = ssub.s32 %s76, %s83
    %p641 = scmp.eq.s32.totalorder %s640, 0
    %s643 = sadd.s32 %s642, 1
    %s644 = scalar_select %p641, %s642, %s643
    %p647 = pneg %p641
    %p648 = scmp.eq.s32.totalorder %s76, 1
    %p649 = por %p647, %p648
    %p650 = scmp.ne.s32.totalorder %s642, %s645
    %p651 = scmp.eq.s32.totalorder %s76, 0
    %p652 = por %p650, %p651
    %p653 = scmp.ne.s32.totalorder %s642, %s645
    %p654 = scmp.eq.s32.totalorder %s81, 1
    %p655 = por %p653, %p654
    %p656 = scmp.ne.s32.totalorder %s645, %s646
    %p657 = scmp.eq.s32.totalorder %s81, 0
    %p658 = por %p656, %p657
    %p659 = scmp.ne.s32.totalorder %s645, %s646
    %p660 = scmp.eq.s32.totalorder %s82, 1
    %p661 = por %p659, %p660
    %p663 = scmp.ne.s32.totalorder %s646, %s662
    %p664 = scmp.eq.s32.totalorder %s82, 0
    %p665 = por %p663, %p664
    %s666 = ssub.s32 %s76, %s83
    %p667 = scmp.eq.s32.totalorder %s666, 0
    %s669 = sadd.s32 %s668, 1
    %s670 = scalar_select %p667, %s668, %s669
    %p673 = pneg %p667
    %p674 = scmp.eq.s32.totalorder %s76, 1
    %p675 = por %p673, %p674
    %p676 = scmp.ne.s32.totalorder %s668, %s671
    %p677 = scmp.eq.s32.totalorder %s76, 0
    %p678 = por %p676, %p677
    %p679 = scmp.ne.s32.totalorder %s668, %s671
    %p680 = scmp.eq.s32.totalorder %s81, 1
    %p681 = por %p679, %p680
    %p682 = scmp.ne.s32.totalorder %s671, %s672
    %p683 = scmp.eq.s32.totalorder %s81, 0
    %p684 = por %p682, %p683
    %p685 = scmp.ne.s32.totalorder %s671, %s672
    %p686 = scmp.eq.s32.totalorder %s82, 1
    %p687 = por %p685, %p686
    %p689 = scmp.ne.s32.totalorder %s672, %s688
    %p690 = scmp.eq.s32.totalorder %s82, 0
    %p691 = por %p689, %p690
    %s692 = ssub.s32 %s76, %s83
    %p693 = scmp.eq.s32.totalorder %s692, 0
    %s695 = sadd.s32 %s694, 1
    %s696 = scalar_select %p693, %s694, %s695
    %p699 = pneg %p693
    %p700 = scmp.eq.s32.totalorder %s76, 1
    %p701 = por %p699, %p700
    %p702 = scmp.ne.s32.totalorder %s694, %s697
    %p703 = scmp.eq.s32.totalorder %s76, 0
    %p704 = por %p702, %p703
    %p705 = scmp.ne.s32.totalorder %s694, %s697
    %p706 = scmp.eq.s32.totalorder %s81, 1
    %p707 = por %p705, %p706
    %p708 = scmp.ne.s32.totalorder %s697, %s698
    %p709 = scmp.eq.s32.totalorder %s81, 0
    %p710 = por %p708, %p709
    %p711 = scmp.ne.s32.totalorder %s697, %s698
    %p712 = scmp.eq.s32.totalorder %s82, 1
    %p713 = por %p711, %p712
    %p715 = scmp.ne.s32.totalorder %s698, %s714
    %p716 = scmp.eq.s32.totalorder %s82, 0
    %p717 = por %p715, %p716
    %s718 = ssub.s32 %s76, %s83
    %p719 = scmp.eq.s32.totalorder %s718, 0
    %s721 = sadd.s32 %s720, 1
    %s722 = scalar_select %p719, %s720, %s721
    %p725 = pneg %p719
    %p726 = scmp.eq.s32.totalorder %s76, 1
    %p727 = por %p725, %p726
    %p728 = scmp.ne.s32.totalorder %s720, %s723
    %p729 = scmp.eq.s32.totalorder %s76, 0
    %p730 = por %p728, %p729
    %p731 = scmp.ne.s32.totalorder %s720, %s723
    %p732 = scmp.eq.s32.totalorder %s81, 1
    %p733 = por %p731, %p732
    %p734 = scmp.ne.s32.totalorder %s723, %s724
    %p735 = scmp.eq.s32.totalorder %s81, 0
    %p736 = por %p734, %p735
    %p737 = scmp.ne.s32.totalorder %s723, %s724
    %p738 = scmp.eq.s32.totalorder %s82, 1
    %p739 = por %p737, %p738
    %p741 = scmp.ne.s32.totalorder %s724, %s740
    %p742 = scmp.eq.s32.totalorder %s82, 0
    %p743 = por %p741, %p742
    %s744 = ssub.s32 %s76, %s83
    %p745 = scmp.eq.s32.totalorder %s744, 0
    %s747 = sadd.s32 %s746, 1
    %s748 = scalar_select %p745, %s746, %s747
    %p751 = pneg %p745
    %p752 = scmp.eq.s32.totalorder %s76, 1
    %p753 = por %p751, %p752
    %p754 = scmp.ne.s32.totalorder %s746, %s749
    %p755 = scmp.eq.s32.totalorder %s76, 0
    %p756 = por %p754, %p755
    %p757 = scmp.ne.s32.totalorder %s746, %s749
    %p758 = scmp.eq.s32.totalorder %s81, 1
    %p759 = por %p757, %p758
    %p760 = scmp.ne.s32.totalorder %s749, %s750
    %p761 = scmp.eq.s32.totalorder %s81, 0
    %p762 = por %p760, %p761
    %p763 = scmp.ne.s32.totalorder %s749, %s750
    %p764 = scmp.eq.s32.totalorder %s82, 1
    %p765 = por %p763, %p764
    %p767 = scmp.ne.s32.totalorder %s750, %s766
    %p768 = scmp.eq.s32.totalorder %s82, 0
    %p769 = por %p767, %p768
    %p770 = scmp.le.s32.totalorder 1, %s76
    %p771 = scmp.lt.s32.totalorder %s76, 3
    %p772 = pnand %p770, %p771
    %p773 = pneg %p772
    // Predicated region
    $region9: #{rom_vae_dilated_forward.1} parent=5 // pred_check
      _
    $region10: #{rom_vae_dilated_forward.1} parent=5 // pred_check_branch
      %775 = sbr.rel (%p772) target = $region12
    $region11: #{rom_vae_dilated_forward.1} parent=5 // pred_region
      %s776 = ssub.s32 %s76, 1
      // Predicated region
      $region13: #{rom_vae_dilated_forward.1} parent=11 // pred_check
        %p777 = pneg %p149
      $region14: #{rom_vae_dilated_forward.1} parent=11 // pred_check_branch
        %779 = sbr.rel (%p777) target = $region16
      $region15: #{rom_vae_dilated_forward.1} parent=11 // pred_region
        _
      $region16: #{rom_vae_dilated_forward.1} parent=11 // pred_fallthru
        _
      // Predicated region
      $region17: #{rom_vae_dilated_forward.1} parent=11 // pred_check
        %p780 = pneg %p170
      $region18: #{rom_vae_dilated_forward.1} parent=11 // pred_check_branch
        %782 = sbr.rel (%p780) target = $region20
      $region19: #{rom_vae_dilated_forward.1} parent=11 // pred_region
        _
      $region20: #{rom_vae_dilated_forward.1} parent=11 // pred_fallthru
        _
      // Predicated region
      $region21: #{rom_vae_dilated_forward.1} parent=11 // pred_check
        %p783 = pneg %p191
      $region22: #{rom_vae_dilated_forward.1} parent=11 // pred_check_branch
        %785 = sbr.rel (%p783) target = $region24
      $region23: #{rom_vae_dilated_forward.1} parent=11 // pred_region
        _
      $region24: #{rom_vae_dilated_forward.1} parent=11 // pred_fallthru
        _
      // Predicated region
      $region25: #{rom_vae_dilated_forward.1} parent=11 // pred_check
        %p786 = pneg %p212
      $region26: #{rom_vae_dilated_forward.1} parent=11 // pred_check_branch
        %788 = sbr.rel (%p786) target = $region28
      $region27: #{rom_vae_dilated_forward.1} parent=11 // pred_region
        _
      $region28: #{rom_vae_dilated_forward.1} parent=11 // pred_fallthru
        _
      // Predicated region
      $region29: #{rom_vae_dilated_forward.1} parent=11 // pred_check
        %p789 = pneg %p233
      $region30: #{rom_vae_dilated_forward.1} parent=11 // pred_check_branch
        %791 = sbr.rel (%p789) target = $region32
      $region31: #{rom_vae_dilated_forward.1} parent=11 // pred_region
        _
      $region32: #{rom_vae_dilated_forward.1} parent=11 // pred_fallthru
        _
      // Predicated region
      $region33: #{rom_vae_dilated_forward.1} parent=11 // pred_check
        %p792 = pneg %p254
      $region34: #{rom_vae_dilated_forward.1} parent=11 // pred_check_branch
        %794 = sbr.rel (%p792) target = $region36
      $region35: #{rom_vae_dilated_forward.1} parent=11 // pred_region
        _
      $region36: #{rom_vae_dilated_forward.1} parent=11 // pred_fallthru
        _
      // Predicated region
      $region37: #{rom_vae_dilated_forward.1} parent=11 // pred_check
        %p795 = pneg %p275
      $region38: #{rom_vae_dilated_forward.1} parent=11 // pred_check_branch
        %797 = sbr.rel (%p795) target = $region40
      $region39: #{rom_vae_dilated_forward.1} parent=11 // pred_region
        _
      $region40: #{rom_vae_dilated_forward.1} parent=11 // pred_fallthru
        _
      // Predicated region
      $region41: #{rom_vae_dilated_forward.1} parent=11 // pred_check
        %p798 = pneg %p296
      $region42: #{rom_vae_dilated_forward.1} parent=11 // pred_check_branch
        %800 = sbr.rel (%p798) target = $region44
      $region43: #{rom_vae_dilated_forward.1} parent=11 // pred_region
        _
      $region44: #{rom_vae_dilated_forward.1} parent=11 // pred_fallthru
        _
      // Predicated region
      $region45: #{rom_vae_dilated_forward.1} parent=11 // pred_check
        %p801 = pneg %p317
      $region46: #{rom_vae_dilated_forward.1} parent=11 // pred_check_branch
        %803 = sbr.rel (%p801) target = $region48
      $region47: #{rom_vae_dilated_forward.1} parent=11 // pred_region
        _
      $region48: #{rom_vae_dilated_forward.1} parent=11 // pred_fallthru
        _
      // Predicated region
      $region49: #{rom_vae_dilated_forward.1} parent=11 // pred_check
        %p804 = pneg %p338
      $region50: #{rom_vae_dilated_forward.1} parent=11 // pred_check_branch
        %806 = sbr.rel (%p804) target = $region52
      $region51: #{rom_vae_dilated_forward.1} parent=11 // pred_region
        _
      $region52: #{rom_vae_dilated_forward.1} parent=11 // pred_fallthru
        _
      // Predicated region
      $region53: #{rom_vae_dilated_forward.1} parent=11 // pred_check
        %p807 = pneg %p359
      $region54: #{rom_vae_dilated_forward.1} parent=11 // pred_check_branch
        %809 = sbr.rel (%p807) target = $region56
      $region55: #{rom_vae_dilated_forward.1} parent=11 // pred_region
        _
      $region56: #{rom_vae_dilated_forward.1} parent=11 // pred_fallthru
        _
      // Predicated region
      $region57: #{rom_vae_dilated_forward.1} parent=11 // pred_check
        %p810 = pneg %p380
      $region58: #{rom_vae_dilated_forward.1} parent=11 // pred_check_branch
        %812 = sbr.rel (%p810) target = $region60
      $region59: #{rom_vae_dilated_forward.1} parent=11 // pred_region
        _
      $region60: #{rom_vae_dilated_forward.1} parent=11 // pred_fallthru
        _
      // Predicated region
      $region61: #{rom_vae_dilated_forward.1} parent=11 // pred_check
        %p813 = pneg %p401
      $region62: #{rom_vae_dilated_forward.1} parent=11 // pred_check_branch
        %815 = sbr.rel (%p813) target = $region64
      $region63: #{rom_vae_dilated_forward.1} parent=11 // pred_region
        _
      $region64: #{rom_vae_dilated_forward.1} parent=11 // pred_fallthru
        _
      // Predicated region
      $region65: #{rom_vae_dilated_forward.1} parent=11 // pred_check
        %p816 = pneg %p422
      $region66: #{rom_vae_dilated_forward.1} parent=11 // pred_check_branch
        %818 = sbr.rel (%p816) target = $region68
      $region67: #{rom_vae_dilated_forward.1} parent=11 // pred_region
        _
      $region68: #{rom_vae_dilated_forward.1} parent=11 // pred_fallthru
        _
      // Predicated region
      $region69: #{rom_vae_dilated_forward.1} parent=11 // pred_check
        %p819 = pneg %p443
      $region70: #{rom_vae_dilated_forward.1} parent=11 // pred_check_branch
        %821 = sbr.rel (%p819) target = $region72
      $region71: #{rom_vae_dilated_forward.1} parent=11 // pred_region
        _
      $region72: #{rom_vae_dilated_forward.1} parent=11 // pred_fallthru
        _
      // Predicated region
      $region73: #{rom_vae_dilated_forward.1} parent=11 // pred_check
        %p822 = pneg %p464
      $region74: #{rom_vae_dilated_forward.1} parent=11 // pred_check_branch
        %824 = sbr.rel (%p822) target = $region76
      $region75: #{rom_vae_dilated_forward.1} parent=11 // pred_region
        _
      $region76: #{rom_vae_dilated_forward.1} parent=11 // pred_fallthru
        _
      // Predicated region
      $region77: #{rom_vae_dilated_forward.1} parent=11 // pred_check
        %p825 = pneg %p485
      $region78: #{rom_vae_dilated_forward.1} parent=11 // pred_check_branch
        %827 = sbr.rel (%p825) target = $region80
      $region79: #{rom_vae_dilated_forward.1} parent=11 // pred_region
        _
      $region80: #{rom_vae_dilated_forward.1} parent=11 // pred_fallthru
        _
      // Predicated region
      $region81: #{rom_vae_dilated_forward.1} parent=11 // pred_check
        %p828 = pneg %p506
      $region82: #{rom_vae_dilated_forward.1} parent=11 // pred_check_branch
        %830 = sbr.rel (%p828) target = $region84
      $region83: #{rom_vae_dilated_forward.1} parent=11 // pred_region
        _
      $region84: #{rom_vae_dilated_forward.1} parent=11 // pred_fallthru
        _
      // Predicated region
      $region85: #{rom_vae_dilated_forward.1} parent=11 // pred_check
        %p831 = pneg %p527
      $region86: #{rom_vae_dilated_forward.1} parent=11 // pred_check_branch
        %833 = sbr.rel (%p831) target = $region88
      $region87: #{rom_vae_dilated_forward.1} parent=11 // pred_region
        _
      $region88: #{rom_vae_dilated_forward.1} parent=11 // pred_fallthru
        _
      // Predicated region
      $region89: #{rom_vae_dilated_forward.1} parent=11 // pred_check
        %p834 = pneg %p548
      $region90: #{rom_vae_dilated_forward.1} parent=11 // pred_check_branch
        %836 = sbr.rel (%p834) target = $region92
      $region91: #{rom_vae_dilated_forward.1} parent=11 // pred_region
        _
      $region92: #{rom_vae_dilated_forward.1} parent=11 // pred_fallthru
        _
      // Predicated region
      $region93: #{rom_vae_dilated_forward.1} parent=11 // pred_check
        %p837 = pneg %p569
      $region94: #{rom_vae_dilated_forward.1} parent=11 // pred_check_branch
        %839 = sbr.rel (%p837) target = $region96
      $region95: #{rom_vae_dilated_forward.1} parent=11 // pred_region
        _
      $region96: #{rom_vae_dilated_forward.1} parent=11 // pred_fallthru
        _
      // Predicated region
      $region97: #{rom_vae_dilated_forward.1} parent=11 // pred_check
        %p840 = pneg %p590
      $region98: #{rom_vae_dilated_forward.1} parent=11 // pred_check_branch
        %842 = sbr.rel (%p840) target = $region100
      $region99: #{rom_vae_dilated_forward.1} parent=11 // pred_region
        _
      $region100: #{rom_vae_dilated_forward.1} parent=11 // pred_fallthru
        _
      // Predicated region
      $region101: #{rom_vae_dilated_forward.1} parent=11 // pred_check
        %p843 = pneg %p611
      $region102: #{rom_vae_dilated_forward.1} parent=11 // pred_check_branch
        %845 = sbr.rel (%p843) target = $region104
      $region103: #{rom_vae_dilated_forward.1} parent=11 // pred_region
        _
      $region104: #{rom_vae_dilated_forward.1} parent=11 // pred_fallthru
        _
      // Predicated region
      $region105: #{rom_vae_dilated_forward.1} parent=11 // pred_check
        %p846 = pneg %p632
      $region106: #{rom_vae_dilated_forward.1} parent=11 // pred_check_branch
        %848 = sbr.rel (%p846) target = $region108
      $region107: #{rom_vae_dilated_forward.1} parent=11 // pred_region
        _
      $region108: #{rom_vae_dilated_forward.1} parent=11 // pred_fallthru
        _
    $region12: #{rom_vae_dilated_forward.1} parent=5 // pred_fallthru
      _
    %p849 = scmp.lt.s32.totalorder %s76, 2
    // Predicated region
    $region109: #{rom_vae_dilated_forward.1} parent=5 // pred_check
      %p850 = pneg %p849
    $region110: #{rom_vae_dilated_forward.1} parent=5 // pred_check_branch
      %852 = sbr.rel (%p850) target = $region112
    $region111: #{rom_vae_dilated_forward.1} parent=5 // pred_region
      // Predicated region
      $region113: #{rom_vae_dilated_forward.1} parent=111 // pred_check
        %p853 = pneg %p96
      $region114: #{rom_vae_dilated_forward.1} parent=111 // pred_check_branch
        %855 = sbr.rel (%p853) target = $region116
      $region115: #{rom_vae_dilated_forward.1} parent=111 // pred_region
        %p856 = scmp.lt.s32.totalorder %s76, 1
        %s857 = scalar_select %p856, %s76, 1
        %s858 = smul.addr %s857, 16
        %s859 = smul.addr %s858, 8
        %s860 = scalar_lea.vmem %s1, %s859
      $region116: #{rom_vae_dilated_forward.1} parent=111 // pred_fallthru
        _
      // Predicated region
      $region117: #{rom_vae_dilated_forward.1} parent=111 // pred_check
        %p861 = pneg %p122
      $region118: #{rom_vae_dilated_forward.1} parent=111 // pred_check_branch
        %863 = sbr.rel (%p861) target = $region120
      $region119: #{rom_vae_dilated_forward.1} parent=111 // pred_region
        %p864 = scmp.lt.s32.totalorder %s76, 1
        %s865 = scalar_select %p864, %s76, 1
        %s866 = smul.addr %s865, 4
        %s867 = smul.addr %s866, 8
        %s868 = scalar_lea.vmem %s3, %s867
      $region120: #{rom_vae_dilated_forward.1} parent=111 // pred_fallthru
        _
    $region112: #{rom_vae_dilated_forward.1} parent=5 // pred_fallthru
      _
    %p869 = scmp.le.s32.totalorder 1, %s76
    %p870 = scmp.lt.s32.totalorder %s76, 3
    %p871 = pnand %p869, %p870
    %p872 = pneg %p871
    // Predicated region
    $region121: #{rom_vae_dilated_forward.1} parent=5 // pred_check
      _
    $region122: #{rom_vae_dilated_forward.1} parent=5 // pred_check_branch
      %874 = sbr.rel (%p871) target = $region124
    $region123: #{rom_vae_dilated_forward.1} parent=5 // pred_region
      %s875 = ssub.s32 %s76, 1
      %p876 = scmp.lt.s32.totalorder %s81, 1
      %s877 = scalar_select %p876, %s81, 1
      %s878 = smul.addr %s877, 16
      %s879 = smul.addr %s878, 8
      %s880 = scalar_lea.vmem %s1, %s879
      %p881 = pneg %p102
      %p882 = pneg %p99
      %p883 = scmp.lt.s32.totalorder %s81, 1
      %s884 = scalar_select %p883, %s81, 1
      %s885 = smul.addr %s884, 4
      %s886 = smul.addr %s885, 8
      %s887 = scalar_lea.vmem %s3, %s886
      %p888 = pneg %p128
      %p889 = pneg %p125
      %p890 = pneg %p149
      %p891 = pneg %p146
      %p892 = pneg %p170
      %p893 = pneg %p167
      %p894 = pneg %p191
      %p895 = pneg %p188
      %p896 = pneg %p212
      %p897 = pneg %p209
      %p898 = pneg %p233
      %p899 = pneg %p230
      %p900 = pneg %p254
      %p901 = pneg %p251
      %p902 = pneg %p275
      %p903 = pneg %p272
      %p904 = pneg %p296
      %p905 = pneg %p293
      %p906 = pneg %p317
      %p907 = pneg %p314
      %p908 = pneg %p338
      %p909 = pneg %p335
      %p910 = pneg %p359
      %p911 = pneg %p356
      %p912 = pneg %p380
      %p913 = pneg %p377
      %p914 = pneg %p401
      %p915 = pneg %p398
      %p916 = pneg %p422
      %p917 = pneg %p419
      %p918 = pneg %p443
      %p919 = pneg %p440
      %p920 = pneg %p464
      %p921 = pneg %p461
      %p922 = pneg %p485
      %p923 = pneg %p482
      %p924 = pneg %p506
      %p925 = pneg %p503
      %p926 = pneg %p527
      %p927 = pneg %p524
      %p928 = pneg %p548
      %p929 = pneg %p545
      %p930 = pneg %p569
      %p931 = pneg %p566
      %p932 = pneg %p590
      %p933 = pneg %p587
      %p934 = pneg %p611
      %p935 = pneg %p608
      %p936 = pneg %p632
      %p937 = pneg %p629
      %p938 = pneg %p658
      %p939 = pneg %p655
      %p940 = scmp.lt.s32.totalorder %s81, 1
      %s941 = scalar_select %p940, %s81, 1
      %s942 = smul.addr %s941, 4
      %s943 = smul.addr %s942, 8
      %s944 = scalar_lea.vmem %s53, %s943
      %p945 = pneg %p684
      %p946 = pneg %p681
      %p947 = scmp.lt.s32.totalorder %s81, 1
      %s948 = scalar_select %p947, %s81, 1
      %s949 = smul.addr %s948, 4
      %s950 = smul.addr %s949, 8
      %s951 = scalar_lea.vmem %s55, %s950
      %p952 = pneg %p710
      %p953 = pneg %p707
      %p954 = scmp.lt.s32.totalorder %s81, 1
      %s955 = scalar_select %p954, %s81, 1
      %s956 = smul.addr %s955, 4
      %s957 = smul.addr %s956, 8
      %s958 = scalar_lea.vmem %s57, %s957
      %p959 = pneg %p736
      %p960 = pneg %p733
      %p961 = scmp.lt.s32.totalorder %s81, 1
      %s962 = scalar_select %p961, %s81, 1
      %s963 = smul.addr %s962, 16
      %s964 = smul.addr %s963, 8
      %s965 = scalar_lea.vmem %s59, %s964
      %p966 = pneg %p762
      %p967 = pneg %p759
      %p968 = scmp.lt.s32.totalorder %s81, 1
      %s969 = scalar_select %p968, %s81, 1
      %s970 = smul.addr %s969, 16
      %s971 = smul.addr %s970, 8
      %s972 = scalar_lea.vmem %s61, %s971
      %p973 = scmp.lt.s32.totalorder %s81, 1
      %s974 = scalar_select %p973, %s81, 1
      %s975 = smul.addr %s974, 16
      %s976 = smul.addr %s975, 8
      %s977 = scalar_lea.vmem %s1, %s976
      %p978 = scmp.lt.s32.totalorder %s81, 1
      %s979 = scalar_select %p978, %s81, 1
      %s980 = smul.addr %s979, 4
      %s981 = smul.addr %s980, 8
      %s982 = scalar_lea.vmem %s3, %s981
      %p983 = scmp.lt.s32.totalorder %s81, 1
      %s984 = scalar_select %p983, %s81, 1
      %s985 = smul.addr %s984, 4
      %s986 = smul.addr %s985, 8
      %s987 = scalar_lea.vmem %s53, %s986
      %p988 = scmp.lt.s32.totalorder %s81, 1
      %s989 = scalar_select %p988, %s81, 1
      %s990 = smul.addr %s989, 4
      %s991 = smul.addr %s990, 8
      %s992 = scalar_lea.vmem %s55, %s991
      %p993 = scmp.lt.s32.totalorder %s81, 1
      %s994 = scalar_select %p993, %s81, 1
      %s995 = smul.addr %s994, 4
      %s996 = smul.addr %s995, 8
      %s997 = scalar_lea.vmem %s57, %s996
      %p998 = scmp.lt.s32.totalorder %s81, 1
      %s999 = scalar_select %p998, %s81, 1
      %s1000 = smul.addr %s999, 16
      %s1001 = smul.addr %s1000, 8
      %s1002 = scalar_lea.vmem %s59, %s1001
      %p1003 = scmp.lt.s32.totalorder %s81, 1
      %s1004 = scalar_select %p1003, %s81, 1
      %s1005 = smul.addr %s1004, 16
      %s1006 = smul.addr %s1005, 8
      %s1007 = scalar_lea.vmem %s61, %s1006
      %v1008 = vld [vmem:[%s977] sm:$0xff]
      %v1009 = vld [vmem:[%s977 + $0x8] sm:$0xff]
      %v1010 = vld [vmem:[%s977 + $0x10] sm:$0xff]
      %v1011 = vld [vmem:[%s977 + $0x18] sm:$0xff]
      %v1012 = vld [vmem:[%s977 + $0x20] sm:$0xff]
      %v1013 = vld [vmem:[%s977 + $0x28] sm:$0xff]
      %v1014 = vld [vmem:[%s977 + $0x30] sm:$0xff]
      %v1015 = vld [vmem:[%s977 + $0x38] sm:$0xff]
      %v1016 = vld [vmem:[%s977 + $0x40] sm:$0xff]
      %v1017 = vld [vmem:[%s977 + $0x48] sm:$0xff]
      %v1018 = vld [vmem:[%s977 + $0x50] sm:$0xff]
      %v1019 = vld [vmem:[%s977 + $0x58] sm:$0xff]
      %v1020 = vld [vmem:[%s977 + $0x60] sm:$0xff]
      %v1021 = vld [vmem:[%s977 + $0x68] sm:$0xff]
      %v1022 = vld [vmem:[%s977 + $0x70] sm:$0xff]
      %v1023 = vld [vmem:[%s977 + $0x78] sm:$0xff]
      %v1025 = vrot.slane %v1023, 7
      %vm1042 = vcmask 1040384
      %v1043 = vrot.slane %v1008, 7
      %v1044 = vrot.slane %v1009, 7
      %v1045 = vsel %vm1042, %v1043, %v1044
      %v1046 = vrot.slane %v1010, 7
      %v1047 = vsel %vm1042, %v1044, %v1046
      %v1048 = vrot.slane %v1011, 7
      %v1049 = vsel %vm1042, %v1046, %v1048
      %v1050 = vrot.slane %v1012, 7
      %v1051 = vsel %vm1042, %v1048, %v1050
      %v1052 = vrot.slane %v1013, 7
      %v1053 = vsel %vm1042, %v1050, %v1052
      %v1054 = vrot.slane %v1014, 7
      %v1055 = vsel %vm1042, %v1052, %v1054
      %v1056 = vrot.slane %v1015, 7
      %v1057 = vsel %vm1042, %v1054, %v1056
      %v1058 = vrot.slane %v1016, 7
      %v1059 = vsel %vm1042, %v1056, %v1058
      %v1060 = vrot.slane %v1017, 7
      %v1061 = vsel %vm1042, %v1058, %v1060
      %v1062 = vrot.slane %v1018, 7
      %v1063 = vsel %vm1042, %v1060, %v1062
      %v1064 = vrot.slane %v1019, 7
      %v1065 = vsel %vm1042, %v1062, %v1064
      %v1066 = vrot.slane %v1020, 7
      %v1067 = vsel %vm1042, %v1064, %v1066
      %v1068 = vrot.slane %v1021, 7
      %v1069 = vsel %vm1042, %v1066, %v1068
      %v1070 = vrot.slane %v1022, 7
      %v1071 = vsel %vm1042, %v1068, %v1070
      %v1072 = vsel %vm1042, %v1070, %v1025
      %v1074 = vsel %vm1042, %v1025, %v1043
      %vm1075 = vcmask 1046528
      %v1076 = vrot.slane %v1008, 1
      %v1077 = vrot.slane %v1009, 1
      %v1078 = vsel %vm1075, %v1076, %v1077
      %v1079 = vrot.slane %v1010, 1
      %v1080 = vsel %vm1075, %v1077, %v1079
      %v1081 = vrot.slane %v1011, 1
      %v1082 = vsel %vm1075, %v1079, %v1081
      %v1083 = vrot.slane %v1012, 1
      %v1084 = vsel %vm1075, %v1081, %v1083
      %v1085 = vrot.slane %v1013, 1
      %v1086 = vsel %vm1075, %v1083, %v1085
      %v1087 = vrot.slane %v1014, 1
      %v1088 = vsel %vm1075, %v1085, %v1087
      %v1089 = vrot.slane %v1015, 1
      %v1090 = vsel %vm1075, %v1087, %v1089
      %v1091 = vrot.slane %v1016, 1
      %v1092 = vsel %vm1075, %v1089, %v1091
      %v1093 = vrot.slane %v1017, 1
      %v1094 = vsel %vm1075, %v1091, %v1093
      %v1095 = vrot.slane %v1018, 1
      %v1096 = vsel %vm1075, %v1093, %v1095
      %v1097 = vrot.slane %v1019, 1
      %v1098 = vsel %vm1075, %v1095, %v1097
      %v1099 = vrot.slane %v1020, 1
      %v1100 = vsel %vm1075, %v1097, %v1099
      %v1101 = vrot.slane %v1021, 1
      %v1102 = vsel %vm1075, %v1099, %v1101
      %v1103 = vrot.slane %v1022, 1
      %v1104 = vsel %vm1075, %v1101, %v1103
      %v1105 = vrot.slane %v1023, 1
      %v1106 = vsel %vm1075, %v1103, %v1105
      %v1109 = vsel %vm1075, %v1105, %v1076
      %v1110 = vld [vmem:[%s5] sm:$0x1]
      %1112 = vset.pattern.permute.xlu0 0
      %1113 = vperm.xlu0 %1112, %v1074
      %v1114 = vpop.permute.xlu0 %1113
      %1116 = vset.pattern.permute.xlu0 0
      %1117 = vperm.xlu0 %1116, %v1045
      %v1118 = vpop.permute.xlu0 %1117
      %1120 = vset.pattern.permute.xlu0 0
      %1121 = vperm.xlu0 %1120, %v1047
      %v1122 = vpop.permute.xlu0 %1121
      %1124 = vset.pattern.permute.xlu0 0
      %1125 = vperm.xlu0 %1124, %v1049
      %v1126 = vpop.permute.xlu0 %1125
      %1128 = vset.pattern.permute.xlu0 0
      %1129 = vperm.xlu0 %1128, %v1051
      %v1130 = vpop.permute.xlu0 %1129
      %1132 = vset.pattern.permute.xlu0 0
      %1133 = vperm.xlu0 %1132, %v1053
      %v1134 = vpop.permute.xlu0 %1133
      %1136 = vset.pattern.permute.xlu0 0
      %1137 = vperm.xlu0 %1136, %v1055
      %v1138 = vpop.permute.xlu0 %1137
      %1140 = vset.pattern.permute.xlu0 0
      %1141 = vperm.xlu0 %1140, %v1057
      %v1142 = vpop.permute.xlu0 %1141
      %1144 = vset.pattern.permute.xlu0 0
      %1145 = vperm.xlu0 %1144, %v1059
      %v1146 = vpop.permute.xlu0 %1145
      %1148 = vset.pattern.permute.xlu0 0
      %1149 = vperm.xlu0 %1148, %v1061
      %v1150 = vpop.permute.xlu0 %1149
      %1152 = vset.pattern.permute.xlu0 0
      %1153 = vperm.xlu0 %1152, %v1063
      %v1154 = vpop.permute.xlu0 %1153
      %1156 = vset.pattern.permute.xlu0 0
      %1157 = vperm.xlu0 %1156, %v1065
      %v1158 = vpop.permute.xlu0 %1157
      %1160 = vset.pattern.permute.xlu0 0
      %1161 = vperm.xlu0 %1160, %v1067
      %v1162 = vpop.permute.xlu0 %1161
      %1164 = vset.pattern.permute.xlu0 0
      %1165 = vperm.xlu0 %1164, %v1069
      %v1166 = vpop.permute.xlu0 %1165
      %1168 = vset.pattern.permute.xlu0 0
      %1169 = vperm.xlu0 %1168, %v1071
      %v1170 = vpop.permute.xlu0 %1169
      %1172 = vset.pattern.permute.xlu0 0
      %1173 = vperm.xlu0 %1172, %v1072
      %v1174 = vpop.permute.xlu0 %1173
      %v1177 = vlaneseq
      %v1178 = vshrl.u32 %v1177, 7
      %v1179 = vsub.s32 0, %v1178
      %v1180 = vrot.slane %v1110, %v1179
      %v1182 = vmul.f32 %v1114, %v1180
      %v1183 = vmul.f32 %v1118, %v1180
      %v1184 = vmul.f32 %v1122, %v1180
      %v1185 = vmul.f32 %v1126, %v1180
      %v1186 = vmul.f32 %v1130, %v1180
      %v1187 = vmul.f32 %v1134, %v1180
      %v1188 = vmul.f32 %v1138, %v1180
      %v1189 = vmul.f32 %v1142, %v1180
      %v1190 = vmul.f32 %v1146, %v1180
      %v1191 = vmul.f32 %v1150, %v1180
      %v1192 = vmul.f32 %v1154, %v1180
      %v1193 = vmul.f32 %v1158, %v1180
      %v1194 = vmul.f32 %v1162, %v1180
      %v1195 = vmul.f32 %v1166, %v1180
      %v1196 = vmul.f32 %v1170, %v1180
      %v1197 = vmul.f32 %v1174, %v1180
      %s1198 = scalar_lea.vmem %s5, 1
      %v1199 = vld [vmem:[%s1198] sm:$0x1]
      %1200 = vset.pattern.permute.xlu0 0
      %1201 = vperm.xlu0 %1200, %v1008
      %v1202 = vpop.permute.xlu0 %1201
      %1204 = vset.pattern.permute.xlu0 0
      %1205 = vperm.xlu0 %1204, %v1009
      %v1206 = vpop.permute.xlu0 %1205
      %1208 = vset.pattern.permute.xlu0 0
      %1209 = vperm.xlu0 %1208, %v1010
      %v1210 = vpop.permute.xlu0 %1209
      %1212 = vset.pattern.permute.xlu0 0
      %1213 = vperm.xlu0 %1212, %v1011
      %v1214 = vpop.permute.xlu0 %1213
      %1216 = vset.pattern.permute.xlu0 0
      %1217 = vperm.xlu0 %1216, %v1012
      %v1218 = vpop.permute.xlu0 %1217
      %1220 = vset.pattern.permute.xlu0 0
      %1221 = vperm.xlu0 %1220, %v1013
      %v1222 = vpop.permute.xlu0 %1221
      %1224 = vset.pattern.permute.xlu0 0
      %1225 = vperm.xlu0 %1224, %v1014
      %v1226 = vpop.permute.xlu0 %1225
      %1228 = vset.pattern.permute.xlu0 0
      %1229 = vperm.xlu0 %1228, %v1015
      %v1230 = vpop.permute.xlu0 %1229
      %1232 = vset.pattern.permute.xlu0 0
      %1233 = vperm.xlu0 %1232, %v1016
      %v1234 = vpop.permute.xlu0 %1233
      %1236 = vset.pattern.permute.xlu0 0
      %1237 = vperm.xlu0 %1236, %v1017
      %v1238 = vpop.permute.xlu0 %1237
      %1240 = vset.pattern.permute.xlu0 0
      %1241 = vperm.xlu0 %1240, %v1018
      %v1242 = vpop.permute.xlu0 %1241
      %1244 = vset.pattern.permute.xlu0 0
      %1245 = vperm.xlu0 %1244, %v1019
      %v1246 = vpop.permute.xlu0 %1245
      %1248 = vset.pattern.permute.xlu0 0
      %1249 = vperm.xlu0 %1248, %v1020
      %v1250 = vpop.permute.xlu0 %1249
      %1252 = vset.pattern.permute.xlu0 0
      %1253 = vperm.xlu0 %1252, %v1021
      %v1254 = vpop.permute.xlu0 %1253
      %1256 = vset.pattern.permute.xlu0 0
      %1257 = vperm.xlu0 %1256, %v1022
      %v1258 = vpop.permute.xlu0 %1257
      %1260 = vset.pattern.permute.xlu0 0
      %1261 = vperm.xlu0 %1260, %v1023
      %v1262 = vpop.permute.xlu0 %1261
      %v1265 = vlaneseq
      %v1266 = vshrl.u32 %v1265, 7
      %v1267 = vsub.s32 0, %v1266
      %v1268 = vrot.slane %v1199, %v1267
      %v1270 = vmul.f32 %v1202, %v1268
      %v1271 = vmul.f32 %v1206, %v1268
      %v1272 = vmul.f32 %v1210, %v1268
      %v1273 = vmul.f32 %v1214, %v1268
      %v1274 = vmul.f32 %v1218, %v1268
      %v1275 = vmul.f32 %v1222, %v1268
      %v1276 = vmul.f32 %v1226, %v1268
      %v1277 = vmul.f32 %v1230, %v1268
      %v1278 = vmul.f32 %v1234, %v1268
      %v1279 = vmul.f32 %v1238, %v1268
      %v1280 = vmul.f32 %v1242, %v1268
      %v1281 = vmul.f32 %v1246, %v1268
      %v1282 = vmul.f32 %v1250, %v1268
      %v1283 = vmul.f32 %v1254, %v1268
      %v1284 = vmul.f32 %v1258, %v1268
      %v1285 = vmul.f32 %v1262, %v1268
      %v1286 = vadd.f32 %v1182, %v1270
      %v1287 = vadd.f32 %v1183, %v1271
      %v1288 = vadd.f32 %v1184, %v1272
      %v1289 = vadd.f32 %v1185, %v1273
      %v1290 = vadd.f32 %v1186, %v1274
      %v1291 = vadd.f32 %v1187, %v1275
      %v1292 = vadd.f32 %v1188, %v1276
      %v1293 = vadd.f32 %v1189, %v1277
      %v1294 = vadd.f32 %v1190, %v1278
      %v1295 = vadd.f32 %v1191, %v1279
      %v1296 = vadd.f32 %v1192, %v1280
      %v1297 = vadd.f32 %v1193, %v1281
      %v1298 = vadd.f32 %v1194, %v1282
      %v1299 = vadd.f32 %v1195, %v1283
      %v1300 = vadd.f32 %v1196, %v1284
      %v1301 = vadd.f32 %v1197, %v1285
      %s1302 = scalar_lea.vmem %s5, 2
      %v1303 = vld [vmem:[%s1302] sm:$0x1]
      %1304 = vset.pattern.permute.xlu0 0
      %1305 = vperm.xlu0 %1304, %v1078
      %v1306 = vpop.permute.xlu0 %1305
      %1308 = vset.pattern.permute.xlu0 0
      %1309 = vperm.xlu0 %1308, %v1080
      %v1310 = vpop.permute.xlu0 %1309
      %1312 = vset.pattern.permute.xlu0 0
      %1313 = vperm.xlu0 %1312, %v1082
      %v1314 = vpop.permute.xlu0 %1313
      %1316 = vset.pattern.permute.xlu0 0
      %1317 = vperm.xlu0 %1316, %v1084
      %v1318 = vpop.permute.xlu0 %1317
      %1320 = vset.pattern.permute.xlu0 0
      %1321 = vperm.xlu0 %1320, %v1086
      %v1322 = vpop.permute.xlu0 %1321
      %1324 = vset.pattern.permute.xlu0 0
      %1325 = vperm.xlu0 %1324, %v1088
      %v1326 = vpop.permute.xlu0 %1325
      %1328 = vset.pattern.permute.xlu0 0
      %1329 = vperm.xlu0 %1328, %v1090
      %v1330 = vpop.permute.xlu0 %1329
      %1332 = vset.pattern.permute.xlu0 0
      %1333 = vperm.xlu0 %1332, %v1092
      %v1334 = vpop.permute.xlu0 %1333
      %1336 = vset.pattern.permute.xlu0 0
      %1337 = vperm.xlu0 %1336, %v1094
      %v1338 = vpop.permute.xlu0 %1337
      %1340 = vset.pattern.permute.xlu0 0
      %1341 = vperm.xlu0 %1340, %v1096
      %v1342 = vpop.permute.xlu0 %1341
      %1344 = vset.pattern.permute.xlu0 0
      %1345 = vperm.xlu0 %1344, %v1098
      %v1346 = vpop.permute.xlu0 %1345
      %1348 = vset.pattern.permute.xlu0 0
      %1349 = vperm.xlu0 %1348, %v1100
      %v1350 = vpop.permute.xlu0 %1349
      %1352 = vset.pattern.permute.xlu0 0
      %1353 = vperm.xlu0 %1352, %v1102
      %v1354 = vpop.permute.xlu0 %1353
      %1356 = vset.pattern.permute.xlu0 0
      %1357 = vperm.xlu0 %1356, %v1104
      %v1358 = vpop.permute.xlu0 %1357
      %1360 = vset.pattern.permute.xlu0 0
      %1361 = vperm.xlu0 %1360, %v1106
      %v1362 = vpop.permute.xlu0 %1361
      %1365 = vset.pattern.permute.xlu0 0
      %1366 = vperm.xlu0 %1365, %v1109
      %v1367 = vpop.permute.xlu0 %1366
      %v1370 = vlaneseq
      %v1371 = vshrl.u32 %v1370, 7
      %v1372 = vsub.s32 0, %v1371
      %v1373 = vrot.slane %v1303, %v1372
      %v1375 = vmul.f32 %v1306, %v1373
      %v1376 = vmul.f32 %v1310, %v1373
      %v1377 = vmul.f32 %v1314, %v1373
      %v1378 = vmul.f32 %v1318, %v1373
      %v1379 = vmul.f32 %v1322, %v1373
      %v1380 = vmul.f32 %v1326, %v1373
      %v1381 = vmul.f32 %v1330, %v1373
      %v1382 = vmul.f32 %v1334, %v1373
      %v1383 = vmul.f32 %v1338, %v1373
      %v1384 = vmul.f32 %v1342, %v1373
      %v1385 = vmul.f32 %v1346, %v1373
      %v1386 = vmul.f32 %v1350, %v1373
      %v1387 = vmul.f32 %v1354, %v1373
      %v1388 = vmul.f32 %v1358, %v1373
      %v1389 = vmul.f32 %v1362, %v1373
      %v1390 = vmul.f32 %v1367, %v1373
      %v1391 = vadd.f32 %v1286, %v1375
      %v1392 = vadd.f32 %v1287, %v1376
      %v1393 = vadd.f32 %v1288, %v1377
      %v1394 = vadd.f32 %v1289, %v1378
      %v1395 = vadd.f32 %v1290, %v1379
      %v1396 = vadd.f32 %v1291, %v1380
      %v1397 = vadd.f32 %v1292, %v1381
      %v1398 = vadd.f32 %v1293, %v1382
      %v1399 = vadd.f32 %v1294, %v1383
      %v1400 = vadd.f32 %v1295, %v1384
      %v1401 = vadd.f32 %v1296, %v1385
      %v1402 = vadd.f32 %v1297, %v1386
      %v1403 = vadd.f32 %v1298, %v1387
      %v1404 = vadd.f32 %v1299, %v1388
      %v1405 = vadd.f32 %v1300, %v1389
      %v1406 = vadd.f32 %v1301, %v1390
      %v1407 = vld [vmem:[%s7] sm:$0x1]
      %v1409 = vlaneseq
      %v1410 = vshrl.u32 %v1409, 7
      %v1411 = vsub.s32 0, %v1410
      %v1412 = vrot.slane %v1407, %v1411
      %v1414 = vadd.f32 %v1391, %v1412
      %v1415 = vadd.f32 %v1392, %v1412
      %v1416 = vadd.f32 %v1393, %v1412
      %v1417 = vadd.f32 %v1394, %v1412
      %v1418 = vadd.f32 %v1395, %v1412
      %v1419 = vadd.f32 %v1396, %v1412
      %v1420 = vadd.f32 %v1397, %v1412
      %v1421 = vadd.f32 %v1398, %v1412
      %v1422 = vadd.f32 %v1399, %v1412
      %v1423 = vadd.f32 %v1400, %v1412
      %v1424 = vadd.f32 %v1401, %v1412
      %v1425 = vadd.f32 %v1402, %v1412
      %v1426 = vadd.f32 %v1403, %v1412
      %v1427 = vadd.f32 %v1404, %v1412
      %v1428 = vadd.f32 %v1405, %v1412
      %v1429 = vadd.f32 %v1406, %v1412
      %v1430 = vmax.f32 %v1414, 0.0
      %v1431 = vmax.f32 %v1415, 0.0
      %v1432 = vmax.f32 %v1416, 0.0
      %v1433 = vmax.f32 %v1417, 0.0
      %v1434 = vmax.f32 %v1418, 0.0
      %v1435 = vmax.f32 %v1419, 0.0
      %v1436 = vmax.f32 %v1420, 0.0
      %v1437 = vmax.f32 %v1421, 0.0
      %v1438 = vmax.f32 %v1422, 0.0
      %v1439 = vmax.f32 %v1423, 0.0
      %v1440 = vmax.f32 %v1424, 0.0
      %v1441 = vmax.f32 %v1425, 0.0
      %v1442 = vmax.f32 %v1426, 0.0
      %v1443 = vmax.f32 %v1427, 0.0
      %v1444 = vmax.f32 %v1428, 0.0
      %v1445 = vmax.f32 %v1429, 0.0
      %v1446 = vmax.f32 %v1430, 0.0
      %v1447 = vmax.f32 %v1431, 0.0
      %v1448 = vmax.f32 %v1432, 0.0
      %v1449 = vmax.f32 %v1433, 0.0
      %v1450 = vmax.f32 %v1434, 0.0
      %v1451 = vmax.f32 %v1435, 0.0
      %v1452 = vmax.f32 %v1436, 0.0
      %v1453 = vmax.f32 %v1437, 0.0
      %v1454 = vmax.f32 %v1438, 0.0
      %v1455 = vmax.f32 %v1439, 0.0
      %v1456 = vmax.f32 %v1440, 0.0
      %v1457 = vmax.f32 %v1441, 0.0
      %v1458 = vmax.f32 %v1442, 0.0
      %v1459 = vmax.f32 %v1443, 0.0
      %v1460 = vmax.f32 %v1444, 0.0
      %v1461 = vmax.f32 %v1445, 0.0
      %v1463 = vrot.slane %v1461, 7
      %v1480 = vrot.slane %v1446, 7
      %v1481 = vrot.slane %v1447, 7
      %v1482 = vsel %vm1042, %v1480, %v1481
      %v1483 = vrot.slane %v1448, 7
      %v1484 = vsel %vm1042, %v1481, %v1483
      %v1485 = vrot.slane %v1449, 7
      %v1486 = vsel %vm1042, %v1483, %v1485
      %v1487 = vrot.slane %v1450, 7
      %v1488 = vsel %vm1042, %v1485, %v1487
      %v1489 = vrot.slane %v1451, 7
      %v1490 = vsel %vm1042, %v1487, %v1489
      %v1491 = vrot.slane %v1452, 7
      %v1492 = vsel %vm1042, %v1489, %v1491
      %v1493 = vrot.slane %v1453, 7
      %v1494 = vsel %vm1042, %v1491, %v1493
      %v1495 = vrot.slane %v1454, 7
      %v1496 = vsel %vm1042, %v1493, %v1495
      %v1497 = vrot.slane %v1455, 7
      %v1498 = vsel %vm1042, %v1495, %v1497
      %v1499 = vrot.slane %v1456, 7
      %v1500 = vsel %vm1042, %v1497, %v1499
      %v1501 = vrot.slane %v1457, 7
      %v1502 = vsel %vm1042, %v1499, %v1501
      %v1503 = vrot.slane %v1458, 7
      %v1504 = vsel %vm1042, %v1501, %v1503
      %v1505 = vrot.slane %v1459, 7
      %v1506 = vsel %vm1042, %v1503, %v1505
      %v1507 = vrot.slane %v1460, 7
      %v1508 = vsel %vm1042, %v1505, %v1507
      %v1509 = vsel %vm1042, %v1507, %v1463
      %v1511 = vsel %vm1042, %v1463, %v1480
      %v1512 = vrot.slane %v1446, 1
      %v1513 = vrot.slane %v1447, 1
      %v1514 = vsel %vm1075, %v1512, %v1513
      %v1515 = vrot.slane %v1448, 1
      %v1516 = vsel %vm1075, %v1513, %v1515
      %v1517 = vrot.slane %v1449, 1
      %v1518 = vsel %vm1075, %v1515, %v1517
      %v1519 = vrot.slane %v1450, 1
      %v1520 = vsel %vm1075, %v1517, %v1519
      %v1521 = vrot.slane %v1451, 1
      %v1522 = vsel %vm1075, %v1519, %v1521
      %v1523 = vrot.slane %v1452, 1
      %v1524 = vsel %vm1075, %v1521, %v1523
      %v1525 = vrot.slane %v1453, 1
      %v1526 = vsel %vm1075, %v1523, %v1525
      %v1527 = vrot.slane %v1454, 1
      %v1528 = vsel %vm1075, %v1525, %v1527
      %v1529 = vrot.slane %v1455, 1
      %v1530 = vsel %vm1075, %v1527, %v1529
      %v1531 = vrot.slane %v1456, 1
      %v1532 = vsel %vm1075, %v1529, %v1531
      %v1533 = vrot.slane %v1457, 1
      %v1534 = vsel %vm1075, %v1531, %v1533
      %v1535 = vrot.slane %v1458, 1
      %v1536 = vsel %vm1075, %v1533, %v1535
      %v1537 = vrot.slane %v1459, 1
      %v1538 = vsel %vm1075, %v1535, %v1537
      %v1539 = vrot.slane %v1460, 1
      %v1540 = vsel %vm1075, %v1537, %v1539
      %v1541 = vrot.slane %v1461, 1
      %v1542 = vsel %vm1075, %v1539, %v1541
      %v1545 = vsel %vm1075, %v1541, %v1512
      %v1546 = vld [vmem:[%s9] sm:$0xff]
      %v1547 = vld [vmem:[%s9 + $0x8] sm:$0xff]
      %v1548 = vld [vmem:[%s9 + $0x10] sm:$0xff]
      %v1549 = vld [vmem:[%s9 + $0x18] sm:$0xff]
      %v1550 = vld [vmem:[%s9 + $0x20] sm:$0xff]
      %v1551 = vld [vmem:[%s9 + $0x28] sm:$0xff]
      %v1552 = vld [vmem:[%s9 + $0x30] sm:$0xff]
      %v1553 = vld [vmem:[%s9 + $0x38] sm:$0xff]
      %s1554 = scalar_lea.vmem %s9, 64
      %v1555 = vld [vmem:[%s1554] sm:$0xff]
      %v1556 = vld [vmem:[%s1554 + $0x8] sm:$0xff]
      %v1557 = vld [vmem:[%s1554 + $0x10] sm:$0xff]
      %v1558 = vld [vmem:[%s1554 + $0x18] sm:$0xff]
      %v1559 = vld [vmem:[%s1554 + $0x20] sm:$0xff]
      %v1560 = vld [vmem:[%s1554 + $0x28] sm:$0xff]
      %v1561 = vld [vmem:[%s1554 + $0x30] sm:$0xff]
      %v1562 = vld [vmem:[%s1554 + $0x38] sm:$0xff]
      %vm1563 = vcmask 523264
      %v1564 = vsel %vm1563, %v1446, 0
      %v1566 = vsel %vm1563, %v1447, 0
      %v1568 = vsel %vm1563, %v1448, 0
      %v1570 = vsel %vm1563, %v1449, 0
      %v1572 = vsel %vm1563, %v1450, 0
      %v1574 = vsel %vm1563, %v1451, 0
      %v1576 = vsel %vm1563, %v1452, 0
      %v1578 = vsel %vm1563, %v1453, 0
      %v1580 = vsel %vm1563, %v1454, 0
      %v1582 = vsel %vm1563, %v1455, 0
      %v1584 = vsel %vm1563, %v1456, 0
      %v1586 = vsel %vm1563, %v1457, 0
      %v1588 = vsel %vm1563, %v1458, 0
      %v1590 = vsel %vm1563, %v1459, 0
      %v1592 = vsel %vm1563, %v1460, 0
      %v1594 = vsel %vm1563, %v1461, 0
      %1596 = vmatprep.subr.mxu0 0.0
      %1597 = vmatpush1.msra.mxu0 %v1555
      %1598 = vmatprep.subr.mxu0 0.0
      %1599 = vmatpush1.msra.mxu0 %v1556
      %1600 = vmatprep.subr.mxu0 0.0
      %1601 = vmatpush1.msra.mxu0 %v1557
      %1602 = vmatprep.subr.mxu0 0.0
      %1603 = vmatpush1.msra.mxu0 %v1558
      %1604 = vmatprep.subr.mxu0 0.0
      %1605 = vmatpush1.msra.mxu0 %v1559
      %1606 = vmatprep.subr.mxu0 0.0
      %1607 = vmatpush1.msra.mxu0 %v1560
      %1608 = vmatprep.subr.mxu0 0.0
      %1609 = vmatpush1.msra.mxu0 %v1561
      %1610 = vmatprep.subr.mxu0 0.0
      %1611 = vmatpush1.msra.mxu0 %v1562
      %1612 = vmatprep.subr.mxu0 0.0
      %1613 = vmatpush1.msra.mxu0 0.0
      %1614 = vmatprep.subr.mxu0 0.0
      %1615 = vmatpush1.msra.mxu0 0.0
      %1616 = vmatprep.subr.mxu0 0.0
      %1617 = vmatpush1.msra.mxu0 0.0
      %1618 = vmatprep.subr.mxu0 0.0
      %1619 = vmatpush1.msra.mxu0 0.0
      %1620 = vmatprep.subr.mxu0 0.0
      %1621 = vmatpush1.msra.mxu0 0.0
      %1622 = vmatprep.subr.mxu0 0.0
      %1623 = vmatpush1.msra.mxu0 0.0
      %1624 = vmatprep.subr.mxu0 0.0
      %1625 = vmatpush1.msra.mxu0 0.0
      %1626 = vmatprep.subr.mxu0 0.0
      %1627 = vmatpush1.msra.mxu0 0.0
      %1628 = vmatprep.subr.mxu0 0.0
      %1629 = vmatpush1.msra.mxu0 0.0
      %1630 = vmatprep.subr.mxu0 0.0
      %1631 = vmatpush1.msra.mxu0 0.0
      %1632 = vmatprep.subr.mxu0 0.0
      %1633 = vmatpush1.msra.mxu0 0.0
      %1634 = vmatprep.subr.mxu0 0.0
      %1635 = vmatpush1.msra.mxu0 0.0
      %1636 = vmatprep.subr.mxu0 0.0
      %1637 = vmatpush1.msra.mxu0 0.0
      %1638 = vmatprep.subr.mxu0 0.0
      %1639 = vmatpush1.msra.mxu0 0.0
      %1640 = vmatprep.subr.mxu0 0.0
      %1641 = vmatpush1.msra.mxu0 0.0
      %1642 = vmatprep.subr.mxu0 0.0
      %1643 = vmatpush1.msra.mxu0 0.0
      %1644 = vmatprep.subr.mxu0 0.0
      %1645 = vmatpush1.msra.mxu0 0.0
      %1646 = vmatprep.subr.mxu0 0.0
      %1647 = vmatpush1.msra.mxu0 0.0
      %1648 = vmatprep.subr.mxu0 0.0
      %1649 = vmatpush1.msra.mxu0 0.0
      %1650 = vmatprep.subr.mxu0 0.0
      %1651 = vmatpush1.msra.mxu0 0.0
      %1652 = vmatprep.subr.mxu0 0.0
      %1653 = vmatpush1.msra.mxu0 0.0
      %1654 = vmatprep.subr.mxu0 0.0
      %1655 = vmatpush1.msra.mxu0 0.0
      %1656 = vmatprep.subr.mxu0 0.0
      %1657 = vmatpush1.msra.mxu0 0.0
      %1658 = vmatprep.subr.mxu0 0.0
      %1659 = vmatpush1.msra.mxu0 0.0
      %1660 = vmatprep.mubr.f32.mxu0 0.0
      %1661 = vmatmul.mubr.f32.gmra.mrb[0].mxu0 %v1564
      %v1662 = vpop.f32.mrb[0].mxu0
      %v1663 = vadd.f32 0.0, %v1662
      %v1664 = vpop.f32.mrb[0].mxu0
      %1665 = vmatprep.mubr.f32.mxu0 0.0
      %1666 = vmatmul.mubr.f32.gmra.mrb[0].mxu0 %v1566
      %v1667 = vpop.f32.mrb[0].mxu0
      %v1668 = vadd.f32 0.0, %v1667
      %v1669 = vpop.f32.mrb[0].mxu0
      %1670 = vmatprep.mubr.f32.mxu0 0.0
      %1671 = vmatmul.mubr.f32.gmra.mrb[0].mxu0 %v1568
      %v1672 = vpop.f32.mrb[0].mxu0
      %v1673 = vadd.f32 0.0, %v1672
      %v1674 = vpop.f32.mrb[0].mxu0
      %1675 = vmatprep.mubr.f32.mxu0 0.0
      %1676 = vmatmul.mubr.f32.gmra.mrb[0].mxu0 %v1570
      %v1677 = vpop.f32.mrb[0].mxu0
      %v1678 = vadd.f32 0.0, %v1677
      %v1679 = vpop.f32.mrb[0].mxu0
      %1680 = vmatprep.mubr.f32.mxu0 0.0
      %1681 = vmatmul.mubr.f32.gmra.mrb[0].mxu0 %v1572
      %v1682 = vpop.f32.mrb[0].mxu0
      %v1683 = vadd.f32 0.0, %v1682
      %v1684 = vpop.f32.mrb[0].mxu0
      %1685 = vmatprep.mubr.f32.mxu0 0.0
      %1686 = vmatmul.mubr.f32.gmra.mrb[0].mxu0 %v1574
      %v1687 = vpop.f32.mrb[0].mxu0
      %v1688 = vadd.f32 0.0, %v1687
      %v1689 = vpop.f32.mrb[0].mxu0
      %1690 = vmatprep.mubr.f32.mxu0 0.0
      %1691 = vmatmul.mubr.f32.gmra.mrb[0].mxu0 %v1576
      %v1692 = vpop.f32.mrb[0].mxu0
      %v1693 = vadd.f32 0.0, %v1692
      %v1694 = vpop.f32.mrb[0].mxu0
      %1695 = vmatprep.mubr.f32.mxu0 0.0
      %1696 = vmatmul.mubr.f32.gmra.mrb[0].mxu0 %v1578
      %v1697 = vpop.f32.mrb[0].mxu0
      %v1698 = vadd.f32 0.0, %v1697
      %v1699 = vpop.f32.mrb[0].mxu0
      %1700 = vmatprep.mubr.f32.mxu0 0.0
      %1701 = vmatmul.mubr.f32.gmra.mrb[0].mxu0 %v1580
      %v1702 = vpop.f32.mrb[0].mxu0
      %v1703 = vadd.f32 0.0, %v1702
      %v1704 = vpop.f32.mrb[0].mxu0
      %1705 = vmatprep.mubr.f32.mxu0 0.0
      %1706 = vmatmul.mubr.f32.gmra.mrb[0].mxu0 %v1582
      %v1707 = vpop.f32.mrb[0].mxu0
      %v1708 = vadd.f32 0.0, %v1707
      %v1709 = vpop.f32.mrb[0].mxu0
      %1710 = vmatprep.mubr.f32.mxu0 0.0
      %1711 = vmatmul.mubr.f32.gmra.mrb[0].mxu0 %v1584
      %v1712 = vpop.f32.mrb[0].mxu0
      %v1713 = vadd.f32 0.0, %v1712
      %v1714 = vpop.f32.mrb[0].mxu0
      %1715 = vmatprep.mubr.f32.mxu0 0.0
      %1716 = vmatmul.mubr.f32.gmra.mrb[0].mxu0 %v1586
      %v1717 = vpop.f32.mrb[0].mxu0
      %v1718 = vadd.f32 0.0, %v1717
      %v1719 = vpop.f32.mrb[0].mxu0
      %1720 = vmatprep.mubr.f32.mxu0 0.0
      %1721 = vmatmul.mubr.f32.gmra.mrb[0].mxu0 %v1588
      %v1722 = vpop.f32.mrb[0].mxu0
      %v1723 = vadd.f32 0.0, %v1722
      %v1724 = vpop.f32.mrb[0].mxu0
      %1725 = vmatprep.mubr.f32.mxu0 0.0
      %1726 = vmatmul.mubr.f32.gmra.mrb[0].mxu0 %v1590
      %v1727 = vpop.f32.mrb[0].mxu0
      %v1728 = vadd.f32 0.0, %v1727
      %v1729 = vpop.f32.mrb[0].mxu0
      %1730 = vmatprep.mubr.f32.mxu0 0.0
      %1731 = vmatmul.mubr.f32.gmra.mrb[0].mxu0 %v1592
      %v1732 = vpop.f32.mrb[0].mxu0
      %v1733 = vadd.f32 0.0, %v1732
      %v1734 = vpop.f32.mrb[0].mxu0
      %1735 = vmatprep.mubr.f32.mxu0 0.0
      %1736 = vmatmul.mubr.f32.gmra.mrb[0].mxu0 %v1594
      %v1737 = vpop.f32.mrb[0].mxu0
      %v1738 = vadd.f32 0.0, %v1737
      %v1739 = vpop.f32.mrb[0].mxu0
      %1740 = vdwg.mxu0
      %v1742 = vsel %vm1563, %v1511, 0
      %v1744 = vsel %vm1563, %v1482, 0
      %v1746 = vsel %vm1563, %v1484, 0
      %v1748 = vsel %vm1563, %v1486, 0
      %v1750 = vsel %vm1563, %v1488, 0
      %v1752 = vsel %vm1563, %v1490, 0
      %v1754 = vsel %vm1563, %v1492, 0
      %v1756 = vsel %vm1563, %v1494, 0
      %v1758 = vsel %vm1563, %v1496, 0
      %v1760 = vsel %vm1563, %v1498, 0
      %v1762 = vsel %vm1563, %v1500, 0
      %v1764 = vsel %vm1563, %v1502, 0
      %v1766 = vsel %vm1563, %v1504, 0
      %v1768 = vsel %vm1563, %v1506, 0
      %v1770 = vsel %vm1563, %v1508, 0
      %v1772 = vsel %vm1563, %v1509, 0
      %1774 = vmatprep.subr.mxu0 0.0
      %1775 = vmatpush1.msra.mxu0 %v1546
      %1776 = vmatprep.subr.mxu0 0.0
      %1777 = vmatpush1.msra.mxu0 %v1547
      %1778 = vmatprep.subr.mxu0 0.0
      %1779 = vmatpush1.msra.mxu0 %v1548
      %1780 = vmatprep.subr.mxu0 0.0
      %1781 = vmatpush1.msra.mxu0 %v1549
      %1782 = vmatprep.subr.mxu0 0.0
      %1783 = vmatpush1.msra.mxu0 %v1550
      %1784 = vmatprep.subr.mxu0 0.0
      %1785 = vmatpush1.msra.mxu0 %v1551
      %1786 = vmatprep.subr.mxu0 0.0
      %1787 = vmatpush1.msra.mxu0 %v1552
      %1788 = vmatprep.subr.mxu0 0.0
      %1789 = vmatpush1.msra.mxu0 %v1553
      %1790 = vmatprep.subr.mxu0 0.0
      %1791 = vmatpush1.msra.mxu0 0.0
      %1792 = vmatprep.subr.mxu0 0.0
      %1793 = vmatpush1.msra.mxu0 0.0
      %1794 = vmatprep.subr.mxu0 0.0
      %1795 = vmatpush1.msra.mxu0 0.0
      %1796 = vmatprep.subr.mxu0 0.0
      %1797 = vmatpush1.msra.mxu0 0.0
      %1798 = vmatprep.subr.mxu0 0.0
      %1799 = vmatpush1.msra.mxu0 0.0
      %1800 = vmatprep.subr.mxu0 0.0
      %1801 = vmatpush1.msra.mxu0 0.0
      %1802 = vmatprep.subr.mxu0 0.0
      %1803 = vmatpush1.msra.mxu0 0.0
      %1804 = vmatprep.subr.mxu0 0.0
      %1805 = vmatpush1.msra.mxu0 0.0
      %1806 = vmatprep.subr.mxu0 0.0
      %1807 = vmatpush1.msra.mxu0 0.0
      %1808 = vmatprep.subr.mxu0 0.0
      %1809 = vmatpush1.msra.mxu0 0.0
      %1810 = vmatprep.subr.mxu0 0.0
      %1811 = vmatpush1.msra.mxu0 0.0
      %1812 = vmatprep.subr.mxu0 0.0
      %1813 = vmatpush1.msra.mxu0 0.0
      %1814 = vmatprep.subr.mxu0 0.0
      %1815 = vmatpush1.msra.mxu0 0.0
      %1816 = vmatprep.subr.mxu0 0.0
      %1817 = vmatpush1.msra.mxu0 0.0
      %1818 = vmatprep.subr.mxu0 0.0
      %1819 = vmatpush1.msra.mxu0 0.0
      %1820 = vmatprep.subr.mxu0 0.0
      %1821 = vmatpush1.msra.mxu0 0.0
      %1822 = vmatprep.subr.mxu0 0.0
      %1823 = vmatpush1.msra.mxu0 0.0
      %1824 = vmatprep.subr.mxu0 0.0
      %1825 = vmatpush1.msra.mxu0 0.0
      %1826 = vmatprep.subr.mxu0 0.0
      %1827 = vmatpush1.msra.mxu0 0.0
      %1828 = vmatprep.subr.mxu0 0.0
      %1829 = vmatpush1.msra.mxu0 0.0
      %1830 = vmatprep.subr.mxu0 0.0
      %1831 = vmatpush1.msra.mxu0 0.0
      %1832 = vmatprep.subr.mxu0 0.0
      %1833 = vmatpush1.msra.mxu0 0.0
      %1834 = vmatprep.subr.mxu0 0.0
      %1835 = vmatpush1.msra.mxu0 0.0
      %1836 = vmatprep.subr.mxu0 0.0
      %1837 = vmatpush1.msra.mxu0 0.0
      %1838 = vmatprep.mubr.f32.mxu0 0.0
      %1839 = vmatmul.mubr.f32.gmra.mrb[0].mxu0 %v1742
      %v1840 = vpop.f32.mrb[0].mxu0
      %v1841 = vadd.f32 %v1663, %v1840
      %v1842 = vpop.f32.mrb[0].mxu0
      %1843 = vmatprep.mubr.f32.mxu0 0.0
      %1844 = vmatmul.mubr.f32.gmra.mrb[0].mxu0 %v1744
      %v1845 = vpop.f32.mrb[0].mxu0
      %v1846 = vadd.f32 %v1668, %v1845
      %v1847 = vpop.f32.mrb[0].mxu0
      %1848 = vmatprep.mubr.f32.mxu0 0.0
      %1849 = vmatmul.mubr.f32.gmra.mrb[0].mxu0 %v1746
      %v1850 = vpop.f32.mrb[0].mxu0
      %v1851 = vadd.f32 %v1673, %v1850
      %v1852 = vpop.f32.mrb[0].mxu0
      %1853 = vmatprep.mubr.f32.mxu0 0.0
      %1854 = vmatmul.mubr.f32.gmra.mrb[0].mxu0 %v1748
      %v1855 = vpop.f32.mrb[0].mxu0
      %v1856 = vadd.f32 %v1678, %v1855
      %v1857 = vpop.f32.mrb[0].mxu0
      %1858 = vmatprep.mubr.f32.mxu0 0.0
      %1859 = vmatmul.mubr.f32.gmra.mrb[0].mxu0 %v1750
      %v1860 = vpop.f32.mrb[0].mxu0
      %v1861 = vadd.f32 %v1683, %v1860
      %v1862 = vpop.f32.mrb[0].mxu0
      %1863 = vmatprep.mubr.f32.mxu0 0.0
      %1864 = vmatmul.mubr.f32.gmra.mrb[0].mxu0 %v1752
      %v1865 = vpop.f32.mrb[0].mxu0
      %v1866 = vadd.f32 %v1688, %v1865
      %v1867 = vpop.f32.mrb[0].mxu0
      %1868 = vmatprep.mubr.f32.mxu0 0.0
      %1869 = vmatmul.mubr.f32.gmra.mrb[0].mxu0 %v1754
      %v1870 = vpop.f32.mrb[0].mxu0
      %v1871 = vadd.f32 %v1693, %v1870
      %v1872 = vpop.f32.mrb[0].mxu0
      %1873 = vmatprep.mubr.f32.mxu0 0.0
      %1874 = vmatmul.mubr.f32.gmra.mrb[0].mxu0 %v1756
      %v1875 = vpop.f32.mrb[0].mxu0
      %v1876 = vadd.f32 %v1698, %v1875
      %v1877 = vpop.f32.mrb[0].mxu0
      %1878 = vmatprep.mubr.f32.mxu0 0.0
      %1879 = vmatmul.mubr.f32.gmra.mrb[0].mxu0 %v1758
      %v1880 = vpop.f32.mrb[0].mxu0
      %v1881 = vadd.f32 %v1703, %v1880
      %v1882 = vpop.f32.mrb[0].mxu0
      %1883 = vmatprep.mubr.f32.mxu0 0.0
      %1884 = vmatmul.mubr.f32.gmra.mrb[0].mxu0 %v1760
      %v1885 = vpop.f32.mrb[0].mxu0
      %v1886 = vadd.f32 %v1708, %v1885
      %v1887 = vpop.f32.mrb[0].mxu0
      %1888 = vmatprep.mubr.f32.mxu0 0.0
      %1889 = vmatmul.mubr.f32.gmra.mrb[0].mxu0 %v1762
      %v1890 = vpop.f32.mrb[0].mxu0
      %v1891 = vadd.f32 %v1713, %v1890
      %v1892 = vpop.f32.mrb[0].mxu0
      %1893 = vmatprep.mubr.f32.mxu0 0.0
      %1894 = vmatmul.mubr.f32.gmra.mrb[0].mxu0 %v1764
      %v1895 = vpop.f32.mrb[0].mxu0
      %v1896 = vadd.f32 %v1718, %v1895
      %v1897 = vpop.f32.mrb[0].mxu0
      %1898 = vmatprep.mubr.f32.mxu0 0.0
      %1899 = vmatmul.mubr.f32.gmra.mrb[0].mxu0 %v1766
      %v1900 = vpop.f32.mrb[0].mxu0
      %v1901 = vadd.f32 %v1723, %v1900
      %v1902 = vpop.f32.mrb[0].mxu0
      %1903 = vmatprep.mubr.f32.mxu0 0.0
      %1904 = vmatmul.mubr.f32.gmra.mrb[0].mxu0 %v1768
      %v1905 = vpop.f32.mrb[0].mxu0
      %v1906 = vadd.f32 %v1728, %v1905
      %v1907 = vpop.f32.mrb[0].mxu0
      %1908 = vmatprep.mubr.f32.mxu0 0.0
      %1909 = vmatmul.mubr.f32.gmra.mrb[0].mxu0 %v1770
      %v1910 = vpop.f32.mrb[0].mxu0
      %v1911 = vadd.f32 %v1733, %v1910
      %v1912 = vpop.f32.mrb[0].mxu0
      %1913 = vmatprep.mubr.f32.mxu0 0.0
      %1914 = vmatmul.mubr.f32.gmra.mrb[0].mxu0 %v1772
      %v1915 = vpop.f32.mrb[0].mxu0
      %v1916 = vadd.f32 %v1738, %v1915
      %v1917 = vpop.f32.mrb[0].mxu0
      %1918 = vdwg.mxu0
      %s1919 = scalar_lea.vmem %s9, 128
      %v1920 = vld [vmem:[%s1919] sm:$0xff]
      %v1921 = vld [vmem:[%s1919 + $0x8] sm:$0xff]
      %v1922 = vld [vmem:[%s1919 + $0x10] sm:$0xff]
      %v1923 = vld [vmem:[%s1919 + $0x18] sm:$0xff]
      %v1924 = vld [vmem:[%s1919 + $0x20] sm:$0xff]
      %v1925 = vld [vmem:[%s1919 + $0x28] sm:$0xff]
      %v1926 = vld [vmem:[%s1919 + $0x30] sm:$0xff]
      %v1927 = vld [vmem:[%s1919 + $0x38] sm:$0xff]
      %v1928 = vsel %vm1563, %v1514, 0
      %v1930 = vsel %vm1563, %v1516, 0
      %v1932 = vsel %vm1563, %v1518, 0
      %v1934 = vsel %vm1563, %v1520, 0
      %v1936 = vsel %vm1563, %v1522, 0
      %v1938 = vsel %vm1563, %v1524, 0
      %v1940 = vsel %vm1563, %v1526, 0
      %v1942 = vsel %vm1563, %v1528, 0
      %v1944 = vsel %vm1563, %v1530, 0
      %v1946 = vsel %vm1563, %v1532, 0
      %v1948 = vsel %vm1563, %v1534, 0
      %v1950 = vsel %vm1563, %v1536, 0
      %v1952 = vsel %vm1563, %v1538, 0
      %v1954 = vsel %vm1563, %v1540, 0
      %v1956 = vsel %vm1563, %v1542, 0
      %v1959 = vsel %vm1563, %v1545, 0
      %1961 = vmatprep.subr.mxu0 0.0
      %1962 = vmatpush1.msra.mxu0 %v1920
      %1963 = vmatprep.subr.mxu0 0.0
      %1964 = vmatpush1.msra.mxu0 %v1921
      %1965 = vmatprep.subr.mxu0 0.0
      %1966 = vmatpush1.msra.mxu0 %v1922
      %1967 = vmatprep.subr.mxu0 0.0
      %1968 = vmatpush1.msra.mxu0 %v1923
      %1969 = vmatprep.subr.mxu0 0.0
      %1970 = vmatpush1.msra.mxu0 %v1924
      %1971 = vmatprep.subr.mxu0 0.0
      %1972 = vmatpush1.msra.mxu0 %v1925
      %1973 = vmatprep.subr.mxu0 0.0
      %1974 = vmatpush1.msra.mxu0 %v1926
      %1975 = vmatprep.subr.mxu0 0.0
      %1976 = vmatpush1.msra.mxu0 %v1927
      %1977 = vmatprep.subr.mxu0 0.0
      %1978 = vmatpush1.msra.mxu0 0.0
      %1979 = vmatprep.subr.mxu0 0.0
      %1980 = vmatpush1.msra.mxu0 0.0
      %1981 = vmatprep.subr.mxu0 0.0
      %1982 = vmatpush1.msra.mxu0 0.0
      %1983 = vmatprep.subr.mxu0 0.0
      %1984 = vmatpush1.msra.mxu0 0.0
      %1985 = vmatprep.subr.mxu0 0.0
      %1986 = vmatpush1.msra.mxu0 0.0
      %1987 = vmatprep.subr.mxu0 0.0
      %1988 = vmatpush1.msra.mxu0 0.0
      %1989 = vmatprep.subr.mxu0 0.0
      %1990 = vmatpush1.msra.mxu0 0.0
      %1991 = vmatprep.subr.mxu0 0.0
      %1992 = vmatpush1.msra.mxu0 0.0
      %1993 = vmatprep.subr.mxu0 0.0
      %1994 = vmatpush1.msra.mxu0 0.0
      %1995 = vmatprep.subr.mxu0 0.0
      %1996 = vmatpush1.msra.mxu0 0.0
      %1997 = vmatprep.subr.mxu0 0.0
      %1998 = vmatpush1.msra.mxu0 0.0
      %1999 = vmatprep.subr.mxu0 0.0
      %2000 = vmatpush1.msra.mxu0 0.0
      %2001 = vmatprep.subr.mxu0 0.0
      %2002 = vmatpush1.msra.mxu0 0.0
      %2003 = vmatprep.subr.mxu0 0.0
      %2004 = vmatpush1.msra.mxu0 0.0
      %2005 = vmatprep.subr.mxu0 0.0
      %2006 = vmatpush1.msra.mxu0 0.0
      %2007 = vmatprep.subr.mxu0 0.0
      %2008 = vmatpush1.msra.mxu0 0.0
      %2009 = vmatprep.subr.mxu0 0.0
      %2010 = vmatpush1.msra.mxu0 0.0
      %2011 = vmatprep.subr.mxu0 0.0
      %2012 = vmatpush1.msra.mxu0 0.0
      %2013 = vmatprep.subr.mxu0 0.0
      %2014 = vmatpush1.msra.mxu0 0.0
      %2015 = vmatprep.subr.mxu0 0.0
      %2016 = vmatpush1.msra.mxu0 0.0
      %2017 = vmatprep.subr.mxu0 0.0
      %2018 = vmatpush1.msra.mxu0 0.0
      %2019 = vmatprep.subr.mxu0 0.0
      %2020 = vmatpush1.msra.mxu0 0.0
      %2021 = vmatprep.subr.mxu0 0.0
      %2022 = vmatpush1.msra.mxu0 0.0
      %2023 = vmatprep.subr.mxu0 0.0
      %2024 = vmatpush1.msra.mxu0 0.0
      %2025 = vmatprep.mubr.f32.mxu0 0.0
      %2026 = vmatmul.mubr.f32.gmra.mrb[0].mxu0 %v1928
      %v2027 = vpop.f32.mrb[0].mxu0
      %v2028 = vadd.f32 0.0, %v2027
      %v2029 = vpop.f32.mrb[0].mxu0
      %2030 = vmatprep.mubr.f32.mxu0 0.0
      %2031 = vmatmul.mubr.f32.gmra.mrb[0].mxu0 %v1930
      %v2032 = vpop.f32.mrb[0].mxu0
      %v2033 = vadd.f32 0.0, %v2032
      %v2034 = vpop.f32.mrb[0].mxu0
      %2035 = vmatprep.mubr.f32.mxu0 0.0
      %2036 = vmatmul.mubr.f32.gmra.mrb[0].mxu0 %v1932
      %v2037 = vpop.f32.mrb[0].mxu0
      %v2038 = vadd.f32 0.0, %v2037
      %v2039 = vpop.f32.mrb[0].mxu0
      %2040 = vmatprep.mubr.f32.mxu0 0.0
      %2041 = vmatmul.mubr.f32.gmra.mrb[0].mxu0 %v1934
      %v2042 = vpop.f32.mrb[0].mxu0
      %v2043 = vadd.f32 0.0, %v2042
      %v2044 = vpop.f32.mrb[0].mxu0
      %2045 = vmatprep.mubr.f32.mxu0 0.0
      %2046 = vmatmul.mubr.f32.gmra.mrb[0].mxu0 %v1936
      %v2047 = vpop.f32.mrb[0].mxu0
      %v2048 = vadd.f32 0.0, %v2047
      %v2049 = vpop.f32.mrb[0].mxu0
      %2050 = vmatprep.mubr.f32.mxu0 0.0
      %2051 = vmatmul.mubr.f32.gmra.mrb[0].mxu0 %v1938
      %v2052 = vpop.f32.mrb[0].mxu0
      %v2053 = vadd.f32 0.0, %v2052
      %v2054 = vpop.f32.mrb[0].mxu0
      %2055 = vmatprep.mubr.f32.mxu0 0.0
      %2056 = vmatmul.mubr.f32.gmra.mrb[0].mxu0 %v1940
      %v2057 = vpop.f32.mrb[0].mxu0
      %v2058 = vadd.f32 0.0, %v2057
      %v2059 = vpop.f32.mrb[0].mxu0
      %2060 = vmatprep.mubr.f32.mxu0 0.0
      %2061 = vmatmul.mubr.f32.gmra.mrb[0].mxu0 %v1942
      %v2062 = vpop.f32.mrb[0].mxu0
      %v2063 = vadd.f32 0.0, %v2062
      %v2064 = vpop.f32.mrb[0].mxu0
      %2065 = vmatprep.mubr.f32.mxu0 0.0
      %2066 = vmatmul.mubr.f32.gmra.mrb[0].mxu0 %v1944
      %v2067 = vpop.f32.mrb[0].mxu0
      %v2068 = vadd.f32 0.0, %v2067
      %v2069 = vpop.f32.mrb[0].mxu0
      %2070 = vmatprep.mubr.f32.mxu0 0.0
      %2071 = vmatmul.mubr.f32.gmra.mrb[0].mxu0 %v1946
      %v2072 = vpop.f32.mrb[0].mxu0
      %v2073 = vadd.f32 0.0, %v2072
      %v2074 = vpop.f32.mrb[0].mxu0
      %2075 = vmatprep.mubr.f32.mxu0 0.0
      %2076 = vmatmul.mubr.f32.gmra.mrb[0].mxu0 %v1948
      %v2077 = vpop.f32.mrb[0].mxu0
      %v2078 = vadd.f32 0.0, %v2077
      %v2079 = vpop.f32.mrb[0].mxu0
      %2080 = vmatprep.mubr.f32.mxu0 0.0
      %2081 = vmatmul.mubr.f32.gmra.mrb[0].mxu0 %v1950
      %v2082 = vpop.f32.mrb[0].mxu0
      %v2083 = vadd.f32 0.0, %v2082
      %v2084 = vpop.f32.mrb[0].mxu0
      %2085 = vmatprep.mubr.f32.mxu0 0.0
      %2086 = vmatmul.mubr.f32.gmra.mrb[0].mxu0 %v1952
      %v2087 = vpop.f32.mrb[0].mxu0
      %v2088 = vadd.f32 0.0, %v2087
      %v2089 = vpop.f32.mrb[0].mxu0
      %2090 = vmatprep.mubr.f32.mxu0 0.0
      %2091 = vmatmul.mubr.f32.gmra.mrb[0].mxu0 %v1954
      %v2092 = vpop.f32.mrb[0].mxu0
      %v2093 = vadd.f32 0.0, %v2092
      %v2094 = vpop.f32.mrb[0].mxu0
      %2095 = vmatprep.mubr.f32.mxu0 0.0
      %2096 = vmatmul.mubr.f32.gmra.mrb[0].mxu0 %v1956
      %v2097 = vpop.f32.mrb[0].mxu0
      %v2098 = vadd.f32 0.0, %v2097
      %v2099 = vpop.f32.mrb[0].mxu0
      %2100 = vmatprep.mubr.f32.mxu0 0.0
      %2101 = vmatmul.mubr.f32.gmra.mrb[0].mxu0 %v1959
      %v2102 = vpop.f32.mrb[0].mxu0
      %v2103 = vadd.f32 0.0, %v2102
      %v2104 = vpop.f32.mrb[0].mxu0
      %2105 = vdwg.mxu0
      %v2106 = vadd.f32 %v1841, %v2028
      %v2107 = vadd.f32 %v1846, %v2033
      %v2108 = vadd.f32 %v1851, %v2038
      %v2109 = vadd.f32 %v1856, %v2043
      %v2110 = vadd.f32 %v1861, %v2048
      %v2111 = vadd.f32 %v1866, %v2053
      %v2112 = vadd.f32 %v1871, %v2058
      %v2113 = vadd.f32 %v1876, %v2063
      %v2114 = vadd.f32 %v1881, %v2068
      %v2115 = vadd.f32 %v1886, %v2073
      %v2116 = vadd.f32 %v1891, %v2078
      %v2117 = vadd.f32 %v1896, %v2083
      %v2118 = vadd.f32 %v1901, %v2088
      %v2119 = vadd.f32 %v1906, %v2093
      %v2120 = vadd.f32 %v1911, %v2098
      %v2121 = vadd.f32 %v1916, %v2103
      %v2122 = vmax.f32 %v2106, 0.0
      %v2123 = vmax.f32 %v2107, 0.0
      %v2124 = vmax.f32 %v2108, 0.0
      %v2125 = vmax.f32 %v2109, 0.0
      %v2126 = vmax.f32 %v2110, 0.0
      %v2127 = vmax.f32 %v2111, 0.0
      %v2128 = vmax.f32 %v2112, 0.0
      %v2129 = vmax.f32 %v2113, 0.0
      %v2130 = vmax.f32 %v2114, 0.0
      %v2131 = vmax.f32 %v2115, 0.0
      %v2132 = vmax.f32 %v2116, 0.0
      %v2133 = vmax.f32 %v2117, 0.0
      %v2134 = vmax.f32 %v2118, 0.0
      %v2135 = vmax.f32 %v2119, 0.0
      %v2136 = vmax.f32 %v2120, 0.0
      %v2137 = vmax.f32 %v2121, 0.0
      %v2154 = vrot.slane %v2122, 1
      %v2155 = vrot.slane %v2123, 1
      %v2156 = vsel %vm1075, %v2154, %v2155
      %v2157 = vrot.slane %v2124, 1
      %v2158 = vsel %vm1075, %v2155, %v2157
      %v2159 = vrot.slane %v2125, 1
      %v2160 = vsel %vm1075, %v2157, %v2159
      %v2161 = vrot.slane %v2126, 1
      %v2162 = vsel %vm1075, %v2159, %v2161
      %v2163 = vrot.slane %v2127, 1
      %v2164 = vsel %vm1075, %v2161, %v2163
      %v2165 = vrot.slane %v2128, 1
      %v2166 = vsel %vm1075, %v2163, %v2165
      %v2167 = vrot.slane %v2129, 1
      %v2168 = vsel %vm1075, %v2165, %v2167
      %v2169 = vrot.slane %v2130, 1
      %v2170 = vsel %vm1075, %v2167, %v2169
      %v2171 = vrot.slane %v2131, 1
      %v2172 = vsel %vm1075, %v2169, %v2171
      %v2173 = vrot.slane %v2132, 1
      %v2174 = vsel %vm1075, %v2171, %v2173
      %v2175 = vrot.slane %v2133, 1
      %v2176 = vsel %vm1075, %v2173, %v2175
      %v2177 = vrot.slane %v2134, 1
      %v2178 = vsel %vm1075, %v2175, %v2177
      %v2179 = vrot.slane %v2135, 1
      %v2180 = vsel %vm1075, %v2177, %v2179
      %v2181 = vrot.slane %v2136, 1
      %v2182 = vsel %vm1075, %v2179, %v2181
      %v2183 = vrot.slane %v2137, 1
      %v2184 = vsel %vm1075, %v2181, %v2183
      %v2202 = vsel %vm1075, %v2183, %v2154
      %v2203 = vld [vmem:[%s45] sm:$0xff]
      %v2204 = vld [vmem:[%s45 + $0x8] sm:$0xff]
      %v2205 = vld [vmem:[%s45 + $0x10] sm:$0xff]
      %v2206 = vld [vmem:[%s45 + $0x18] sm:$0xff]
      %v2207 = vld [vmem:[%s45 + $0x20] sm:$0xff]
      %v2208 = vld [vmem:[%s45 + $0x28] sm:$0xff]
      %v2209 = vld [vmem:[%s45 + $0x30] sm:$0xff]
      %v2210 = vld [vmem:[%s45 + $0x38] sm:$0xff]
      %v2211 = vmax.f32 %v2122, %v2156
      %v2212 = vmax.f32 %v2123, %v2158
      %v2213 = vmax.f32 %v2124, %v2160
      %v2214 = vmax.f32 %v2125, %v2162
      %v2215 = vmax.f32 %v2126, %v2164
      %v2216 = vmax.f32 %v2127, %v2166
      %v2217 = vmax.f32 %v2128, %v2168
      %v2218 = vmax.f32 %v2129, %v2170
      %v2219 = vmax.f32 %v2130, %v2172
      %v2220 = vmax.f32 %v2131, %v2174
      %v2221 = vmax.f32 %v2132, %v2176
      %v2222 = vmax.f32 %v2133, %v2178
      %v2223 = vmax.f32 %v2134, %v2180
      %v2224 = vmax.f32 %v2135, %v2182
      %v2225 = vmax.f32 %v2136, %v2184
      %v2226 = vmax.f32 %v2137, %v2202
      %2227 = vmatprep.subr.mxu0 0.0
      %2228 = vmatpush1.msra.mxu0 %v2211
      %2229 = vmatprep.subr.mxu0 0.0
      %2230 = vmatpush1.msra.mxu0 %v2212
      %2231 = vmatprep.subr.mxu0 0.0
      %2232 = vmatpush1.msra.mxu0 %v2213
      %2233 = vmatprep.subr.mxu0 0.0
      %2234 = vmatpush1.msra.mxu0 %v2214
      %2235 = vmatprep.subr.mxu0 0.0
      %2236 = vmatpush1.msra.mxu0 %v2215
      %2237 = vmatprep.subr.mxu0 0.0
      %2238 = vmatpush1.msra.mxu0 %v2216
      %2239 = vmatprep.subr.mxu0 0.0
      %2240 = vmatpush1.msra.mxu0 %v2217
      %2241 = vmatprep.subr.mxu0 0.0
      %2242 = vmatpush1.msra.mxu0 %v2218
      %2243 = vmatprep.subr.mxu0 0.0
      %2244 = vmatpush1.msra.mxu0 %v2219
      %2245 = vmatprep.subr.mxu0 0.0
      %2246 = vmatpush1.msra.mxu0 %v2220
      %2247 = vmatprep.subr.mxu0 0.0
      %2248 = vmatpush1.msra.mxu0 %v2221
      %2249 = vmatprep.subr.mxu0 0.0
      %2250 = vmatpush1.msra.mxu0 %v2222
      %2251 = vmatprep.subr.mxu0 0.0
      %2252 = vmatpush1.msra.mxu0 %v2223
      %2253 = vmatprep.subr.mxu0 0.0
      %2254 = vmatpush1.msra.mxu0 %v2224
      %2255 = vmatprep.subr.mxu0 0.0
      %2256 = vmatpush1.msra.mxu0 %v2225
      %2257 = vmatprep.subr.mxu0 0.0
      %2258 = vmatpush1.msra.mxu0 %v2226
      %2259 = vmatprep.subr.mxu0 0.0
      %2260 = vmatpush1.msra.mxu0 0.0
      %2261 = vmatprep.subr.mxu0 0.0
      %2262 = vmatpush1.msra.mxu0 0.0
      %2263 = vmatprep.subr.mxu0 0.0
      %2264 = vmatpush1.msra.mxu0 0.0
      %2265 = vmatprep.subr.mxu0 0.0
      %2266 = vmatpush1.msra.mxu0 0.0
      %2267 = vmatprep.subr.mxu0 0.0
      %2268 = vmatpush1.msra.mxu0 0.0
      %2269 = vmatprep.subr.mxu0 0.0
      %2270 = vmatpush1.msra.mxu0 0.0
      %2271 = vmatprep.subr.mxu0 0.0
      %2272 = vmatpush1.msra.mxu0 0.0
      %2273 = vmatprep.subr.mxu0 0.0
      %2274 = vmatpush1.msra.mxu0 0.0
      %2275 = vmatprep.subr.mxu0 0.0
      %2276 = vmatpush1.msra.mxu0 0.0
      %2277 = vmatprep.subr.mxu0 0.0
      %2278 = vmatpush1.msra.mxu0 0.0
      %2279 = vmatprep.subr.mxu0 0.0
      %2280 = vmatpush1.msra.mxu0 0.0
      %2281 = vmatprep.subr.mxu0 0.0
      %2282 = vmatpush1.msra.mxu0 0.0
      %2283 = vmatprep.subr.mxu0 0.0
      %2284 = vmatpush1.msra.mxu0 0.0
      %2285 = vmatprep.subr.mxu0 0.0
      %2286 = vmatpush1.msra.mxu0 0.0
      %2287 = vmatprep.subr.mxu0 0.0
      %2288 = vmatpush1.msra.mxu0 0.0
      %2289 = vmatprep.subr.mxu0 0.0
      %2290 = vmatpush1.msra.mxu0 0.0
      %2291 = vmatprep.mubr.f32.mxu0 0.0
      %2292 = vmatmul.mubr.f32.gmra.mrb[0].mxu0 %v2203
      %v2293 = vpop.f32.mrb[0].mxu0
      %v2294 = vadd.f32 0.0, %v2293
      %v2295 = vpop.f32.mrb[0].mxu0
      %2296 = vmatprep.mubr.f32.mxu0 0.0
      %2297 = vmatmul.mubr.f32.gmra.mrb[0].mxu0 %v2204
      %v2298 = vpop.f32.mrb[0].mxu0
      %v2299 = vadd.f32 0.0, %v2298
      %v2300 = vpop.f32.mrb[0].mxu0
      %2301 = vmatprep.mubr.f32.mxu0 0.0
      %2302 = vmatmul.mubr.f32.gmra.mrb[0].mxu0 %v2205
      %v2303 = vpop.f32.mrb[0].mxu0
      %v2304 = vadd.f32 0.0, %v2303
      %v2305 = vpop.f32.mrb[0].mxu0
      %2306 = vmatprep.mubr.f32.mxu0 0.0
      %2307 = vmatmul.mubr.f32.gmra.mrb[0].mxu0 %v2206
      %v2308 = vpop.f32.mrb[0].mxu0
      %v2309 = vadd.f32 0.0, %v2308
      %v2310 = vpop.f32.mrb[0].mxu0
      %2311 = vmatprep.mubr.f32.mxu0 0.0
      %2312 = vmatmul.mubr.f32.gmra.mrb[0].mxu0 %v2207
      %v2313 = vpop.f32.mrb[0].mxu0
      %v2314 = vadd.f32 0.0, %v2313
      %v2315 = vpop.f32.mrb[0].mxu0
      %2316 = vmatprep.mubr.f32.mxu0 0.0
      %2317 = vmatmul.mubr.f32.gmra.mrb[0].mxu0 %v2208
      %v2318 = vpop.f32.mrb[0].mxu0
      %v2319 = vadd.f32 0.0, %v2318
      %v2320 = vpop.f32.mrb[0].mxu0
      %2321 = vmatprep.mubr.f32.mxu0 0.0
      %2322 = vmatmul.mubr.f32.gmra.mrb[0].mxu0 %v2209
      %v2323 = vpop.f32.mrb[0].mxu0
      %v2324 = vadd.f32 0.0, %v2323
      %v2325 = vpop.f32.mrb[0].mxu0
      %2326 = vmatprep.mubr.f32.mxu0 0.0
      %2327 = vmatmul.mubr.f32.gmra.mrb[0].mxu0 %v2210
      %v2328 = vpop.f32.mrb[0].mxu0
      %v2329 = vadd.f32 0.0, %v2328
      %v2330 = vpop.f32.mrb[0].mxu0
      %2331 = vdwg.mxu0
      %v2333 = vrot.slane %v2329, 7
      %v2342 = vrot.slane %v2294, 7
      %v2343 = vrot.slane %v2299, 7
      %v2344 = vsel %vm1042, %v2342, %v2343
      %v2345 = vrot.slane %v2304, 7
      %v2346 = vsel %vm1042, %v2343, %v2345
      %v2347 = vrot.slane %v2309, 7
      %v2348 = vsel %vm1042, %v2345, %v2347
      %v2349 = vrot.slane %v2314, 7
      %v2350 = vsel %vm1042, %v2347, %v2349
      %v2351 = vrot.slane %v2319, 7
      %v2352 = vsel %vm1042, %v2349, %v2351
      %v2353 = vrot.slane %v2324, 7
      %v2354 = vsel %vm1042, %v2351, %v2353
      %v2355 = vsel %vm1042, %v2353, %v2333
      %v2357 = vsel %vm1042, %v2333, %v2342
      %v2358 = vrot.slane %v2294, 1
      %v2359 = vrot.slane %v2299, 1
      %v2360 = vsel %vm1075, %v2358, %v2359
      %v2361 = vrot.slane %v2304, 1
      %v2362 = vsel %vm1075, %v2359, %v2361
      %v2363 = vrot.slane %v2309, 1
      %v2364 = vsel %vm1075, %v2361, %v2363
      %v2365 = vrot.slane %v2314, 1
      %v2366 = vsel %vm1075, %v2363, %v2365
      %v2367 = vrot.slane %v2319, 1
      %v2368 = vsel %vm1075, %v2365, %v2367
      %v2369 = vrot.slane %v2324, 1
      %v2370 = vsel %vm1075, %v2367, %v2369
      %v2371 = vrot.slane %v2329, 1
      %v2372 = vsel %vm1075, %v2369, %v2371
      %v2375 = vsel %vm1075, %v2371, %v2358
      %v2376 = vld [vmem:[%s11] sm:$0xff]
      %v2377 = vld [vmem:[%s11 + $0x8] sm:$0xff]
      %v2378 = vld [vmem:[%s11 + $0x10] sm:$0xff]
      %v2379 = vld [vmem:[%s11 + $0x18] sm:$0xff]
      %v2380 = vld [vmem:[%s11 + $0x20] sm:$0xff]
      %v2381 = vld [vmem:[%s11 + $0x28] sm:$0xff]
      %v2382 = vld [vmem:[%s11 + $0x30] sm:$0xff]
      %v2383 = vld [vmem:[%s11 + $0x38] sm:$0xff]
      %s2384 = scalar_lea.vmem %s11, 64
      %v2385 = vld [vmem:[%s2384] sm:$0xff]
      %v2386 = vld [vmem:[%s2384 + $0x8] sm:$0xff]
      %v2387 = vld [vmem:[%s2384 + $0x10] sm:$0xff]
      %v2388 = vld [vmem:[%s2384 + $0x18] sm:$0xff]
      %v2389 = vld [vmem:[%s2384 + $0x20] sm:$0xff]
      %v2390 = vld [vmem:[%s2384 + $0x28] sm:$0xff]
      %v2391 = vld [vmem:[%s2384 + $0x30] sm:$0xff]
      %v2392 = vld [vmem:[%s2384 + $0x38] sm:$0xff]
      %v2393 = vsel %vm1563, %v2294, 0
      %v2395 = vsel %vm1563, %v2299, 0
      %v2397 = vsel %vm1563, %v2304, 0
      %v2399 = vsel %vm1563, %v2309, 0
      %v2401 = vsel %vm1563, %v2314, 0
      %v2403 = vsel %vm1563, %v2319, 0
      %v2405 = vsel %vm1563, %v2324, 0
      %v2407 = vsel %vm1563, %v2329, 0
      %2409 = vmatprep.subr.mxu0 0.0
      %2410 = vmatpush1.msra.mxu0 %v2385
      %2411 = vmatprep.subr.mxu0 0.0
      %2412 = vmatpush1.msra.mxu0 %v2386
      %2413 = vmatprep.subr.mxu0 0.0
      %2414 = vmatpush1.msra.mxu0 %v2387
      %2415 = vmatprep.subr.mxu0 0.0
      %2416 = vmatpush1.msra.mxu0 %v2388
      %2417 = vmatprep.subr.mxu0 0.0
      %2418 = vmatpush1.msra.mxu0 %v2389
      %2419 = vmatprep.subr.mxu0 0.0
      %2420 = vmatpush1.msra.mxu0 %v2390
      %2421 = vmatprep.subr.mxu0 0.0
      %2422 = vmatpush1.msra.mxu0 %v2391
      %2423 = vmatprep.subr.mxu0 0.0
      %2424 = vmatpush1.msra.mxu0 %v2392
      %2425 = vmatprep.subr.mxu0 0.0
      %2426 = vmatpush1.msra.mxu0 0.0
      %2427 = vmatprep.subr.mxu0 0.0
      %2428 = vmatpush1.msra.mxu0 0.0
      %2429 = vmatprep.subr.mxu0 0.0
      %2430 = vmatpush1.msra.mxu0 0.0
      %2431 = vmatprep.subr.mxu0 0.0
      %2432 = vmatpush1.msra.mxu0 0.0
      %2433 = vmatprep.subr.mxu0 0.0
      %2434 = vmatpush1.msra.mxu0 0.0
      %2435 = vmatprep.subr.mxu0 0.0
      %2436 = vmatpush1.msra.mxu0 0.0
      %2437 = vmatprep.subr.mxu0 0.0
      %2438 = vmatpush1.msra.mxu0 0.0
      %2439 = vmatprep.subr.mxu0 0.0
      %2440 = vmatpush1.msra.mxu0 0.0
      %2441 = vmatprep.subr.mxu0 0.0
      %2442 = vmatpush1.msra.mxu0 0.0
      %2443 = vmatprep.subr.mxu0 0.0
      %2444 = vmatpush1.msra.mxu0 0.0
      %2445 = vmatprep.subr.mxu0 0.0
      %2446 = vmatpush1.msra.mxu0 0.0
      %2447 = vmatprep.subr.mxu0 0.0
      %2448 = vmatpush1.msra.mxu0 0.0
      %2449 = vmatprep.subr.mxu0 0.0
      %2450 = vmatpush1.msra.mxu0 0.0
      %2451 = vmatprep.subr.mxu0 0.0
      %2452 = vmatpush1.msra.mxu0 0.0
      %2453 = vmatprep.subr.mxu0 0.0
      %2454 = vmatpush1.msra.mxu0 0.0
      %2455 = vmatprep.subr.mxu0 0.0
      %2456 = vmatpush1.msra.mxu0 0.0
      %2457 = vmatprep.subr.mxu0 0.0
      %2458 = vmatpush1.msra.mxu0 0.0
      %2459 = vmatprep.subr.mxu0 0.0
      %2460 = vmatpush1.msra.mxu0 0.0
      %2461 = vmatprep.subr.mxu0 0.0
      %2462 = vmatpush1.msra.mxu0 0.0
      %2463 = vmatprep.subr.mxu0 0.0
      %2464 = vmatpush1.msra.mxu0 0.0
      %2465 = vmatprep.subr.mxu0 0.0
      %2466 = vmatpush1.msra.mxu0 0.0
      %2467 = vmatprep.subr.mxu0 0.0
      %2468 = vmatpush1.msra.mxu0 0.0
      %2469 = vmatprep.subr.mxu0 0.0
      %2470 = vmatpush1.msra.mxu0 0.0
      %2471 = vmatprep.subr.mxu0 0.0
      %2472 = vmatpush1.msra.mxu0 0.0
      %2473 = vmatprep.mubr.f32.mxu0 0.0
      %2474 = vmatmul.mubr.f32.gmra.mrb[0].mxu0 %v2393
      %v2475 = vpop.f32.mrb[0].mxu0
      %v2476 = vadd.f32 0.0, %v2475
      %v2477 = vpop.f32.mrb[0].mxu0
      %2478 = vmatprep.mubr.f32.mxu0 0.0
      %2479 = vmatmul.mubr.f32.gmra.mrb[0].mxu0 %v2395
      %v2480 = vpop.f32.mrb[0].mxu0
      %v2481 = vadd.f32 0.0, %v2480
      %v2482 = vpop.f32.mrb[0].mxu0
      %2483 = vmatprep.mubr.f32.mxu0 0.0
      %2484 = vmatmul.mubr.f32.gmra.mrb[0].mxu0 %v2397
      %v2485 = vpop.f32.mrb[0].mxu0
      %v2486 = vadd.f32 0.0, %v2485
      %v2487 = vpop.f32.mrb[0].mxu0
      %2488 = vmatprep.mubr.f32.mxu0 0.0
      %2489 = vmatmul.mubr.f32.gmra.mrb[0].mxu0 %v2399
      %v2490 = vpop.f32.mrb[0].mxu0
      %v2491 = vadd.f32 0.0, %v2490
      %v2492 = vpop.f32.mrb[0].mxu0
      %2493 = vmatprep.mubr.f32.mxu0 0.0
      %2494 = vmatmul.mubr.f32.gmra.mrb[0].mxu0 %v2401
      %v2495 = vpop.f32.mrb[0].mxu0
      %v2496 = vadd.f32 0.0, %v2495
      %v2497 = vpop.f32.mrb[0].mxu0
      %2498 = vmatprep.mubr.f32.mxu0 0.0
      %2499 = vmatmul.mubr.f32.gmra.mrb[0].mxu0 %v2403
      %v2500 = vpop.f32.mrb[0].mxu0
      %v2501 = vadd.f32 0.0, %v2500
      %v2502 = vpop.f32.mrb[0].mxu0
      %2503 = vmatprep.mubr.f32.mxu0 0.0
      %2504 = vmatmul.mubr.f32.gmra.mrb[0].mxu0 %v2405
      %v2505 = vpop.f32.mrb[0].mxu0
      %v2506 = vadd.f32 0.0, %v2505
      %v2507 = vpop.f32.mrb[0].mxu0
      %2508 = vmatprep.mubr.f32.mxu0 0.0
      %2509 = vmatmul.mubr.f32.gmra.mrb[0].mxu0 %v2407
      %v2510 = vpop.f32.mrb[0].mxu0
      %v2511 = vadd.f32 0.0, %v2510
      %v2512 = vpop.f32.mrb[0].mxu0
      %2513 = vdwg.mxu0
      %v2515 = vsel %vm1563, %v2357, 0
      %v2517 = vsel %vm1563, %v2344, 0
      %v2519 = vsel %vm1563, %v2346, 0
      %v2521 = vsel %vm1563, %v2348, 0
      %v2523 = vsel %vm1563, %v2350, 0
      %v2525 = vsel %vm1563, %v2352, 0
      %v2527 = vsel %vm1563, %v2354, 0
      %v2529 = vsel %vm1563, %v2355, 0
      %2531 = vmatprep.subr.mxu0 0.0
      %2532 = vmatpush1.msra.mxu0 %v2376
      %2533 = vmatprep.subr.mxu0 0.0
      %2534 = vmatpush1.msra.mxu0 %v2377
      %2535 = vmatprep.subr.mxu0 0.0
      %2536 = vmatpush1.msra.mxu0 %v2378
      %2537 = vmatprep.subr.mxu0 0.0
      %2538 = vmatpush1.msra.mxu0 %v2379
      %2539 = vmatprep.subr.mxu0 0.0
      %2540 = vmatpush1.msra.mxu0 %v2380
      %2541 = vmatprep.subr.mxu0 0.0
      %2542 = vmatpush1.msra.mxu0 %v2381
      %2543 = vmatprep.subr.mxu0 0.0
      %2544 = vmatpush1.msra.mxu0 %v2382
      %2545 = vmatprep.subr.mxu0 0.0
      %2546 = vmatpush1.msra.mxu0 %v2383
      %2547 = vmatprep.subr.mxu0 0.0
      %2548 = vmatpush1.msra.mxu0 0.0
      %2549 = vmatprep.subr.mxu0 0.0
      %2550 = vmatpush1.msra.mxu0 0.0
      %2551 = vmatprep.subr.mxu0 0.0
      %2552 = vmatpush1.msra.mxu0 0.0
      %2553 = vmatprep.subr.mxu0 0.0
      %2554 = vmatpush1.msra.mxu0 0.0
      %2555 = vmatprep.subr.mxu0 0.0
      %2556 = vmatpush1.msra.mxu0 0.0
      %2557 = vmatprep.subr.mxu0 0.0
      %2558 = vmatpush1.msra.mxu0 0.0
      %2559 = vmatprep.subr.mxu0 0.0
      %2560 = vmatpush1.msra.mxu0 0.0
      %2561 = vmatprep.subr.mxu0 0.0
      %2562 = vmatpush1.msra.mxu0 0.0
      %2563 = vmatprep.subr.mxu0 0.0
      %2564 = vmatpush1.msra.mxu0 0.0
      %2565 = vmatprep.subr.mxu0 0.0
      %2566 = vmatpush1.msra.mxu0 0.0
      %2567 = vmatprep.subr.mxu0 0.0
      %2568 = vmatpush1.msra.mxu0 0.0
      %2569 = vmatprep.subr.mxu0 0.0
      %2570 = vmatpush1.msra.mxu0 0.0
      %2571 = vmatprep.subr.mxu0 0.0
      %2572 = vmatpush1.msra.mxu0 0.0
      %2573 = vmatprep.subr.mxu0 0.0
      %2574 = vmatpush1.msra.mxu0 0.0
      %2575 = vmatprep.subr.mxu0 0.0
      %2576 = vmatpush1.msra.mxu0 0.0
      %2577 = vmatprep.subr.mxu0 0.0
      %2578 = vmatpush1.msra.mxu0 0.0
      %2579 = vmatprep.subr.mxu0 0.0
      %2580 = vmatpush1.msra.mxu0 0.0
      %2581 = vmatprep.subr.mxu0 0.0
      %2582 = vmatpush1.msra.mxu0 0.0
      %2583 = vmatprep.subr.mxu0 0.0
      %2584 = vmatpush1.msra.mxu0 0.0
      %2585 = vmatprep.subr.mxu0 0.0
      %2586 = vmatpush1.msra.mxu0 0.0
      %2587 = vmatprep.subr.mxu0 0.0
      %2588 = vmatpush1.msra.mxu0 0.0
      %2589 = vmatprep.subr.mxu0 0.0
      %2590 = vmatpush1.msra.mxu0 0.0
      %2591 = vmatprep.subr.mxu0 0.0
      %2592 = vmatpush1.msra.mxu0 0.0
      %2593 = vmatprep.subr.mxu0 0.0
      %2594 = vmatpush1.msra.mxu0 0.0
      %2595 = vmatprep.mubr.f32.mxu0 0.0
      %2596 = vmatmul.mubr.f32.gmra.mrb[0].mxu0 %v2515
      %v2597 = vpop.f32.mrb[0].mxu0
      %v2598 = vadd.f32 %v2476, %v2597
      %v2599 = vpop.f32.mrb[0].mxu0
      %2600 = vmatprep.mubr.f32.mxu0 0.0
      %2601 = vmatmul.mubr.f32.gmra.mrb[0].mxu0 %v2517
      %v2602 = vpop.f32.mrb[0].mxu0
      %v2603 = vadd.f32 %v2481, %v2602
      %v2604 = vpop.f32.mrb[0].mxu0
      %2605 = vmatprep.mubr.f32.mxu0 0.0
      %2606 = vmatmul.mubr.f32.gmra.mrb[0].mxu0 %v2519
      %v2607 = vpop.f32.mrb[0].mxu0
      %v2608 = vadd.f32 %v2486, %v2607
      %v2609 = vpop.f32.mrb[0].mxu0
      %2610 = vmatprep.mubr.f32.mxu0 0.0
      %2611 = vmatmul.mubr.f32.gmra.mrb[0].mxu0 %v2521
      %v2612 = vpop.f32.mrb[0].mxu0
      %v2613 = vadd.f32 %v2491, %v2612
      %v2614 = vpop.f32.mrb[0].mxu0
      %2615 = vmatprep.mubr.f32.mxu0 0.0
      %2616 = vmatmul.mubr.f32.gmra.mrb[0].mxu0 %v2523
      %v2617 = vpop.f32.mrb[0].mxu0
      %v2618 = vadd.f32 %v2496, %v2617
      %v2619 = vpop.f32.mrb[0].mxu0
      %2620 = vmatprep.mubr.f32.mxu0 0.0
      %2621 = vmatmul.mubr.f32.gmra.mrb[0].mxu0 %v2525
      %v2622 = vpop.f32.mrb[0].mxu0
      %v2623 = vadd.f32 %v2501, %v2622
      %v2624 = vpop.f32.mrb[0].mxu0
      %2625 = vmatprep.mubr.f32.mxu0 0.0
      %2626 = vmatmul.mubr.f32.gmra.mrb[0].mxu0 %v2527
      %v2627 = vpop.f32.mrb[0].mxu0
      %v2628 = vadd.f32 %v2506, %v2627
      %v2629 = vpop.f32.mrb[0].mxu0
      %2630 = vmatprep.mubr.f32.mxu0 0.0
      %2631 = vmatmul.mubr.f32.gmra.mrb[0].mxu0 %v2529
      %v2632 = vpop.f32.mrb[0].mxu0
      %v2633 = vadd.f32 %v2511, %v2632
      %v2634 = vpop.f32.mrb[0].mxu0
      %2635 = vdwg.mxu0
      %s2636 = scalar_lea.vmem %s11, 128
      %v2637 = vld [vmem:[%s2636] sm:$0xff]
      %v2638 = vld [vmem:[%s2636 + $0x8] sm:$0xff]
      %v2639 = vld [vmem:[%s2636 + $0x10] sm:$0xff]
      %v2640 = vld [vmem:[%s2636 + $0x18] sm:$0xff]
      %v2641 = vld [vmem:[%s2636 + $0x20] sm:$0xff]
      %v2642 = vld [vmem:[%s2636 + $0x28] sm:$0xff]
      %v2643 = vld [vmem:[%s2636 + $0x30] sm:$0xff]
      %v2644 = vld [vmem:[%s2636 + $0x38] sm:$0xff]
      %v2645 = vsel %vm1563, %v2360, 0
      %v2647 = vsel %vm1563, %v2362, 0
      %v2649 = vsel %vm1563, %v2364, 0
      %v2651 = vsel %vm1563, %v2366, 0
      %v2653 = vsel %vm1563, %v2368, 0
      %v2655 = vsel %vm1563, %v2370, 0
      %v2657 = vsel %vm1563, %v2372, 0
      %v2660 = vsel %vm1563, %v2375, 0
      %2662 = vmatprep.subr.mxu0 0.0
      %2663 = vmatpush1.msra.mxu0 %v2637
      %2664 = vmatprep.subr.mxu0 0.0
      %2665 = vmatpush1.msra.mxu0 %v2638
      %2666 = vmatprep.subr.mxu0 0.0
      %2667 = vmatpush1.msra.mxu0 %v2639
      %2668 = vmatprep.subr.mxu0 0.0
      %2669 = vmatpush1.msra.mxu0 %v2640
      %2670 = vmatprep.subr.mxu0 0.0
      %2671 = vmatpush1.msra.mxu0 %v2641
      %2672 = vmatprep.subr.mxu0 0.0
      %2673 = vmatpush1.msra.mxu0 %v2642
      %2674 = vmatprep.subr.mxu0 0.0
      %2675 = vmatpush1.msra.mxu0 %v2643
      %2676 = vmatprep.subr.mxu0 0.0
      %2677 = vmatpush1.msra.mxu0 %v2644
      %2678 = vmatprep.subr.mxu0 0.0
      %2679 = vmatpush1.msra.mxu0 0.0
      %2680 = vmatprep.subr.mxu0 0.0
      %2681 = vmatpush1.msra.mxu0 0.0
      %2682 = vmatprep.subr.mxu0 0.0
      %2683 = vmatpush1.msra.mxu0 0.0
      %2684 = vmatprep.subr.mxu0 0.0
      %2685 = vmatpush1.msra.mxu0 0.0
      %2686 = vmatprep.subr.mxu0 0.0
      %2687 = vmatpush1.msra.mxu0 0.0
      %2688 = vmatprep.subr.mxu0 0.0
      %2689 = vmatpush1.msra.mxu0 0.0
      %2690 = vmatprep.subr.mxu0 0.0
      %2691 = vmatpush1.msra.mxu0 0.0
      %2692 = vmatprep.subr.mxu0 0.0
      %2693 = vmatpush1.msra.mxu0 0.0
      %2694 = vmatprep.subr.mxu0 0.0
      %2695 = vmatpush1.msra.mxu0 0.0
      %2696 = vmatprep.subr.mxu0 0.0
      %2697 = vmatpush1.msra.mxu0 0.0
      %2698 = vmatprep.subr.mxu0 0.0
      %2699 = vmatpush1.msra.mxu0 0.0
      %2700 = vmatprep.subr.mxu0 0.0
      %2701 = vmatpush1.msra.mxu0 0.0
      %2702 = vmatprep.subr.mxu0 0.0
      %2703 = vmatpush1.msra.mxu0 0.0
      %2704 = vmatprep.subr.mxu0 0.0
      %2705 = vmatpush1.msra.mxu0 0.0
      %2706 = vmatprep.subr.mxu0 0.0
      %2707 = vmatpush1.msra.mxu0 0.0
      %2708 = vmatprep.subr.mxu0 0.0
      %2709 = vmatpush1.msra.mxu0 0.0
      %2710 = vmatprep.subr.mxu0 0.0
      %2711 = vmatpush1.msra.mxu0 0.0
      %2712 = vmatprep.subr.mxu0 0.0
      %2713 = vmatpush1.msra.mxu0 0.0
      %2714 = vmatprep.subr.mxu0 0.0
      %2715 = vmatpush1.msra.mxu0 0.0
      %2716 = vmatprep.subr.mxu0 0.0
      %2717 = vmatpush1.msra.mxu0 0.0
      %2718 = vmatprep.subr.mxu0 0.0
      %2719 = vmatpush1.msra.mxu0 0.0
      %2720 = vmatprep.subr.mxu0 0.0
      %2721 = vmatpush1.msra.mxu0 0.0
      %2722 = vmatprep.subr.mxu0 0.0
      %2723 = vmatpush1.msra.mxu0 0.0
      %2724 = vmatprep.subr.mxu0 0.0
      %2725 = vmatpush1.msra.mxu0 0.0
      %2726 = vmatprep.mubr.f32.mxu0 0.0
      %2727 = vmatmul.mubr.f32.gmra.mrb[0].mxu0 %v2645
      %v2728 = vpop.f32.mrb[0].mxu0
      %v2729 = vadd.f32 0.0, %v2728
      %v2730 = vpop.f32.mrb[0].mxu0
      %2731 = vmatprep.mubr.f32.mxu0 0.0
      %2732 = vmatmul.mubr.f32.gmra.mrb[0].mxu0 %v2647
      %v2733 = vpop.f32.mrb[0].mxu0
      %v2734 = vadd.f32 0.0, %v2733
      %v2735 = vpop.f32.mrb[0].mxu0
      %2736 = vmatprep.mubr.f32.mxu0 0.0
      %2737 = vmatmul.mubr.f32.gmra.mrb[0].mxu0 %v2649
      %v2738 = vpop.f32.mrb[0].mxu0
      %v2739 = vadd.f32 0.0, %v2738
      %v2740 = vpop.f32.mrb[0].mxu0
      %2741 = vmatprep.mubr.f32.mxu0 0.0
      %2742 = vmatmul.mubr.f32.gmra.mrb[0].mxu0 %v2651
      %v2743 = vpop.f32.mrb[0].mxu0
      %v2744 = vadd.f32 0.0, %v2743
      %v2745 = vpop.f32.mrb[0].mxu0
      %2746 = vmatprep.mubr.f32.mxu0 0.0
      %2747 = vmatmul.mubr.f32.gmra.mrb[0].mxu0 %v2653
      %v2748 = vpop.f32.mrb[0].mxu0
      %v2749 = vadd.f32 0.0, %v2748
      %v2750 = vpop.f32.mrb[0].mxu0
      %2751 = vmatprep.mubr.f32.mxu0 0.0
      %2752 = vmatmul.mubr.f32.gmra.mrb[0].mxu0 %v2655
      %v2753 = vpop.f32.mrb[0].mxu0
      %v2754 = vadd.f32 0.0, %v2753
      %v2755 = vpop.f32.mrb[0].mxu0
      %2756 = vmatprep.mubr.f32.mxu0 0.0
      %2757 = vmatmul.mubr.f32.gmra.mrb[0].mxu0 %v2657
      %v2758 = vpop.f32.mrb[0].mxu0
      %v2759 = vadd.f32 0.0, %v2758
      %v2760 = vpop.f32.mrb[0].mxu0
      %2761 = vmatprep.mubr.f32.mxu0 0.0
      %2762 = vmatmul.mubr.f32.gmra.mrb[0].mxu0 %v2660
      %v2763 = vpop.f32.mrb[0].mxu0
      %v2764 = vadd.f32 0.0, %v2763
      %v2765 = vpop.f32.mrb[0].mxu0
      %2766 = vdwg.mxu0
      %v2767 = vadd.f32 %v2598, %v2729
      %v2768 = vadd.f32 %v2603, %v2734
      %v2769 = vadd.f32 %v2608, %v2739
      %v2770 = vadd.f32 %v2613, %v2744
      %v2771 = vadd.f32 %v2618, %v2749
      %v2772 = vadd.f32 %v2623, %v2754
      %v2773 = vadd.f32 %v2628, %v2759
      %v2774 = vadd.f32 %v2633, %v2764
      %v2775 = vld [vmem:[%s13] sm:$0x1]
      %v2777 = vlaneseq
      %v2778 = vshrl.u32 %v2777, 7
      %v2779 = vsub.s32 0, %v2778
      %v2780 = vrot.slane %v2775, %v2779
      %v2782 = vadd.f32 %v2767, %v2780
      %v2783 = vadd.f32 %v2768, %v2780
      %v2784 = vadd.f32 %v2769, %v2780
      %v2785 = vadd.f32 %v2770, %v2780
      %v2786 = vadd.f32 %v2771, %v2780
      %v2787 = vadd.f32 %v2772, %v2780
      %v2788 = vadd.f32 %v2773, %v2780
      %v2789 = vadd.f32 %v2774, %v2780
      %v2790 = vmax.f32 %v2782, 0.0
      %v2791 = vmax.f32 %v2783, 0.0
      %v2792 = vmax.f32 %v2784, 0.0
      %v2793 = vmax.f32 %v2785, 0.0
      %v2794 = vmax.f32 %v2786, 0.0
      %v2795 = vmax.f32 %v2787, 0.0
      %v2796 = vmax.f32 %v2788, 0.0
      %v2797 = vmax.f32 %v2789, 0.0
      %v2798 = vmax.f32 %v2790, 0.0
      %v2799 = vmax.f32 %v2791, 0.0
      %v2800 = vmax.f32 %v2792, 0.0
      %v2801 = vmax.f32 %v2793, 0.0
      %v2802 = vmax.f32 %v2794, 0.0
      %v2803 = vmax.f32 %v2795, 0.0
      %v2804 = vmax.f32 %v2796, 0.0
      %v2805 = vmax.f32 %v2797, 0.0
      %v2807 = vrot.slane %v2805, 7
      %v2816 = vrot.slane %v2798, 7
      %v2817 = vrot.slane %v2799, 7
      %v2818 = vsel %vm1042, %v2816, %v2817
      %v2819 = vrot.slane %v2800, 7
      %v2820 = vsel %vm1042, %v2817, %v2819
      %v2821 = vrot.slane %v2801, 7
      %v2822 = vsel %vm1042, %v2819, %v2821
      %v2823 = vrot.slane %v2802, 7
      %v2824 = vsel %vm1042, %v2821, %v2823
      %v2825 = vrot.slane %v2803, 7
      %v2826 = vsel %vm1042, %v2823, %v2825
      %v2827 = vrot.slane %v2804, 7
      %v2828 = vsel %vm1042, %v2825, %v2827
      %v2829 = vsel %vm1042, %v2827, %v2807
      %v2838 = vsel %vm1042, %v2807, %v2816
      %v2839 = vrot.slane %v2798, 1
      %v2840 = vrot.slane %v2799, 1
      %v2841 = vsel %vm1075, %v2839, %v2840
      %v2842 = vrot.slane %v2800, 1
      %v2843 = vsel %vm1075, %v2840, %v2842
      %v2844 = vrot.slane %v2801, 1
      %v2845 = vsel %vm1075, %v2842, %v2844
      %v2846 = vrot.slane %v2802, 1
      %v2847 = vsel %vm1075, %v2844, %v2846
      %v2848 = vrot.slane %v2803, 1
      %v2849 = vsel %vm1075, %v2846, %v2848
      %v2850 = vrot.slane %v2804, 1
      %v2851 = vsel %vm1075, %v2848, %v2850
      %v2852 = vrot.slane %v2805, 1
      %v2853 = vsel %vm1075, %v2850, %v2852
      %v2863 = vsel %vm1075, %v2852, %v2839
      %v2864 = vld [vmem:[%s15] sm:$0xff]
      %v2865 = vld [vmem:[%s15 + $0x8] sm:$0xff]
      %v2866 = vld [vmem:[%s15 + $0x10] sm:$0xff]
      %v2867 = vld [vmem:[%s15 + $0x18] sm:$0xff]
      %v2868 = vld [vmem:[%s15 + $0x20] sm:$0xff]
      %v2869 = vld [vmem:[%s15 + $0x28] sm:$0xff]
      %v2870 = vld [vmem:[%s15 + $0x30] sm:$0xff]
      %v2871 = vld [vmem:[%s15 + $0x38] sm:$0xff]
      %v2872 = vld [vmem:[%s15 + $0x40] sm:$0xff]
      %v2873 = vld [vmem:[%s15 + $0x48] sm:$0xff]
      %v2874 = vld [vmem:[%s15 + $0x50] sm:$0xff]
      %v2875 = vld [vmem:[%s15 + $0x58] sm:$0xff]
      %v2876 = vld [vmem:[%s15 + $0x60] sm:$0xff]
      %v2877 = vld [vmem:[%s15 + $0x68] sm:$0xff]
      %v2878 = vld [vmem:[%s15 + $0x70] sm:$0xff]
      %v2879 = vld [vmem:[%s15 + $0x78] sm:$0xff]
      %s2880 = scalar_lea.vmem %s15, 128
      %v2881 = vld [vmem:[%s2880] sm:$0xff]
      %v2882 = vld [vmem:[%s2880 + $0x8] sm:$0xff]
      %v2883 = vld [vmem:[%s2880 + $0x10] sm:$0xff]
      %v2884 = vld [vmem:[%s2880 + $0x18] sm:$0xff]
      %v2885 = vld [vmem:[%s2880 + $0x20] sm:$0xff]
      %v2886 = vld [vmem:[%s2880 + $0x28] sm:$0xff]
      %v2887 = vld [vmem:[%s2880 + $0x30] sm:$0xff]
      %v2888 = vld [vmem:[%s2880 + $0x38] sm:$0xff]
      %v2889 = vld [vmem:[%s2880 + $0x40] sm:$0xff]
      %v2890 = vld [vmem:[%s2880 + $0x48] sm:$0xff]
      %v2891 = vld [vmem:[%s2880 + $0x50] sm:$0xff]
      %v2892 = vld [vmem:[%s2880 + $0x58] sm:$0xff]
      %v2893 = vld [vmem:[%s2880 + $0x60] sm:$0xff]
      %v2894 = vld [vmem:[%s2880 + $0x68] sm:$0xff]
      %v2895 = vld [vmem:[%s2880 + $0x70] sm:$0xff]
      %v2896 = vld [vmem:[%s2880 + $0x78] sm:$0xff]
      %2897 = vmatprep.subr.mxu0 0.0
      %2898 = vmatpush1.msra.mxu0 %v2881
      %2899 = vmatprep.subr.mxu0 0.0
      %2900 = vmatpush1.msra.mxu0 %v2882
      %2901 = vmatprep.subr.mxu0 0.0
      %2902 = vmatpush1.msra.mxu0 %v2883
      %2903 = vmatprep.subr.mxu0 0.0
      %2904 = vmatpush1.msra.mxu0 %v2884
      %2905 = vmatprep.subr.mxu0 0.0
      %2906 = vmatpush1.msra.mxu0 %v2885
      %2907 = vmatprep.subr.mxu0 0.0
      %2908 = vmatpush1.msra.mxu0 %v2886
      %2909 = vmatprep.subr.mxu0 0.0
      %2910 = vmatpush1.msra.mxu0 %v2887
      %2911 = vmatprep.subr.mxu0 0.0
      %2912 = vmatpush1.msra.mxu0 %v2888
      %2913 = vmatprep.subr.mxu0 0.0
      %2914 = vmatpush1.msra.mxu0 %v2889
      %2915 = vmatprep.subr.mxu0 0.0
      %2916 = vmatpush1.msra.mxu0 %v2890
      %2917 = vmatprep.subr.mxu0 0.0
      %2918 = vmatpush1.msra.mxu0 %v2891
      %2919 = vmatprep.subr.mxu0 0.0
      %2920 = vmatpush1.msra.mxu0 %v2892
      %2921 = vmatprep.subr.mxu0 0.0
      %2922 = vmatpush1.msra.mxu0 %v2893
      %2923 = vmatprep.subr.mxu0 0.0
      %2924 = vmatpush1.msra.mxu0 %v2894
      %2925 = vmatprep.subr.mxu0 0.0
      %2926 = vmatpush1.msra.mxu0 %v2895
      %2927 = vmatprep.subr.mxu0 0.0
      %2928 = vmatpush1.msra.mxu0 %v2896
      %2929 = vmatprep.subr.mxu0 0.0
      %2930 = vmatpush1.msra.mxu0 0.0
      %2931 = vmatprep.subr.mxu0 0.0
      %2932 = vmatpush1.msra.mxu0 0.0
      %2933 = vmatprep.subr.mxu0 0.0
      %2934 = vmatpush1.msra.mxu0 0.0
      %2935 = vmatprep.subr.mxu0 0.0
      %2936 = vmatpush1.msra.mxu0 0.0
      %2937 = vmatprep.subr.mxu0 0.0
      %2938 = vmatpush1.msra.mxu0 0.0
      %2939 = vmatprep.subr.mxu0 0.0
      %2940 = vmatpush1.msra.mxu0 0.0
      %2941 = vmatprep.subr.mxu0 0.0
      %2942 = vmatpush1.msra.mxu0 0.0
      %2943 = vmatprep.subr.mxu0 0.0
      %2944 = vmatpush1.msra.mxu0 0.0
      %2945 = vmatprep.subr.mxu0 0.0
      %2946 = vmatpush1.msra.mxu0 0.0
      %2947 = vmatprep.subr.mxu0 0.0
      %2948 = vmatpush1.msra.mxu0 0.0
      %2949 = vmatprep.subr.mxu0 0.0
      %2950 = vmatpush1.msra.mxu0 0.0
      %2951 = vmatprep.subr.mxu0 0.0
      %2952 = vmatpush1.msra.mxu0 0.0
      %2953 = vmatprep.subr.mxu0 0.0
      %2954 = vmatpush1.msra.mxu0 0.0
      %2955 = vmatprep.subr.mxu0 0.0
      %2956 = vmatpush1.msra.mxu0 0.0
      %2957 = vmatprep.subr.mxu0 0.0
      %2958 = vmatpush1.msra.mxu0 0.0
      %2959 = vmatprep.subr.mxu0 0.0
      %2960 = vmatpush1.msra.mxu0 0.0
      %2961 = vmatprep.mubr.f32.mxu0 0.0
      %2962 = vmatmul.mubr.f32.gmra.mrb[0].mxu0 %v2798
      %v2963 = vpop.f32.mrb[0].mxu0
      %v2964 = vadd.f32 0.0, %v2963
      %v2965 = vpop.f32.mrb[0].mxu0
      %2966 = vmatprep.mubr.f32.mxu0 0.0
      %2967 = vmatmul.mubr.f32.gmra.mrb[0].mxu0 %v2799
      %v2968 = vpop.f32.mrb[0].mxu0
      %v2969 = vadd.f32 0.0, %v2968
      %v2970 = vpop.f32.mrb[0].mxu0
      %2971 = vmatprep.mubr.f32.mxu0 0.0
      %2972 = vmatmul.mubr.f32.gmra.mrb[0].mxu0 %v2800
      %v2973 = vpop.f32.mrb[0].mxu0
      %v2974 = vadd.f32 0.0, %v2973
      %v2975 = vpop.f32.mrb[0].mxu0
      %2976 = vmatprep.mubr.f32.mxu0 0.0
      %2977 = vmatmul.mubr.f32.gmra.mrb[0].mxu0 %v2801
      %v2978 = vpop.f32.mrb[0].mxu0
      %v2979 = vadd.f32 0.0, %v2978
      %v2980 = vpop.f32.mrb[0].mxu0
      %2981 = vmatprep.mubr.f32.mxu0 0.0
      %2982 = vmatmul.mubr.f32.gmra.mrb[0].mxu0 %v2802
      %v2983 = vpop.f32.mrb[0].mxu0
      %v2984 = vadd.f32 0.0, %v2983
      %v2985 = vpop.f32.mrb[0].mxu0
      %2986 = vmatprep.mubr.f32.mxu0 0.0
      %2987 = vmatmul.mubr.f32.gmra.mrb[0].mxu0 %v2803
      %v2988 = vpop.f32.mrb[0].mxu0
      %v2989 = vadd.f32 0.0, %v2988
      %v2990 = vpop.f32.mrb[0].mxu0
      %2991 = vmatprep.mubr.f32.mxu0 0.0
      %2992 = vmatmul.mubr.f32.gmra.mrb[0].mxu0 %v2804
      %v2993 = vpop.f32.mrb[0].mxu0
      %v2994 = vadd.f32 0.0, %v2993
      %v2995 = vpop.f32.mrb[0].mxu0
      %2996 = vmatprep.mubr.f32.mxu0 0.0
      %2997 = vmatmul.mubr.f32.gmra.mrb[0].mxu0 %v2805
      %v2998 = vpop.f32.mrb[0].mxu0
      %v2999 = vadd.f32 0.0, %v2998
      %v3000 = vpop.f32.mrb[0].mxu0
      %3001 = vdwg.mxu0
      %3002 = vmatprep.subr.mxu0 0.0
      %3003 = vmatpush1.msra.mxu0 %v2864
      %3004 = vmatprep.subr.mxu0 0.0
      %3005 = vmatpush1.msra.mxu0 %v2865
      %3006 = vmatprep.subr.mxu0 0.0
      %3007 = vmatpush1.msra.mxu0 %v2866
      %3008 = vmatprep.subr.mxu0 0.0
      %3009 = vmatpush1.msra.mxu0 %v2867
      %3010 = vmatprep.subr.mxu0 0.0
      %3011 = vmatpush1.msra.mxu0 %v2868
      %3012 = vmatprep.subr.mxu0 0.0
      %3013 = vmatpush1.msra.mxu0 %v2869
      %3014 = vmatprep.subr.mxu0 0.0
      %3015 = vmatpush1.msra.mxu0 %v2870
      %3016 = vmatprep.subr.mxu0 0.0
      %3017 = vmatpush1.msra.mxu0 %v2871
      %3018 = vmatprep.subr.mxu0 0.0
      %3019 = vmatpush1.msra.mxu0 %v2872
      %3020 = vmatprep.subr.mxu0 0.0
      %3021 = vmatpush1.msra.mxu0 %v2873
      %3022 = vmatprep.subr.mxu0 0.0
      %3023 = vmatpush1.msra.mxu0 %v2874
      %3024 = vmatprep.subr.mxu0 0.0
      %3025 = vmatpush1.msra.mxu0 %v2875
      %3026 = vmatprep.subr.mxu0 0.0
      %3027 = vmatpush1.msra.mxu0 %v2876
      %3028 = vmatprep.subr.mxu0 0.0
      %3029 = vmatpush1.msra.mxu0 %v2877
      %3030 = vmatprep.subr.mxu0 0.0
      %3031 = vmatpush1.msra.mxu0 %v2878
      %3032 = vmatprep.subr.mxu0 0.0
      %3033 = vmatpush1.msra.mxu0 %v2879
      %3034 = vmatprep.subr.mxu0 0.0
      %3035 = vmatpush1.msra.mxu0 0.0
      %3036 = vmatprep.subr.mxu0 0.0
      %3037 = vmatpush1.msra.mxu0 0.0
      %3038 = vmatprep.subr.mxu0 0.0
      %3039 = vmatpush1.msra.mxu0 0.0
      %3040 = vmatprep.subr.mxu0 0.0
      %3041 = vmatpush1.msra.mxu0 0.0
      %3042 = vmatprep.subr.mxu0 0.0
      %3043 = vmatpush1.msra.mxu0 0.0
      %3044 = vmatprep.subr.mxu0 0.0
      %3045 = vmatpush1.msra.mxu0 0.0
      %3046 = vmatprep.subr.mxu0 0.0
      %3047 = vmatpush1.msra.mxu0 0.0
      %3048 = vmatprep.subr.mxu0 0.0
      %3049 = vmatpush1.msra.mxu0 0.0
      %3050 = vmatprep.subr.mxu0 0.0
      %3051 = vmatpush1.msra.mxu0 0.0
      %3052 = vmatprep.subr.mxu0 0.0
      %3053 = vmatpush1.msra.mxu0 0.0
      %3054 = vmatprep.subr.mxu0 0.0
      %3055 = vmatpush1.msra.mxu0 0.0
      %3056 = vmatprep.subr.mxu0 0.0
      %3057 = vmatpush1.msra.mxu0 0.0
      %3058 = vmatprep.subr.mxu0 0.0
      %3059 = vmatpush1.msra.mxu0 0.0
      %3060 = vmatprep.subr.mxu0 0.0
      %3061 = vmatpush1.msra.mxu0 0.0
      %3062 = vmatprep.subr.mxu0 0.0
      %3063 = vmatpush1.msra.mxu0 0.0
      %3064 = vmatprep.subr.mxu0 0.0
      %3065 = vmatpush1.msra.mxu0 0.0
      %3066 = vmatprep.mubr.f32.mxu0 0.0
      %3067 = vmatmul.mubr.f32.gmra.mrb[0].mxu0 %v2838
      %v3068 = vpop.f32.mrb[0].mxu0
      %v3069 = vadd.f32 %v2964, %v3068
      %v3070 = vpop.f32.mrb[0].mxu0
      %3071 = vmatprep.mubr.f32.mxu0 0.0
      %3072 = vmatmul.mubr.f32.gmra.mrb[0].mxu0 %v2818
      %v3073 = vpop.f32.mrb[0].mxu0
      %v3074 = vadd.f32 %v2969, %v3073
      %v3075 = vpop.f32.mrb[0].mxu0
      %3076 = vmatprep.mubr.f32.mxu0 0.0
      %3077 = vmatmul.mubr.f32.gmra.mrb[0].mxu0 %v2820
      %v3078 = vpop.f32.mrb[0].mxu0
      %v3079 = vadd.f32 %v2974, %v3078
      %v3080 = vpop.f32.mrb[0].mxu0
      %3081 = vmatprep.mubr.f32.mxu0 0.0
      %3082 = vmatmul.mubr.f32.gmra.mrb[0].mxu0 %v2822
      %v3083 = vpop.f32.mrb[0].mxu0
      %v3084 = vadd.f32 %v2979, %v3083
      %v3085 = vpop.f32.mrb[0].mxu0
      %3086 = vmatprep.mubr.f32.mxu0 0.0
      %3087 = vmatmul.mubr.f32.gmra.mrb[0].mxu0 %v2824
      %v3088 = vpop.f32.mrb[0].mxu0
      %v3089 = vadd.f32 %v2984, %v3088
      %v3090 = vpop.f32.mrb[0].mxu0
      %3091 = vmatprep.mubr.f32.mxu0 0.0
      %3092 = vmatmul.mubr.f32.gmra.mrb[0].mxu0 %v2826
      %v3093 = vpop.f32.mrb[0].mxu0
      %v3094 = vadd.f32 %v2989, %v3093
      %v3095 = vpop.f32.mrb[0].mxu0
      %3096 = vmatprep.mubr.f32.mxu0 0.0
      %3097 = vmatmul.mubr.f32.gmra.mrb[0].mxu0 %v2828
      %v3098 = vpop.f32.mrb[0].mxu0
      %v3099 = vadd.f32 %v2994, %v3098
      %v3100 = vpop.f32.mrb[0].mxu0
      %3101 = vmatprep.mubr.f32.mxu0 0.0
      %3102 = vmatmul.mubr.f32.gmra.mrb[0].mxu0 %v2829
      %v3103 = vpop.f32.mrb[0].mxu0
      %v3104 = vadd.f32 %v2999, %v3103
      %v3105 = vpop.f32.mrb[0].mxu0
      %3106 = vdwg.mxu0
      %s3107 = scalar_lea.vmem %s15, 256
      %v3108 = vld [vmem:[%s3107] sm:$0xff]
      %v3109 = vld [vmem:[%s3107 + $0x8] sm:$0xff]
      %v3110 = vld [vmem:[%s3107 + $0x10] sm:$0xff]
      %v3111 = vld [vmem:[%s3107 + $0x18] sm:$0xff]
      %v3112 = vld [vmem:[%s3107 + $0x20] sm:$0xff]
      %v3113 = vld [vmem:[%s3107 + $0x28] sm:$0xff]
      %v3114 = vld [vmem:[%s3107 + $0x30] sm:$0xff]
      %v3115 = vld [vmem:[%s3107 + $0x38] sm:$0xff]
      %v3116 = vld [vmem:[%s3107 + $0x40] sm:$0xff]
      %v3117 = vld [vmem:[%s3107 + $0x48] sm:$0xff]
      %v3118 = vld [vmem:[%s3107 + $0x50] sm:$0xff]
      %v3119 = vld [vmem:[%s3107 + $0x58] sm:$0xff]
      %v3120 = vld [vmem:[%s3107 + $0x60] sm:$0xff]
      %v3121 = vld [vmem:[%s3107 + $0x68] sm:$0xff]
      %v3122 = vld [vmem:[%s3107 + $0x70] sm:$0xff]
      %v3123 = vld [vmem:[%s3107 + $0x78] sm:$0xff]
      %3124 = vmatprep.subr.mxu0 0.0
      %3125 = vmatpush1.msra.mxu0 %v3108
      %3126 = vmatprep.subr.mxu0 0.0
      %3127 = vmatpush1.msra.mxu0 %v3109
      %3128 = vmatprep.subr.mxu0 0.0
      %3129 = vmatpush1.msra.mxu0 %v3110
      %3130 = vmatprep.subr.mxu0 0.0
      %3131 = vmatpush1.msra.mxu0 %v3111
      %3132 = vmatprep.subr.mxu0 0.0
      %3133 = vmatpush1.msra.mxu0 %v3112
      %3134 = vmatprep.subr.mxu0 0.0
      %3135 = vmatpush1.msra.mxu0 %v3113
      %3136 = vmatprep.subr.mxu0 0.0
      %3137 = vmatpush1.msra.mxu0 %v3114
      %3138 = vmatprep.subr.mxu0 0.0
      %3139 = vmatpush1.msra.mxu0 %v3115
      %3140 = vmatprep.subr.mxu0 0.0
      %3141 = vmatpush1.msra.mxu0 %v3116
      %3142 = vmatprep.subr.mxu0 0.0
      %3143 = vmatpush1.msra.mxu0 %v3117
      %3144 = vmatprep.subr.mxu0 0.0
      %3145 = vmatpush1.msra.mxu0 %v3118
      %3146 = vmatprep.subr.mxu0 0.0
      %3147 = vmatpush1.msra.mxu0 %v3119
      %3148 = vmatprep.subr.mxu0 0.0
      %3149 = vmatpush1.msra.mxu0 %v3120
      %3150 = vmatprep.subr.mxu0 0.0
      %3151 = vmatpush1.msra.mxu0 %v3121
      %3152 = vmatprep.subr.mxu0 0.0
      %3153 = vmatpush1.msra.mxu0 %v3122
      %3154 = vmatprep.subr.mxu0 0.0
      %3155 = vmatpush1.msra.mxu0 %v3123
      %3156 = vmatprep.subr.mxu0 0.0
      %3157 = vmatpush1.msra.mxu0 0.0
      %3158 = vmatprep.subr.mxu0 0.0
      %3159 = vmatpush1.msra.mxu0 0.0
      %3160 = vmatprep.subr.mxu0 0.0
      %3161 = vmatpush1.msra.mxu0 0.0
      %3162 = vmatprep.subr.mxu0 0.0
      %3163 = vmatpush1.msra.mxu0 0.0
      %3164 = vmatprep.subr.mxu0 0.0
      %3165 = vmatpush1.msra.mxu0 0.0
      %3166 = vmatprep.subr.mxu0 0.0
      %3167 = vmatpush1.msra.mxu0 0.0
      %3168 = vmatprep.subr.mxu0 0.0
      %3169 = vmatpush1.msra.mxu0 0.0
      %3170 = vmatprep.subr.mxu0 0.0
      %3171 = vmatpush1.msra.mxu0 0.0
      %3172 = vmatprep.subr.mxu0 0.0
      %3173 = vmatpush1.msra.mxu0 0.0
      %3174 = vmatprep.subr.mxu0 0.0
      %3175 = vmatpush1.msra.mxu0 0.0
      %3176 = vmatprep.subr.mxu0 0.0
      %3177 = vmatpush1.msra.mxu0 0.0
      %3178 = vmatprep.subr.mxu0 0.0
      %3179 = vmatpush1.msra.mxu0 0.0
      %3180 = vmatprep.subr.mxu0 0.0
      %3181 = vmatpush1.msra.mxu0 0.0
      %3182 = vmatprep.subr.mxu0 0.0
      %3183 = vmatpush1.msra.mxu0 0.0
      %3184 = vmatprep.subr.mxu0 0.0
      %3185 = vmatpush1.msra.mxu0 0.0
      %3186 = vmatprep.subr.mxu0 0.0
      %3187 = vmatpush1.msra.mxu0 0.0
      %3188 = vmatprep.mubr.f32.mxu0 0.0
      %3189 = vmatmul.mubr.f32.gmra.mrb[0].mxu0 %v2841
      %v3190 = vpop.f32.mrb[0].mxu0
      %v3191 = vadd.f32 0.0, %v3190
      %v3192 = vpop.f32.mrb[0].mxu0
      %3193 = vmatprep.mubr.f32.mxu0 0.0
      %3194 = vmatmul.mubr.f32.gmra.mrb[0].mxu0 %v2843
      %v3195 = vpop.f32.mrb[0].mxu0
      %v3196 = vadd.f32 0.0, %v3195
      %v3197 = vpop.f32.mrb[0].mxu0
      %3198 = vmatprep.mubr.f32.mxu0 0.0
      %3199 = vmatmul.mubr.f32.gmra.mrb[0].mxu0 %v2845
      %v3200 = vpop.f32.mrb[0].mxu0
      %v3201 = vadd.f32 0.0, %v3200
      %v3202 = vpop.f32.mrb[0].mxu0
      %3203 = vmatprep.mubr.f32.mxu0 0.0
      %3204 = vmatmul.mubr.f32.gmra.mrb[0].mxu0 %v2847
      %v3205 = vpop.f32.mrb[0].mxu0
      %v3206 = vadd.f32 0.0, %v3205
      %v3207 = vpop.f32.mrb[0].mxu0
      %3208 = vmatprep.mubr.f32.mxu0 0.0
      %3209 = vmatmul.mubr.f32.gmra.mrb[0].mxu0 %v2849
      %v3210 = vpop.f32.mrb[0].mxu0
      %v3211 = vadd.f32 0.0, %v3210
      %v3212 = vpop.f32.mrb[0].mxu0
      %3213 = vmatprep.mubr.f32.mxu0 0.0
      %3214 = vmatmul.mubr.f32.gmra.mrb[0].mxu0 %v2851
      %v3215 = vpop.f32.mrb[0].mxu0
      %v3216 = vadd.f32 0.0, %v3215
      %v3217 = vpop.f32.mrb[0].mxu0
      %3218 = vmatprep.mubr.f32.mxu0 0.0
      %3219 = vmatmul.mubr.f32.gmra.mrb[0].mxu0 %v2853
      %v3220 = vpop.f32.mrb[0].mxu0
      %v3221 = vadd.f32 0.0, %v3220
      %v3222 = vpop.f32.mrb[0].mxu0
      %3223 = vmatprep.mubr.f32.mxu0 0.0
      %3224 = vmatmul.mubr.f32.gmra.mrb[0].mxu0 %v2863
      %v3225 = vpop.f32.mrb[0].mxu0
      %v3226 = vadd.f32 0.0, %v3225
      %v3227 = vpop.f32.mrb[0].mxu0
      %3228 = vdwg.mxu0
      %v3229 = vadd.f32 %v3069, %v3191
      %v3230 = vadd.f32 %v3074, %v3196
      %v3231 = vadd.f32 %v3079, %v3201
      %v3232 = vadd.f32 %v3084, %v3206
      %v3233 = vadd.f32 %v3089, %v3211
      %v3234 = vadd.f32 %v3094, %v3216
      %v3235 = vadd.f32 %v3099, %v3221
      %v3236 = vadd.f32 %v3104, %v3226
      %v3237 = vmax.f32 %v3229, 0.0
      %v3238 = vmax.f32 %v3230, 0.0
      %v3239 = vmax.f32 %v3231, 0.0
      %v3240 = vmax.f32 %v3232, 0.0
      %v3241 = vmax.f32 %v3233, 0.0
      %v3242 = vmax.f32 %v3234, 0.0
      %v3243 = vmax.f32 %v3235, 0.0
      %v3244 = vmax.f32 %v3236, 0.0
      %v3253 = vrot.slane %v3237, 1
      %v3254 = vrot.slane %v3238, 1
      %v3255 = vsel %vm1075, %v3253, %v3254
      %v3256 = vrot.slane %v3239, 1
      %v3257 = vsel %vm1075, %v3254, %v3256
      %v3258 = vrot.slane %v3240, 1
      %v3259 = vsel %vm1075, %v3256, %v3258
      %v3260 = vrot.slane %v3241, 1
      %v3261 = vsel %vm1075, %v3258, %v3260
      %v3262 = vrot.slane %v3242, 1
      %v3263 = vsel %vm1075, %v3260, %v3262
      %v3264 = vrot.slane %v3243, 1
      %v3265 = vsel %vm1075, %v3262, %v3264
      %v3266 = vrot.slane %v3244, 1
      %v3267 = vsel %vm1075, %v3264, %v3266
      %v3277 = vsel %vm1075, %v3266, %v3253
      %v3278 = vld [vmem:[%s47] sm:$0xff]
      %v3279 = vld [vmem:[%s47 + $0x8] sm:$0xff]
      %v3280 = vld [vmem:[%s47 + $0x10] sm:$0xff]
      %v3281 = vld [vmem:[%s47 + $0x18] sm:$0xff]
      %v3282 = vmax.f32 %v3237, %v3255
      %v3283 = vmax.f32 %v3238, %v3257
      %v3284 = vmax.f32 %v3239, %v3259
      %v3285 = vmax.f32 %v3240, %v3261
      %v3286 = vmax.f32 %v3241, %v3263
      %v3287 = vmax.f32 %v3242, %v3265
      %v3288 = vmax.f32 %v3243, %v3267
      %v3289 = vmax.f32 %v3244, %v3277
      %v3291 = vsel %vm1563, %v3278, 0
      %v3294 = vsel %vm1563, %v3279, 0
      %v3297 = vsel %vm1563, %v3280, 0
      %v3300 = vsel %vm1563, %v3281, 0
      %3302 = vmatprep.subr.mxu0 0.0
      %3303 = vmatpush1.msra.mxu0 %v3282
      %3304 = vmatprep.subr.mxu0 0.0
      %3305 = vmatpush1.msra.mxu0 %v3283
      %3306 = vmatprep.subr.mxu0 0.0
      %3307 = vmatpush1.msra.mxu0 %v3284
      %3308 = vmatprep.subr.mxu0 0.0
      %3309 = vmatpush1.msra.mxu0 %v3285
      %3310 = vmatprep.subr.mxu0 0.0
      %3311 = vmatpush1.msra.mxu0 %v3286
      %3312 = vmatprep.subr.mxu0 0.0
      %3313 = vmatpush1.msra.mxu0 %v3287
      %3314 = vmatprep.subr.mxu0 0.0
      %3315 = vmatpush1.msra.mxu0 %v3288
      %3316 = vmatprep.subr.mxu0 0.0
      %3317 = vmatpush1.msra.mxu0 %v3289
      %3318 = vmatprep.subr.mxu0 0.0
      %3319 = vmatpush1.msra.mxu0 0.0
      %3320 = vmatprep.subr.mxu0 0.0
      %3321 = vmatpush1.msra.mxu0 0.0
      %3322 = vmatprep.subr.mxu0 0.0
      %3323 = vmatpush1.msra.mxu0 0.0
      %3324 = vmatprep.subr.mxu0 0.0
      %3325 = vmatpush1.msra.mxu0 0.0
      %3326 = vmatprep.subr.mxu0 0.0
      %3327 = vmatpush1.msra.mxu0 0.0
      %3328 = vmatprep.subr.mxu0 0.0
      %3329 = vmatpush1.msra.mxu0 0.0
      %3330 = vmatprep.subr.mxu0 0.0
      %3331 = vmatpush1.msra.mxu0 0.0
      %3332 = vmatprep.subr.mxu0 0.0
      %3333 = vmatpush1.msra.mxu0 0.0
      %3334 = vmatprep.subr.mxu0 0.0
      %3335 = vmatpush1.msra.mxu0 0.0
      %3336 = vmatprep.subr.mxu0 0.0
      %3337 = vmatpush1.msra.mxu0 0.0
      %3338 = vmatprep.subr.mxu0 0.0
      %3339 = vmatpush1.msra.mxu0 0.0
      %3340 = vmatprep.subr.mxu0 0.0
      %3341 = vmatpush1.msra.mxu0 0.0
      %3342 = vmatprep.subr.mxu0 0.0
      %3343 = vmatpush1.msra.mxu0 0.0
      %3344 = vmatprep.subr.mxu0 0.0
      %3345 = vmatpush1.msra.mxu0 0.0
      %3346 = vmatprep.subr.mxu0 0.0
      %3347 = vmatpush1.msra.mxu0 0.0
      %3348 = vmatprep.subr.mxu0 0.0
      %3349 = vmatpush1.msra.mxu0 0.0
      %3350 = vmatprep.subr.mxu0 0.0
      %3351 = vmatpush1.msra.mxu0 0.0
      %3352 = vmatprep.subr.mxu0 0.0
      %3353 = vmatpush1.msra.mxu0 0.0
      %3354 = vmatprep.subr.mxu0 0.0
      %3355 = vmatpush1.msra.mxu0 0.0
      %3356 = vmatprep.subr.mxu0 0.0
      %3357 = vmatpush1.msra.mxu0 0.0
      %3358 = vmatprep.subr.mxu0 0.0
      %3359 = vmatpush1.msra.mxu0 0.0
      %3360 = vmatprep.subr.mxu0 0.0
      %3361 = vmatpush1.msra.mxu0 0.0
      %3362 = vmatprep.subr.mxu0 0.0
      %3363 = vmatpush1.msra.mxu0 0.0
      %3364 = vmatprep.subr.mxu0 0.0
      %3365 = vmatpush1.msra.mxu0 0.0
      %3366 = vmatprep.mubr.f32.mxu0 0.0
      %3367 = vmatmul.mubr.f32.gmra.mrb[0].mxu0 %v3291
      %v3368 = vpop.f32.mrb[0].mxu0
      %v3369 = vadd.f32 0.0, %v3368
      %v3370 = vpop.f32.mrb[0].mxu0
      %3371 = vmatprep.mubr.f32.mxu0 0.0
      %3372 = vmatmul.mubr.f32.gmra.mrb[0].mxu0 %v3294
      %v3373 = vpop.f32.mrb[0].mxu0
      %v3374 = vadd.f32 0.0, %v3373
      %v3375 = vpop.f32.mrb[0].mxu0
      %3376 = vmatprep.mubr.f32.mxu0 0.0
      %3377 = vmatmul.mubr.f32.gmra.mrb[0].mxu0 %v3297
      %v3378 = vpop.f32.mrb[0].mxu0
      %v3379 = vadd.f32 0.0, %v3378
      %v3380 = vpop.f32.mrb[0].mxu0
      %3381 = vmatprep.mubr.f32.mxu0 0.0
      %3382 = vmatmul.mubr.f32.gmra.mrb[0].mxu0 %v3300
      %v3383 = vpop.f32.mrb[0].mxu0
      %v3384 = vadd.f32 0.0, %v3383
      %v3385 = vpop.f32.mrb[0].mxu0
      %3386 = vdwg.mxu0
      %v3388 = vrot.slane %v3384, 7
      %v3393 = vrot.slane %v3369, 7
      %v3394 = vrot.slane %v3374, 7
      %v3395 = vsel %vm1042, %v3393, %v3394
      %v3396 = vrot.slane %v3379, 7
      %v3397 = vsel %vm1042, %v3394, %v3396
      %v3398 = vsel %vm1042, %v3396, %v3388
      %v3403 = vsel %vm1042, %v3388, %v3393
      %v3404 = vrot.slane %v3369, 1
      %v3405 = vrot.slane %v3374, 1
      %v3406 = vsel %vm1075, %v3404, %v3405
      %v3407 = vrot.slane %v3379, 1
      %v3408 = vsel %vm1075, %v3405, %v3407
      %v3409 = vrot.slane %v3384, 1
      %v3410 = vsel %vm1075, %v3407, %v3409
      %v3416 = vsel %vm1075, %v3409, %v3404
      %v3417 = vld [vmem:[%s17] sm:$0xff]
      %v3418 = vld [vmem:[%s17 + $0x8] sm:$0xff]
      %v3419 = vld [vmem:[%s17 + $0x10] sm:$0xff]
      %v3420 = vld [vmem:[%s17 + $0x18] sm:$0xff]
      %v3421 = vld [vmem:[%s17 + $0x20] sm:$0xff]
      %v3422 = vld [vmem:[%s17 + $0x28] sm:$0xff]
      %v3423 = vld [vmem:[%s17 + $0x30] sm:$0xff]
      %v3424 = vld [vmem:[%s17 + $0x38] sm:$0xff]
      %v3425 = vld [vmem:[%s17 + $0x40] sm:$0xff]
      %v3426 = vld [vmem:[%s17 + $0x48] sm:$0xff]
      %v3427 = vld [vmem:[%s17 + $0x50] sm:$0xff]
      %v3428 = vld [vmem:[%s17 + $0x58] sm:$0xff]
      %v3429 = vld [vmem:[%s17 + $0x60] sm:$0xff]
      %v3430 = vld [vmem:[%s17 + $0x68] sm:$0xff]
      %v3431 = vld [vmem:[%s17 + $0x70] sm:$0xff]
      %v3432 = vld [vmem:[%s17 + $0x78] sm:$0xff]
      %s3433 = scalar_lea.vmem %s17, 128
      %v3434 = vld [vmem:[%s3433] sm:$0xff]
      %v3435 = vld [vmem:[%s3433 + $0x8] sm:$0xff]
      %v3436 = vld [vmem:[%s3433 + $0x10] sm:$0xff]
      %v3437 = vld [vmem:[%s3433 + $0x18] sm:$0xff]
      %v3438 = vld [vmem:[%s3433 + $0x20] sm:$0xff]
      %v3439 = vld [vmem:[%s3433 + $0x28] sm:$0xff]
      %v3440 = vld [vmem:[%s3433 + $0x30] sm:$0xff]
      %v3441 = vld [vmem:[%s3433 + $0x38] sm:$0xff]
      %v3442 = vld [vmem:[%s3433 + $0x40] sm:$0xff]
      %v3443 = vld [vmem:[%s3433 + $0x48] sm:$0xff]
      %v3444 = vld [vmem:[%s3433 + $0x50] sm:$0xff]
      %v3445 = vld [vmem:[%s3433 + $0x58] sm:$0xff]
      %v3446 = vld [vmem:[%s3433 + $0x60] sm:$0xff]
      %v3447 = vld [vmem:[%s3433 + $0x68] sm:$0xff]
      %v3448 = vld [vmem:[%s3433 + $0x70] sm:$0xff]
      %v3449 = vld [vmem:[%s3433 + $0x78] sm:$0xff]
      %3450 = vmatprep.subr.mxu0 0.0
      %3451 = vmatpush1.msra.mxu0 %v3434
      %3452 = vmatprep.subr.mxu0 0.0
      %3453 = vmatpush1.msra.mxu0 %v3435
      %3454 = vmatprep.subr.mxu0 0.0
      %3455 = vmatpush1.msra.mxu0 %v3436
      %3456 = vmatprep.subr.mxu0 0.0
      %3457 = vmatpush1.msra.mxu0 %v3437
      %3458 = vmatprep.subr.mxu0 0.0
      %3459 = vmatpush1.msra.mxu0 %v3438
      %3460 = vmatprep.subr.mxu0 0.0
      %3461 = vmatpush1.msra.mxu0 %v3439
      %3462 = vmatprep.subr.mxu0 0.0
      %3463 = vmatpush1.msra.mxu0 %v3440
      %3464 = vmatprep.subr.mxu0 0.0
      %3465 = vmatpush1.msra.mxu0 %v3441
      %3466 = vmatprep.subr.mxu0 0.0
      %3467 = vmatpush1.msra.mxu0 %v3442
      %3468 = vmatprep.subr.mxu0 0.0
      %3469 = vmatpush1.msra.mxu0 %v3443
      %3470 = vmatprep.subr.mxu0 0.0
      %3471 = vmatpush1.msra.mxu0 %v3444
      %3472 = vmatprep.subr.mxu0 0.0
      %3473 = vmatpush1.msra.mxu0 %v3445
      %3474 = vmatprep.subr.mxu0 0.0
      %3475 = vmatpush1.msra.mxu0 %v3446
      %3476 = vmatprep.subr.mxu0 0.0
      %3477 = vmatpush1.msra.mxu0 %v3447
      %3478 = vmatprep.subr.mxu0 0.0
      %3479 = vmatpush1.msra.mxu0 %v3448
      %3480 = vmatprep.subr.mxu0 0.0
      %3481 = vmatpush1.msra.mxu0 %v3449
      %3482 = vmatprep.subr.mxu0 0.0
      %3483 = vmatpush1.msra.mxu0 0.0
      %3484 = vmatprep.subr.mxu0 0.0
      %3485 = vmatpush1.msra.mxu0 0.0
      %3486 = vmatprep.subr.mxu0 0.0
      %3487 = vmatpush1.msra.mxu0 0.0
      %3488 = vmatprep.subr.mxu0 0.0
      %3489 = vmatpush1.msra.mxu0 0.0
      %3490 = vmatprep.subr.mxu0 0.0
      %3491 = vmatpush1.msra.mxu0 0.0
      %3492 = vmatprep.subr.mxu0 0.0
      %3493 = vmatpush1.msra.mxu0 0.0
      %3494 = vmatprep.subr.mxu0 0.0
      %3495 = vmatpush1.msra.mxu0 0.0
      %3496 = vmatprep.subr.mxu0 0.0
      %3497 = vmatpush1.msra.mxu0 0.0
      %3498 = vmatprep.subr.mxu0 0.0
      %3499 = vmatpush1.msra.mxu0 0.0
      %3500 = vmatprep.subr.mxu0 0.0
      %3501 = vmatpush1.msra.mxu0 0.0
      %3502 = vmatprep.subr.mxu0 0.0
      %3503 = vmatpush1.msra.mxu0 0.0
      %3504 = vmatprep.subr.mxu0 0.0
      %3505 = vmatpush1.msra.mxu0 0.0
      %3506 = vmatprep.subr.mxu0 0.0
      %3507 = vmatpush1.msra.mxu0 0.0
      %3508 = vmatprep.subr.mxu0 0.0
      %3509 = vmatpush1.msra.mxu0 0.0
      %3510 = vmatprep.subr.mxu0 0.0
      %3511 = vmatpush1.msra.mxu0 0.0
      %3512 = vmatprep.subr.mxu0 0.0
      %3513 = vmatpush1.msra.mxu0 0.0
      %3514 = vmatprep.mubr.f32.mxu0 0.0
      %3515 = vmatmul.mubr.f32.gmra.mrb[0].mxu0 %v3369
      %v3516 = vpop.f32.mrb[0].mxu0
      %v3517 = vadd.f32 0.0, %v3516
      %v3518 = vpop.f32.mrb[0].mxu0
      %3519 = vmatprep.mubr.f32.mxu0 0.0
      %3520 = vmatmul.mubr.f32.gmra.mrb[0].mxu0 %v3374
      %v3521 = vpop.f32.mrb[0].mxu0
      %v3522 = vadd.f32 0.0, %v3521
      %v3523 = vpop.f32.mrb[0].mxu0
      %3524 = vmatprep.mubr.f32.mxu0 0.0
      %3525 = vmatmul.mubr.f32.gmra.mrb[0].mxu0 %v3379
      %v3526 = vpop.f32.mrb[0].mxu0
      %v3527 = vadd.f32 0.0, %v3526
      %v3528 = vpop.f32.mrb[0].mxu0
      %3529 = vmatprep.mubr.f32.mxu0 0.0
      %3530 = vmatmul.mubr.f32.gmra.mrb[0].mxu0 %v3384
      %v3531 = vpop.f32.mrb[0].mxu0
      %v3532 = vadd.f32 0.0, %v3531
      %v3533 = vpop.f32.mrb[0].mxu0
      %3534 = vdwg.mxu0
      %3535 = vmatprep.subr.mxu0 0.0
      %3536 = vmatpush1.msra.mxu0 %v3417
      %3537 = vmatprep.subr.mxu0 0.0
      %3538 = vmatpush1.msra.mxu0 %v3418
      %3539 = vmatprep.subr.mxu0 0.0
      %3540 = vmatpush1.msra.mxu0 %v3419
      %3541 = vmatprep.subr.mxu0 0.0
      %3542 = vmatpush1.msra.mxu0 %v3420
      %3543 = vmatprep.subr.mxu0 0.0
      %3544 = vmatpush1.msra.mxu0 %v3421
      %3545 = vmatprep.subr.mxu0 0.0
      %3546 = vmatpush1.msra.mxu0 %v3422
      %3547 = vmatprep.subr.mxu0 0.0
      %3548 = vmatpush1.msra.mxu0 %v3423
      %3549 = vmatprep.subr.mxu0 0.0
      %3550 = vmatpush1.msra.mxu0 %v3424
      %3551 = vmatprep.subr.mxu0 0.0
      %3552 = vmatpush1.msra.mxu0 %v3425
      %3553 = vmatprep.subr.mxu0 0.0
      %3554 = vmatpush1.msra.mxu0 %v3426
      %3555 = vmatprep.subr.mxu0 0.0
      %3556 = vmatpush1.msra.mxu0 %v3427
      %3557 = vmatprep.subr.mxu0 0.0
      %3558 = vmatpush1.msra.mxu0 %v3428
      %3559 = vmatprep.subr.mxu0 0.0
      %3560 = vmatpush1.msra.mxu0 %v3429
      %3561 = vmatprep.subr.mxu0 0.0
      %3562 = vmatpush1.msra.mxu0 %v3430
      %3563 = vmatprep.subr.mxu0 0.0
      %3564 = vmatpush1.msra.mxu0 %v3431
      %3565 = vmatprep.subr.mxu0 0.0
      %3566 = vmatpush1.msra.mxu0 %v3432
      %3567 = vmatprep.subr.mxu0 0.0
      %3568 = vmatpush1.msra.mxu0 0.0
      %3569 = vmatprep.subr.mxu0 0.0
      %3570 = vmatpush1.msra.mxu0 0.0
      %3571 = vmatprep.subr.mxu0 0.0
      %3572 = vmatpush1.msra.mxu0 0.0
      %3573 = vmatprep.subr.mxu0 0.0
      %3574 = vmatpush1.msra.mxu0 0.0
      %3575 = vmatprep.subr.mxu0 0.0
      %3576 = vmatpush1.msra.mxu0 0.0
      %3577 = vmatprep.subr.mxu0 0.0
      %3578 = vmatpush1.msra.mxu0 0.0
      %3579 = vmatprep.subr.mxu0 0.0
      %3580 = vmatpush1.msra.mxu0 0.0
      %3581 = vmatprep.subr.mxu0 0.0
      %3582 = vmatpush1.msra.mxu0 0.0
      %3583 = vmatprep.subr.mxu0 0.0
      %3584 = vmatpush1.msra.mxu0 0.0
      %3585 = vmatprep.subr.mxu0 0.0
      %3586 = vmatpush1.msra.mxu0 0.0
      %3587 = vmatprep.subr.mxu0 0.0
      %3588 = vmatpush1.msra.mxu0 0.0
      %3589 = vmatprep.subr.mxu0 0.0
      %3590 = vmatpush1.msra.mxu0 0.0
      %3591 = vmatprep.subr.mxu0 0.0
      %3592 = vmatpush1.msra.mxu0 0.0
      %3593 = vmatprep.subr.mxu0 0.0
      %3594 = vmatpush1.msra.mxu0 0.0
      %3595 = vmatprep.subr.mxu0 0.0
      %3596 = vmatpush1.msra.mxu0 0.0
      %3597 = vmatprep.subr.mxu0 0.0
      %3598 = vmatpush1.msra.mxu0 0.0
      %3599 = vmatprep.mubr.f32.mxu0 0.0
      %3600 = vmatmul.mubr.f32.gmra.mrb[0].mxu0 %v3403
      %v3601 = vpop.f32.mrb[0].mxu0
      %v3602 = vadd.f32 %v3517, %v3601
      %v3603 = vpop.f32.mrb[0].mxu0
      %3604 = vmatprep.mubr.f32.mxu0 0.0
      %3605 = vmatmul.mubr.f32.gmra.mrb[0].mxu0 %v3395
      %v3606 = vpop.f32.mrb[0].mxu0
      %v3607 = vadd.f32 %v3522, %v3606
      %v3608 = vpop.f32.mrb[0].mxu0
      %3609 = vmatprep.mubr.f32.mxu0 0.0
      %3610 = vmatmul.mubr.f32.gmra.mrb[0].mxu0 %v3397
      %v3611 = vpop.f32.mrb[0].mxu0
      %v3612 = vadd.f32 %v3527, %v3611
      %v3613 = vpop.f32.mrb[0].mxu0
      %3614 = vmatprep.mubr.f32.mxu0 0.0
      %3615 = vmatmul.mubr.f32.gmra.mrb[0].mxu0 %v3398
      %v3616 = vpop.f32.mrb[0].mxu0
      %v3617 = vadd.f32 %v3532, %v3616
      %v3618 = vpop.f32.mrb[0].mxu0
      %3619 = vdwg.mxu0
      %s3620 = scalar_lea.vmem %s17, 256
      %v3621 = vld [vmem:[%s3620] sm:$0xff]
      %v3622 = vld [vmem:[%s3620 + $0x8] sm:$0xff]
      %v3623 = vld [vmem:[%s3620 + $0x10] sm:$0xff]
      %v3624 = vld [vmem:[%s3620 + $0x18] sm:$0xff]
      %v3625 = vld [vmem:[%s3620 + $0x20] sm:$0xff]
      %v3626 = vld [vmem:[%s3620 + $0x28] sm:$0xff]
      %v3627 = vld [vmem:[%s3620 + $0x30] sm:$0xff]
      %v3628 = vld [vmem:[%s3620 + $0x38] sm:$0xff]
      %v3629 = vld [vmem:[%s3620 + $0x40] sm:$0xff]
      %v3630 = vld [vmem:[%s3620 + $0x48] sm:$0xff]
      %v3631 = vld [vmem:[%s3620 + $0x50] sm:$0xff]
      %v3632 = vld [vmem:[%s3620 + $0x58] sm:$0xff]
      %v3633 = vld [vmem:[%s3620 + $0x60] sm:$0xff]
      %v3634 = vld [vmem:[%s3620 + $0x68] sm:$0xff]
      %v3635 = vld [vmem:[%s3620 + $0x70] sm:$0xff]
      %v3636 = vld [vmem:[%s3620 + $0x78] sm:$0xff]
      %3637 = vmatprep.subr.mxu0 0.0
      %3638 = vmatpush1.msra.mxu0 %v3621
      %3639 = vmatprep.subr.mxu0 0.0
      %3640 = vmatpush1.msra.mxu0 %v3622
      %3641 = vmatprep.subr.mxu0 0.0
      %3642 = vmatpush1.msra.mxu0 %v3623
      %3643 = vmatprep.subr.mxu0 0.0
      %3644 = vmatpush1.msra.mxu0 %v3624
      %3645 = vmatprep.subr.mxu0 0.0
      %3646 = vmatpush1.msra.mxu0 %v3625
      %3647 = vmatprep.subr.mxu0 0.0
      %3648 = vmatpush1.msra.mxu0 %v3626
      %3649 = vmatprep.subr.mxu0 0.0
      %3650 = vmatpush1.msra.mxu0 %v3627
      %3651 = vmatprep.subr.mxu0 0.0
      %3652 = vmatpush1.msra.mxu0 %v3628
      %3653 = vmatprep.subr.mxu0 0.0
      %3654 = vmatpush1.msra.mxu0 %v3629
      %3655 = vmatprep.subr.mxu0 0.0
      %3656 = vmatpush1.msra.mxu0 %v3630
      %3657 = vmatprep.subr.mxu0 0.0
      %3658 = vmatpush1.msra.mxu0 %v3631
      %3659 = vmatprep.subr.mxu0 0.0
      %3660 = vmatpush1.msra.mxu0 %v3632
      %3661 = vmatprep.subr.mxu0 0.0
      %3662 = vmatpush1.msra.mxu0 %v3633
      %3663 = vmatprep.subr.mxu0 0.0
      %3664 = vmatpush1.msra.mxu0 %v3634
      %3665 = vmatprep.subr.mxu0 0.0
      %3666 = vmatpush1.msra.mxu0 %v3635
      %3667 = vmatprep.subr.mxu0 0.0
      %3668 = vmatpush1.msra.mxu0 %v3636
      %3669 = vmatprep.subr.mxu0 0.0
      %3670 = vmatpush1.msra.mxu0 0.0
      %3671 = vmatprep.subr.mxu0 0.0
      %3672 = vmatpush1.msra.mxu0 0.0
      %3673 = vmatprep.subr.mxu0 0.0
      %3674 = vmatpush1.msra.mxu0 0.0
      %3675 = vmatprep.subr.mxu0 0.0
      %3676 = vmatpush1.msra.mxu0 0.0
      %3677 = vmatprep.subr.mxu0 0.0
      %3678 = vmatpush1.msra.mxu0 0.0
      %3679 = vmatprep.subr.mxu0 0.0
      %3680 = vmatpush1.msra.mxu0 0.0
      %3681 = vmatprep.subr.mxu0 0.0
      %3682 = vmatpush1.msra.mxu0 0.0
      %3683 = vmatprep.subr.mxu0 0.0
      %3684 = vmatpush1.msra.mxu0 0.0
      %3685 = vmatprep.subr.mxu0 0.0
      %3686 = vmatpush1.msra.mxu0 0.0
      %3687 = vmatprep.subr.mxu0 0.0
      %3688 = vmatpush1.msra.mxu0 0.0
      %3689 = vmatprep.subr.mxu0 0.0
      %3690 = vmatpush1.msra.mxu0 0.0
      %3691 = vmatprep.subr.mxu0 0.0
      %3692 = vmatpush1.msra.mxu0 0.0
      %3693 = vmatprep.subr.mxu0 0.0
      %3694 = vmatpush1.msra.mxu0 0.0
      %3695 = vmatprep.subr.mxu0 0.0
      %3696 = vmatpush1.msra.mxu0 0.0
      %3697 = vmatprep.subr.mxu0 0.0
      %3698 = vmatpush1.msra.mxu0 0.0
      %3699 = vmatprep.subr.mxu0 0.0
      %3700 = vmatpush1.msra.mxu0 0.0
      %3701 = vmatprep.mubr.f32.mxu0 0.0
      %3702 = vmatmul.mubr.f32.gmra.mrb[0].mxu0 %v3406
      %v3703 = vpop.f32.mrb[0].mxu0
      %v3704 = vadd.f32 0.0, %v3703
      %v3705 = vpop.f32.mrb[0].mxu0
      %3706 = vmatprep.mubr.f32.mxu0 0.0
      %3707 = vmatmul.mubr.f32.gmra.mrb[0].mxu0 %v3408
      %v3708 = vpop.f32.mrb[0].mxu0
      %v3709 = vadd.f32 0.0, %v3708
      %v3710 = vpop.f32.mrb[0].mxu0
      %3711 = vmatprep.mubr.f32.mxu0 0.0
      %3712 = vmatmul.mubr.f32.gmra.mrb[0].mxu0 %v3410
      %v3713 = vpop.f32.mrb[0].mxu0
      %v3714 = vadd.f32 0.0, %v3713
      %v3715 = vpop.f32.mrb[0].mxu0
      %3716 = vmatprep.mubr.f32.mxu0 0.0
      %3717 = vmatmul.mubr.f32.gmra.mrb[0].mxu0 %v3416
      %v3718 = vpop.f32.mrb[0].mxu0
      %v3719 = vadd.f32 0.0, %v3718
      %v3720 = vpop.f32.mrb[0].mxu0
      %3721 = vdwg.mxu0
      %v3722 = vadd.f32 %v3602, %v3704
      %v3723 = vadd.f32 %v3607, %v3709
      %v3724 = vadd.f32 %v3612, %v3714
      %v3725 = vadd.f32 %v3617, %v3719
      %v3726 = vld [vmem:[#allocation2] sm:$0x1]
      %v3728 = vlaneseq
      %v3729 = vshrl.u32 %v3728, 7
      %v3730 = vsub.s32 0, %v3729
      %v3731 = vrot.slane %v3726, %v3730
      %v3733 = vadd.f32 %v3722, %v3731
      %v3734 = vadd.f32 %v3723, %v3731
      %v3735 = vadd.f32 %v3724, %v3731
      %v3736 = vadd.f32 %v3725, %v3731
      %v3737 = vmax.f32 %v3733, 0.0
      %v3738 = vmax.f32 %v3734, 0.0
      %v3739 = vmax.f32 %v3735, 0.0
      %v3740 = vmax.f32 %v3736, 0.0
      %v3741 = vld [vmem:[%s21] sm:$0xff]
      %v3742 = vld [vmem:[%s21 + $0x8] sm:$0xff]
      %v3743 = vld [vmem:[%s21 + $0x10] sm:$0xff]
      %v3744 = vld [vmem:[%s21 + $0x18] sm:$0xff]
      %v3745 = vld [vmem:[%s21 + $0x20] sm:$0xff]
      %v3746 = vld [vmem:[%s21 + $0x28] sm:$0xff]
      %v3747 = vld [vmem:[%s21 + $0x30] sm:$0xff]
      %v3748 = vld [vmem:[%s21 + $0x38] sm:$0xff]
      %v3749 = vld [vmem:[%s21 + $0x40] sm:$0xff]
      %v3750 = vld [vmem:[%s21 + $0x48] sm:$0xff]
      %v3751 = vld [vmem:[%s21 + $0x50] sm:$0xff]
      %v3752 = vld [vmem:[%s21 + $0x58] sm:$0xff]
      %v3753 = vld [vmem:[%s21 + $0x60] sm:$0xff]
      %v3754 = vld [vmem:[%s21 + $0x68] sm:$0xff]
      %v3755 = vld [vmem:[%s21 + $0x70] sm:$0xff]
      %v3756 = vld [vmem:[%s21 + $0x78] sm:$0xff]
      %s3757 = scalar_lea.vmem %s21, 128
      %v3758 = vld [vmem:[%s3757] sm:$0xff]
      %v3759 = vld [vmem:[%s3757 + $0x8] sm:$0xff]
      %v3760 = vld [vmem:[%s3757 + $0x10] sm:$0xff]
      %v3761 = vld [vmem:[%s3757 + $0x18] sm:$0xff]
      %v3762 = vld [vmem:[%s3757 + $0x20] sm:$0xff]
      %v3763 = vld [vmem:[%s3757 + $0x28] sm:$0xff]
      %v3764 = vld [vmem:[%s3757 + $0x30] sm:$0xff]
      %v3765 = vld [vmem:[%s3757 + $0x38] sm:$0xff]
      %v3766 = vld [vmem:[%s3757 + $0x40] sm:$0xff]
      %v3767 = vld [vmem:[%s3757 + $0x48] sm:$0xff]
      %v3768 = vld [vmem:[%s3757 + $0x50] sm:$0xff]
      %v3769 = vld [vmem:[%s3757 + $0x58] sm:$0xff]
      %v3770 = vld [vmem:[%s3757 + $0x60] sm:$0xff]
      %v3771 = vld [vmem:[%s3757 + $0x68] sm:$0xff]
      %v3772 = vld [vmem:[%s3757 + $0x70] sm:$0xff]
      %v3773 = vld [vmem:[%s3757 + $0x78] sm:$0xff]
      %3774 = vmatprep.subr.mxu0 0.0
      %3775 = vmatpush1.msra.mxu0 %v3758
      %3776 = vmatprep.subr.mxu0 0.0
      %3777 = vmatpush1.msra.mxu0 %v3759
      %3778 = vmatprep.subr.mxu0 0.0
      %3779 = vmatpush1.msra.mxu0 %v3760
      %3780 = vmatprep.subr.mxu0 0.0
      %3781 = vmatpush1.msra.mxu0 %v3761
      %3782 = vmatprep.subr.mxu0 0.0
      %3783 = vmatpush1.msra.mxu0 %v3762
      %3784 = vmatprep.subr.mxu0 0.0
      %3785 = vmatpush1.msra.mxu0 %v3763
      %3786 = vmatprep.subr.mxu0 0.0
      %3787 = vmatpush1.msra.mxu0 %v3764
      %3788 = vmatprep.subr.mxu0 0.0
      %3789 = vmatpush1.msra.mxu0 %v3765
      %3790 = vmatprep.subr.mxu0 0.0
      %3791 = vmatpush1.msra.mxu0 %v3766
      %3792 = vmatprep.subr.mxu0 0.0
      %3793 = vmatpush1.msra.mxu0 %v3767
      %3794 = vmatprep.subr.mxu0 0.0
      %3795 = vmatpush1.msra.mxu0 %v3768
      %3796 = vmatprep.subr.mxu0 0.0
      %3797 = vmatpush1.msra.mxu0 %v3769
      %3798 = vmatprep.subr.mxu0 0.0
      %3799 = vmatpush1.msra.mxu0 %v3770
      %3800 = vmatprep.subr.mxu0 0.0
      %3801 = vmatpush1.msra.mxu0 %v3771
      %3802 = vmatprep.subr.mxu0 0.0
      %3803 = vmatpush1.msra.mxu0 %v3772
      %3804 = vmatprep.subr.mxu0 0.0
      %3805 = vmatpush1.msra.mxu0 %v3773
      %3806 = vmatprep.subr.mxu0 0.0
      %3807 = vmatpush1.msra.mxu0 0.0
      %3808 = vmatprep.subr.mxu0 0.0
      %3809 = vmatpush1.msra.mxu0 0.0
      %3810 = vmatprep.subr.mxu0 0.0
      %3811 = vmatpush1.msra.mxu0 0.0
      %3812 = vmatprep.subr.mxu0 0.0
      %3813 = vmatpush1.msra.mxu0 0.0
      %3814 = vmatprep.subr.mxu0 0.0
      %3815 = vmatpush1.msra.mxu0 0.0
      %3816 = vmatprep.subr.mxu0 0.0
      %3817 = vmatpush1.msra.mxu0 0.0
      %3818 = vmatprep.subr.mxu0 0.0
      %3819 = vmatpush1.msra.mxu0 0.0
      %3820 = vmatprep.subr.mxu0 0.0
      %3821 = vmatpush1.msra.mxu0 0.0
      %3822 = vmatprep.subr.mxu0 0.0
      %3823 = vmatpush1.msra.mxu0 0.0
      %3824 = vmatprep.subr.mxu0 0.0
      %3825 = vmatpush1.msra.mxu0 0.0
      %3826 = vmatprep.subr.mxu0 0.0
      %3827 = vmatpush1.msra.mxu0 0.0
      %3828 = vmatprep.subr.mxu0 0.0
      %3829 = vmatpush1.msra.mxu0 0.0
      %3830 = vmatprep.subr.mxu0 0.0
      %3831 = vmatpush1.msra.mxu0 0.0
      %3832 = vmatprep.subr.mxu0 0.0
      %3833 = vmatpush1.msra.mxu0 0.0
      %3834 = vmatprep.subr.mxu0 0.0
      %3835 = vmatpush1.msra.mxu0 0.0
      %3836 = vmatprep.subr.mxu0 0.0
      %3837 = vmatpush1.msra.mxu0 0.0
      %3838 = vmatprep.mubr.f32.mxu0 0.0
      %3839 = vmatmul.mubr.f32.gmra.mrb[0].mxu0 %v3369
      %v3840 = vpop.f32.mrb[0].mxu0
      %v3841 = vadd.f32 0.0, %v3840
      %v3842 = vpop.f32.mrb[0].mxu0
      %3843 = vmatprep.mubr.f32.mxu0 0.0
      %3844 = vmatmul.mubr.f32.gmra.mrb[0].mxu0 %v3374
      %v3845 = vpop.f32.mrb[0].mxu0
      %v3846 = vadd.f32 0.0, %v3845
      %v3847 = vpop.f32.mrb[0].mxu0
      %3848 = vmatprep.mubr.f32.mxu0 0.0
      %3849 = vmatmul.mubr.f32.gmra.mrb[0].mxu0 %v3379
      %v3850 = vpop.f32.mrb[0].mxu0
      %v3851 = vadd.f32 0.0, %v3850
      %v3852 = vpop.f32.mrb[0].mxu0
      %3853 = vmatprep.mubr.f32.mxu0 0.0
      %3854 = vmatmul.mubr.f32.gmra.mrb[0].mxu0 %v3384
      %v3855 = vpop.f32.mrb[0].mxu0
      %v3856 = vadd.f32 0.0, %v3855
      %v3857 = vpop.f32.mrb[0].mxu0
      %3858 = vdwg.mxu0
      %3859 = vmatprep.subr.mxu0 0.0
      %3860 = vmatpush1.msra.mxu0 %v3741
      %3861 = vmatprep.subr.mxu0 0.0
      %3862 = vmatpush1.msra.mxu0 %v3742
      %3863 = vmatprep.subr.mxu0 0.0
      %3864 = vmatpush1.msra.mxu0 %v3743
      %3865 = vmatprep.subr.mxu0 0.0
      %3866 = vmatpush1.msra.mxu0 %v3744
      %3867 = vmatprep.subr.mxu0 0.0
      %3868 = vmatpush1.msra.mxu0 %v3745
      %3869 = vmatprep.subr.mxu0 0.0
      %3870 = vmatpush1.msra.mxu0 %v3746
      %3871 = vmatprep.subr.mxu0 0.0
      %3872 = vmatpush1.msra.mxu0 %v3747
      %3873 = vmatprep.subr.mxu0 0.0
      %3874 = vmatpush1.msra.mxu0 %v3748
      %3875 = vmatprep.subr.mxu0 0.0
      %3876 = vmatpush1.msra.mxu0 %v3749
      %3877 = vmatprep.subr.mxu0 0.0
      %3878 = vmatpush1.msra.mxu0 %v3750
      %3879 = vmatprep.subr.mxu0 0.0
      %3880 = vmatpush1.msra.mxu0 %v3751
      %3881 = vmatprep.subr.mxu0 0.0
      %3882 = vmatpush1.msra.mxu0 %v3752
      %3883 = vmatprep.subr.mxu0 0.0
      %3884 = vmatpush1.msra.mxu0 %v3753
      %3885 = vmatprep.subr.mxu0 0.0
      %3886 = vmatpush1.msra.mxu0 %v3754
      %3887 = vmatprep.subr.mxu0 0.0
      %3888 = vmatpush1.msra.mxu0 %v3755
      %3889 = vmatprep.subr.mxu0 0.0
      %3890 = vmatpush1.msra.mxu0 %v3756
      %3891 = vmatprep.subr.mxu0 0.0
      %3892 = vmatpush1.msra.mxu0 0.0
      %3893 = vmatprep.subr.mxu0 0.0
      %3894 = vmatpush1.msra.mxu0 0.0
      %3895 = vmatprep.subr.mxu0 0.0
      %3896 = vmatpush1.msra.mxu0 0.0
      %3897 = vmatprep.subr.mxu0 0.0
      %3898 = vmatpush1.msra.mxu0 0.0
      %3899 = vmatprep.subr.mxu0 0.0
      %3900 = vmatpush1.msra.mxu0 0.0
      %3901 = vmatprep.subr.mxu0 0.0
      %3902 = vmatpush1.msra.mxu0 0.0
      %3903 = vmatprep.subr.mxu0 0.0
      %3904 = vmatpush1.msra.mxu0 0.0
      %3905 = vmatprep.subr.mxu0 0.0
      %3906 = vmatpush1.msra.mxu0 0.0
      %3907 = vmatprep.subr.mxu0 0.0
      %3908 = vmatpush1.msra.mxu0 0.0
      %3909 = vmatprep.subr.mxu0 0.0
      %3910 = vmatpush1.msra.mxu0 0.0
      %3911 = vmatprep.subr.mxu0 0.0
      %3912 = vmatpush1.msra.mxu0 0.0
      %3913 = vmatprep.subr.mxu0 0.0
      %3914 = vmatpush1.msra.mxu0 0.0
      %3915 = vmatprep.subr.mxu0 0.0
      %3916 = vmatpush1.msra.mxu0 0.0
      %3917 = vmatprep.subr.mxu0 0.0
      %3918 = vmatpush1.msra.mxu0 0.0
      %3919 = vmatprep.subr.mxu0 0.0
      %3920 = vmatpush1.msra.mxu0 0.0
      %3921 = vmatprep.subr.mxu0 0.0
      %3922 = vmatpush1.msra.mxu0 0.0
      %3923 = vmatprep.mubr.f32.mxu0 0.0
      %3924 = vmatmul.mubr.f32.gmra.mrb[0].mxu0 %v3403
      %v3925 = vpop.f32.mrb[0].mxu0
      %v3926 = vadd.f32 %v3841, %v3925
      %v3927 = vpop.f32.mrb[0].mxu0
      %3928 = vmatprep.mubr.f32.mxu0 0.0
      %3929 = vmatmul.mubr.f32.gmra.mrb[0].mxu0 %v3395
      %v3930 = vpop.f32.mrb[0].mxu0
      %v3931 = vadd.f32 %v3846, %v3930
      %v3932 = vpop.f32.mrb[0].mxu0
      %3933 = vmatprep.mubr.f32.mxu0 0.0
      %3934 = vmatmul.mubr.f32.gmra.mrb[0].mxu0 %v3397
      %v3935 = vpop.f32.mrb[0].mxu0
      %v3936 = vadd.f32 %v3851, %v3935
      %v3937 = vpop.f32.mrb[0].mxu0
      %3938 = vmatprep.mubr.f32.mxu0 0.0
      %3939 = vmatmul.mubr.f32.gmra.mrb[0].mxu0 %v3398
      %v3940 = vpop.f32.mrb[0].mxu0
      %v3941 = vadd.f32 %v3856, %v3940
      %v3942 = vpop.f32.mrb[0].mxu0
      %3943 = vdwg.mxu0
      %s3944 = scalar_lea.vmem %s21, 256
      %v3945 = vld [vmem:[%s3944] sm:$0xff]
      %v3946 = vld [vmem:[%s3944 + $0x8] sm:$0xff]
      %v3947 = vld [vmem:[%s3944 + $0x10] sm:$0xff]
      %v3948 = vld [vmem:[%s3944 + $0x18] sm:$0xff]
      %v3949 = vld [vmem:[%s3944 + $0x20] sm:$0xff]
      %v3950 = vld [vmem:[%s3944 + $0x28] sm:$0xff]
      %v3951 = vld [vmem:[%s3944 + $0x30] sm:$0xff]
      %v3952 = vld [vmem:[%s3944 + $0x38] sm:$0xff]
      %v3953 = vld [vmem:[%s3944 + $0x40] sm:$0xff]
      %v3954 = vld [vmem:[%s3944 + $0x48] sm:$0xff]
      %v3955 = vld [vmem:[%s3944 + $0x50] sm:$0xff]
      %v3956 = vld [vmem:[%s3944 + $0x58] sm:$0xff]
      %v3957 = vld [vmem:[%s3944 + $0x60] sm:$0xff]
      %v3958 = vld [vmem:[%s3944 + $0x68] sm:$0xff]
      %v3959 = vld [vmem:[%s3944 + $0x70] sm:$0xff]
      %v3960 = vld [vmem:[%s3944 + $0x78] sm:$0xff]
      %3961 = vmatprep.subr.mxu0 0.0
      %3962 = vmatpush1.msra.mxu0 %v3945
      %3963 = vmatprep.subr.mxu0 0.0
      %3964 = vmatpush1.msra.mxu0 %v3946
      %3965 = vmatprep.subr.mxu0 0.0
      %3966 = vmatpush1.msra.mxu0 %v3947
      %3967 = vmatprep.subr.mxu0 0.0
      %3968 = vmatpush1.msra.mxu0 %v3948
      %3969 = vmatprep.subr.mxu0 0.0
      %3970 = vmatpush1.msra.mxu0 %v3949
      %3971 = vmatprep.subr.mxu0 0.0
      %3972 = vmatpush1.msra.mxu0 %v3950
      %3973 = vmatprep.subr.mxu0 0.0
      %3974 = vmatpush1.msra.mxu0 %v3951
      %3975 = vmatprep.subr.mxu0 0.0
      %3976 = vmatpush1.msra.mxu0 %v3952
      %3977 = vmatprep.subr.mxu0 0.0
      %3978 = vmatpush1.msra.mxu0 %v3953
      %3979 = vmatprep.subr.mxu0 0.0
      %3980 = vmatpush1.msra.mxu0 %v3954
      %3981 = vmatprep.subr.mxu0 0.0
      %3982 = vmatpush1.msra.mxu0 %v3955
      %3983 = vmatprep.subr.mxu0 0.0
      %3984 = vmatpush1.msra.mxu0 %v3956
      %3985 = vmatprep.subr.mxu0 0.0
      %3986 = vmatpush1.msra.mxu0 %v3957
      %3987 = vmatprep.subr.mxu0 0.0
      %3988 = vmatpush1.msra.mxu0 %v3958
      %3989 = vmatprep.subr.mxu0 0.0
      %3990 = vmatpush1.msra.mxu0 %v3959
      %3991 = vmatprep.subr.mxu0 0.0
      %3992 = vmatpush1.msra.mxu0 %v3960
      %3993 = vmatprep.subr.mxu0 0.0
      %3994 = vmatpush1.msra.mxu0 0.0
      %3995 = vmatprep.subr.mxu0 0.0
      %3996 = vmatpush1.msra.mxu0 0.0
      %3997 = vmatprep.subr.mxu0 0.0
      %3998 = vmatpush1.msra.mxu0 0.0
      %3999 = vmatprep.subr.mxu0 0.0
      %4000 = vmatpush1.msra.mxu0 0.0
      %4001 = vmatprep.subr.mxu0 0.0
      %4002 = vmatpush1.msra.mxu0 0.0
      %4003 = vmatprep.subr.mxu0 0.0
      %4004 = vmatpush1.msra.mxu0 0.0
      %4005 = vmatprep.subr.mxu0 0.0
      %4006 = vmatpush1.msra.mxu0 0.0
      %4007 = vmatprep.subr.mxu0 0.0
      %4008 = vmatpush1.msra.mxu0 0.0
      %4009 = vmatprep.subr.mxu0 0.0
      %4010 = vmatpush1.msra.mxu0 0.0
      %4011 = vmatprep.subr.mxu0 0.0
      %4012 = vmatpush1.msra.mxu0 0.0
      %4013 = vmatprep.subr.mxu0 0.0
      %4014 = vmatpush1.msra.mxu0 0.0
      %4015 = vmatprep.subr.mxu0 0.0
      %4016 = vmatpush1.msra.mxu0 0.0
      %4017 = vmatprep.subr.mxu0 0.0
      %4018 = vmatpush1.msra.mxu0 0.0
      %4019 = vmatprep.subr.mxu0 0.0
      %4020 = vmatpush1.msra.mxu0 0.0
      %4021 = vmatprep.subr.mxu0 0.0
      %4022 = vmatpush1.msra.mxu0 0.0
      %4023 = vmatprep.subr.mxu0 0.0
      %4024 = vmatpush1.msra.mxu0 0.0
      %4025 = vmatprep.mubr.f32.mxu0 0.0
      %4026 = vmatmul.mubr.f32.gmra.mrb[0].mxu0 %v3406
      %v4027 = vpop.f32.mrb[0].mxu0
      %v4028 = vadd.f32 0.0, %v4027
      %v4029 = vpop.f32.mrb[0].mxu0
      %4030 = vmatprep.mubr.f32.mxu0 0.0
      %4031 = vmatmul.mubr.f32.gmra.mrb[0].mxu0 %v3408
      %v4032 = vpop.f32.mrb[0].mxu0
      %v4033 = vadd.f32 0.0, %v4032
      %v4034 = vpop.f32.mrb[0].mxu0
      %4035 = vmatprep.mubr.f32.mxu0 0.0
      %4036 = vmatmul.mubr.f32.gmra.mrb[0].mxu0 %v3410
      %v4037 = vpop.f32.mrb[0].mxu0
      %v4038 = vadd.f32 0.0, %v4037
      %v4039 = vpop.f32.mrb[0].mxu0
      %4040 = vmatprep.mubr.f32.mxu0 0.0
      %4041 = vmatmul.mubr.f32.gmra.mrb[0].mxu0 %v3416
      %v4042 = vpop.f32.mrb[0].mxu0
      %v4043 = vadd.f32 0.0, %v4042
      %v4044 = vpop.f32.mrb[0].mxu0
      %4045 = vdwg.mxu0
      %v4046 = vadd.f32 %v3926, %v4028
      %v4047 = vadd.f32 %v3931, %v4033
      %v4048 = vadd.f32 %v3936, %v4038
      %v4049 = vadd.f32 %v3941, %v4043
      %v4050 = vld [vmem:[#allocation3] sm:$0x1]
      %v4052 = vlaneseq
      %v4053 = vshrl.u32 %v4052, 7
      %v4054 = vsub.s32 0, %v4053
      %v4055 = vrot.slane %v4050, %v4054
      %v4057 = vadd.f32 %v4046, %v4055
      %v4058 = vadd.f32 %v4047, %v4055
      %v4059 = vadd.f32 %v4048, %v4055
      %v4060 = vadd.f32 %v4049, %v4055
      %v4061 = vmax.f32 %v4057, 0.0
      %v4062 = vmax.f32 %v4058, 0.0
      %v4063 = vmax.f32 %v4059, 0.0
      %v4064 = vmax.f32 %v4060, 0.0
      %vm4065 = vcmask 7168
      %4066 = vst.msk [vmem:[%s987] sm:$0xff] %vm4065, %v3737
      %4067 = vst.msk [vmem:[%s987 + $0x8] sm:$0xff] %vm4065, %v3738
      %4068 = vst.msk [vmem:[%s987 + $0x10] sm:$0xff] %vm4065, %v3739
      %4069 = vst.msk [vmem:[%s987 + $0x18] sm:$0xff] %vm4065, %v3740
      %4070 = vst.msk [vmem:[%s992] sm:$0xff] %vm4065, %v4061
      %4071 = vst.msk [vmem:[%s992 + $0x8] sm:$0xff] %vm4065, %v4062
      %4072 = vst.msk [vmem:[%s992 + $0x10] sm:$0xff] %vm4065, %v4063
      %4073 = vst.msk [vmem:[%s992 + $0x18] sm:$0xff] %vm4065, %v4064
      %v4074 = vmul.f32 %v4061, 0.5
      %v4075 = vmul.f32 %v4062, 0.5
      %v4076 = vmul.f32 %v4063, 0.5
      %v4077 = vmul.f32 %v4064, 0.5
      %v4078 = vmul.f32 %v4074, 1.442695
      %v4079 = vpow.pop %v4078
      %v4080 = vmul.f32 %v4075, 1.442695
      %v4081 = vpow.pop %v4080
      %v4082 = vmul.f32 %v4076, 1.442695
      %v4083 = vpow.pop %v4082
      %v4084 = vmul.f32 %v4077, 1.442695
      %v4085 = vpow.pop %v4084
      %v4086 = vld [vmem:[%s982] sm:$0xff]
      %v4087 = vld [vmem:[%s982 + $0x8] sm:$0xff]
      %v4088 = vld [vmem:[%s982 + $0x10] sm:$0xff]
      %v4089 = vld [vmem:[%s982 + $0x18] sm:$0xff]
      %v4090 = vmul.f32 %v4079, %v4086
      %v4091 = vmul.f32 %v4081, %v4087
      %v4092 = vmul.f32 %v4083, %v4088
      %v4093 = vmul.f32 %v4085, %v4089
      %v4094 = vadd.f32 %v3737, %v4090
      %v4095 = vadd.f32 %v3738, %v4091
      %v4096 = vadd.f32 %v3739, %v4092
      %v4097 = vadd.f32 %v3740, %v4093
      %4098 = vst.msk [vmem:[%s997] sm:$0xff] %vm4065, %v4094
      %4099 = vst.msk [vmem:[%s997 + $0x8] sm:$0xff] %vm4065, %v4095
      %4100 = vst.msk [vmem:[%s997 + $0x10] sm:$0xff] %vm4065, %v4096
      %4101 = vst.msk [vmem:[%s997 + $0x18] sm:$0xff] %vm4065, %v4097
      %v4103 = vrot.slane %v4097, 7
      %v4108 = vrot.slane %v4094, 7
      %v4109 = vrot.slane %v4095, 7
      %v4110 = vsel %vm1042, %v4108, %v4109
      %v4111 = vrot.slane %v4096, 7
      %v4112 = vsel %vm1042, %v4109, %v4111
      %v4113 = vsel %vm1042, %v4111, %v4103
      %v4115 = vsel %vm1042, %v4103, %v4108
      %v4116 = vrot.slane %v4094, 1
      %v4117 = vrot.slane %v4095, 1
      %v4118 = vsel %vm1075, %v4116, %v4117
      %v4119 = vrot.slane %v4096, 1
      %v4120 = vsel %vm1075, %v4117, %v4119
      %v4121 = vrot.slane %v4097, 1
      %v4122 = vsel %vm1075, %v4119, %v4121
      %v4125 = vsel %vm1075, %v4121, %v4116
      %v4126 = vld [vmem:[%s25] sm:$0x1]
      %4128 = vset.pattern.permute.xlu0 0
      %4129 = vperm.xlu0 %4128, %v4115
      %v4130 = vpop.permute.xlu0 %4129
      %4132 = vset.pattern.permute.xlu0 0
      %4133 = vperm.xlu0 %4132, %v4110
      %v4134 = vpop.permute.xlu0 %4133
      %4136 = vset.pattern.permute.xlu0 0
      %4137 = vperm.xlu0 %4136, %v4112
      %v4138 = vpop.permute.xlu0 %4137
      %4140 = vset.pattern.permute.xlu0 0
      %4141 = vperm.xlu0 %4140, %v4113
      %v4142 = vpop.permute.xlu0 %4141
      %v4145 = vlaneseq
      %v4146 = vshrl.u32 %v4145, 7
      %v4147 = vsub.s32 0, %v4146
      %v4148 = vrot.slane %v4126, %v4147
      %v4150 = vmul.f32 %v4130, %v4148
      %v4151 = vmul.f32 %v4134, %v4148
      %v4152 = vmul.f32 %v4138, %v4148
      %v4153 = vmul.f32 %v4142, %v4148
      %s4154 = scalar_lea.vmem %s25, 1
      %v4155 = vld [vmem:[%s4154] sm:$0x1]
      %4156 = vset.pattern.permute.xlu0 0
      %4157 = vperm.xlu0 %4156, %v4094
      %v4158 = vpop.permute.xlu0 %4157
      %4160 = vset.pattern.permute.xlu0 0
      %4161 = vperm.xlu0 %4160, %v4095
      %v4162 = vpop.permute.xlu0 %4161
      %4164 = vset.pattern.permute.xlu0 0
      %4165 = vperm.xlu0 %4164, %v4096
      %v4166 = vpop.permute.xlu0 %4165
      %4168 = vset.pattern.permute.xlu0 0
      %4169 = vperm.xlu0 %4168, %v4097
      %v4170 = vpop.permute.xlu0 %4169
      %v4173 = vlaneseq
      %v4174 = vshrl.u32 %v4173, 7
      %v4175 = vsub.s32 0, %v4174
      %v4176 = vrot.slane %v4155, %v4175
      %v4178 = vmul.f32 %v4158, %v4176
      %v4179 = vmul.f32 %v4162, %v4176
      %v4180 = vmul.f32 %v4166, %v4176
      %v4181 = vmul.f32 %v4170, %v4176
      %v4182 = vadd.f32 %v4150, %v4178
      %v4183 = vadd.f32 %v4151, %v4179
      %v4184 = vadd.f32 %v4152, %v4180
      %v4185 = vadd.f32 %v4153, %v4181
      %s4186 = scalar_lea.vmem %s25, 2
      %v4187 = vld [vmem:[%s4186] sm:$0x1]
      %4188 = vset.pattern.permute.xlu0 0
      %4189 = vperm.xlu0 %4188, %v4118
      %v4190 = vpop.permute.xlu0 %4189
      %4192 = vset.pattern.permute.xlu0 0
      %4193 = vperm.xlu0 %4192, %v4120
      %v4194 = vpop.permute.xlu0 %4193
      %4196 = vset.pattern.permute.xlu0 0
      %4197 = vperm.xlu0 %4196, %v4122
      %v4198 = vpop.permute.xlu0 %4197
      %4201 = vset.pattern.permute.xlu0 0
      %4202 = vperm.xlu0 %4201, %v4125
      %v4203 = vpop.permute.xlu0 %4202
      %v4206 = vlaneseq
      %v4207 = vshrl.u32 %v4206, 7
      %v4208 = vsub.s32 0, %v4207
      %v4209 = vrot.slane %v4187, %v4208
      %v4211 = vmul.f32 %v4190, %v4209
      %v4212 = vmul.f32 %v4194, %v4209
      %v4213 = vmul.f32 %v4198, %v4209
      %v4214 = vmul.f32 %v4203, %v4209
      %v4215 = vadd.f32 %v4182, %v4211
      %v4216 = vadd.f32 %v4183, %v4212
      %v4217 = vadd.f32 %v4184, %v4213
      %v4218 = vadd.f32 %v4185, %v4214
      %v4219 = vld [vmem:[%s27] sm:$0x1]
      %v4221 = vlaneseq
      %v4222 = vshrl.u32 %v4221, 7
      %v4223 = vsub.s32 0, %v4222
      %v4224 = vrot.slane %v4219, %v4223
      %v4226 = vadd.f32 %v4215, %v4224
      %v4227 = vadd.f32 %v4216, %v4224
      %v4228 = vadd.f32 %v4217, %v4224
      %v4229 = vadd.f32 %v4218, %v4224
      %v4230 = vmax.f32 %v4226, 0.0
      %v4231 = vmax.f32 %v4227, 0.0
      %v4232 = vmax.f32 %v4228, 0.0
      %v4233 = vmax.f32 %v4229, 0.0
      %v4234 = vld [vmem:[%s49] sm:$0xff]
      %v4235 = vld [vmem:[%s49 + $0x8] sm:$0xff]
      %v4236 = vld [vmem:[%s49 + $0x10] sm:$0xff]
      %v4237 = vld [vmem:[%s49 + $0x18] sm:$0xff]
      %v4238 = vld [vmem:[%s49 + $0x20] sm:$0xff]
      %v4239 = vld [vmem:[%s49 + $0x28] sm:$0xff]
      %v4240 = vld [vmem:[%s49 + $0x30] sm:$0xff]
      %v4241 = vld [vmem:[%s49 + $0x38] sm:$0xff]
      %v4242 = vmax.f32 %v4230, 0.0
      %v4243 = vmax.f32 %v4231, 0.0
      %v4244 = vmax.f32 %v4232, 0.0
      %v4245 = vmax.f32 %v4233, 0.0
      %v4247 = vrot.slane %v4245, 7
      %v4252 = vrot.slane %v4242, 7
      %v4253 = vrot.slane %v4243, 7
      %v4254 = vsel %vm1042, %v4252, %v4253
      %v4255 = vrot.slane %v4244, 7
      %v4256 = vsel %vm1042, %v4253, %v4255
      %v4257 = vsel %vm1042, %v4255, %v4247
      %v4262 = vsel %vm1042, %v4247, %v4252
      %v4263 = vrot.slane %v4242, 1
      %v4264 = vrot.slane %v4243, 1
      %v4265 = vsel %vm1075, %v4263, %v4264
      %v4266 = vrot.slane %v4244, 1
      %v4267 = vsel %vm1075, %v4264, %v4266
      %v4268 = vrot.slane %v4245, 1
      %v4269 = vsel %vm1075, %v4266, %v4268
      %v4275 = vsel %vm1075, %v4268, %v4263
      %v4276 = vld [vmem:[%s29] sm:$0xff]
      %v4277 = vld [vmem:[%s29 + $0x8] sm:$0xff]
      %v4278 = vld [vmem:[%s29 + $0x10] sm:$0xff]
      %v4279 = vld [vmem:[%s29 + $0x18] sm:$0xff]
      %v4280 = vld [vmem:[%s29 + $0x20] sm:$0xff]
      %v4281 = vld [vmem:[%s29 + $0x28] sm:$0xff]
      %v4282 = vld [vmem:[%s29 + $0x30] sm:$0xff]
      %v4283 = vld [vmem:[%s29 + $0x38] sm:$0xff]
      %v4284 = vld [vmem:[%s29 + $0x40] sm:$0xff]
      %v4285 = vld [vmem:[%s29 + $0x48] sm:$0xff]
      %v4286 = vld [vmem:[%s29 + $0x50] sm:$0xff]
      %v4287 = vld [vmem:[%s29 + $0x58] sm:$0xff]
      %v4288 = vld [vmem:[%s29 + $0x60] sm:$0xff]
      %v4289 = vld [vmem:[%s29 + $0x68] sm:$0xff]
      %v4290 = vld [vmem:[%s29 + $0x70] sm:$0xff]
      %v4291 = vld [vmem:[%s29 + $0x78] sm:$0xff]
      %s4292 = scalar_lea.vmem %s29, 128
      %v4293 = vld [vmem:[%s4292] sm:$0xff]
      %v4294 = vld [vmem:[%s4292 + $0x8] sm:$0xff]
      %v4295 = vld [vmem:[%s4292 + $0x10] sm:$0xff]
      %v4296 = vld [vmem:[%s4292 + $0x18] sm:$0xff]
      %v4297 = vld [vmem:[%s4292 + $0x20] sm:$0xff]
      %v4298 = vld [vmem:[%s4292 + $0x28] sm:$0xff]
      %v4299 = vld [vmem:[%s4292 + $0x30] sm:$0xff]
      %v4300 = vld [vmem:[%s4292 + $0x38] sm:$0xff]
      %v4301 = vld [vmem:[%s4292 + $0x40] sm:$0xff]
      %v4302 = vld [vmem:[%s4292 + $0x48] sm:$0xff]
      %v4303 = vld [vmem:[%s4292 + $0x50] sm:$0xff]
      %v4304 = vld [vmem:[%s4292 + $0x58] sm:$0xff]
      %v4305 = vld [vmem:[%s4292 + $0x60] sm:$0xff]
      %v4306 = vld [vmem:[%s4292 + $0x68] sm:$0xff]
      %v4307 = vld [vmem:[%s4292 + $0x70] sm:$0xff]
      %v4308 = vld [vmem:[%s4292 + $0x78] sm:$0xff]
      %4309 = vmatprep.subr.mxu0 0.0
      %4310 = vmatpush1.msra.mxu0 %v4293
      %4311 = vmatprep.subr.mxu0 0.0
      %4312 = vmatpush1.msra.mxu0 %v4294
      %4313 = vmatprep.subr.mxu0 0.0
      %4314 = vmatpush1.msra.mxu0 %v4295
      %4315 = vmatprep.subr.mxu0 0.0
      %4316 = vmatpush1.msra.mxu0 %v4296
      %4317 = vmatprep.subr.mxu0 0.0
      %4318 = vmatpush1.msra.mxu0 %v4297
      %4319 = vmatprep.subr.mxu0 0.0
      %4320 = vmatpush1.msra.mxu0 %v4298
      %4321 = vmatprep.subr.mxu0 0.0
      %4322 = vmatpush1.msra.mxu0 %v4299
      %4323 = vmatprep.subr.mxu0 0.0
      %4324 = vmatpush1.msra.mxu0 %v4300
      %4325 = vmatprep.subr.mxu0 0.0
      %4326 = vmatpush1.msra.mxu0 %v4301
      %4327 = vmatprep.subr.mxu0 0.0
      %4328 = vmatpush1.msra.mxu0 %v4302
      %4329 = vmatprep.subr.mxu0 0.0
      %4330 = vmatpush1.msra.mxu0 %v4303
      %4331 = vmatprep.subr.mxu0 0.0
      %4332 = vmatpush1.msra.mxu0 %v4304
      %4333 = vmatprep.subr.mxu0 0.0
      %4334 = vmatpush1.msra.mxu0 %v4305
      %4335 = vmatprep.subr.mxu0 0.0
      %4336 = vmatpush1.msra.mxu0 %v4306
      %4337 = vmatprep.subr.mxu0 0.0
      %4338 = vmatpush1.msra.mxu0 %v4307
      %4339 = vmatprep.subr.mxu0 0.0
      %4340 = vmatpush1.msra.mxu0 %v4308
      %4341 = vmatprep.subr.mxu0 0.0
      %4342 = vmatpush1.msra.mxu0 0.0
      %4343 = vmatprep.subr.mxu0 0.0
      %4344 = vmatpush1.msra.mxu0 0.0
      %4345 = vmatprep.subr.mxu0 0.0
      %4346 = vmatpush1.msra.mxu0 0.0
      %4347 = vmatprep.subr.mxu0 0.0
      %4348 = vmatpush1.msra.mxu0 0.0
      %4349 = vmatprep.subr.mxu0 0.0
      %4350 = vmatpush1.msra.mxu0 0.0
      %4351 = vmatprep.subr.mxu0 0.0
      %4352 = vmatpush1.msra.mxu0 0.0
      %4353 = vmatprep.subr.mxu0 0.0
      %4354 = vmatpush1.msra.mxu0 0.0
      %4355 = vmatprep.subr.mxu0 0.0
      %4356 = vmatpush1.msra.mxu0 0.0
      %4357 = vmatprep.subr.mxu0 0.0
      %4358 = vmatpush1.msra.mxu0 0.0
      %4359 = vmatprep.subr.mxu0 0.0
      %4360 = vmatpush1.msra.mxu0 0.0
      %4361 = vmatprep.subr.mxu0 0.0
      %4362 = vmatpush1.msra.mxu0 0.0
      %4363 = vmatprep.subr.mxu0 0.0
      %4364 = vmatpush1.msra.mxu0 0.0
      %4365 = vmatprep.subr.mxu0 0.0
      %4366 = vmatpush1.msra.mxu0 0.0
      %4367 = vmatprep.subr.mxu0 0.0
      %4368 = vmatpush1.msra.mxu0 0.0
      %4369 = vmatprep.subr.mxu0 0.0
      %4370 = vmatpush1.msra.mxu0 0.0
      %4371 = vmatprep.subr.mxu0 0.0
      %4372 = vmatpush1.msra.mxu0 0.0
      %4373 = vmatprep.mubr.f32.mxu0 0.0
      %4374 = vmatmul.mubr.f32.gmra.mrb[0].mxu0 %v4242
      %v4375 = vpop.f32.mrb[0].mxu0
      %v4376 = vadd.f32 0.0, %v4375
      %v4377 = vpop.f32.mrb[0].mxu0
      %4378 = vmatprep.mubr.f32.mxu0 0.0
      %4379 = vmatmul.mubr.f32.gmra.mrb[0].mxu0 %v4243
      %v4380 = vpop.f32.mrb[0].mxu0
      %v4381 = vadd.f32 0.0, %v4380
      %v4382 = vpop.f32.mrb[0].mxu0
      %4383 = vmatprep.mubr.f32.mxu0 0.0
      %4384 = vmatmul.mubr.f32.gmra.mrb[0].mxu0 %v4244
      %v4385 = vpop.f32.mrb[0].mxu0
      %v4386 = vadd.f32 0.0, %v4385
      %v4387 = vpop.f32.mrb[0].mxu0
      %4388 = vmatprep.mubr.f32.mxu0 0.0
      %4389 = vmatmul.mubr.f32.gmra.mrb[0].mxu0 %v4245
      %v4390 = vpop.f32.mrb[0].mxu0
      %v4391 = vadd.f32 0.0, %v4390
      %v4392 = vpop.f32.mrb[0].mxu0
      %4393 = vdwg.mxu0
      %4394 = vmatprep.subr.mxu0 0.0
      %4395 = vmatpush1.msra.mxu0 %v4276
      %4396 = vmatprep.subr.mxu0 0.0
      %4397 = vmatpush1.msra.mxu0 %v4277
      %4398 = vmatprep.subr.mxu0 0.0
      %4399 = vmatpush1.msra.mxu0 %v4278
      %4400 = vmatprep.subr.mxu0 0.0
      %4401 = vmatpush1.msra.mxu0 %v4279
      %4402 = vmatprep.subr.mxu0 0.0
      %4403 = vmatpush1.msra.mxu0 %v4280
      %4404 = vmatprep.subr.mxu0 0.0
      %4405 = vmatpush1.msra.mxu0 %v4281
      %4406 = vmatprep.subr.mxu0 0.0
      %4407 = vmatpush1.msra.mxu0 %v4282
      %4408 = vmatprep.subr.mxu0 0.0
      %4409 = vmatpush1.msra.mxu0 %v4283
      %4410 = vmatprep.subr.mxu0 0.0
      %4411 = vmatpush1.msra.mxu0 %v4284
      %4412 = vmatprep.subr.mxu0 0.0
      %4413 = vmatpush1.msra.mxu0 %v4285
      %4414 = vmatprep.subr.mxu0 0.0
      %4415 = vmatpush1.msra.mxu0 %v4286
      %4416 = vmatprep.subr.mxu0 0.0
      %4417 = vmatpush1.msra.mxu0 %v4287
      %4418 = vmatprep.subr.mxu0 0.0
      %4419 = vmatpush1.msra.mxu0 %v4288
      %4420 = vmatprep.subr.mxu0 0.0
      %4421 = vmatpush1.msra.mxu0 %v4289
      %4422 = vmatprep.subr.mxu0 0.0
      %4423 = vmatpush1.msra.mxu0 %v4290
      %4424 = vmatprep.subr.mxu0 0.0
      %4425 = vmatpush1.msra.mxu0 %v4291
      %4426 = vmatprep.subr.mxu0 0.0
      %4427 = vmatpush1.msra.mxu0 0.0
      %4428 = vmatprep.subr.mxu0 0.0
      %4429 = vmatpush1.msra.mxu0 0.0
      %4430 = vmatprep.subr.mxu0 0.0
      %4431 = vmatpush1.msra.mxu0 0.0
      %4432 = vmatprep.subr.mxu0 0.0
      %4433 = vmatpush1.msra.mxu0 0.0
      %4434 = vmatprep.subr.mxu0 0.0
      %4435 = vmatpush1.msra.mxu0 0.0
      %4436 = vmatprep.subr.mxu0 0.0
      %4437 = vmatpush1.msra.mxu0 0.0
      %4438 = vmatprep.subr.mxu0 0.0
      %4439 = vmatpush1.msra.mxu0 0.0
      %4440 = vmatprep.subr.mxu0 0.0
      %4441 = vmatpush1.msra.mxu0 0.0
      %4442 = vmatprep.subr.mxu0 0.0
      %4443 = vmatpush1.msra.mxu0 0.0
      %4444 = vmatprep.subr.mxu0 0.0
      %4445 = vmatpush1.msra.mxu0 0.0
      %4446 = vmatprep.subr.mxu0 0.0
      %4447 = vmatpush1.msra.mxu0 0.0
      %4448 = vmatprep.subr.mxu0 0.0
      %4449 = vmatpush1.msra.mxu0 0.0
      %4450 = vmatprep.subr.mxu0 0.0
      %4451 = vmatpush1.msra.mxu0 0.0
      %4452 = vmatprep.subr.mxu0 0.0
      %4453 = vmatpush1.msra.mxu0 0.0
      %4454 = vmatprep.subr.mxu0 0.0
      %4455 = vmatpush1.msra.mxu0 0.0
      %4456 = vmatprep.subr.mxu0 0.0
      %4457 = vmatpush1.msra.mxu0 0.0
      %4458 = vmatprep.mubr.f32.mxu0 0.0
      %4459 = vmatmul.mubr.f32.gmra.mrb[0].mxu0 %v4262
      %v4460 = vpop.f32.mrb[0].mxu0
      %v4461 = vadd.f32 %v4376, %v4460
      %v4462 = vpop.f32.mrb[0].mxu0
      %4463 = vmatprep.mubr.f32.mxu0 0.0
      %4464 = vmatmul.mubr.f32.gmra.mrb[0].mxu0 %v4254
      %v4465 = vpop.f32.mrb[0].mxu0
      %v4466 = vadd.f32 %v4381, %v4465
      %v4467 = vpop.f32.mrb[0].mxu0
      %4468 = vmatprep.mubr.f32.mxu0 0.0
      %4469 = vmatmul.mubr.f32.gmra.mrb[0].mxu0 %v4256
      %v4470 = vpop.f32.mrb[0].mxu0
      %v4471 = vadd.f32 %v4386, %v4470
      %v4472 = vpop.f32.mrb[0].mxu0
      %4473 = vmatprep.mubr.f32.mxu0 0.0
      %4474 = vmatmul.mubr.f32.gmra.mrb[0].mxu0 %v4257
      %v4475 = vpop.f32.mrb[0].mxu0
      %v4476 = vadd.f32 %v4391, %v4475
      %v4477 = vpop.f32.mrb[0].mxu0
      %4478 = vdwg.mxu0
      %s4479 = scalar_lea.vmem %s29, 256
      %v4480 = vld [vmem:[%s4479] sm:$0xff]
      %v4481 = vld [vmem:[%s4479 + $0x8] sm:$0xff]
      %v4482 = vld [vmem:[%s4479 + $0x10] sm:$0xff]
      %v4483 = vld [vmem:[%s4479 + $0x18] sm:$0xff]
      %v4484 = vld [vmem:[%s4479 + $0x20] sm:$0xff]
      %v4485 = vld [vmem:[%s4479 + $0x28] sm:$0xff]
      %v4486 = vld [vmem:[%s4479 + $0x30] sm:$0xff]
      %v4487 = vld [vmem:[%s4479 + $0x38] sm:$0xff]
      %v4488 = vld [vmem:[%s4479 + $0x40] sm:$0xff]
      %v4489 = vld [vmem:[%s4479 + $0x48] sm:$0xff]
      %v4490 = vld [vmem:[%s4479 + $0x50] sm:$0xff]
      %v4491 = vld [vmem:[%s4479 + $0x58] sm:$0xff]
      %v4492 = vld [vmem:[%s4479 + $0x60] sm:$0xff]
      %v4493 = vld [vmem:[%s4479 + $0x68] sm:$0xff]
      %v4494 = vld [vmem:[%s4479 + $0x70] sm:$0xff]
      %v4495 = vld [vmem:[%s4479 + $0x78] sm:$0xff]
      %4496 = vmatprep.subr.mxu0 0.0
      %4497 = vmatpush1.msra.mxu0 %v4480
      %4498 = vmatprep.subr.mxu0 0.0
      %4499 = vmatpush1.msra.mxu0 %v4481
      %4500 = vmatprep.subr.mxu0 0.0
      %4501 = vmatpush1.msra.mxu0 %v4482
      %4502 = vmatprep.subr.mxu0 0.0
      %4503 = vmatpush1.msra.mxu0 %v4483
      %4504 = vmatprep.subr.mxu0 0.0
      %4505 = vmatpush1.msra.mxu0 %v4484
      %4506 = vmatprep.subr.mxu0 0.0
      %4507 = vmatpush1.msra.mxu0 %v4485
      %4508 = vmatprep.subr.mxu0 0.0
      %4509 = vmatpush1.msra.mxu0 %v4486
      %4510 = vmatprep.subr.mxu0 0.0
      %4511 = vmatpush1.msra.mxu0 %v4487
      %4512 = vmatprep.subr.mxu0 0.0
      %4513 = vmatpush1.msra.mxu0 %v4488
      %4514 = vmatprep.subr.mxu0 0.0
      %4515 = vmatpush1.msra.mxu0 %v4489
      %4516 = vmatprep.subr.mxu0 0.0
      %4517 = vmatpush1.msra.mxu0 %v4490
      %4518 = vmatprep.subr.mxu0 0.0
      %4519 = vmatpush1.msra.mxu0 %v4491
      %4520 = vmatprep.subr.mxu0 0.0
      %4521 = vmatpush1.msra.mxu0 %v4492
      %4522 = vmatprep.subr.mxu0 0.0
      %4523 = vmatpush1.msra.mxu0 %v4493
      %4524 = vmatprep.subr.mxu0 0.0
      %4525 = vmatpush1.msra.mxu0 %v4494
      %4526 = vmatprep.subr.mxu0 0.0
      %4527 = vmatpush1.msra.mxu0 %v4495
      %4528 = vmatprep.subr.mxu0 0.0
      %4529 = vmatpush1.msra.mxu0 0.0
      %4530 = vmatprep.subr.mxu0 0.0
      %4531 = vmatpush1.msra.mxu0 0.0
      %4532 = vmatprep.subr.mxu0 0.0
      %4533 = vmatpush1.msra.mxu0 0.0
      %4534 = vmatprep.subr.mxu0 0.0
      %4535 = vmatpush1.msra.mxu0 0.0
      %4536 = vmatprep.subr.mxu0 0.0
      %4537 = vmatpush1.msra.mxu0 0.0
      %4538 = vmatprep.subr.mxu0 0.0
      %4539 = vmatpush1.msra.mxu0 0.0
      %4540 = vmatprep.subr.mxu0 0.0
      %4541 = vmatpush1.msra.mxu0 0.0
      %4542 = vmatprep.subr.mxu0 0.0
      %4543 = vmatpush1.msra.mxu0 0.0
      %4544 = vmatprep.subr.mxu0 0.0
      %4545 = vmatpush1.msra.mxu0 0.0
      %4546 = vmatprep.subr.mxu0 0.0
      %4547 = vmatpush1.msra.mxu0 0.0
      %4548 = vmatprep.subr.mxu0 0.0
      %4549 = vmatpush1.msra.mxu0 0.0
      %4550 = vmatprep.subr.mxu0 0.0
      %4551 = vmatpush1.msra.mxu0 0.0
      %4552 = vmatprep.subr.mxu0 0.0
      %4553 = vmatpush1.msra.mxu0 0.0
      %4554 = vmatprep.subr.mxu0 0.0
      %4555 = vmatpush1.msra.mxu0 0.0
      %4556 = vmatprep.subr.mxu0 0.0
      %4557 = vmatpush1.msra.mxu0 0.0
      %4558 = vmatprep.subr.mxu0 0.0
      %4559 = vmatpush1.msra.mxu0 0.0
      %4560 = vmatprep.mubr.f32.mxu0 0.0
      %4561 = vmatmul.mubr.f32.gmra.mrb[0].mxu0 %v4265
      %v4562 = vpop.f32.mrb[0].mxu0
      %v4563 = vadd.f32 0.0, %v4562
      %v4564 = vpop.f32.mrb[0].mxu0
      %4565 = vmatprep.mubr.f32.mxu0 0.0
      %4566 = vmatmul.mubr.f32.gmra.mrb[0].mxu0 %v4267
      %v4567 = vpop.f32.mrb[0].mxu0
      %v4568 = vadd.f32 0.0, %v4567
      %v4569 = vpop.f32.mrb[0].mxu0
      %4570 = vmatprep.mubr.f32.mxu0 0.0
      %4571 = vmatmul.mubr.f32.gmra.mrb[0].mxu0 %v4269
      %v4572 = vpop.f32.mrb[0].mxu0
      %v4573 = vadd.f32 0.0, %v4572
      %v4574 = vpop.f32.mrb[0].mxu0
      %4575 = vmatprep.mubr.f32.mxu0 0.0
      %4576 = vmatmul.mubr.f32.gmra.mrb[0].mxu0 %v4275
      %v4577 = vpop.f32.mrb[0].mxu0
      %v4578 = vadd.f32 0.0, %v4577
      %v4579 = vpop.f32.mrb[0].mxu0
      %4580 = vdwg.mxu0
      %v4581 = vadd.f32 %v4461, %v4563
      %v4582 = vadd.f32 %v4466, %v4568
      %v4583 = vadd.f32 %v4471, %v4573
      %v4584 = vadd.f32 %v4476, %v4578
      %v4585 = vmax.f32 %v4581, 0.0
      %v4586 = vmax.f32 %v4582, 0.0
      %v4587 = vmax.f32 %v4583, 0.0
      %v4588 = vmax.f32 %v4584, 0.0
      %vm4589 = vcmask 261120
      %v4591 = vsel %vm4589, %v4234, 0
      %v4594 = vsel %vm4589, %v4235, 0
      %v4597 = vsel %vm4589, %v4236, 0
      %v4600 = vsel %vm4589, %v4237, 0
      %v4603 = vsel %vm4589, %v4238, 0
      %v4606 = vsel %vm4589, %v4239, 0
      %v4609 = vsel %vm4589, %v4240, 0
      %v4612 = vsel %vm4589, %v4241, 0
      %4614 = vmatprep.subr.mxu0 0.0
      %4615 = vmatpush1.msra.mxu0 %v4585
      %4616 = vmatprep.subr.mxu0 0.0
      %4617 = vmatpush1.msra.mxu0 %v4586
      %4618 = vmatprep.subr.mxu0 0.0
      %4619 = vmatpush1.msra.mxu0 %v4587
      %4620 = vmatprep.subr.mxu0 0.0
      %4621 = vmatpush1.msra.mxu0 %v4588
      %4622 = vmatprep.subr.mxu0 0.0
      %4623 = vmatpush1.msra.mxu0 0.0
      %4624 = vmatprep.subr.mxu0 0.0
      %4625 = vmatpush1.msra.mxu0 0.0
      %4626 = vmatprep.subr.mxu0 0.0
      %4627 = vmatpush1.msra.mxu0 0.0
      %4628 = vmatprep.subr.mxu0 0.0
      %4629 = vmatpush1.msra.mxu0 0.0
      %4630 = vmatprep.subr.mxu0 0.0
      %4631 = vmatpush1.msra.mxu0 0.0
      %4632 = vmatprep.subr.mxu0 0.0
      %4633 = vmatpush1.msra.mxu0 0.0
      %4634 = vmatprep.subr.mxu0 0.0
      %4635 = vmatpush1.msra.mxu0 0.0
      %4636 = vmatprep.subr.mxu0 0.0
      %4637 = vmatpush1.msra.mxu0 0.0
      %4638 = vmatprep.subr.mxu0 0.0
      %4639 = vmatpush1.msra.mxu0 0.0
      %4640 = vmatprep.subr.mxu0 0.0
      %4641 = vmatpush1.msra.mxu0 0.0
      %4642 = vmatprep.subr.mxu0 0.0
      %4643 = vmatpush1.msra.mxu0 0.0
      %4644 = vmatprep.subr.mxu0 0.0
      %4645 = vmatpush1.msra.mxu0 0.0
      %4646 = vmatprep.subr.mxu0 0.0
      %4647 = vmatpush1.msra.mxu0 0.0
      %4648 = vmatprep.subr.mxu0 0.0
      %4649 = vmatpush1.msra.mxu0 0.0
      %4650 = vmatprep.subr.mxu0 0.0
      %4651 = vmatpush1.msra.mxu0 0.0
      %4652 = vmatprep.subr.mxu0 0.0
      %4653 = vmatpush1.msra.mxu0 0.0
      %4654 = vmatprep.subr.mxu0 0.0
      %4655 = vmatpush1.msra.mxu0 0.0
      %4656 = vmatprep.subr.mxu0 0.0
      %4657 = vmatpush1.msra.mxu0 0.0
      %4658 = vmatprep.subr.mxu0 0.0
      %4659 = vmatpush1.msra.mxu0 0.0
      %4660 = vmatprep.subr.mxu0 0.0
      %4661 = vmatpush1.msra.mxu0 0.0
      %4662 = vmatprep.subr.mxu0 0.0
      %4663 = vmatpush1.msra.mxu0 0.0
      %4664 = vmatprep.subr.mxu0 0.0
      %4665 = vmatpush1.msra.mxu0 0.0
      %4666 = vmatprep.subr.mxu0 0.0
      %4667 = vmatpush1.msra.mxu0 0.0
      %4668 = vmatprep.subr.mxu0 0.0
      %4669 = vmatpush1.msra.mxu0 0.0
      %4670 = vmatprep.subr.mxu0 0.0
      %4671 = vmatpush1.msra.mxu0 0.0
      %4672 = vmatprep.subr.mxu0 0.0
      %4673 = vmatpush1.msra.mxu0 0.0
      %4674 = vmatprep.subr.mxu0 0.0
      %4675 = vmatpush1.msra.mxu0 0.0
      %4676 = vmatprep.subr.mxu0 0.0
      %4677 = vmatpush1.msra.mxu0 0.0
      %4678 = vmatprep.mubr.f32.mxu0 0.0
      %4679 = vmatmul.mubr.f32.gmra.mrb[0].mxu0 %v4591
      %v4680 = vpop.f32.mrb[0].mxu0
      %v4681 = vadd.f32 0.0, %v4680
      %v4682 = vpop.f32.mrb[0].mxu0
      %4683 = vmatprep.mubr.f32.mxu0 0.0
      %4684 = vmatmul.mubr.f32.gmra.mrb[0].mxu0 %v4594
      %v4685 = vpop.f32.mrb[0].mxu0
      %v4686 = vadd.f32 0.0, %v4685
      %v4687 = vpop.f32.mrb[0].mxu0
      %4688 = vmatprep.mubr.f32.mxu0 0.0
      %4689 = vmatmul.mubr.f32.gmra.mrb[0].mxu0 %v4597
      %v4690 = vpop.f32.mrb[0].mxu0
      %v4691 = vadd.f32 0.0, %v4690
      %v4692 = vpop.f32.mrb[0].mxu0
      %4693 = vmatprep.mubr.f32.mxu0 0.0
      %4694 = vmatmul.mubr.f32.gmra.mrb[0].mxu0 %v4600
      %v4695 = vpop.f32.mrb[0].mxu0
      %v4696 = vadd.f32 0.0, %v4695
      %v4697 = vpop.f32.mrb[0].mxu0
      %4698 = vmatprep.mubr.f32.mxu0 0.0
      %4699 = vmatmul.mubr.f32.gmra.mrb[0].mxu0 %v4603
      %v4700 = vpop.f32.mrb[0].mxu0
      %v4701 = vadd.f32 0.0, %v4700
      %v4702 = vpop.f32.mrb[0].mxu0
      %4703 = vmatprep.mubr.f32.mxu0 0.0
      %4704 = vmatmul.mubr.f32.gmra.mrb[0].mxu0 %v4606
      %v4705 = vpop.f32.mrb[0].mxu0
      %v4706 = vadd.f32 0.0, %v4705
      %v4707 = vpop.f32.mrb[0].mxu0
      %4708 = vmatprep.mubr.f32.mxu0 0.0
      %4709 = vmatmul.mubr.f32.gmra.mrb[0].mxu0 %v4609
      %v4710 = vpop.f32.mrb[0].mxu0
      %v4711 = vadd.f32 0.0, %v4710
      %v4712 = vpop.f32.mrb[0].mxu0
      %4713 = vmatprep.mubr.f32.mxu0 0.0
      %4714 = vmatmul.mubr.f32.gmra.mrb[0].mxu0 %v4612
      %v4715 = vpop.f32.mrb[0].mxu0
      %v4716 = vadd.f32 0.0, %v4715
      %v4717 = vpop.f32.mrb[0].mxu0
      %4718 = vdwg.mxu0
      %v4720 = vrot.slane %v4716, 7
      %v4729 = vrot.slane %v4681, 7
      %v4730 = vrot.slane %v4686, 7
      %v4731 = vsel %vm1042, %v4729, %v4730
      %v4732 = vrot.slane %v4691, 7
      %v4733 = vsel %vm1042, %v4730, %v4732
      %v4734 = vrot.slane %v4696, 7
      %v4735 = vsel %vm1042, %v4732, %v4734
      %v4736 = vrot.slane %v4701, 7
      %v4737 = vsel %vm1042, %v4734, %v4736
      %v4738 = vrot.slane %v4706, 7
      %v4739 = vsel %vm1042, %v4736, %v4738
      %v4740 = vrot.slane %v4711, 7
      %v4741 = vsel %vm1042, %v4738, %v4740
      %v4742 = vsel %vm1042, %v4740, %v4720
      %v4751 = vsel %vm1042, %v4720, %v4729
      %v4752 = vrot.slane %v4681, 1
      %v4753 = vrot.slane %v4686, 1
      %v4754 = vsel %vm1075, %v4752, %v4753
      %v4755 = vrot.slane %v4691, 1
      %v4756 = vsel %vm1075, %v4753, %v4755
      %v4757 = vrot.slane %v4696, 1
      %v4758 = vsel %vm1075, %v4755, %v4757
      %v4759 = vrot.slane %v4701, 1
      %v4760 = vsel %vm1075, %v4757, %v4759
      %v4761 = vrot.slane %v4706, 1
      %v4762 = vsel %vm1075, %v4759, %v4761
      %v4763 = vrot.slane %v4711, 1
      %v4764 = vsel %vm1075, %v4761, %v4763
      %v4765 = vrot.slane %v4716, 1
      %v4766 = vsel %vm1075, %v4763, %v4765
      %v4776 = vsel %vm1075, %v4765, %v4752
      %v4777 = vld [vmem:[%s31] sm:$0xff]
      %v4778 = vld [vmem:[%s31 + $0x8] sm:$0xff]
      %v4779 = vld [vmem:[%s31 + $0x10] sm:$0xff]
      %v4780 = vld [vmem:[%s31 + $0x18] sm:$0xff]
      %v4781 = vld [vmem:[%s31 + $0x20] sm:$0xff]
      %v4782 = vld [vmem:[%s31 + $0x28] sm:$0xff]
      %v4783 = vld [vmem:[%s31 + $0x30] sm:$0xff]
      %v4784 = vld [vmem:[%s31 + $0x38] sm:$0xff]
      %v4785 = vld [vmem:[%s31 + $0x40] sm:$0xff]
      %v4786 = vld [vmem:[%s31 + $0x48] sm:$0xff]
      %v4787 = vld [vmem:[%s31 + $0x50] sm:$0xff]
      %v4788 = vld [vmem:[%s31 + $0x58] sm:$0xff]
      %v4789 = vld [vmem:[%s31 + $0x60] sm:$0xff]
      %v4790 = vld [vmem:[%s31 + $0x68] sm:$0xff]
      %v4791 = vld [vmem:[%s31 + $0x70] sm:$0xff]
      %v4792 = vld [vmem:[%s31 + $0x78] sm:$0xff]
      %s4793 = scalar_lea.vmem %s31, 128
      %v4794 = vld [vmem:[%s4793] sm:$0xff]
      %v4795 = vld [vmem:[%s4793 + $0x8] sm:$0xff]
      %v4796 = vld [vmem:[%s4793 + $0x10] sm:$0xff]
      %v4797 = vld [vmem:[%s4793 + $0x18] sm:$0xff]
      %v4798 = vld [vmem:[%s4793 + $0x20] sm:$0xff]
      %v4799 = vld [vmem:[%s4793 + $0x28] sm:$0xff]
      %v4800 = vld [vmem:[%s4793 + $0x30] sm:$0xff]
      %v4801 = vld [vmem:[%s4793 + $0x38] sm:$0xff]
      %v4802 = vld [vmem:[%s4793 + $0x40] sm:$0xff]
      %v4803 = vld [vmem:[%s4793 + $0x48] sm:$0xff]
      %v4804 = vld [vmem:[%s4793 + $0x50] sm:$0xff]
      %v4805 = vld [vmem:[%s4793 + $0x58] sm:$0xff]
      %v4806 = vld [vmem:[%s4793 + $0x60] sm:$0xff]
      %v4807 = vld [vmem:[%s4793 + $0x68] sm:$0xff]
      %v4808 = vld [vmem:[%s4793 + $0x70] sm:$0xff]
      %v4809 = vld [vmem:[%s4793 + $0x78] sm:$0xff]
      %4810 = vmatprep.subr.mxu0 0.0
      %4811 = vmatpush1.msra.mxu0 %v4794
      %4812 = vmatprep.subr.mxu0 0.0
      %4813 = vmatpush1.msra.mxu0 %v4795
      %4814 = vmatprep.subr.mxu0 0.0
      %4815 = vmatpush1.msra.mxu0 %v4796
      %4816 = vmatprep.subr.mxu0 0.0
      %4817 = vmatpush1.msra.mxu0 %v4797
      %4818 = vmatprep.subr.mxu0 0.0
      %4819 = vmatpush1.msra.mxu0 %v4798
      %4820 = vmatprep.subr.mxu0 0.0
      %4821 = vmatpush1.msra.mxu0 %v4799
      %4822 = vmatprep.subr.mxu0 0.0
      %4823 = vmatpush1.msra.mxu0 %v4800
      %4824 = vmatprep.subr.mxu0 0.0
      %4825 = vmatpush1.msra.mxu0 %v4801
      %4826 = vmatprep.subr.mxu0 0.0
      %4827 = vmatpush1.msra.mxu0 %v4802
      %4828 = vmatprep.subr.mxu0 0.0
      %4829 = vmatpush1.msra.mxu0 %v4803
      %4830 = vmatprep.subr.mxu0 0.0
      %4831 = vmatpush1.msra.mxu0 %v4804
      %4832 = vmatprep.subr.mxu0 0.0
      %4833 = vmatpush1.msra.mxu0 %v4805
      %4834 = vmatprep.subr.mxu0 0.0
      %4835 = vmatpush1.msra.mxu0 %v4806
      %4836 = vmatprep.subr.mxu0 0.0
      %4837 = vmatpush1.msra.mxu0 %v4807
      %4838 = vmatprep.subr.mxu0 0.0
      %4839 = vmatpush1.msra.mxu0 %v4808
      %4840 = vmatprep.subr.mxu0 0.0
      %4841 = vmatpush1.msra.mxu0 %v4809
      %4842 = vmatprep.subr.mxu0 0.0
      %4843 = vmatpush1.msra.mxu0 0.0
      %4844 = vmatprep.subr.mxu0 0.0
      %4845 = vmatpush1.msra.mxu0 0.0
      %4846 = vmatprep.subr.mxu0 0.0
      %4847 = vmatpush1.msra.mxu0 0.0
      %4848 = vmatprep.subr.mxu0 0.0
      %4849 = vmatpush1.msra.mxu0 0.0
      %4850 = vmatprep.subr.mxu0 0.0
      %4851 = vmatpush1.msra.mxu0 0.0
      %4852 = vmatprep.subr.mxu0 0.0
      %4853 = vmatpush1.msra.mxu0 0.0
      %4854 = vmatprep.subr.mxu0 0.0
      %4855 = vmatpush1.msra.mxu0 0.0
      %4856 = vmatprep.subr.mxu0 0.0
      %4857 = vmatpush1.msra.mxu0 0.0
      %4858 = vmatprep.subr.mxu0 0.0
      %4859 = vmatpush1.msra.mxu0 0.0
      %4860 = vmatprep.subr.mxu0 0.0
      %4861 = vmatpush1.msra.mxu0 0.0
      %4862 = vmatprep.subr.mxu0 0.0
      %4863 = vmatpush1.msra.mxu0 0.0
      %4864 = vmatprep.subr.mxu0 0.0
      %4865 = vmatpush1.msra.mxu0 0.0
      %4866 = vmatprep.subr.mxu0 0.0
      %4867 = vmatpush1.msra.mxu0 0.0
      %4868 = vmatprep.subr.mxu0 0.0
      %4869 = vmatpush1.msra.mxu0 0.0
      %4870 = vmatprep.subr.mxu0 0.0
      %4871 = vmatpush1.msra.mxu0 0.0
      %4872 = vmatprep.subr.mxu0 0.0
      %4873 = vmatpush1.msra.mxu0 0.0
      %4874 = vmatprep.mubr.f32.mxu0 0.0
      %4875 = vmatmul.mubr.f32.gmra.mrb[0].mxu0 %v4681
      %v4876 = vpop.f32.mrb[0].mxu0
      %v4877 = vadd.f32 0.0, %v4876
      %v4878 = vpop.f32.mrb[0].mxu0
      %4879 = vmatprep.mubr.f32.mxu0 0.0
      %4880 = vmatmul.mubr.f32.gmra.mrb[0].mxu0 %v4686
      %v4881 = vpop.f32.mrb[0].mxu0
      %v4882 = vadd.f32 0.0, %v4881
      %v4883 = vpop.f32.mrb[0].mxu0
      %4884 = vmatprep.mubr.f32.mxu0 0.0
      %4885 = vmatmul.mubr.f32.gmra.mrb[0].mxu0 %v4691
      %v4886 = vpop.f32.mrb[0].mxu0
      %v4887 = vadd.f32 0.0, %v4886
      %v4888 = vpop.f32.mrb[0].mxu0
      %4889 = vmatprep.mubr.f32.mxu0 0.0
      %4890 = vmatmul.mubr.f32.gmra.mrb[0].mxu0 %v4696
      %v4891 = vpop.f32.mrb[0].mxu0
      %v4892 = vadd.f32 0.0, %v4891
      %v4893 = vpop.f32.mrb[0].mxu0
      %4894 = vmatprep.mubr.f32.mxu0 0.0
      %4895 = vmatmul.mubr.f32.gmra.mrb[0].mxu0 %v4701
      %v4896 = vpop.f32.mrb[0].mxu0
      %v4897 = vadd.f32 0.0, %v4896
      %v4898 = vpop.f32.mrb[0].mxu0
      %4899 = vmatprep.mubr.f32.mxu0 0.0
      %4900 = vmatmul.mubr.f32.gmra.mrb[0].mxu0 %v4706
      %v4901 = vpop.f32.mrb[0].mxu0
      %v4902 = vadd.f32 0.0, %v4901
      %v4903 = vpop.f32.mrb[0].mxu0
      %4904 = vmatprep.mubr.f32.mxu0 0.0
      %4905 = vmatmul.mubr.f32.gmra.mrb[0].mxu0 %v4711
      %v4906 = vpop.f32.mrb[0].mxu0
      %v4907 = vadd.f32 0.0, %v4906
      %v4908 = vpop.f32.mrb[0].mxu0
      %4909 = vmatprep.mubr.f32.mxu0 0.0
      %4910 = vmatmul.mubr.f32.gmra.mrb[0].mxu0 %v4716
      %v4911 = vpop.f32.mrb[0].mxu0
      %v4912 = vadd.f32 0.0, %v4911
      %v4913 = vpop.f32.mrb[0].mxu0
      %4914 = vdwg.mxu0
      %4915 = vmatprep.subr.mxu0 0.0
      %4916 = vmatpush1.msra.mxu0 %v4777
      %4917 = vmatprep.subr.mxu0 0.0
      %4918 = vmatpush1.msra.mxu0 %v4778
      %4919 = vmatprep.subr.mxu0 0.0
      %4920 = vmatpush1.msra.mxu0 %v4779
      %4921 = vmatprep.subr.mxu0 0.0
      %4922 = vmatpush1.msra.mxu0 %v4780
      %4923 = vmatprep.subr.mxu0 0.0
      %4924 = vmatpush1.msra.mxu0 %v4781
      %4925 = vmatprep.subr.mxu0 0.0
      %4926 = vmatpush1.msra.mxu0 %v4782
      %4927 = vmatprep.subr.mxu0 0.0
      %4928 = vmatpush1.msra.mxu0 %v4783
      %4929 = vmatprep.subr.mxu0 0.0
      %4930 = vmatpush1.msra.mxu0 %v4784
      %4931 = vmatprep.subr.mxu0 0.0
      %4932 = vmatpush1.msra.mxu0 %v4785
      %4933 = vmatprep.subr.mxu0 0.0
      %4934 = vmatpush1.msra.mxu0 %v4786
      %4935 = vmatprep.subr.mxu0 0.0
      %4936 = vmatpush1.msra.mxu0 %v4787
      %4937 = vmatprep.subr.mxu0 0.0
      %4938 = vmatpush1.msra.mxu0 %v4788
      %4939 = vmatprep.subr.mxu0 0.0
      %4940 = vmatpush1.msra.mxu0 %v4789
      %4941 = vmatprep.subr.mxu0 0.0
      %4942 = vmatpush1.msra.mxu0 %v4790
      %4943 = vmatprep.subr.mxu0 0.0
      %4944 = vmatpush1.msra.mxu0 %v4791
      %4945 = vmatprep.subr.mxu0 0.0
      %4946 = vmatpush1.msra.mxu0 %v4792
      %4947 = vmatprep.subr.mxu0 0.0
      %4948 = vmatpush1.msra.mxu0 0.0
      %4949 = vmatprep.subr.mxu0 0.0
      %4950 = vmatpush1.msra.mxu0 0.0
      %4951 = vmatprep.subr.mxu0 0.0
      %4952 = vmatpush1.msra.mxu0 0.0
      %4953 = vmatprep.subr.mxu0 0.0
      %4954 = vmatpush1.msra.mxu0 0.0
      %4955 = vmatprep.subr.mxu0 0.0
      %4956 = vmatpush1.msra.mxu0 0.0
      %4957 = vmatprep.subr.mxu0 0.0
      %4958 = vmatpush1.msra.mxu0 0.0
      %4959 = vmatprep.subr.mxu0 0.0
      %4960 = vmatpush1.msra.mxu0 0.0
      %4961 = vmatprep.subr.mxu0 0.0
      %4962 = vmatpush1.msra.mxu0 0.0
      %4963 = vmatprep.subr.mxu0 0.0
      %4964 = vmatpush1.msra.mxu0 0.0
      %4965 = vmatprep.subr.mxu0 0.0
      %4966 = vmatpush1.msra.mxu0 0.0
      %4967 = vmatprep.subr.mxu0 0.0
      %4968 = vmatpush1.msra.mxu0 0.0
      %4969 = vmatprep.subr.mxu0 0.0
      %4970 = vmatpush1.msra.mxu0 0.0
      %4971 = vmatprep.subr.mxu0 0.0
      %4972 = vmatpush1.msra.mxu0 0.0
      %4973 = vmatprep.subr.mxu0 0.0
      %4974 = vmatpush1.msra.mxu0 0.0
      %4975 = vmatprep.subr.mxu0 0.0
      %4976 = vmatpush1.msra.mxu0 0.0
      %4977 = vmatprep.subr.mxu0 0.0
      %4978 = vmatpush1.msra.mxu0 0.0
      %4979 = vmatprep.mubr.f32.mxu0 0.0
      %4980 = vmatmul.mubr.f32.gmra.mrb[0].mxu0 %v4751
      %v4981 = vpop.f32.mrb[0].mxu0
      %v4982 = vadd.f32 %v4877, %v4981
      %v4983 = vpop.f32.mrb[0].mxu0
      %4984 = vmatprep.mubr.f32.mxu0 0.0
      %4985 = vmatmul.mubr.f32.gmra.mrb[0].mxu0 %v4731
      %v4986 = vpop.f32.mrb[0].mxu0
      %v4987 = vadd.f32 %v4882, %v4986
      %v4988 = vpop.f32.mrb[0].mxu0
      %4989 = vmatprep.mubr.f32.mxu0 0.0
      %4990 = vmatmul.mubr.f32.gmra.mrb[0].mxu0 %v4733
      %v4991 = vpop.f32.mrb[0].mxu0
      %v4992 = vadd.f32 %v4887, %v4991
      %v4993 = vpop.f32.mrb[0].mxu0
      %4994 = vmatprep.mubr.f32.mxu0 0.0
      %4995 = vmatmul.mubr.f32.gmra.mrb[0].mxu0 %v4735
      %v4996 = vpop.f32.mrb[0].mxu0
      %v4997 = vadd.f32 %v4892, %v4996
      %v4998 = vpop.f32.mrb[0].mxu0
      %4999 = vmatprep.mubr.f32.mxu0 0.0
      %5000 = vmatmul.mubr.f32.gmra.mrb[0].mxu0 %v4737
      %v5001 = vpop.f32.mrb[0].mxu0
      %v5002 = vadd.f32 %v4897, %v5001
      %v5003 = vpop.f32.mrb[0].mxu0
      %5004 = vmatprep.mubr.f32.mxu0 0.0
      %5005 = vmatmul.mubr.f32.gmra.mrb[0].mxu0 %v4739
      %v5006 = vpop.f32.mrb[0].mxu0
      %v5007 = vadd.f32 %v4902, %v5006
      %v5008 = vpop.f32.mrb[0].mxu0
      %5009 = vmatprep.mubr.f32.mxu0 0.0
      %5010 = vmatmul.mubr.f32.gmra.mrb[0].mxu0 %v4741
      %v5011 = vpop.f32.mrb[0].mxu0
      %v5012 = vadd.f32 %v4907, %v5011
      %v5013 = vpop.f32.mrb[0].mxu0
      %5014 = vmatprep.mubr.f32.mxu0 0.0
      %5015 = vmatmul.mubr.f32.gmra.mrb[0].mxu0 %v4742
      %v5016 = vpop.f32.mrb[0].mxu0
      %v5017 = vadd.f32 %v4912, %v5016
      %v5018 = vpop.f32.mrb[0].mxu0
      %5019 = vdwg.mxu0
      %s5020 = scalar_lea.vmem %s31, 256
      %v5021 = vld [vmem:[%s5020] sm:$0xff]
      %v5022 = vld [vmem:[%s5020 + $0x8] sm:$0xff]
      %v5023 = vld [vmem:[%s5020 + $0x10] sm:$0xff]
      %v5024 = vld [vmem:[%s5020 + $0x18] sm:$0xff]
      %v5025 = vld [vmem:[%s5020 + $0x20] sm:$0xff]
      %v5026 = vld [vmem:[%s5020 + $0x28] sm:$0xff]
      %v5027 = vld [vmem:[%s5020 + $0x30] sm:$0xff]
      %v5028 = vld [vmem:[%s5020 + $0x38] sm:$0xff]
      %v5029 = vld [vmem:[%s5020 + $0x40] sm:$0xff]
      %v5030 = vld [vmem:[%s5020 + $0x48] sm:$0xff]
      %v5031 = vld [vmem:[%s5020 + $0x50] sm:$0xff]
      %v5032 = vld [vmem:[%s5020 + $0x58] sm:$0xff]
      %v5033 = vld [vmem:[%s5020 + $0x60] sm:$0xff]
      %v5034 = vld [vmem:[%s5020 + $0x68] sm:$0xff]
      %v5035 = vld [vmem:[%s5020 + $0x70] sm:$0xff]
      %v5036 = vld [vmem:[%s5020 + $0x78] sm:$0xff]
      %5037 = vmatprep.subr.mxu0 0.0
      %5038 = vmatpush1.msra.mxu0 %v5021
      %5039 = vmatprep.subr.mxu0 0.0
      %5040 = vmatpush1.msra.mxu0 %v5022
      %5041 = vmatprep.subr.mxu0 0.0
      %5042 = vmatpush1.msra.mxu0 %v5023
      %5043 = vmatprep.subr.mxu0 0.0
      %5044 = vmatpush1.msra.mxu0 %v5024
      %5045 = vmatprep.subr.mxu0 0.0
      %5046 = vmatpush1.msra.mxu0 %v5025
      %5047 = vmatprep.subr.mxu0 0.0
      %5048 = vmatpush1.msra.mxu0 %v5026
      %5049 = vmatprep.subr.mxu0 0.0
      %5050 = vmatpush1.msra.mxu0 %v5027
      %5051 = vmatprep.subr.mxu0 0.0
      %5052 = vmatpush1.msra.mxu0 %v5028
      %5053 = vmatprep.subr.mxu0 0.0
      %5054 = vmatpush1.msra.mxu0 %v5029
      %5055 = vmatprep.subr.mxu0 0.0
      %5056 = vmatpush1.msra.mxu0 %v5030
      %5057 = vmatprep.subr.mxu0 0.0
      %5058 = vmatpush1.msra.mxu0 %v5031
      %5059 = vmatprep.subr.mxu0 0.0
      %5060 = vmatpush1.msra.mxu0 %v5032
      %5061 = vmatprep.subr.mxu0 0.0
      %5062 = vmatpush1.msra.mxu0 %v5033
      %5063 = vmatprep.subr.mxu0 0.0
      %5064 = vmatpush1.msra.mxu0 %v5034
      %5065 = vmatprep.subr.mxu0 0.0
      %5066 = vmatpush1.msra.mxu0 %v5035
      %5067 = vmatprep.subr.mxu0 0.0
      %5068 = vmatpush1.msra.mxu0 %v5036
      %5069 = vmatprep.subr.mxu0 0.0
      %5070 = vmatpush1.msra.mxu0 0.0
      %5071 = vmatprep.subr.mxu0 0.0
      %5072 = vmatpush1.msra.mxu0 0.0
      %5073 = vmatprep.subr.mxu0 0.0
      %5074 = vmatpush1.msra.mxu0 0.0
      %5075 = vmatprep.subr.mxu0 0.0
      %5076 = vmatpush1.msra.mxu0 0.0
      %5077 = vmatprep.subr.mxu0 0.0
      %5078 = vmatpush1.msra.mxu0 0.0
      %5079 = vmatprep.subr.mxu0 0.0
      %5080 = vmatpush1.msra.mxu0 0.0
      %5081 = vmatprep.subr.mxu0 0.0
      %5082 = vmatpush1.msra.mxu0 0.0
      %5083 = vmatprep.subr.mxu0 0.0
      %5084 = vmatpush1.msra.mxu0 0.0
      %5085 = vmatprep.subr.mxu0 0.0
      %5086 = vmatpush1.msra.mxu0 0.0
      %5087 = vmatprep.subr.mxu0 0.0
      %5088 = vmatpush1.msra.mxu0 0.0
      %5089 = vmatprep.subr.mxu0 0.0
      %5090 = vmatpush1.msra.mxu0 0.0
      %5091 = vmatprep.subr.mxu0 0.0
      %5092 = vmatpush1.msra.mxu0 0.0
      %5093 = vmatprep.subr.mxu0 0.0
      %5094 = vmatpush1.msra.mxu0 0.0
      %5095 = vmatprep.subr.mxu0 0.0
      %5096 = vmatpush1.msra.mxu0 0.0
      %5097 = vmatprep.subr.mxu0 0.0
      %5098 = vmatpush1.msra.mxu0 0.0
      %5099 = vmatprep.subr.mxu0 0.0
      %5100 = vmatpush1.msra.mxu0 0.0
      %5101 = vmatprep.mubr.f32.mxu0 0.0
      %5102 = vmatmul.mubr.f32.gmra.mrb[0].mxu0 %v4754
      %v5103 = vpop.f32.mrb[0].mxu0
      %v5104 = vadd.f32 0.0, %v5103
      %v5105 = vpop.f32.mrb[0].mxu0
      %5106 = vmatprep.mubr.f32.mxu0 0.0
      %5107 = vmatmul.mubr.f32.gmra.mrb[0].mxu0 %v4756
      %v5108 = vpop.f32.mrb[0].mxu0
      %v5109 = vadd.f32 0.0, %v5108
      %v5110 = vpop.f32.mrb[0].mxu0
      %5111 = vmatprep.mubr.f32.mxu0 0.0
      %5112 = vmatmul.mubr.f32.gmra.mrb[0].mxu0 %v4758
      %v5113 = vpop.f32.mrb[0].mxu0
      %v5114 = vadd.f32 0.0, %v5113
      %v5115 = vpop.f32.mrb[0].mxu0
      %5116 = vmatprep.mubr.f32.mxu0 0.0
      %5117 = vmatmul.mubr.f32.gmra.mrb[0].mxu0 %v4760
      %v5118 = vpop.f32.mrb[0].mxu0
      %v5119 = vadd.f32 0.0, %v5118
      %v5120 = vpop.f32.mrb[0].mxu0
      %5121 = vmatprep.mubr.f32.mxu0 0.0
      %5122 = vmatmul.mubr.f32.gmra.mrb[0].mxu0 %v4762
      %v5123 = vpop.f32.mrb[0].mxu0
      %v5124 = vadd.f32 0.0, %v5123
      %v5125 = vpop.f32.mrb[0].mxu0
      %5126 = vmatprep.mubr.f32.mxu0 0.0
      %5127 = vmatmul.mubr.f32.gmra.mrb[0].mxu0 %v4764
      %v5128 = vpop.f32.mrb[0].mxu0
      %v5129 = vadd.f32 0.0, %v5128
      %v5130 = vpop.f32.mrb[0].mxu0
      %5131 = vmatprep.mubr.f32.mxu0 0.0
      %5132 = vmatmul.mubr.f32.gmra.mrb[0].mxu0 %v4766
      %v5133 = vpop.f32.mrb[0].mxu0
      %v5134 = vadd.f32 0.0, %v5133
      %v5135 = vpop.f32.mrb[0].mxu0
      %5136 = vmatprep.mubr.f32.mxu0 0.0
      %5137 = vmatmul.mubr.f32.gmra.mrb[0].mxu0 %v4776
      %v5138 = vpop.f32.mrb[0].mxu0
      %v5139 = vadd.f32 0.0, %v5138
      %v5140 = vpop.f32.mrb[0].mxu0
      %5141 = vdwg.mxu0
      %v5142 = vadd.f32 %v4982, %v5104
      %v5143 = vadd.f32 %v4987, %v5109
      %v5144 = vadd.f32 %v4992, %v5114
      %v5145 = vadd.f32 %v4997, %v5119
      %v5146 = vadd.f32 %v5002, %v5124
      %v5147 = vadd.f32 %v5007, %v5129
      %v5148 = vadd.f32 %v5012, %v5134
      %v5149 = vadd.f32 %v5017, %v5139
      %v5150 = vld [vmem:[%s33] sm:$0x1]
      %v5152 = vlaneseq
      %v5153 = vshrl.u32 %v5152, 7
      %v5154 = vsub.s32 0, %v5153
      %v5155 = vrot.slane %v5150, %v5154
      %v5157 = vadd.f32 %v5142, %v5155
      %v5158 = vadd.f32 %v5143, %v5155
      %v5159 = vadd.f32 %v5144, %v5155
      %v5160 = vadd.f32 %v5145, %v5155
      %v5161 = vadd.f32 %v5146, %v5155
      %v5162 = vadd.f32 %v5147, %v5155
      %v5163 = vadd.f32 %v5148, %v5155
      %v5164 = vadd.f32 %v5149, %v5155
      %v5165 = vmax.f32 %v5157, 0.0
      %v5166 = vmax.f32 %v5158, 0.0
      %v5167 = vmax.f32 %v5159, 0.0
      %v5168 = vmax.f32 %v5160, 0.0
      %v5169 = vmax.f32 %v5161, 0.0
      %v5170 = vmax.f32 %v5162, 0.0
      %v5171 = vmax.f32 %v5163, 0.0
      %v5172 = vmax.f32 %v5164, 0.0
      %v5173 = vld [vmem:[%s51] sm:$0xff]
      %v5174 = vld [vmem:[%s51 + $0x8] sm:$0xff]
      %v5175 = vld [vmem:[%s51 + $0x10] sm:$0xff]
      %v5176 = vld [vmem:[%s51 + $0x18] sm:$0xff]
      %v5177 = vld [vmem:[%s51 + $0x20] sm:$0xff]
      %v5178 = vld [vmem:[%s51 + $0x28] sm:$0xff]
      %v5179 = vld [vmem:[%s51 + $0x30] sm:$0xff]
      %v5180 = vld [vmem:[%s51 + $0x38] sm:$0xff]
      %v5181 = vld [vmem:[%s51 + $0x40] sm:$0xff]
      %v5182 = vld [vmem:[%s51 + $0x48] sm:$0xff]
      %v5183 = vld [vmem:[%s51 + $0x50] sm:$0xff]
      %v5184 = vld [vmem:[%s51 + $0x58] sm:$0xff]
      %v5185 = vld [vmem:[%s51 + $0x60] sm:$0xff]
      %v5186 = vld [vmem:[%s51 + $0x68] sm:$0xff]
      %v5187 = vld [vmem:[%s51 + $0x70] sm:$0xff]
      %v5188 = vld [vmem:[%s51 + $0x78] sm:$0xff]
      %v5189 = vmax.f32 %v5165, 0.0
      %v5190 = vmax.f32 %v5166, 0.0
      %v5191 = vmax.f32 %v5167, 0.0
      %v5192 = vmax.f32 %v5168, 0.0
      %v5193 = vmax.f32 %v5169, 0.0
      %v5194 = vmax.f32 %v5170, 0.0
      %v5195 = vmax.f32 %v5171, 0.0
      %v5196 = vmax.f32 %v5172, 0.0
      %v5198 = vrot.slane %v5196, 7
      %v5207 = vrot.slane %v5189, 7
      %v5208 = vrot.slane %v5190, 7
      %v5209 = vsel %vm1042, %v5207, %v5208
      %v5210 = vrot.slane %v5191, 7
      %v5211 = vsel %vm1042, %v5208, %v5210
      %v5212 = vrot.slane %v5192, 7
      %v5213 = vsel %vm1042, %v5210, %v5212
      %v5214 = vrot.slane %v5193, 7
      %v5215 = vsel %vm1042, %v5212, %v5214
      %v5216 = vrot.slane %v5194, 7
      %v5217 = vsel %vm1042, %v5214, %v5216
      %v5218 = vrot.slane %v5195, 7
      %v5219 = vsel %vm1042, %v5216, %v5218
      %v5220 = vsel %vm1042, %v5218, %v5198
      %v5222 = vsel %vm1042, %v5198, %v5207
      %v5223 = vrot.slane %v5189, 1
      %v5224 = vrot.slane %v5190, 1
      %v5225 = vsel %vm1075, %v5223, %v5224
      %v5226 = vrot.slane %v5191, 1
      %v5227 = vsel %vm1075, %v5224, %v5226
      %v5228 = vrot.slane %v5192, 1
      %v5229 = vsel %vm1075, %v5226, %v5228
      %v5230 = vrot.slane %v5193, 1
      %v5231 = vsel %vm1075, %v5228, %v5230
      %v5232 = vrot.slane %v5194, 1
      %v5233 = vsel %vm1075, %v5230, %v5232
      %v5234 = vrot.slane %v5195, 1
      %v5235 = vsel %vm1075, %v5232, %v5234
      %v5236 = vrot.slane %v5196, 1
      %v5237 = vsel %vm1075, %v5234, %v5236
      %v5240 = vsel %vm1075, %v5236, %v5223
      %v5241 = vld [vmem:[%s35] sm:$0xff]
      %v5242 = vld [vmem:[%s35 + $0x8] sm:$0xff]
      %v5243 = vld [vmem:[%s35 + $0x10] sm:$0xff]
      %v5244 = vld [vmem:[%s35 + $0x18] sm:$0xff]
      %v5245 = vld [vmem:[%s35 + $0x20] sm:$0xff]
      %v5246 = vld [vmem:[%s35 + $0x28] sm:$0xff]
      %v5247 = vld [vmem:[%s35 + $0x30] sm:$0xff]
      %v5248 = vld [vmem:[%s35 + $0x38] sm:$0xff]
      %s5249 = scalar_lea.vmem %s35, 64
      %v5250 = vld [vmem:[%s5249] sm:$0xff]
      %v5251 = vld [vmem:[%s5249 + $0x8] sm:$0xff]
      %v5252 = vld [vmem:[%s5249 + $0x10] sm:$0xff]
      %v5253 = vld [vmem:[%s5249 + $0x18] sm:$0xff]
      %v5254 = vld [vmem:[%s5249 + $0x20] sm:$0xff]
      %v5255 = vld [vmem:[%s5249 + $0x28] sm:$0xff]
      %v5256 = vld [vmem:[%s5249 + $0x30] sm:$0xff]
      %v5257 = vld [vmem:[%s5249 + $0x38] sm:$0xff]
      %v5258 = vsel %vm1563, %v5189, 0
      %v5260 = vsel %vm1563, %v5190, 0
      %v5262 = vsel %vm1563, %v5191, 0
      %v5264 = vsel %vm1563, %v5192, 0
      %v5266 = vsel %vm1563, %v5193, 0
      %v5268 = vsel %vm1563, %v5194, 0
      %v5270 = vsel %vm1563, %v5195, 0
      %v5272 = vsel %vm1563, %v5196, 0
      %5274 = vmatprep.subr.mxu0 0.0
      %5275 = vmatpush1.msra.mxu0 %v5250
      %5276 = vmatprep.subr.mxu0 0.0
      %5277 = vmatpush1.msra.mxu0 %v5251
      %5278 = vmatprep.subr.mxu0 0.0
      %5279 = vmatpush1.msra.mxu0 %v5252
      %5280 = vmatprep.subr.mxu0 0.0
      %5281 = vmatpush1.msra.mxu0 %v5253
      %5282 = vmatprep.subr.mxu0 0.0
      %5283 = vmatpush1.msra.mxu0 %v5254
      %5284 = vmatprep.subr.mxu0 0.0
      %5285 = vmatpush1.msra.mxu0 %v5255
      %5286 = vmatprep.subr.mxu0 0.0
      %5287 = vmatpush1.msra.mxu0 %v5256
      %5288 = vmatprep.subr.mxu0 0.0
      %5289 = vmatpush1.msra.mxu0 %v5257
      %5290 = vmatprep.subr.mxu0 0.0
      %5291 = vmatpush1.msra.mxu0 0.0
      %5292 = vmatprep.subr.mxu0 0.0
      %5293 = vmatpush1.msra.mxu0 0.0
      %5294 = vmatprep.subr.mxu0 0.0
      %5295 = vmatpush1.msra.mxu0 0.0
      %5296 = vmatprep.subr.mxu0 0.0
      %5297 = vmatpush1.msra.mxu0 0.0
      %5298 = vmatprep.subr.mxu0 0.0
      %5299 = vmatpush1.msra.mxu0 0.0
      %5300 = vmatprep.subr.mxu0 0.0
      %5301 = vmatpush1.msra.mxu0 0.0
      %5302 = vmatprep.subr.mxu0 0.0
      %5303 = vmatpush1.msra.mxu0 0.0
      %5304 = vmatprep.subr.mxu0 0.0
      %5305 = vmatpush1.msra.mxu0 0.0
      %5306 = vmatprep.subr.mxu0 0.0
      %5307 = vmatpush1.msra.mxu0 0.0
      %5308 = vmatprep.subr.mxu0 0.0
      %5309 = vmatpush1.msra.mxu0 0.0
      %5310 = vmatprep.subr.mxu0 0.0
      %5311 = vmatpush1.msra.mxu0 0.0
      %5312 = vmatprep.subr.mxu0 0.0
      %5313 = vmatpush1.msra.mxu0 0.0
      %5314 = vmatprep.subr.mxu0 0.0
      %5315 = vmatpush1.msra.mxu0 0.0
      %5316 = vmatprep.subr.mxu0 0.0
      %5317 = vmatpush1.msra.mxu0 0.0
      %5318 = vmatprep.subr.mxu0 0.0
      %5319 = vmatpush1.msra.mxu0 0.0
      %5320 = vmatprep.subr.mxu0 0.0
      %5321 = vmatpush1.msra.mxu0 0.0
      %5322 = vmatprep.subr.mxu0 0.0
      %5323 = vmatpush1.msra.mxu0 0.0
      %5324 = vmatprep.subr.mxu0 0.0
      %5325 = vmatpush1.msra.mxu0 0.0
      %5326 = vmatprep.subr.mxu0 0.0
      %5327 = vmatpush1.msra.mxu0 0.0
      %5328 = vmatprep.subr.mxu0 0.0
      %5329 = vmatpush1.msra.mxu0 0.0
      %5330 = vmatprep.subr.mxu0 0.0
      %5331 = vmatpush1.msra.mxu0 0.0
      %5332 = vmatprep.subr.mxu0 0.0
      %5333 = vmatpush1.msra.mxu0 0.0
      %5334 = vmatprep.subr.mxu0 0.0
      %5335 = vmatpush1.msra.mxu0 0.0
      %5336 = vmatprep.subr.mxu0 0.0
      %5337 = vmatpush1.msra.mxu0 0.0
      %5338 = vmatprep.mubr.f32.mxu0 0.0
      %5339 = vmatmul.mubr.f32.gmra.mrb[0].mxu0 %v5258
      %v5340 = vpop.f32.mrb[0].mxu0
      %v5341 = vadd.f32 0.0, %v5340
      %v5342 = vpop.f32.mrb[0].mxu0
      %5343 = vmatprep.mubr.f32.mxu0 0.0
      %5344 = vmatmul.mubr.f32.gmra.mrb[0].mxu0 %v5260
      %v5345 = vpop.f32.mrb[0].mxu0
      %v5346 = vadd.f32 0.0, %v5345
      %v5347 = vpop.f32.mrb[0].mxu0
      %5348 = vmatprep.mubr.f32.mxu0 0.0
      %5349 = vmatmul.mubr.f32.gmra.mrb[0].mxu0 %v5262
      %v5350 = vpop.f32.mrb[0].mxu0
      %v5351 = vadd.f32 0.0, %v5350
      %v5352 = vpop.f32.mrb[0].mxu0
      %5353 = vmatprep.mubr.f32.mxu0 0.0
      %5354 = vmatmul.mubr.f32.gmra.mrb[0].mxu0 %v5264
      %v5355 = vpop.f32.mrb[0].mxu0
      %v5356 = vadd.f32 0.0, %v5355
      %v5357 = vpop.f32.mrb[0].mxu0
      %5358 = vmatprep.mubr.f32.mxu0 0.0
      %5359 = vmatmul.mubr.f32.gmra.mrb[0].mxu0 %v5266
      %v5360 = vpop.f32.mrb[0].mxu0
      %v5361 = vadd.f32 0.0, %v5360
      %v5362 = vpop.f32.mrb[0].mxu0
      %5363 = vmatprep.mubr.f32.mxu0 0.0
      %5364 = vmatmul.mubr.f32.gmra.mrb[0].mxu0 %v5268
      %v5365 = vpop.f32.mrb[0].mxu0
      %v5366 = vadd.f32 0.0, %v5365
      %v5367 = vpop.f32.mrb[0].mxu0
      %5368 = vmatprep.mubr.f32.mxu0 0.0
      %5369 = vmatmul.mubr.f32.gmra.mrb[0].mxu0 %v5270
      %v5370 = vpop.f32.mrb[0].mxu0
      %v5371 = vadd.f32 0.0, %v5370
      %v5372 = vpop.f32.mrb[0].mxu0
      %5373 = vmatprep.mubr.f32.mxu0 0.0
      %5374 = vmatmul.mubr.f32.gmra.mrb[0].mxu0 %v5272
      %v5375 = vpop.f32.mrb[0].mxu0
      %v5376 = vadd.f32 0.0, %v5375
      %v5377 = vpop.f32.mrb[0].mxu0
      %5378 = vdwg.mxu0
      %v5380 = vsel %vm1563, %v5222, 0
      %v5382 = vsel %vm1563, %v5209, 0
      %v5384 = vsel %vm1563, %v5211, 0
      %v5386 = vsel %vm1563, %v5213, 0
      %v5388 = vsel %vm1563, %v5215, 0
      %v5390 = vsel %vm1563, %v5217, 0
      %v5392 = vsel %vm1563, %v5219, 0
      %v5394 = vsel %vm1563, %v5220, 0
      %5396 = vmatprep.subr.mxu0 0.0
      %5397 = vmatpush1.msra.mxu0 %v5241
      %5398 = vmatprep.subr.mxu0 0.0
      %5399 = vmatpush1.msra.mxu0 %v5242
      %5400 = vmatprep.subr.mxu0 0.0
      %5401 = vmatpush1.msra.mxu0 %v5243
      %5402 = vmatprep.subr.mxu0 0.0
      %5403 = vmatpush1.msra.mxu0 %v5244
      %5404 = vmatprep.subr.mxu0 0.0
      %5405 = vmatpush1.msra.mxu0 %v5245
      %5406 = vmatprep.subr.mxu0 0.0
      %5407 = vmatpush1.msra.mxu0 %v5246
      %5408 = vmatprep.subr.mxu0 0.0
      %5409 = vmatpush1.msra.mxu0 %v5247
      %5410 = vmatprep.subr.mxu0 0.0
      %5411 = vmatpush1.msra.mxu0 %v5248
      %5412 = vmatprep.subr.mxu0 0.0
      %5413 = vmatpush1.msra.mxu0 0.0
      %5414 = vmatprep.subr.mxu0 0.0
      %5415 = vmatpush1.msra.mxu0 0.0
      %5416 = vmatprep.subr.mxu0 0.0
      %5417 = vmatpush1.msra.mxu0 0.0
      %5418 = vmatprep.subr.mxu0 0.0
      %5419 = vmatpush1.msra.mxu0 0.0
      %5420 = vmatprep.subr.mxu0 0.0
      %5421 = vmatpush1.msra.mxu0 0.0
      %5422 = vmatprep.subr.mxu0 0.0
      %5423 = vmatpush1.msra.mxu0 0.0
      %5424 = vmatprep.subr.mxu0 0.0
      %5425 = vmatpush1.msra.mxu0 0.0
      %5426 = vmatprep.subr.mxu0 0.0
      %5427 = vmatpush1.msra.mxu0 0.0
      %5428 = vmatprep.subr.mxu0 0.0
      %5429 = vmatpush1.msra.mxu0 0.0
      %5430 = vmatprep.subr.mxu0 0.0
      %5431 = vmatpush1.msra.mxu0 0.0
      %5432 = vmatprep.subr.mxu0 0.0
      %5433 = vmatpush1.msra.mxu0 0.0
      %5434 = vmatprep.subr.mxu0 0.0
      %5435 = vmatpush1.msra.mxu0 0.0
      %5436 = vmatprep.subr.mxu0 0.0
      %5437 = vmatpush1.msra.mxu0 0.0
      %5438 = vmatprep.subr.mxu0 0.0
      %5439 = vmatpush1.msra.mxu0 0.0
      %5440 = vmatprep.subr.mxu0 0.0
      %5441 = vmatpush1.msra.mxu0 0.0
      %5442 = vmatprep.subr.mxu0 0.0
      %5443 = vmatpush1.msra.mxu0 0.0
      %5444 = vmatprep.subr.mxu0 0.0
      %5445 = vmatpush1.msra.mxu0 0.0
      %5446 = vmatprep.subr.mxu0 0.0
      %5447 = vmatpush1.msra.mxu0 0.0
      %5448 = vmatprep.subr.mxu0 0.0
      %5449 = vmatpush1.msra.mxu0 0.0
      %5450 = vmatprep.subr.mxu0 0.0
      %5451 = vmatpush1.msra.mxu0 0.0
      %5452 = vmatprep.subr.mxu0 0.0
      %5453 = vmatpush1.msra.mxu0 0.0
      %5454 = vmatprep.subr.mxu0 0.0
      %5455 = vmatpush1.msra.mxu0 0.0
      %5456 = vmatprep.subr.mxu0 0.0
      %5457 = vmatpush1.msra.mxu0 0.0
      %5458 = vmatprep.subr.mxu0 0.0
      %5459 = vmatpush1.msra.mxu0 0.0
      %5460 = vmatprep.mubr.f32.mxu0 0.0
      %5461 = vmatmul.mubr.f32.gmra.mrb[0].mxu0 %v5380
      %v5462 = vpop.f32.mrb[0].mxu0
      %v5463 = vadd.f32 %v5341, %v5462
      %v5464 = vpop.f32.mrb[0].mxu0
      %5465 = vmatprep.mubr.f32.mxu0 0.0
      %5466 = vmatmul.mubr.f32.gmra.mrb[0].mxu0 %v5382
      %v5467 = vpop.f32.mrb[0].mxu0
      %v5468 = vadd.f32 %v5346, %v5467
      %v5469 = vpop.f32.mrb[0].mxu0
      %5470 = vmatprep.mubr.f32.mxu0 0.0
      %5471 = vmatmul.mubr.f32.gmra.mrb[0].mxu0 %v5384
      %v5472 = vpop.f32.mrb[0].mxu0
      %v5473 = vadd.f32 %v5351, %v5472
      %v5474 = vpop.f32.mrb[0].mxu0
      %5475 = vmatprep.mubr.f32.mxu0 0.0
      %5476 = vmatmul.mubr.f32.gmra.mrb[0].mxu0 %v5386
      %v5477 = vpop.f32.mrb[0].mxu0
      %v5478 = vadd.f32 %v5356, %v5477
      %v5479 = vpop.f32.mrb[0].mxu0
      %5480 = vmatprep.mubr.f32.mxu0 0.0
      %5481 = vmatmul.mubr.f32.gmra.mrb[0].mxu0 %v5388
      %v5482 = vpop.f32.mrb[0].mxu0
      %v5483 = vadd.f32 %v5361, %v5482
      %v5484 = vpop.f32.mrb[0].mxu0
      %5485 = vmatprep.mubr.f32.mxu0 0.0
      %5486 = vmatmul.mubr.f32.gmra.mrb[0].mxu0 %v5390
      %v5487 = vpop.f32.mrb[0].mxu0
      %v5488 = vadd.f32 %v5366, %v5487
      %v5489 = vpop.f32.mrb[0].mxu0
      %5490 = vmatprep.mubr.f32.mxu0 0.0
      %5491 = vmatmul.mubr.f32.gmra.mrb[0].mxu0 %v5392
      %v5492 = vpop.f32.mrb[0].mxu0
      %v5493 = vadd.f32 %v5371, %v5492
      %v5494 = vpop.f32.mrb[0].mxu0
      %5495 = vmatprep.mubr.f32.mxu0 0.0
      %5496 = vmatmul.mubr.f32.gmra.mrb[0].mxu0 %v5394
      %v5497 = vpop.f32.mrb[0].mxu0
      %v5498 = vadd.f32 %v5376, %v5497
      %v5499 = vpop.f32.mrb[0].mxu0
      %5500 = vdwg.mxu0
      %s5501 = scalar_lea.vmem %s35, 128
      %v5502 = vld [vmem:[%s5501] sm:$0xff]
      %v5503 = vld [vmem:[%s5501 + $0x8] sm:$0xff]
      %v5504 = vld [vmem:[%s5501 + $0x10] sm:$0xff]
      %v5505 = vld [vmem:[%s5501 + $0x18] sm:$0xff]
      %v5506 = vld [vmem:[%s5501 + $0x20] sm:$0xff]
      %v5507 = vld [vmem:[%s5501 + $0x28] sm:$0xff]
      %v5508 = vld [vmem:[%s5501 + $0x30] sm:$0xff]
      %v5509 = vld [vmem:[%s5501 + $0x38] sm:$0xff]
      %v5510 = vsel %vm1563, %v5225, 0
      %v5512 = vsel %vm1563, %v5227, 0
      %v5514 = vsel %vm1563, %v5229, 0
      %v5516 = vsel %vm1563, %v5231, 0
      %v5518 = vsel %vm1563, %v5233, 0
      %v5520 = vsel %vm1563, %v5235, 0
      %v5522 = vsel %vm1563, %v5237, 0
      %v5525 = vsel %vm1563, %v5240, 0
      %5527 = vmatprep.subr.mxu0 0.0
      %5528 = vmatpush1.msra.mxu0 %v5502
      %5529 = vmatprep.subr.mxu0 0.0
      %5530 = vmatpush1.msra.mxu0 %v5503
      %5531 = vmatprep.subr.mxu0 0.0
      %5532 = vmatpush1.msra.mxu0 %v5504
      %5533 = vmatprep.subr.mxu0 0.0
      %5534 = vmatpush1.msra.mxu0 %v5505
      %5535 = vmatprep.subr.mxu0 0.0
      %5536 = vmatpush1.msra.mxu0 %v5506
      %5537 = vmatprep.subr.mxu0 0.0
      %5538 = vmatpush1.msra.mxu0 %v5507
      %5539 = vmatprep.subr.mxu0 0.0
      %5540 = vmatpush1.msra.mxu0 %v5508
      %5541 = vmatprep.subr.mxu0 0.0
      %5542 = vmatpush1.msra.mxu0 %v5509
      %5543 = vmatprep.subr.mxu0 0.0
      %5544 = vmatpush1.msra.mxu0 0.0
      %5545 = vmatprep.subr.mxu0 0.0
      %5546 = vmatpush1.msra.mxu0 0.0
      %5547 = vmatprep.subr.mxu0 0.0
      %5548 = vmatpush1.msra.mxu0 0.0
      %5549 = vmatprep.subr.mxu0 0.0
      %5550 = vmatpush1.msra.mxu0 0.0
      %5551 = vmatprep.subr.mxu0 0.0
      %5552 = vmatpush1.msra.mxu0 0.0
      %5553 = vmatprep.subr.mxu0 0.0
      %5554 = vmatpush1.msra.mxu0 0.0
      %5555 = vmatprep.subr.mxu0 0.0
      %5556 = vmatpush1.msra.mxu0 0.0
      %5557 = vmatprep.subr.mxu0 0.0
      %5558 = vmatpush1.msra.mxu0 0.0
      %5559 = vmatprep.subr.mxu0 0.0
      %5560 = vmatpush1.msra.mxu0 0.0
      %5561 = vmatprep.subr.mxu0 0.0
      %5562 = vmatpush1.msra.mxu0 0.0
      %5563 = vmatprep.subr.mxu0 0.0
      %5564 = vmatpush1.msra.mxu0 0.0
      %5565 = vmatprep.subr.mxu0 0.0
      %5566 = vmatpush1.msra.mxu0 0.0
      %5567 = vmatprep.subr.mxu0 0.0
      %5568 = vmatpush1.msra.mxu0 0.0
      %5569 = vmatprep.subr.mxu0 0.0
      %5570 = vmatpush1.msra.mxu0 0.0
      %5571 = vmatprep.subr.mxu0 0.0
      %5572 = vmatpush1.msra.mxu0 0.0
      %5573 = vmatprep.subr.mxu0 0.0
      %5574 = vmatpush1.msra.mxu0 0.0
      %5575 = vmatprep.subr.mxu0 0.0
      %5576 = vmatpush1.msra.mxu0 0.0
      %5577 = vmatprep.subr.mxu0 0.0
      %5578 = vmatpush1.msra.mxu0 0.0
      %5579 = vmatprep.subr.mxu0 0.0
      %5580 = vmatpush1.msra.mxu0 0.0
      %5581 = vmatprep.subr.mxu0 0.0
      %5582 = vmatpush1.msra.mxu0 0.0
      %5583 = vmatprep.subr.mxu0 0.0
      %5584 = vmatpush1.msra.mxu0 0.0
      %5585 = vmatprep.subr.mxu0 0.0
      %5586 = vmatpush1.msra.mxu0 0.0
      %5587 = vmatprep.subr.mxu0 0.0
      %5588 = vmatpush1.msra.mxu0 0.0
      %5589 = vmatprep.subr.mxu0 0.0
      %5590 = vmatpush1.msra.mxu0 0.0
      %5591 = vmatprep.mubr.f32.mxu0 0.0
      %5592 = vmatmul.mubr.f32.gmra.mrb[0].mxu0 %v5510
      %v5593 = vpop.f32.mrb[0].mxu0
      %v5594 = vadd.f32 0.0, %v5593
      %v5595 = vpop.f32.mrb[0].mxu0
      %5596 = vmatprep.mubr.f32.mxu0 0.0
      %5597 = vmatmul.mubr.f32.gmra.mrb[0].mxu0 %v5512
      %v5598 = vpop.f32.mrb[0].mxu0
      %v5599 = vadd.f32 0.0, %v5598
      %v5600 = vpop.f32.mrb[0].mxu0
      %5601 = vmatprep.mubr.f32.mxu0 0.0
      %5602 = vmatmul.mubr.f32.gmra.mrb[0].mxu0 %v5514
      %v5603 = vpop.f32.mrb[0].mxu0
      %v5604 = vadd.f32 0.0, %v5603
      %v5605 = vpop.f32.mrb[0].mxu0
      %5606 = vmatprep.mubr.f32.mxu0 0.0
      %5607 = vmatmul.mubr.f32.gmra.mrb[0].mxu0 %v5516
      %v5608 = vpop.f32.mrb[0].mxu0
      %v5609 = vadd.f32 0.0, %v5608
      %v5610 = vpop.f32.mrb[0].mxu0
      %5611 = vmatprep.mubr.f32.mxu0 0.0
      %5612 = vmatmul.mubr.f32.gmra.mrb[0].mxu0 %v5518
      %v5613 = vpop.f32.mrb[0].mxu0
      %v5614 = vadd.f32 0.0, %v5613
      %v5615 = vpop.f32.mrb[0].mxu0
      %5616 = vmatprep.mubr.f32.mxu0 0.0
      %5617 = vmatmul.mubr.f32.gmra.mrb[0].mxu0 %v5520
      %v5618 = vpop.f32.mrb[0].mxu0
      %v5619 = vadd.f32 0.0, %v5618
      %v5620 = vpop.f32.mrb[0].mxu0
      %5621 = vmatprep.mubr.f32.mxu0 0.0
      %5622 = vmatmul.mubr.f32.gmra.mrb[0].mxu0 %v5522
      %v5623 = vpop.f32.mrb[0].mxu0
      %v5624 = vadd.f32 0.0, %v5623
      %v5625 = vpop.f32.mrb[0].mxu0
      %5626 = vmatprep.mubr.f32.mxu0 0.0
      %5627 = vmatmul.mubr.f32.gmra.mrb[0].mxu0 %v5525
      %v5628 = vpop.f32.mrb[0].mxu0
      %v5629 = vadd.f32 0.0, %v5628
      %v5630 = vpop.f32.mrb[0].mxu0
      %5631 = vdwg.mxu0
      %v5632 = vadd.f32 %v5463, %v5594
      %v5633 = vadd.f32 %v5468, %v5599
      %v5634 = vadd.f32 %v5473, %v5604
      %v5635 = vadd.f32 %v5478, %v5609
      %v5636 = vadd.f32 %v5483, %v5614
      %v5637 = vadd.f32 %v5488, %v5619
      %v5638 = vadd.f32 %v5493, %v5624
      %v5639 = vadd.f32 %v5498, %v5629
      %v5640 = vmax.f32 %v5632, 0.0
      %v5641 = vmax.f32 %v5633, 0.0
      %v5642 = vmax.f32 %v5634, 0.0
      %v5643 = vmax.f32 %v5635, 0.0
      %v5644 = vmax.f32 %v5636, 0.0
      %v5645 = vmax.f32 %v5637, 0.0
      %v5646 = vmax.f32 %v5638, 0.0
      %v5647 = vmax.f32 %v5639, 0.0
      %v5649 = vsel %vm1563, %v5173, 0
      %v5652 = vsel %vm1563, %v5174, 0
      %v5655 = vsel %vm1563, %v5175, 0
      %v5658 = vsel %vm1563, %v5176, 0
      %v5661 = vsel %vm1563, %v5177, 0
      %v5664 = vsel %vm1563, %v5178, 0
      %v5667 = vsel %vm1563, %v5179, 0
      %v5670 = vsel %vm1563, %v5180, 0
      %v5673 = vsel %vm1563, %v5181, 0
      %v5676 = vsel %vm1563, %v5182, 0
      %v5679 = vsel %vm1563, %v5183, 0
      %v5682 = vsel %vm1563, %v5184, 0
      %v5685 = vsel %vm1563, %v5185, 0
      %v5688 = vsel %vm1563, %v5186, 0
      %v5691 = vsel %vm1563, %v5187, 0
      %v5694 = vsel %vm1563, %v5188, 0
      %5696 = vmatprep.subr.mxu0 0.0
      %5697 = vmatpush1.msra.mxu0 %v5640
      %5698 = vmatprep.subr.mxu0 0.0
      %5699 = vmatpush1.msra.mxu0 %v5641
      %5700 = vmatprep.subr.mxu0 0.0
      %5701 = vmatpush1.msra.mxu0 %v5642
      %5702 = vmatprep.subr.mxu0 0.0
      %5703 = vmatpush1.msra.mxu0 %v5643
      %5704 = vmatprep.subr.mxu0 0.0
      %5705 = vmatpush1.msra.mxu0 %v5644
      %5706 = vmatprep.subr.mxu0 0.0
      %5707 = vmatpush1.msra.mxu0 %v5645
      %5708 = vmatprep.subr.mxu0 0.0
      %5709 = vmatpush1.msra.mxu0 %v5646
      %5710 = vmatprep.subr.mxu0 0.0
      %5711 = vmatpush1.msra.mxu0 %v5647
      %5712 = vmatprep.subr.mxu0 0.0
      %5713 = vmatpush1.msra.mxu0 0.0
      %5714 = vmatprep.subr.mxu0 0.0
      %5715 = vmatpush1.msra.mxu0 0.0
      %5716 = vmatprep.subr.mxu0 0.0
      %5717 = vmatpush1.msra.mxu0 0.0
      %5718 = vmatprep.subr.mxu0 0.0
      %5719 = vmatpush1.msra.mxu0 0.0
      %5720 = vmatprep.subr.mxu0 0.0
      %5721 = vmatpush1.msra.mxu0 0.0
      %5722 = vmatprep.subr.mxu0 0.0
      %5723 = vmatpush1.msra.mxu0 0.0
      %5724 = vmatprep.subr.mxu0 0.0
      %5725 = vmatpush1.msra.mxu0 0.0
      %5726 = vmatprep.subr.mxu0 0.0
      %5727 = vmatpush1.msra.mxu0 0.0
      %5728 = vmatprep.subr.mxu0 0.0
      %5729 = vmatpush1.msra.mxu0 0.0
      %5730 = vmatprep.subr.mxu0 0.0
      %5731 = vmatpush1.msra.mxu0 0.0
      %5732 = vmatprep.subr.mxu0 0.0
      %5733 = vmatpush1.msra.mxu0 0.0
      %5734 = vmatprep.subr.mxu0 0.0
      %5735 = vmatpush1.msra.mxu0 0.0
      %5736 = vmatprep.subr.mxu0 0.0
      %5737 = vmatpush1.msra.mxu0 0.0
      %5738 = vmatprep.subr.mxu0 0.0
      %5739 = vmatpush1.msra.mxu0 0.0
      %5740 = vmatprep.subr.mxu0 0.0
      %5741 = vmatpush1.msra.mxu0 0.0
      %5742 = vmatprep.subr.mxu0 0.0
      %5743 = vmatpush1.msra.mxu0 0.0
      %5744 = vmatprep.subr.mxu0 0.0
      %5745 = vmatpush1.msra.mxu0 0.0
      %5746 = vmatprep.subr.mxu0 0.0
      %5747 = vmatpush1.msra.mxu0 0.0
      %5748 = vmatprep.subr.mxu0 0.0
      %5749 = vmatpush1.msra.mxu0 0.0
      %5750 = vmatprep.subr.mxu0 0.0
      %5751 = vmatpush1.msra.mxu0 0.0
      %5752 = vmatprep.subr.mxu0 0.0
      %5753 = vmatpush1.msra.mxu0 0.0
      %5754 = vmatprep.subr.mxu0 0.0
      %5755 = vmatpush1.msra.mxu0 0.0
      %5756 = vmatprep.subr.mxu0 0.0
      %5757 = vmatpush1.msra.mxu0 0.0
      %5758 = vmatprep.subr.mxu0 0.0
      %5759 = vmatpush1.msra.mxu0 0.0
      %5760 = vmatprep.mubr.f32.mxu0 0.0
      %5761 = vmatmul.mubr.f32.gmra.mrb[0].mxu0 %v5649
      %v5762 = vpop.f32.mrb[0].mxu0
      %v5763 = vadd.f32 0.0, %v5762
      %v5764 = vpop.f32.mrb[0].mxu0
      %5765 = vmatprep.mubr.f32.mxu0 0.0
      %5766 = vmatmul.mubr.f32.gmra.mrb[0].mxu0 %v5652
      %v5767 = vpop.f32.mrb[0].mxu0
      %v5768 = vadd.f32 0.0, %v5767
      %v5769 = vpop.f32.mrb[0].mxu0
      %5770 = vmatprep.mubr.f32.mxu0 0.0
      %5771 = vmatmul.mubr.f32.gmra.mrb[0].mxu0 %v5655
      %v5772 = vpop.f32.mrb[0].mxu0
      %v5773 = vadd.f32 0.0, %v5772
      %v5774 = vpop.f32.mrb[0].mxu0
      %5775 = vmatprep.mubr.f32.mxu0 0.0
      %5776 = vmatmul.mubr.f32.gmra.mrb[0].mxu0 %v5658
      %v5777 = vpop.f32.mrb[0].mxu0
      %v5778 = vadd.f32 0.0, %v5777
      %v5779 = vpop.f32.mrb[0].mxu0
      %5780 = vmatprep.mubr.f32.mxu0 0.0
      %5781 = vmatmul.mubr.f32.gmra.mrb[0].mxu0 %v5661
      %v5782 = vpop.f32.mrb[0].mxu0
      %v5783 = vadd.f32 0.0, %v5782
      %v5784 = vpop.f32.mrb[0].mxu0
      %5785 = vmatprep.mubr.f32.mxu0 0.0
      %5786 = vmatmul.mubr.f32.gmra.mrb[0].mxu0 %v5664
      %v5787 = vpop.f32.mrb[0].mxu0
      %v5788 = vadd.f32 0.0, %v5787
      %v5789 = vpop.f32.mrb[0].mxu0
      %5790 = vmatprep.mubr.f32.mxu0 0.0
      %5791 = vmatmul.mubr.f32.gmra.mrb[0].mxu0 %v5667
      %v5792 = vpop.f32.mrb[0].mxu0
      %v5793 = vadd.f32 0.0, %v5792
      %v5794 = vpop.f32.mrb[0].mxu0
      %5795 = vmatprep.mubr.f32.mxu0 0.0
      %5796 = vmatmul.mubr.f32.gmra.mrb[0].mxu0 %v5670
      %v5797 = vpop.f32.mrb[0].mxu0
      %v5798 = vadd.f32 0.0, %v5797
      %v5799 = vpop.f32.mrb[0].mxu0
      %5800 = vmatprep.mubr.f32.mxu0 0.0
      %5801 = vmatmul.mubr.f32.gmra.mrb[0].mxu0 %v5673
      %v5802 = vpop.f32.mrb[0].mxu0
      %v5803 = vadd.f32 0.0, %v5802
      %v5804 = vpop.f32.mrb[0].mxu0
      %5805 = vmatprep.mubr.f32.mxu0 0.0
      %5806 = vmatmul.mubr.f32.gmra.mrb[0].mxu0 %v5676
      %v5807 = vpop.f32.mrb[0].mxu0
      %v5808 = vadd.f32 0.0, %v5807
      %v5809 = vpop.f32.mrb[0].mxu0
      %5810 = vmatprep.mubr.f32.mxu0 0.0
      %5811 = vmatmul.mubr.f32.gmra.mrb[0].mxu0 %v5679
      %v5812 = vpop.f32.mrb[0].mxu0
      %v5813 = vadd.f32 0.0, %v5812
      %v5814 = vpop.f32.mrb[0].mxu0
      %5815 = vmatprep.mubr.f32.mxu0 0.0
      %5816 = vmatmul.mubr.f32.gmra.mrb[0].mxu0 %v5682
      %v5817 = vpop.f32.mrb[0].mxu0
      %v5818 = vadd.f32 0.0, %v5817
      %v5819 = vpop.f32.mrb[0].mxu0
      %5820 = vmatprep.mubr.f32.mxu0 0.0
      %5821 = vmatmul.mubr.f32.gmra.mrb[0].mxu0 %v5685
      %v5822 = vpop.f32.mrb[0].mxu0
      %v5823 = vadd.f32 0.0, %v5822
      %v5824 = vpop.f32.mrb[0].mxu0
      %5825 = vmatprep.mubr.f32.mxu0 0.0
      %5826 = vmatmul.mubr.f32.gmra.mrb[0].mxu0 %v5688
      %v5827 = vpop.f32.mrb[0].mxu0
      %v5828 = vadd.f32 0.0, %v5827
      %v5829 = vpop.f32.mrb[0].mxu0
      %5830 = vmatprep.mubr.f32.mxu0 0.0
      %5831 = vmatmul.mubr.f32.gmra.mrb[0].mxu0 %v5691
      %v5832 = vpop.f32.mrb[0].mxu0
      %v5833 = vadd.f32 0.0, %v5832
      %v5834 = vpop.f32.mrb[0].mxu0
      %5835 = vmatprep.mubr.f32.mxu0 0.0
      %5836 = vmatmul.mubr.f32.gmra.mrb[0].mxu0 %v5694
      %v5837 = vpop.f32.mrb[0].mxu0
      %v5838 = vadd.f32 0.0, %v5837
      %v5839 = vpop.f32.mrb[0].mxu0
      %5840 = vdwg.mxu0
      %v5842 = vrot.slane %v5838, 7
      %v5859 = vrot.slane %v5763, 7
      %v5860 = vrot.slane %v5768, 7
      %v5861 = vsel %vm1042, %v5859, %v5860
      %v5862 = vrot.slane %v5773, 7
      %v5863 = vsel %vm1042, %v5860, %v5862
      %v5864 = vrot.slane %v5778, 7
      %v5865 = vsel %vm1042, %v5862, %v5864
      %v5866 = vrot.slane %v5783, 7
      %v5867 = vsel %vm1042, %v5864, %v5866
      %v5868 = vrot.slane %v5788, 7
      %v5869 = vsel %vm1042, %v5866, %v5868
      %v5870 = vrot.slane %v5793, 7
      %v5871 = vsel %vm1042, %v5868, %v5870
      %v5872 = vrot.slane %v5798, 7
      %v5873 = vsel %vm1042, %v5870, %v5872
      %v5874 = vrot.slane %v5803, 7
      %v5875 = vsel %vm1042, %v5872, %v5874
      %v5876 = vrot.slane %v5808, 7
      %v5877 = vsel %vm1042, %v5874, %v5876
      %v5878 = vrot.slane %v5813, 7
      %v5879 = vsel %vm1042, %v5876, %v5878
      %v5880 = vrot.slane %v5818, 7
      %v5881 = vsel %vm1042, %v5878, %v5880
      %v5882 = vrot.slane %v5823, 7
      %v5883 = vsel %vm1042, %v5880, %v5882
      %v5884 = vrot.slane %v5828, 7
      %v5885 = vsel %vm1042, %v5882, %v5884
      %v5886 = vrot.slane %v5833, 7
      %v5887 = vsel %vm1042, %v5884, %v5886
      %v5888 = vsel %vm1042, %v5886, %v5842
      %v5890 = vsel %vm1042, %v5842, %v5859
      %v5891 = vrot.slane %v5763, 1
      %v5892 = vrot.slane %v5768, 1
      %v5893 = vsel %vm1075, %v5891, %v5892
      %v5894 = vrot.slane %v5773, 1
      %v5895 = vsel %vm1075, %v5892, %v5894
      %v5896 = vrot.slane %v5778, 1
      %v5897 = vsel %vm1075, %v5894, %v5896
      %v5898 = vrot.slane %v5783, 1
      %v5899 = vsel %vm1075, %v5896, %v5898
      %v5900 = vrot.slane %v5788, 1
      %v5901 = vsel %vm1075, %v5898, %v5900
      %v5902 = vrot.slane %v5793, 1
      %v5903 = vsel %vm1075, %v5900, %v5902
      %v5904 = vrot.slane %v5798, 1
      %v5905 = vsel %vm1075, %v5902, %v5904
      %v5906 = vrot.slane %v5803, 1
      %v5907 = vsel %vm1075, %v5904, %v5906
      %v5908 = vrot.slane %v5808, 1
      %v5909 = vsel %vm1075, %v5906, %v5908
      %v5910 = vrot.slane %v5813, 1
      %v5911 = vsel %vm1075, %v5908, %v5910
      %v5912 = vrot.slane %v5818, 1
      %v5913 = vsel %vm1075, %v5910, %v5912
      %v5914 = vrot.slane %v5823, 1
      %v5915 = vsel %vm1075, %v5912, %v5914
      %v5916 = vrot.slane %v5828, 1
      %v5917 = vsel %vm1075, %v5914, %v5916
      %v5918 = vrot.slane %v5833, 1
      %v5919 = vsel %vm1075, %v5916, %v5918
      %v5920 = vrot.slane %v5838, 1
      %v5921 = vsel %vm1075, %v5918, %v5920
      %v5924 = vsel %vm1075, %v5920, %v5891
      %v5925 = vld [vmem:[%s37] sm:$0xff]
      %v5926 = vld [vmem:[%s37 + $0x8] sm:$0xff]
      %v5927 = vld [vmem:[%s37 + $0x10] sm:$0xff]
      %v5928 = vld [vmem:[%s37 + $0x18] sm:$0xff]
      %v5929 = vld [vmem:[%s37 + $0x20] sm:$0xff]
      %v5930 = vld [vmem:[%s37 + $0x28] sm:$0xff]
      %v5931 = vld [vmem:[%s37 + $0x30] sm:$0xff]
      %v5932 = vld [vmem:[%s37 + $0x38] sm:$0xff]
      %s5933 = scalar_lea.vmem %s37, 64
      %v5934 = vld [vmem:[%s5933] sm:$0xff]
      %v5935 = vld [vmem:[%s5933 + $0x8] sm:$0xff]
      %v5936 = vld [vmem:[%s5933 + $0x10] sm:$0xff]
      %v5937 = vld [vmem:[%s5933 + $0x18] sm:$0xff]
      %v5938 = vld [vmem:[%s5933 + $0x20] sm:$0xff]
      %v5939 = vld [vmem:[%s5933 + $0x28] sm:$0xff]
      %v5940 = vld [vmem:[%s5933 + $0x30] sm:$0xff]
      %v5941 = vld [vmem:[%s5933 + $0x38] sm:$0xff]
      %v5942 = vsel %vm1563, %v5763, 0
      %v5944 = vsel %vm1563, %v5768, 0
      %v5946 = vsel %vm1563, %v5773, 0
      %v5948 = vsel %vm1563, %v5778, 0
      %v5950 = vsel %vm1563, %v5783, 0
      %v5952 = vsel %vm1563, %v5788, 0
      %v5954 = vsel %vm1563, %v5793, 0
      %v5956 = vsel %vm1563, %v5798, 0
      %v5958 = vsel %vm1563, %v5803, 0
      %v5960 = vsel %vm1563, %v5808, 0
      %v5962 = vsel %vm1563, %v5813, 0
      %v5964 = vsel %vm1563, %v5818, 0
      %v5966 = vsel %vm1563, %v5823, 0
      %v5968 = vsel %vm1563, %v5828, 0
      %v5970 = vsel %vm1563, %v5833, 0
      %v5972 = vsel %vm1563, %v5838, 0
      %5974 = vmatprep.subr.mxu0 0.0
      %5975 = vmatpush1.msra.mxu0 %v5934
      %5976 = vmatprep.subr.mxu0 0.0
      %5977 = vmatpush1.msra.mxu0 %v5935
      %5978 = vmatprep.subr.mxu0 0.0
      %5979 = vmatpush1.msra.mxu0 %v5936
      %5980 = vmatprep.subr.mxu0 0.0
      %5981 = vmatpush1.msra.mxu0 %v5937
      %5982 = vmatprep.subr.mxu0 0.0
      %5983 = vmatpush1.msra.mxu0 %v5938
      %5984 = vmatprep.subr.mxu0 0.0
      %5985 = vmatpush1.msra.mxu0 %v5939
      %5986 = vmatprep.subr.mxu0 0.0
      %5987 = vmatpush1.msra.mxu0 %v5940
      %5988 = vmatprep.subr.mxu0 0.0
      %5989 = vmatpush1.msra.mxu0 %v5941
      %5990 = vmatprep.subr.mxu0 0.0
      %5991 = vmatpush1.msra.mxu0 0.0
      %5992 = vmatprep.subr.mxu0 0.0
      %5993 = vmatpush1.msra.mxu0 0.0
      %5994 = vmatprep.subr.mxu0 0.0
      %5995 = vmatpush1.msra.mxu0 0.0
      %5996 = vmatprep.subr.mxu0 0.0
      %5997 = vmatpush1.msra.mxu0 0.0
      %5998 = vmatprep.subr.mxu0 0.0
      %5999 = vmatpush1.msra.mxu0 0.0
      %6000 = vmatprep.subr.mxu0 0.0
      %6001 = vmatpush1.msra.mxu0 0.0
      %6002 = vmatprep.subr.mxu0 0.0
      %6003 = vmatpush1.msra.mxu0 0.0
      %6004 = vmatprep.subr.mxu0 0.0
      %6005 = vmatpush1.msra.mxu0 0.0
      %6006 = vmatprep.subr.mxu0 0.0
      %6007 = vmatpush1.msra.mxu0 0.0
      %6008 = vmatprep.subr.mxu0 0.0
      %6009 = vmatpush1.msra.mxu0 0.0
      %6010 = vmatprep.subr.mxu0 0.0
      %6011 = vmatpush1.msra.mxu0 0.0
      %6012 = vmatprep.subr.mxu0 0.0
      %6013 = vmatpush1.msra.mxu0 0.0
      %6014 = vmatprep.subr.mxu0 0.0
      %6015 = vmatpush1.msra.mxu0 0.0
      %6016 = vmatprep.subr.mxu0 0.0
      %6017 = vmatpush1.msra.mxu0 0.0
      %6018 = vmatprep.subr.mxu0 0.0
      %6019 = vmatpush1.msra.mxu0 0.0
      %6020 = vmatprep.subr.mxu0 0.0
      %6021 = vmatpush1.msra.mxu0 0.0
      %6022 = vmatprep.subr.mxu0 0.0
      %6023 = vmatpush1.msra.mxu0 0.0
      %6024 = vmatprep.subr.mxu0 0.0
      %6025 = vmatpush1.msra.mxu0 0.0
      %6026 = vmatprep.subr.mxu0 0.0
      %6027 = vmatpush1.msra.mxu0 0.0
      %6028 = vmatprep.subr.mxu0 0.0
      %6029 = vmatpush1.msra.mxu0 0.0
      %6030 = vmatprep.subr.mxu0 0.0
      %6031 = vmatpush1.msra.mxu0 0.0
      %6032 = vmatprep.subr.mxu0 0.0
      %6033 = vmatpush1.msra.mxu0 0.0
      %6034 = vmatprep.subr.mxu0 0.0
      %6035 = vmatpush1.msra.mxu0 0.0
      %6036 = vmatprep.subr.mxu0 0.0
      %6037 = vmatpush1.msra.mxu0 0.0
      %6038 = vmatprep.mubr.f32.mxu0 0.0
      %6039 = vmatmul.mubr.f32.gmra.mrb[0].mxu0 %v5942
      %v6040 = vpop.f32.mrb[0].mxu0
      %v6041 = vadd.f32 0.0, %v6040
      %v6042 = vpop.f32.mrb[0].mxu0
      %6043 = vmatprep.mubr.f32.mxu0 0.0
      %6044 = vmatmul.mubr.f32.gmra.mrb[0].mxu0 %v5944
      %v6045 = vpop.f32.mrb[0].mxu0
      %v6046 = vadd.f32 0.0, %v6045
      %v6047 = vpop.f32.mrb[0].mxu0
      %6048 = vmatprep.mubr.f32.mxu0 0.0
      %6049 = vmatmul.mubr.f32.gmra.mrb[0].mxu0 %v5946
      %v6050 = vpop.f32.mrb[0].mxu0
      %v6051 = vadd.f32 0.0, %v6050
      %v6052 = vpop.f32.mrb[0].mxu0
      %6053 = vmatprep.mubr.f32.mxu0 0.0
      %6054 = vmatmul.mubr.f32.gmra.mrb[0].mxu0 %v5948
      %v6055 = vpop.f32.mrb[0].mxu0
      %v6056 = vadd.f32 0.0, %v6055
      %v6057 = vpop.f32.mrb[0].mxu0
      %6058 = vmatprep.mubr.f32.mxu0 0.0
      %6059 = vmatmul.mubr.f32.gmra.mrb[0].mxu0 %v5950
      %v6060 = vpop.f32.mrb[0].mxu0
      %v6061 = vadd.f32 0.0, %v6060
      %v6062 = vpop.f32.mrb[0].mxu0
      %6063 = vmatprep.mubr.f32.mxu0 0.0
      %6064 = vmatmul.mubr.f32.gmra.mrb[0].mxu0 %v5952
      %v6065 = vpop.f32.mrb[0].mxu0
      %v6066 = vadd.f32 0.0, %v6065
      %v6067 = vpop.f32.mrb[0].mxu0
      %6068 = vmatprep.mubr.f32.mxu0 0.0
      %6069 = vmatmul.mubr.f32.gmra.mrb[0].mxu0 %v5954
      %v6070 = vpop.f32.mrb[0].mxu0
      %v6071 = vadd.f32 0.0, %v6070
      %v6072 = vpop.f32.mrb[0].mxu0
      %6073 = vmatprep.mubr.f32.mxu0 0.0
      %6074 = vmatmul.mubr.f32.gmra.mrb[0].mxu0 %v5956
      %v6075 = vpop.f32.mrb[0].mxu0
      %v6076 = vadd.f32 0.0, %v6075
      %v6077 = vpop.f32.mrb[0].mxu0
      %6078 = vmatprep.mubr.f32.mxu0 0.0
      %6079 = vmatmul.mubr.f32.gmra.mrb[0].mxu0 %v5958
      %v6080 = vpop.f32.mrb[0].mxu0
      %v6081 = vadd.f32 0.0, %v6080
      %v6082 = vpop.f32.mrb[0].mxu0
      %6083 = vmatprep.mubr.f32.mxu0 0.0
      %6084 = vmatmul.mubr.f32.gmra.mrb[0].mxu0 %v5960
      %v6085 = vpop.f32.mrb[0].mxu0
      %v6086 = vadd.f32 0.0, %v6085
      %v6087 = vpop.f32.mrb[0].mxu0
      %6088 = vmatprep.mubr.f32.mxu0 0.0
      %6089 = vmatmul.mubr.f32.gmra.mrb[0].mxu0 %v5962
      %v6090 = vpop.f32.mrb[0].mxu0
      %v6091 = vadd.f32 0.0, %v6090
      %v6092 = vpop.f32.mrb[0].mxu0
      %6093 = vmatprep.mubr.f32.mxu0 0.0
      %6094 = vmatmul.mubr.f32.gmra.mrb[0].mxu0 %v5964
      %v6095 = vpop.f32.mrb[0].mxu0
      %v6096 = vadd.f32 0.0, %v6095
      %v6097 = vpop.f32.mrb[0].mxu0
      %6098 = vmatprep.mubr.f32.mxu0 0.0
      %6099 = vmatmul.mubr.f32.gmra.mrb[0].mxu0 %v5966
      %v6100 = vpop.f32.mrb[0].mxu0
      %v6101 = vadd.f32 0.0, %v6100
      %v6102 = vpop.f32.mrb[0].mxu0
      %6103 = vmatprep.mubr.f32.mxu0 0.0
      %6104 = vmatmul.mubr.f32.gmra.mrb[0].mxu0 %v5968
      %v6105 = vpop.f32.mrb[0].mxu0
      %v6106 = vadd.f32 0.0, %v6105
      %v6107 = vpop.f32.mrb[0].mxu0
      %6108 = vmatprep.mubr.f32.mxu0 0.0
      %6109 = vmatmul.mubr.f32.gmra.mrb[0].mxu0 %v5970
      %v6110 = vpop.f32.mrb[0].mxu0
      %v6111 = vadd.f32 0.0, %v6110
      %v6112 = vpop.f32.mrb[0].mxu0
      %6113 = vmatprep.mubr.f32.mxu0 0.0
      %6114 = vmatmul.mubr.f32.gmra.mrb[0].mxu0 %v5972
      %v6115 = vpop.f32.mrb[0].mxu0
      %v6116 = vadd.f32 0.0, %v6115
      %v6117 = vpop.f32.mrb[0].mxu0
      %6118 = vdwg.mxu0
      %v6120 = vsel %vm1563, %v5890, 0
      %v6122 = vsel %vm1563, %v5861, 0
      %v6124 = vsel %vm1563, %v5863, 0
      %v6126 = vsel %vm1563, %v5865, 0
      %v6128 = vsel %vm1563, %v5867, 0
      %v6130 = vsel %vm1563, %v5869, 0
      %v6132 = vsel %vm1563, %v5871, 0
      %v6134 = vsel %vm1563, %v5873, 0
      %v6136 = vsel %vm1563, %v5875, 0
      %v6138 = vsel %vm1563, %v5877, 0
      %v6140 = vsel %vm1563, %v5879, 0
      %v6142 = vsel %vm1563, %v5881, 0
      %v6144 = vsel %vm1563, %v5883, 0
      %v6146 = vsel %vm1563, %v5885, 0
      %v6148 = vsel %vm1563, %v5887, 0
      %v6150 = vsel %vm1563, %v5888, 0
      %6152 = vmatprep.subr.mxu0 0.0
      %6153 = vmatpush1.msra.mxu0 %v5925
      %6154 = vmatprep.subr.mxu0 0.0
      %6155 = vmatpush1.msra.mxu0 %v5926
      %6156 = vmatprep.subr.mxu0 0.0
      %6157 = vmatpush1.msra.mxu0 %v5927
      %6158 = vmatprep.subr.mxu0 0.0
      %6159 = vmatpush1.msra.mxu0 %v5928
      %6160 = vmatprep.subr.mxu0 0.0
      %6161 = vmatpush1.msra.mxu0 %v5929
      %6162 = vmatprep.subr.mxu0 0.0
      %6163 = vmatpush1.msra.mxu0 %v5930
      %6164 = vmatprep.subr.mxu0 0.0
      %6165 = vmatpush1.msra.mxu0 %v5931
      %6166 = vmatprep.subr.mxu0 0.0
      %6167 = vmatpush1.msra.mxu0 %v5932
      %6168 = vmatprep.subr.mxu0 0.0
      %6169 = vmatpush1.msra.mxu0 0.0
      %6170 = vmatprep.subr.mxu0 0.0
      %6171 = vmatpush1.msra.mxu0 0.0
      %6172 = vmatprep.subr.mxu0 0.0
      %6173 = vmatpush1.msra.mxu0 0.0
      %6174 = vmatprep.subr.mxu0 0.0
      %6175 = vmatpush1.msra.mxu0 0.0
      %6176 = vmatprep.subr.mxu0 0.0
      %6177 = vmatpush1.msra.mxu0 0.0
      %6178 = vmatprep.subr.mxu0 0.0
      %6179 = vmatpush1.msra.mxu0 0.0
      %6180 = vmatprep.subr.mxu0 0.0
      %6181 = vmatpush1.msra.mxu0 0.0
      %6182 = vmatprep.subr.mxu0 0.0
      %6183 = vmatpush1.msra.mxu0 0.0
      %6184 = vmatprep.subr.mxu0 0.0
      %6185 = vmatpush1.msra.mxu0 0.0
      %6186 = vmatprep.subr.mxu0 0.0
      %6187 = vmatpush1.msra.mxu0 0.0
      %6188 = vmatprep.subr.mxu0 0.0
      %6189 = vmatpush1.msra.mxu0 0.0
      %6190 = vmatprep.subr.mxu0 0.0
      %6191 = vmatpush1.msra.mxu0 0.0
      %6192 = vmatprep.subr.mxu0 0.0
      %6193 = vmatpush1.msra.mxu0 0.0
      %6194 = vmatprep.subr.mxu0 0.0
      %6195 = vmatpush1.msra.mxu0 0.0
      %6196 = vmatprep.subr.mxu0 0.0
      %6197 = vmatpush1.msra.mxu0 0.0
      %6198 = vmatprep.subr.mxu0 0.0
      %6199 = vmatpush1.msra.mxu0 0.0
      %6200 = vmatprep.subr.mxu0 0.0
      %6201 = vmatpush1.msra.mxu0 0.0
      %6202 = vmatprep.subr.mxu0 0.0
      %6203 = vmatpush1.msra.mxu0 0.0
      %6204 = vmatprep.subr.mxu0 0.0
      %6205 = vmatpush1.msra.mxu0 0.0
      %6206 = vmatprep.subr.mxu0 0.0
      %6207 = vmatpush1.msra.mxu0 0.0
      %6208 = vmatprep.subr.mxu0 0.0
      %6209 = vmatpush1.msra.mxu0 0.0
      %6210 = vmatprep.subr.mxu0 0.0
      %6211 = vmatpush1.msra.mxu0 0.0
      %6212 = vmatprep.subr.mxu0 0.0
      %6213 = vmatpush1.msra.mxu0 0.0
      %6214 = vmatprep.subr.mxu0 0.0
      %6215 = vmatpush1.msra.mxu0 0.0
      %6216 = vmatprep.mubr.f32.mxu0 0.0
      %6217 = vmatmul.mubr.f32.gmra.mrb[0].mxu0 %v6120
      %v6218 = vpop.f32.mrb[0].mxu0
      %v6219 = vadd.f32 %v6041, %v6218
      %v6220 = vpop.f32.mrb[0].mxu0
      %6221 = vmatprep.mubr.f32.mxu0 0.0
      %6222 = vmatmul.mubr.f32.gmra.mrb[0].mxu0 %v6122
      %v6223 = vpop.f32.mrb[0].mxu0
      %v6224 = vadd.f32 %v6046, %v6223
      %v6225 = vpop.f32.mrb[0].mxu0
      %6226 = vmatprep.mubr.f32.mxu0 0.0
      %6227 = vmatmul.mubr.f32.gmra.mrb[0].mxu0 %v6124
      %v6228 = vpop.f32.mrb[0].mxu0
      %v6229 = vadd.f32 %v6051, %v6228
      %v6230 = vpop.f32.mrb[0].mxu0
      %6231 = vmatprep.mubr.f32.mxu0 0.0
      %6232 = vmatmul.mubr.f32.gmra.mrb[0].mxu0 %v6126
      %v6233 = vpop.f32.mrb[0].mxu0
      %v6234 = vadd.f32 %v6056, %v6233
      %v6235 = vpop.f32.mrb[0].mxu0
      %6236 = vmatprep.mubr.f32.mxu0 0.0
      %6237 = vmatmul.mubr.f32.gmra.mrb[0].mxu0 %v6128
      %v6238 = vpop.f32.mrb[0].mxu0
      %v6239 = vadd.f32 %v6061, %v6238
      %v6240 = vpop.f32.mrb[0].mxu0
      %6241 = vmatprep.mubr.f32.mxu0 0.0
      %6242 = vmatmul.mubr.f32.gmra.mrb[0].mxu0 %v6130
      %v6243 = vpop.f32.mrb[0].mxu0
      %v6244 = vadd.f32 %v6066, %v6243
      %v6245 = vpop.f32.mrb[0].mxu0
      %6246 = vmatprep.mubr.f32.mxu0 0.0
      %6247 = vmatmul.mubr.f32.gmra.mrb[0].mxu0 %v6132
      %v6248 = vpop.f32.mrb[0].mxu0
      %v6249 = vadd.f32 %v6071, %v6248
      %v6250 = vpop.f32.mrb[0].mxu0
      %6251 = vmatprep.mubr.f32.mxu0 0.0
      %6252 = vmatmul.mubr.f32.gmra.mrb[0].mxu0 %v6134
      %v6253 = vpop.f32.mrb[0].mxu0
      %v6254 = vadd.f32 %v6076, %v6253
      %v6255 = vpop.f32.mrb[0].mxu0
      %6256 = vmatprep.mubr.f32.mxu0 0.0
      %6257 = vmatmul.mubr.f32.gmra.mrb[0].mxu0 %v6136
      %v6258 = vpop.f32.mrb[0].mxu0
      %v6259 = vadd.f32 %v6081, %v6258
      %v6260 = vpop.f32.mrb[0].mxu0
      %6261 = vmatprep.mubr.f32.mxu0 0.0
      %6262 = vmatmul.mubr.f32.gmra.mrb[0].mxu0 %v6138
      %v6263 = vpop.f32.mrb[0].mxu0
      %v6264 = vadd.f32 %v6086, %v6263
      %v6265 = vpop.f32.mrb[0].mxu0
      %6266 = vmatprep.mubr.f32.mxu0 0.0
      %6267 = vmatmul.mubr.f32.gmra.mrb[0].mxu0 %v6140
      %v6268 = vpop.f32.mrb[0].mxu0
      %v6269 = vadd.f32 %v6091, %v6268
      %v6270 = vpop.f32.mrb[0].mxu0
      %6271 = vmatprep.mubr.f32.mxu0 0.0
      %6272 = vmatmul.mubr.f32.gmra.mrb[0].mxu0 %v6142
      %v6273 = vpop.f32.mrb[0].mxu0
      %v6274 = vadd.f32 %v6096, %v6273
      %v6275 = vpop.f32.mrb[0].mxu0
      %6276 = vmatprep.mubr.f32.mxu0 0.0
      %6277 = vmatmul.mubr.f32.gmra.mrb[0].mxu0 %v6144
      %v6278 = vpop.f32.mrb[0].mxu0
      %v6279 = vadd.f32 %v6101, %v6278
      %v6280 = vpop.f32.mrb[0].mxu0
      %6281 = vmatprep.mubr.f32.mxu0 0.0
      %6282 = vmatmul.mubr.f32.gmra.mrb[0].mxu0 %v6146
      %v6283 = vpop.f32.mrb[0].mxu0
      %v6284 = vadd.f32 %v6106, %v6283
      %v6285 = vpop.f32.mrb[0].mxu0
      %6286 = vmatprep.mubr.f32.mxu0 0.0
      %6287 = vmatmul.mubr.f32.gmra.mrb[0].mxu0 %v6148
      %v6288 = vpop.f32.mrb[0].mxu0
      %v6289 = vadd.f32 %v6111, %v6288
      %v6290 = vpop.f32.mrb[0].mxu0
      %6291 = vmatprep.mubr.f32.mxu0 0.0
      %6292 = vmatmul.mubr.f32.gmra.mrb[0].mxu0 %v6150
      %v6293 = vpop.f32.mrb[0].mxu0
      %v6294 = vadd.f32 %v6116, %v6293
      %v6295 = vpop.f32.mrb[0].mxu0
      %6296 = vdwg.mxu0
      %s6297 = scalar_lea.vmem %s37, 128
      %v6298 = vld [vmem:[%s6297] sm:$0xff]
      %v6299 = vld [vmem:[%s6297 + $0x8] sm:$0xff]
      %v6300 = vld [vmem:[%s6297 + $0x10] sm:$0xff]
      %v6301 = vld [vmem:[%s6297 + $0x18] sm:$0xff]
      %v6302 = vld [vmem:[%s6297 + $0x20] sm:$0xff]
      %v6303 = vld [vmem:[%s6297 + $0x28] sm:$0xff]
      %v6304 = vld [vmem:[%s6297 + $0x30] sm:$0xff]
      %v6305 = vld [vmem:[%s6297 + $0x38] sm:$0xff]
      %v6306 = vsel %vm1563, %v5893, 0
      %v6308 = vsel %vm1563, %v5895, 0
      %v6310 = vsel %vm1563, %v5897, 0
      %v6312 = vsel %vm1563, %v5899, 0
      %v6314 = vsel %vm1563, %v5901, 0
      %v6316 = vsel %vm1563, %v5903, 0
      %v6318 = vsel %vm1563, %v5905, 0
      %v6320 = vsel %vm1563, %v5907, 0
      %v6322 = vsel %vm1563, %v5909, 0
      %v6324 = vsel %vm1563, %v5911, 0
      %v6326 = vsel %vm1563, %v5913, 0
      %v6328 = vsel %vm1563, %v5915, 0
      %v6330 = vsel %vm1563, %v5917, 0
      %v6332 = vsel %vm1563, %v5919, 0
      %v6334 = vsel %vm1563, %v5921, 0
      %v6337 = vsel %vm1563, %v5924, 0
      %6339 = vmatprep.subr.mxu0 0.0
      %6340 = vmatpush1.msra.mxu0 %v6298
      %6341 = vmatprep.subr.mxu0 0.0
      %6342 = vmatpush1.msra.mxu0 %v6299
      %6343 = vmatprep.subr.mxu0 0.0
      %6344 = vmatpush1.msra.mxu0 %v6300
      %6345 = vmatprep.subr.mxu0 0.0
      %6346 = vmatpush1.msra.mxu0 %v6301
      %6347 = vmatprep.subr.mxu0 0.0
      %6348 = vmatpush1.msra.mxu0 %v6302
      %6349 = vmatprep.subr.mxu0 0.0
      %6350 = vmatpush1.msra.mxu0 %v6303
      %6351 = vmatprep.subr.mxu0 0.0
      %6352 = vmatpush1.msra.mxu0 %v6304
      %6353 = vmatprep.subr.mxu0 0.0
      %6354 = vmatpush1.msra.mxu0 %v6305
      %6355 = vmatprep.subr.mxu0 0.0
      %6356 = vmatpush1.msra.mxu0 0.0
      %6357 = vmatprep.subr.mxu0 0.0
      %6358 = vmatpush1.msra.mxu0 0.0
      %6359 = vmatprep.subr.mxu0 0.0
      %6360 = vmatpush1.msra.mxu0 0.0
      %6361 = vmatprep.subr.mxu0 0.0
      %6362 = vmatpush1.msra.mxu0 0.0
      %6363 = vmatprep.subr.mxu0 0.0
      %6364 = vmatpush1.msra.mxu0 0.0
      %6365 = vmatprep.subr.mxu0 0.0
      %6366 = vmatpush1.msra.mxu0 0.0
      %6367 = vmatprep.subr.mxu0 0.0
      %6368 = vmatpush1.msra.mxu0 0.0
      %6369 = vmatprep.subr.mxu0 0.0
      %6370 = vmatpush1.msra.mxu0 0.0
      %6371 = vmatprep.subr.mxu0 0.0
      %6372 = vmatpush1.msra.mxu0 0.0
      %6373 = vmatprep.subr.mxu0 0.0
      %6374 = vmatpush1.msra.mxu0 0.0
      %6375 = vmatprep.subr.mxu0 0.0
      %6376 = vmatpush1.msra.mxu0 0.0
      %6377 = vmatprep.subr.mxu0 0.0
      %6378 = vmatpush1.msra.mxu0 0.0
      %6379 = vmatprep.subr.mxu0 0.0
      %6380 = vmatpush1.msra.mxu0 0.0
      %6381 = vmatprep.subr.mxu0 0.0
      %6382 = vmatpush1.msra.mxu0 0.0
      %6383 = vmatprep.subr.mxu0 0.0
      %6384 = vmatpush1.msra.mxu0 0.0
      %6385 = vmatprep.subr.mxu0 0.0
      %6386 = vmatpush1.msra.mxu0 0.0
      %6387 = vmatprep.subr.mxu0 0.0
      %6388 = vmatpush1.msra.mxu0 0.0
      %6389 = vmatprep.subr.mxu0 0.0
      %6390 = vmatpush1.msra.mxu0 0.0
      %6391 = vmatprep.subr.mxu0 0.0
      %6392 = vmatpush1.msra.mxu0 0.0
      %6393 = vmatprep.subr.mxu0 0.0
      %6394 = vmatpush1.msra.mxu0 0.0
      %6395 = vmatprep.subr.mxu0 0.0
      %6396 = vmatpush1.msra.mxu0 0.0
      %6397 = vmatprep.subr.mxu0 0.0
      %6398 = vmatpush1.msra.mxu0 0.0
      %6399 = vmatprep.subr.mxu0 0.0
      %6400 = vmatpush1.msra.mxu0 0.0
      %6401 = vmatprep.subr.mxu0 0.0
      %6402 = vmatpush1.msra.mxu0 0.0
      %6403 = vmatprep.mubr.f32.mxu0 0.0
      %6404 = vmatmul.mubr.f32.gmra.mrb[0].mxu0 %v6306
      %v6405 = vpop.f32.mrb[0].mxu0
      %v6406 = vadd.f32 0.0, %v6405
      %v6407 = vpop.f32.mrb[0].mxu0
      %6408 = vmatprep.mubr.f32.mxu0 0.0
      %6409 = vmatmul.mubr.f32.gmra.mrb[0].mxu0 %v6308
      %v6410 = vpop.f32.mrb[0].mxu0
      %v6411 = vadd.f32 0.0, %v6410
      %v6412 = vpop.f32.mrb[0].mxu0
      %6413 = vmatprep.mubr.f32.mxu0 0.0
      %6414 = vmatmul.mubr.f32.gmra.mrb[0].mxu0 %v6310
      %v6415 = vpop.f32.mrb[0].mxu0
      %v6416 = vadd.f32 0.0, %v6415
      %v6417 = vpop.f32.mrb[0].mxu0
      %6418 = vmatprep.mubr.f32.mxu0 0.0
      %6419 = vmatmul.mubr.f32.gmra.mrb[0].mxu0 %v6312
      %v6420 = vpop.f32.mrb[0].mxu0
      %v6421 = vadd.f32 0.0, %v6420
      %v6422 = vpop.f32.mrb[0].mxu0
      %6423 = vmatprep.mubr.f32.mxu0 0.0
      %6424 = vmatmul.mubr.f32.gmra.mrb[0].mxu0 %v6314
      %v6425 = vpop.f32.mrb[0].mxu0
      %v6426 = vadd.f32 0.0, %v6425
      %v6427 = vpop.f32.mrb[0].mxu0
      %6428 = vmatprep.mubr.f32.mxu0 0.0
      %6429 = vmatmul.mubr.f32.gmra.mrb[0].mxu0 %v6316
      %v6430 = vpop.f32.mrb[0].mxu0
      %v6431 = vadd.f32 0.0, %v6430
      %v6432 = vpop.f32.mrb[0].mxu0
      %6433 = vmatprep.mubr.f32.mxu0 0.0
      %6434 = vmatmul.mubr.f32.gmra.mrb[0].mxu0 %v6318
      %v6435 = vpop.f32.mrb[0].mxu0
      %v6436 = vadd.f32 0.0, %v6435
      %v6437 = vpop.f32.mrb[0].mxu0
      %6438 = vmatprep.mubr.f32.mxu0 0.0
      %6439 = vmatmul.mubr.f32.gmra.mrb[0].mxu0 %v6320
      %v6440 = vpop.f32.mrb[0].mxu0
      %v6441 = vadd.f32 0.0, %v6440
      %v6442 = vpop.f32.mrb[0].mxu0
      %6443 = vmatprep.mubr.f32.mxu0 0.0
      %6444 = vmatmul.mubr.f32.gmra.mrb[0].mxu0 %v6322
      %v6445 = vpop.f32.mrb[0].mxu0
      %v6446 = vadd.f32 0.0, %v6445
      %v6447 = vpop.f32.mrb[0].mxu0
      %6448 = vmatprep.mubr.f32.mxu0 0.0
      %6449 = vmatmul.mubr.f32.gmra.mrb[0].mxu0 %v6324
      %v6450 = vpop.f32.mrb[0].mxu0
      %v6451 = vadd.f32 0.0, %v6450
      %v6452 = vpop.f32.mrb[0].mxu0
      %6453 = vmatprep.mubr.f32.mxu0 0.0
      %6454 = vmatmul.mubr.f32.gmra.mrb[0].mxu0 %v6326
      %v6455 = vpop.f32.mrb[0].mxu0
      %v6456 = vadd.f32 0.0, %v6455
      %v6457 = vpop.f32.mrb[0].mxu0
      %6458 = vmatprep.mubr.f32.mxu0 0.0
      %6459 = vmatmul.mubr.f32.gmra.mrb[0].mxu0 %v6328
      %v6460 = vpop.f32.mrb[0].mxu0
      %v6461 = vadd.f32 0.0, %v6460
      %v6462 = vpop.f32.mrb[0].mxu0
      %6463 = vmatprep.mubr.f32.mxu0 0.0
      %6464 = vmatmul.mubr.f32.gmra.mrb[0].mxu0 %v6330
      %v6465 = vpop.f32.mrb[0].mxu0
      %v6466 = vadd.f32 0.0, %v6465
      %v6467 = vpop.f32.mrb[0].mxu0
      %6468 = vmatprep.mubr.f32.mxu0 0.0
      %6469 = vmatmul.mubr.f32.gmra.mrb[0].mxu0 %v6332
      %v6470 = vpop.f32.mrb[0].mxu0
      %v6471 = vadd.f32 0.0, %v6470
      %v6472 = vpop.f32.mrb[0].mxu0
      %6473 = vmatprep.mubr.f32.mxu0 0.0
      %6474 = vmatmul.mubr.f32.gmra.mrb[0].mxu0 %v6334
      %v6475 = vpop.f32.mrb[0].mxu0
      %v6476 = vadd.f32 0.0, %v6475
      %v6477 = vpop.f32.mrb[0].mxu0
      %6478 = vmatprep.mubr.f32.mxu0 0.0
      %6479 = vmatmul.mubr.f32.gmra.mrb[0].mxu0 %v6337
      %v6480 = vpop.f32.mrb[0].mxu0
      %v6481 = vadd.f32 0.0, %v6480
      %v6482 = vpop.f32.mrb[0].mxu0
      %6483 = vdwg.mxu0
      %v6484 = vadd.f32 %v6219, %v6406
      %v6485 = vadd.f32 %v6224, %v6411
      %v6486 = vadd.f32 %v6229, %v6416
      %v6487 = vadd.f32 %v6234, %v6421
      %v6488 = vadd.f32 %v6239, %v6426
      %v6489 = vadd.f32 %v6244, %v6431
      %v6490 = vadd.f32 %v6249, %v6436
      %v6491 = vadd.f32 %v6254, %v6441
      %v6492 = vadd.f32 %v6259, %v6446
      %v6493 = vadd.f32 %v6264, %v6451
      %v6494 = vadd.f32 %v6269, %v6456
      %v6495 = vadd.f32 %v6274, %v6461
      %v6496 = vadd.f32 %v6279, %v6466
      %v6497 = vadd.f32 %v6284, %v6471
      %v6498 = vadd.f32 %v6289, %v6476
      %v6499 = vadd.f32 %v6294, %v6481
      %v6500 = vld [vmem:[#allocation4] sm:$0x1]
      %v6502 = vlaneseq
      %v6503 = vshrl.u32 %v6502, 7
      %v6504 = vsub.s32 0, %v6503
      %v6505 = vrot.slane %v6500, %v6504
      %v6507 = vadd.f32 %v6484, %v6505
      %v6508 = vadd.f32 %v6485, %v6505
      %v6509 = vadd.f32 %v6486, %v6505
      %v6510 = vadd.f32 %v6487, %v6505
      %v6511 = vadd.f32 %v6488, %v6505
      %v6512 = vadd.f32 %v6489, %v6505
      %v6513 = vadd.f32 %v6490, %v6505
      %v6514 = vadd.f32 %v6491, %v6505
      %v6515 = vadd.f32 %v6492, %v6505
      %v6516 = vadd.f32 %v6493, %v6505
      %v6517 = vadd.f32 %v6494, %v6505
      %v6518 = vadd.f32 %v6495, %v6505
      %v6519 = vadd.f32 %v6496, %v6505
      %v6520 = vadd.f32 %v6497, %v6505
      %v6521 = vadd.f32 %v6498, %v6505
      %v6522 = vadd.f32 %v6499, %v6505
      %v6523 = vmax.f32 %v6507, 0.0
      %v6524 = vmax.f32 %v6508, 0.0
      %v6525 = vmax.f32 %v6509, 0.0
      %v6526 = vmax.f32 %v6510, 0.0
      %v6527 = vmax.f32 %v6511, 0.0
      %v6528 = vmax.f32 %v6512, 0.0
      %v6529 = vmax.f32 %v6513, 0.0
      %v6530 = vmax.f32 %v6514, 0.0
      %v6531 = vmax.f32 %v6515, 0.0
      %v6532 = vmax.f32 %v6516, 0.0
      %v6533 = vmax.f32 %v6517, 0.0
      %v6534 = vmax.f32 %v6518, 0.0
      %v6535 = vmax.f32 %v6519, 0.0
      %v6536 = vmax.f32 %v6520, 0.0
      %v6537 = vmax.f32 %v6521, 0.0
      %v6538 = vmax.f32 %v6522, 0.0
      %6539 = vst.msk [vmem:[%s1002] sm:$0xff] %vm4065, %v6523
      %6540 = vst.msk [vmem:[%s1002 + $0x8] sm:$0xff] %vm4065, %v6524
      %6541 = vst.msk [vmem:[%s1002 + $0x10] sm:$0xff] %vm4065, %v6525
      %6542 = vst.msk [vmem:[%s1002 + $0x18] sm:$0xff] %vm4065, %v6526
      %6543 = vst.msk [vmem:[%s1002 + $0x20] sm:$0xff] %vm4065, %v6527
      %6544 = vst.msk [vmem:[%s1002 + $0x28] sm:$0xff] %vm4065, %v6528
      %6545 = vst.msk [vmem:[%s1002 + $0x30] sm:$0xff] %vm4065, %v6529
      %6546 = vst.msk [vmem:[%s1002 + $0x38] sm:$0xff] %vm4065, %v6530
      %6547 = vst.msk [vmem:[%s1002 + $0x40] sm:$0xff] %vm4065, %v6531
      %6548 = vst.msk [vmem:[%s1002 + $0x48] sm:$0xff] %vm4065, %v6532
      %6549 = vst.msk [vmem:[%s1002 + $0x50] sm:$0xff] %vm4065, %v6533
      %6550 = vst.msk [vmem:[%s1002 + $0x58] sm:$0xff] %vm4065, %v6534
      %6551 = vst.msk [vmem:[%s1002 + $0x60] sm:$0xff] %vm4065, %v6535
      %6552 = vst.msk [vmem:[%s1002 + $0x68] sm:$0xff] %vm4065, %v6536
      %6553 = vst.msk [vmem:[%s1002 + $0x70] sm:$0xff] %vm4065, %v6537
      %6554 = vst.msk [vmem:[%s1002 + $0x78] sm:$0xff] %vm4065, %v6538
      %v6555 = vld [vmem:[%s41] sm:$0xff]
      %v6556 = vld [vmem:[%s41 + $0x8] sm:$0xff]
      %v6557 = vld [vmem:[%s41 + $0x10] sm:$0xff]
      %v6558 = vld [vmem:[%s41 + $0x18] sm:$0xff]
      %v6559 = vld [vmem:[%s41 + $0x20] sm:$0xff]
      %v6560 = vld [vmem:[%s41 + $0x28] sm:$0xff]
      %v6561 = vld [vmem:[%s41 + $0x30] sm:$0xff]
      %v6562 = vld [vmem:[%s41 + $0x38] sm:$0xff]
      %s6563 = scalar_lea.vmem %s41, 64
      %v6564 = vld [vmem:[%s6563] sm:$0xff]
      %v6565 = vld [vmem:[%s6563 + $0x8] sm:$0xff]
      %v6566 = vld [vmem:[%s6563 + $0x10] sm:$0xff]
      %v6567 = vld [vmem:[%s6563 + $0x18] sm:$0xff]
      %v6568 = vld [vmem:[%s6563 + $0x20] sm:$0xff]
      %v6569 = vld [vmem:[%s6563 + $0x28] sm:$0xff]
      %v6570 = vld [vmem:[%s6563 + $0x30] sm:$0xff]
      %v6571 = vld [vmem:[%s6563 + $0x38] sm:$0xff]
      %6572 = vmatprep.subr.mxu0 0.0
      %6573 = vmatpush1.msra.mxu0 %v6564
      %6574 = vmatprep.subr.mxu0 0.0
      %6575 = vmatpush1.msra.mxu0 %v6565
      %6576 = vmatprep.subr.mxu0 0.0
      %6577 = vmatpush1.msra.mxu0 %v6566
      %6578 = vmatprep.subr.mxu0 0.0
      %6579 = vmatpush1.msra.mxu0 %v6567
      %6580 = vmatprep.subr.mxu0 0.0
      %6581 = vmatpush1.msra.mxu0 %v6568
      %6582 = vmatprep.subr.mxu0 0.0
      %6583 = vmatpush1.msra.mxu0 %v6569
      %6584 = vmatprep.subr.mxu0 0.0
      %6585 = vmatpush1.msra.mxu0 %v6570
      %6586 = vmatprep.subr.mxu0 0.0
      %6587 = vmatpush1.msra.mxu0 %v6571
      %6588 = vmatprep.subr.mxu0 0.0
      %6589 = vmatpush1.msra.mxu0 0.0
      %6590 = vmatprep.subr.mxu0 0.0
      %6591 = vmatpush1.msra.mxu0 0.0
      %6592 = vmatprep.subr.mxu0 0.0
      %6593 = vmatpush1.msra.mxu0 0.0
      %6594 = vmatprep.subr.mxu0 0.0
      %6595 = vmatpush1.msra.mxu0 0.0
      %6596 = vmatprep.subr.mxu0 0.0
      %6597 = vmatpush1.msra.mxu0 0.0
      %6598 = vmatprep.subr.mxu0 0.0
      %6599 = vmatpush1.msra.mxu0 0.0
      %6600 = vmatprep.subr.mxu0 0.0
      %6601 = vmatpush1.msra.mxu0 0.0
      %6602 = vmatprep.subr.mxu0 0.0
      %6603 = vmatpush1.msra.mxu0 0.0
      %6604 = vmatprep.subr.mxu0 0.0
      %6605 = vmatpush1.msra.mxu0 0.0
      %6606 = vmatprep.subr.mxu0 0.0
      %6607 = vmatpush1.msra.mxu0 0.0
      %6608 = vmatprep.subr.mxu0 0.0
      %6609 = vmatpush1.msra.mxu0 0.0
      %6610 = vmatprep.subr.mxu0 0.0
      %6611 = vmatpush1.msra.mxu0 0.0
      %6612 = vmatprep.subr.mxu0 0.0
      %6613 = vmatpush1.msra.mxu0 0.0
      %6614 = vmatprep.subr.mxu0 0.0
      %6615 = vmatpush1.msra.mxu0 0.0
      %6616 = vmatprep.subr.mxu0 0.0
      %6617 = vmatpush1.msra.mxu0 0.0
      %6618 = vmatprep.subr.mxu0 0.0
      %6619 = vmatpush1.msra.mxu0 0.0
      %6620 = vmatprep.subr.mxu0 0.0
      %6621 = vmatpush1.msra.mxu0 0.0
      %6622 = vmatprep.subr.mxu0 0.0
      %6623 = vmatpush1.msra.mxu0 0.0
      %6624 = vmatprep.subr.mxu0 0.0
      %6625 = vmatpush1.msra.mxu0 0.0
      %6626 = vmatprep.subr.mxu0 0.0
      %6627 = vmatpush1.msra.mxu0 0.0
      %6628 = vmatprep.subr.mxu0 0.0
      %6629 = vmatpush1.msra.mxu0 0.0
      %6630 = vmatprep.subr.mxu0 0.0
      %6631 = vmatpush1.msra.mxu0 0.0
      %6632 = vmatprep.subr.mxu0 0.0
      %6633 = vmatpush1.msra.mxu0 0.0
      %6634 = vmatprep.subr.mxu0 0.0
      %6635 = vmatpush1.msra.mxu0 0.0
      %6636 = vmatprep.mubr.f32.mxu0 0.0
      %6637 = vmatmul.mubr.f32.gmra.mrb[0].mxu0 %v5942
      %v6638 = vpop.f32.mrb[0].mxu0
      %v6639 = vadd.f32 0.0, %v6638
      %v6640 = vpop.f32.mrb[0].mxu0
      %6641 = vmatprep.mubr.f32.mxu0 0.0
      %6642 = vmatmul.mubr.f32.gmra.mrb[0].mxu0 %v5944
      %v6643 = vpop.f32.mrb[0].mxu0
      %v6644 = vadd.f32 0.0, %v6643
      %v6645 = vpop.f32.mrb[0].mxu0
      %6646 = vmatprep.mubr.f32.mxu0 0.0
      %6647 = vmatmul.mubr.f32.gmra.mrb[0].mxu0 %v5946
      %v6648 = vpop.f32.mrb[0].mxu0
      %v6649 = vadd.f32 0.0, %v6648
      %v6650 = vpop.f32.mrb[0].mxu0
      %6651 = vmatprep.mubr.f32.mxu0 0.0
      %6652 = vmatmul.mubr.f32.gmra.mrb[0].mxu0 %v5948
      %v6653 = vpop.f32.mrb[0].mxu0
      %v6654 = vadd.f32 0.0, %v6653
      %v6655 = vpop.f32.mrb[0].mxu0
      %6656 = vmatprep.mubr.f32.mxu0 0.0
      %6657 = vmatmul.mubr.f32.gmra.mrb[0].mxu0 %v5950
      %v6658 = vpop.f32.mrb[0].mxu0
      %v6659 = vadd.f32 0.0, %v6658
      %v6660 = vpop.f32.mrb[0].mxu0
      %6661 = vmatprep.mubr.f32.mxu0 0.0
      %6662 = vmatmul.mubr.f32.gmra.mrb[0].mxu0 %v5952
      %v6663 = vpop.f32.mrb[0].mxu0
      %v6664 = vadd.f32 0.0, %v6663
      %v6665 = vpop.f32.mrb[0].mxu0
      %6666 = vmatprep.mubr.f32.mxu0 0.0
      %6667 = vmatmul.mubr.f32.gmra.mrb[0].mxu0 %v5954
      %v6668 = vpop.f32.mrb[0].mxu0
      %v6669 = vadd.f32 0.0, %v6668
      %v6670 = vpop.f32.mrb[0].mxu0
      %6671 = vmatprep.mubr.f32.mxu0 0.0
      %6672 = vmatmul.mubr.f32.gmra.mrb[0].mxu0 %v5956
      %v6673 = vpop.f32.mrb[0].mxu0
      %v6674 = vadd.f32 0.0, %v6673
      %v6675 = vpop.f32.mrb[0].mxu0
      %6676 = vmatprep.mubr.f32.mxu0 0.0
      %6677 = vmatmul.mubr.f32.gmra.mrb[0].mxu0 %v5958
      %v6678 = vpop.f32.mrb[0].mxu0
      %v6679 = vadd.f32 0.0, %v6678
      %v6680 = vpop.f32.mrb[0].mxu0
      %6681 = vmatprep.mubr.f32.mxu0 0.0
      %6682 = vmatmul.mubr.f32.gmra.mrb[0].mxu0 %v5960
      %v6683 = vpop.f32.mrb[0].mxu0
      %v6684 = vadd.f32 0.0, %v6683
      %v6685 = vpop.f32.mrb[0].mxu0
      %6686 = vmatprep.mubr.f32.mxu0 0.0
      %6687 = vmatmul.mubr.f32.gmra.mrb[0].mxu0 %v5962
      %v6688 = vpop.f32.mrb[0].mxu0
      %v6689 = vadd.f32 0.0, %v6688
      %v6690 = vpop.f32.mrb[0].mxu0
      %6691 = vmatprep.mubr.f32.mxu0 0.0
      %6692 = vmatmul.mubr.f32.gmra.mrb[0].mxu0 %v5964
      %v6693 = vpop.f32.mrb[0].mxu0
      %v6694 = vadd.f32 0.0, %v6693
      %v6695 = vpop.f32.mrb[0].mxu0
      %6696 = vmatprep.mubr.f32.mxu0 0.0
      %6697 = vmatmul.mubr.f32.gmra.mrb[0].mxu0 %v5966
      %v6698 = vpop.f32.mrb[0].mxu0
      %v6699 = vadd.f32 0.0, %v6698
      %v6700 = vpop.f32.mrb[0].mxu0
      %6701 = vmatprep.mubr.f32.mxu0 0.0
      %6702 = vmatmul.mubr.f32.gmra.mrb[0].mxu0 %v5968
      %v6703 = vpop.f32.mrb[0].mxu0
      %v6704 = vadd.f32 0.0, %v6703
      %v6705 = vpop.f32.mrb[0].mxu0
      %6706 = vmatprep.mubr.f32.mxu0 0.0
      %6707 = vmatmul.mubr.f32.gmra.mrb[0].mxu0 %v5970
      %v6708 = vpop.f32.mrb[0].mxu0
      %v6709 = vadd.f32 0.0, %v6708
      %v6710 = vpop.f32.mrb[0].mxu0
      %6711 = vmatprep.mubr.f32.mxu0 0.0
      %6712 = vmatmul.mubr.f32.gmra.mrb[0].mxu0 %v5972
      %v6713 = vpop.f32.mrb[0].mxu0
      %v6714 = vadd.f32 0.0, %v6713
      %v6715 = vpop.f32.mrb[0].mxu0
      %6716 = vdwg.mxu0
      %6717 = vmatprep.subr.mxu0 0.0
      %6718 = vmatpush1.msra.mxu0 %v6555
      %6719 = vmatprep.subr.mxu0 0.0
      %6720 = vmatpush1.msra.mxu0 %v6556
      %6721 = vmatprep.subr.mxu0 0.0
      %6722 = vmatpush1.msra.mxu0 %v6557
      %6723 = vmatprep.subr.mxu0 0.0
      %6724 = vmatpush1.msra.mxu0 %v6558
      %6725 = vmatprep.subr.mxu0 0.0
      %6726 = vmatpush1.msra.mxu0 %v6559
      %6727 = vmatprep.subr.mxu0 0.0
      %6728 = vmatpush1.msra.mxu0 %v6560
      %6729 = vmatprep.subr.mxu0 0.0
      %6730 = vmatpush1.msra.mxu0 %v6561
      %6731 = vmatprep.subr.mxu0 0.0
      %6732 = vmatpush1.msra.mxu0 %v6562
      %6733 = vmatprep.subr.mxu0 0.0
      %6734 = vmatpush1.msra.mxu0 0.0
      %6735 = vmatprep.subr.mxu0 0.0
      %6736 = vmatpush1.msra.mxu0 0.0
      %6737 = vmatprep.subr.mxu0 0.0
      %6738 = vmatpush1.msra.mxu0 0.0
      %6739 = vmatprep.subr.mxu0 0.0
      %6740 = vmatpush1.msra.mxu0 0.0
      %6741 = vmatprep.subr.mxu0 0.0
      %6742 = vmatpush1.msra.mxu0 0.0
      %6743 = vmatprep.subr.mxu0 0.0
      %6744 = vmatpush1.msra.mxu0 0.0
      %6745 = vmatprep.subr.mxu0 0.0
      %6746 = vmatpush1.msra.mxu0 0.0
      %6747 = vmatprep.subr.mxu0 0.0
      %6748 = vmatpush1.msra.mxu0 0.0
      %6749 = vmatprep.subr.mxu0 0.0
      %6750 = vmatpush1.msra.mxu0 0.0
      %6751 = vmatprep.subr.mxu0 0.0
      %6752 = vmatpush1.msra.mxu0 0.0
      %6753 = vmatprep.subr.mxu0 0.0
      %6754 = vmatpush1.msra.mxu0 0.0
      %6755 = vmatprep.subr.mxu0 0.0
      %6756 = vmatpush1.msra.mxu0 0.0
      %6757 = vmatprep.subr.mxu0 0.0
      %6758 = vmatpush1.msra.mxu0 0.0
      %6759 = vmatprep.subr.mxu0 0.0
      %6760 = vmatpush1.msra.mxu0 0.0
      %6761 = vmatprep.subr.mxu0 0.0
      %6762 = vmatpush1.msra.mxu0 0.0
      %6763 = vmatprep.subr.mxu0 0.0
      %6764 = vmatpush1.msra.mxu0 0.0
      %6765 = vmatprep.subr.mxu0 0.0
      %6766 = vmatpush1.msra.mxu0 0.0
      %6767 = vmatprep.subr.mxu0 0.0
      %6768 = vmatpush1.msra.mxu0 0.0
      %6769 = vmatprep.subr.mxu0 0.0
      %6770 = vmatpush1.msra.mxu0 0.0
      %6771 = vmatprep.subr.mxu0 0.0
      %6772 = vmatpush1.msra.mxu0 0.0
      %6773 = vmatprep.subr.mxu0 0.0
      %6774 = vmatpush1.msra.mxu0 0.0
      %6775 = vmatprep.subr.mxu0 0.0
      %6776 = vmatpush1.msra.mxu0 0.0
      %6777 = vmatprep.subr.mxu0 0.0
      %6778 = vmatpush1.msra.mxu0 0.0
      %6779 = vmatprep.subr.mxu0 0.0
      %6780 = vmatpush1.msra.mxu0 0.0
      %6781 = vmatprep.mubr.f32.mxu0 0.0
      %6782 = vmatmul.mubr.f32.gmra.mrb[0].mxu0 %v6120
      %v6783 = vpop.f32.mrb[0].mxu0
      %v6784 = vadd.f32 %v6639, %v6783
      %v6785 = vpop.f32.mrb[0].mxu0
      %6786 = vmatprep.mubr.f32.mxu0 0.0
      %6787 = vmatmul.mubr.f32.gmra.mrb[0].mxu0 %v6122
      %v6788 = vpop.f32.mrb[0].mxu0
      %v6789 = vadd.f32 %v6644, %v6788
      %v6790 = vpop.f32.mrb[0].mxu0
      %6791 = vmatprep.mubr.f32.mxu0 0.0
      %6792 = vmatmul.mubr.f32.gmra.mrb[0].mxu0 %v6124
      %v6793 = vpop.f32.mrb[0].mxu0
      %v6794 = vadd.f32 %v6649, %v6793
      %v6795 = vpop.f32.mrb[0].mxu0
      %6796 = vmatprep.mubr.f32.mxu0 0.0
      %6797 = vmatmul.mubr.f32.gmra.mrb[0].mxu0 %v6126
      %v6798 = vpop.f32.mrb[0].mxu0
      %v6799 = vadd.f32 %v6654, %v6798
      %v6800 = vpop.f32.mrb[0].mxu0
      %6801 = vmatprep.mubr.f32.mxu0 0.0
      %6802 = vmatmul.mubr.f32.gmra.mrb[0].mxu0 %v6128
      %v6803 = vpop.f32.mrb[0].mxu0
      %v6804 = vadd.f32 %v6659, %v6803
      %v6805 = vpop.f32.mrb[0].mxu0
      %6806 = vmatprep.mubr.f32.mxu0 0.0
      %6807 = vmatmul.mubr.f32.gmra.mrb[0].mxu0 %v6130
      %v6808 = vpop.f32.mrb[0].mxu0
      %v6809 = vadd.f32 %v6664, %v6808
      %v6810 = vpop.f32.mrb[0].mxu0
      %6811 = vmatprep.mubr.f32.mxu0 0.0
      %6812 = vmatmul.mubr.f32.gmra.mrb[0].mxu0 %v6132
      %v6813 = vpop.f32.mrb[0].mxu0
      %v6814 = vadd.f32 %v6669, %v6813
      %v6815 = vpop.f32.mrb[0].mxu0
      %6816 = vmatprep.mubr.f32.mxu0 0.0
      %6817 = vmatmul.mubr.f32.gmra.mrb[0].mxu0 %v6134
      %v6818 = vpop.f32.mrb[0].mxu0
      %v6819 = vadd.f32 %v6674, %v6818
      %v6820 = vpop.f32.mrb[0].mxu0
      %6821 = vmatprep.mubr.f32.mxu0 0.0
      %6822 = vmatmul.mubr.f32.gmra.mrb[0].mxu0 %v6136
      %v6823 = vpop.f32.mrb[0].mxu0
      %v6824 = vadd.f32 %v6679, %v6823
      %v6825 = vpop.f32.mrb[0].mxu0
      %6826 = vmatprep.mubr.f32.mxu0 0.0
      %6827 = vmatmul.mubr.f32.gmra.mrb[0].mxu0 %v6138
      %v6828 = vpop.f32.mrb[0].mxu0
      %v6829 = vadd.f32 %v6684, %v6828
      %v6830 = vpop.f32.mrb[0].mxu0
      %6831 = vmatprep.mubr.f32.mxu0 0.0
      %6832 = vmatmul.mubr.f32.gmra.mrb[0].mxu0 %v6140
      %v6833 = vpop.f32.mrb[0].mxu0
      %v6834 = vadd.f32 %v6689, %v6833
      %v6835 = vpop.f32.mrb[0].mxu0
      %6836 = vmatprep.mubr.f32.mxu0 0.0
      %6837 = vmatmul.mubr.f32.gmra.mrb[0].mxu0 %v6142
      %v6838 = vpop.f32.mrb[0].mxu0
      %v6839 = vadd.f32 %v6694, %v6838
      %v6840 = vpop.f32.mrb[0].mxu0
      %6841 = vmatprep.mubr.f32.mxu0 0.0
      %6842 = vmatmul.mubr.f32.gmra.mrb[0].mxu0 %v6144
      %v6843 = vpop.f32.mrb[0].mxu0
      %v6844 = vadd.f32 %v6699, %v6843
      %v6845 = vpop.f32.mrb[0].mxu0
      %6846 = vmatprep.mubr.f32.mxu0 0.0
      %6847 = vmatmul.mubr.f32.gmra.mrb[0].mxu0 %v6146
      %v6848 = vpop.f32.mrb[0].mxu0
      %v6849 = vadd.f32 %v6704, %v6848
      %v6850 = vpop.f32.mrb[0].mxu0
      %6851 = vmatprep.mubr.f32.mxu0 0.0
      %6852 = vmatmul.mubr.f32.gmra.mrb[0].mxu0 %v6148
      %v6853 = vpop.f32.mrb[0].mxu0
      %v6854 = vadd.f32 %v6709, %v6853
      %v6855 = vpop.f32.mrb[0].mxu0
      %6856 = vmatprep.mubr.f32.mxu0 0.0
      %6857 = vmatmul.mubr.f32.gmra.mrb[0].mxu0 %v6150
      %v6858 = vpop.f32.mrb[0].mxu0
      %v6859 = vadd.f32 %v6714, %v6858
      %v6860 = vpop.f32.mrb[0].mxu0
      %6861 = vdwg.mxu0
      %s6862 = scalar_lea.vmem %s41, 128
      %v6863 = vld [vmem:[%s6862] sm:$0xff]
      %v6864 = vld [vmem:[%s6862 + $0x8] sm:$0xff]
      %v6865 = vld [vmem:[%s6862 + $0x10] sm:$0xff]
      %v6866 = vld [vmem:[%s6862 + $0x18] sm:$0xff]
      %v6867 = vld [vmem:[%s6862 + $0x20] sm:$0xff]
      %v6868 = vld [vmem:[%s6862 + $0x28] sm:$0xff]
      %v6869 = vld [vmem:[%s6862 + $0x30] sm:$0xff]
      %v6870 = vld [vmem:[%s6862 + $0x38] sm:$0xff]
      %6871 = vmatprep.subr.mxu0 0.0
      %6872 = vmatpush1.msra.mxu0 %v6863
      %6873 = vmatprep.subr.mxu0 0.0
      %6874 = vmatpush1.msra.mxu0 %v6864
      %6875 = vmatprep.subr.mxu0 0.0
      %6876 = vmatpush1.msra.mxu0 %v6865
      %6877 = vmatprep.subr.mxu0 0.0
      %6878 = vmatpush1.msra.mxu0 %v6866
      %6879 = vmatprep.subr.mxu0 0.0
      %6880 = vmatpush1.msra.mxu0 %v6867
      %6881 = vmatprep.subr.mxu0 0.0
      %6882 = vmatpush1.msra.mxu0 %v6868
      %6883 = vmatprep.subr.mxu0 0.0
      %6884 = vmatpush1.msra.mxu0 %v6869
      %6885 = vmatprep.subr.mxu0 0.0
      %6886 = vmatpush1.msra.mxu0 %v6870
      %6887 = vmatprep.subr.mxu0 0.0
      %6888 = vmatpush1.msra.mxu0 0.0
      %6889 = vmatprep.subr.mxu0 0.0
      %6890 = vmatpush1.msra.mxu0 0.0
      %6891 = vmatprep.subr.mxu0 0.0
      %6892 = vmatpush1.msra.mxu0 0.0
      %6893 = vmatprep.subr.mxu0 0.0
      %6894 = vmatpush1.msra.mxu0 0.0
      %6895 = vmatprep.subr.mxu0 0.0
      %6896 = vmatpush1.msra.mxu0 0.0
      %6897 = vmatprep.subr.mxu0 0.0
      %6898 = vmatpush1.msra.mxu0 0.0
      %6899 = vmatprep.subr.mxu0 0.0
      %6900 = vmatpush1.msra.mxu0 0.0
      %6901 = vmatprep.subr.mxu0 0.0
      %6902 = vmatpush1.msra.mxu0 0.0
      %6903 = vmatprep.subr.mxu0 0.0
      %6904 = vmatpush1.msra.mxu0 0.0
      %6905 = vmatprep.subr.mxu0 0.0
      %6906 = vmatpush1.msra.mxu0 0.0
      %6907 = vmatprep.subr.mxu0 0.0
      %6908 = vmatpush1.msra.mxu0 0.0
      %6909 = vmatprep.subr.mxu0 0.0
      %6910 = vmatpush1.msra.mxu0 0.0
      %6911 = vmatprep.subr.mxu0 0.0
      %6912 = vmatpush1.msra.mxu0 0.0
      %6913 = vmatprep.subr.mxu0 0.0
      %6914 = vmatpush1.msra.mxu0 0.0
      %6915 = vmatprep.subr.mxu0 0.0
      %6916 = vmatpush1.msra.mxu0 0.0
      %6917 = vmatprep.subr.mxu0 0.0
      %6918 = vmatpush1.msra.mxu0 0.0
      %6919 = vmatprep.subr.mxu0 0.0
      %6920 = vmatpush1.msra.mxu0 0.0
      %6921 = vmatprep.subr.mxu0 0.0
      %6922 = vmatpush1.msra.mxu0 0.0
      %6923 = vmatprep.subr.mxu0 0.0
      %6924 = vmatpush1.msra.mxu0 0.0
      %6925 = vmatprep.subr.mxu0 0.0
      %6926 = vmatpush1.msra.mxu0 0.0
      %6927 = vmatprep.subr.mxu0 0.0
      %6928 = vmatpush1.msra.mxu0 0.0
      %6929 = vmatprep.subr.mxu0 0.0
      %6930 = vmatpush1.msra.mxu0 0.0
      %6931 = vmatprep.subr.mxu0 0.0
      %6932 = vmatpush1.msra.mxu0 0.0
      %6933 = vmatprep.subr.mxu0 0.0
      %6934 = vmatpush1.msra.mxu0 0.0
      %6935 = vmatprep.mubr.f32.mxu0 0.0
      %6936 = vmatmul.mubr.f32.gmra.mrb[0].mxu0 %v6306
      %v6937 = vpop.f32.mrb[0].mxu0
      %v6938 = vadd.f32 0.0, %v6937
      %v6939 = vpop.f32.mrb[0].mxu0
      %6940 = vmatprep.mubr.f32.mxu0 0.0
      %6941 = vmatmul.mubr.f32.gmra.mrb[0].mxu0 %v6308
      %v6942 = vpop.f32.mrb[0].mxu0
      %v6943 = vadd.f32 0.0, %v6942
      %v6944 = vpop.f32.mrb[0].mxu0
      %6945 = vmatprep.mubr.f32.mxu0 0.0
      %6946 = vmatmul.mubr.f32.gmra.mrb[0].mxu0 %v6310
      %v6947 = vpop.f32.mrb[0].mxu0
      %v6948 = vadd.f32 0.0, %v6947
      %v6949 = vpop.f32.mrb[0].mxu0
      %6950 = vmatprep.mubr.f32.mxu0 0.0
      %6951 = vmatmul.mubr.f32.gmra.mrb[0].mxu0 %v6312
      %v6952 = vpop.f32.mrb[0].mxu0
      %v6953 = vadd.f32 0.0, %v6952
      %v6954 = vpop.f32.mrb[0].mxu0
      %6955 = vmatprep.mubr.f32.mxu0 0.0
      %6956 = vmatmul.mubr.f32.gmra.mrb[0].mxu0 %v6314
      %v6957 = vpop.f32.mrb[0].mxu0
      %v6958 = vadd.f32 0.0, %v6957
      %v6959 = vpop.f32.mrb[0].mxu0
      %6960 = vmatprep.mubr.f32.mxu0 0.0
      %6961 = vmatmul.mubr.f32.gmra.mrb[0].mxu0 %v6316
      %v6962 = vpop.f32.mrb[0].mxu0
      %v6963 = vadd.f32 0.0, %v6962
      %v6964 = vpop.f32.mrb[0].mxu0
      %6965 = vmatprep.mubr.f32.mxu0 0.0
      %6966 = vmatmul.mubr.f32.gmra.mrb[0].mxu0 %v6318
      %v6967 = vpop.f32.mrb[0].mxu0
      %v6968 = vadd.f32 0.0, %v6967
      %v6969 = vpop.f32.mrb[0].mxu0
      %6970 = vmatprep.mubr.f32.mxu0 0.0
      %6971 = vmatmul.mubr.f32.gmra.mrb[0].mxu0 %v6320
      %v6972 = vpop.f32.mrb[0].mxu0
      %v6973 = vadd.f32 0.0, %v6972
      %v6974 = vpop.f32.mrb[0].mxu0
      %6975 = vmatprep.mubr.f32.mxu0 0.0
      %6976 = vmatmul.mubr.f32.gmra.mrb[0].mxu0 %v6322
      %v6977 = vpop.f32.mrb[0].mxu0
      %v6978 = vadd.f32 0.0, %v6977
      %v6979 = vpop.f32.mrb[0].mxu0
      %6980 = vmatprep.mubr.f32.mxu0 0.0
      %6981 = vmatmul.mubr.f32.gmra.mrb[0].mxu0 %v6324
      %v6982 = vpop.f32.mrb[0].mxu0
      %v6983 = vadd.f32 0.0, %v6982
      %v6984 = vpop.f32.mrb[0].mxu0
      %6985 = vmatprep.mubr.f32.mxu0 0.0
      %6986 = vmatmul.mubr.f32.gmra.mrb[0].mxu0 %v6326
      %v6987 = vpop.f32.mrb[0].mxu0
      %v6988 = vadd.f32 0.0, %v6987
      %v6989 = vpop.f32.mrb[0].mxu0
      %6990 = vmatprep.mubr.f32.mxu0 0.0
      %6991 = vmatmul.mubr.f32.gmra.mrb[0].mxu0 %v6328
      %v6992 = vpop.f32.mrb[0].mxu0
      %v6993 = vadd.f32 0.0, %v6992
      %v6994 = vpop.f32.mrb[0].mxu0
      %6995 = vmatprep.mubr.f32.mxu0 0.0
      %6996 = vmatmul.mubr.f32.gmra.mrb[0].mxu0 %v6330
      %v6997 = vpop.f32.mrb[0].mxu0
      %v6998 = vadd.f32 0.0, %v6997
      %v6999 = vpop.f32.mrb[0].mxu0
      %7000 = vmatprep.mubr.f32.mxu0 0.0
      %7001 = vmatmul.mubr.f32.gmra.mrb[0].mxu0 %v6332
      %v7002 = vpop.f32.mrb[0].mxu0
      %v7003 = vadd.f32 0.0, %v7002
      %v7004 = vpop.f32.mrb[0].mxu0
      %7005 = vmatprep.mubr.f32.mxu0 0.0
      %7006 = vmatmul.mubr.f32.gmra.mrb[0].mxu0 %v6334
      %v7007 = vpop.f32.mrb[0].mxu0
      %v7008 = vadd.f32 0.0, %v7007
      %v7009 = vpop.f32.mrb[0].mxu0
      %7010 = vmatprep.mubr.f32.mxu0 0.0
      %7011 = vmatmul.mubr.f32.gmra.mrb[0].mxu0 %v6337
      %v7012 = vpop.f32.mrb[0].mxu0
      %v7013 = vadd.f32 0.0, %v7012
      %v7014 = vpop.f32.mrb[0].mxu0
      %7015 = vdwg.mxu0
      %v7016 = vadd.f32 %v6784, %v6938
      %v7017 = vadd.f32 %v6789, %v6943
      %v7018 = vadd.f32 %v6794, %v6948
      %v7019 = vadd.f32 %v6799, %v6953
      %v7020 = vadd.f32 %v6804, %v6958
      %v7021 = vadd.f32 %v6809, %v6963
      %v7022 = vadd.f32 %v6814, %v6968
      %v7023 = vadd.f32 %v6819, %v6973
      %v7024 = vadd.f32 %v6824, %v6978
      %v7025 = vadd.f32 %v6829, %v6983
      %v7026 = vadd.f32 %v6834, %v6988
      %v7027 = vadd.f32 %v6839, %v6993
      %v7028 = vadd.f32 %v6844, %v6998
      %v7029 = vadd.f32 %v6849, %v7003
      %v7030 = vadd.f32 %v6854, %v7008
      %v7031 = vadd.f32 %v6859, %v7013
      %v7032 = vld [vmem:[#allocation5] sm:$0x1]
      %v7034 = vlaneseq
      %v7035 = vshrl.u32 %v7034, 7
      %v7036 = vsub.s32 0, %v7035
      %v7037 = vrot.slane %v7032, %v7036
      %v7039 = vadd.f32 %v7016, %v7037
      %v7040 = vadd.f32 %v7017, %v7037
      %v7041 = vadd.f32 %v7018, %v7037
      %v7042 = vadd.f32 %v7019, %v7037
      %v7043 = vadd.f32 %v7020, %v7037
      %v7044 = vadd.f32 %v7021, %v7037
      %v7045 = vadd.f32 %v7022, %v7037
      %v7046 = vadd.f32 %v7023, %v7037
      %v7047 = vadd.f32 %v7024, %v7037
      %v7048 = vadd.f32 %v7025, %v7037
      %v7049 = vadd.f32 %v7026, %v7037
      %v7050 = vadd.f32 %v7027, %v7037
      %v7051 = vadd.f32 %v7028, %v7037
      %v7052 = vadd.f32 %v7029, %v7037
      %v7053 = vadd.f32 %v7030, %v7037
      %v7054 = vadd.f32 %v7031, %v7037
      %v7055 = vmax.f32 %v7039, 0.0
      %v7056 = vmax.f32 %v7040, 0.0
      %v7057 = vmax.f32 %v7041, 0.0
      %v7058 = vmax.f32 %v7042, 0.0
      %v7059 = vmax.f32 %v7043, 0.0
      %v7060 = vmax.f32 %v7044, 0.0
      %v7061 = vmax.f32 %v7045, 0.0
      %v7062 = vmax.f32 %v7046, 0.0
      %v7063 = vmax.f32 %v7047, 0.0
      %v7064 = vmax.f32 %v7048, 0.0
      %v7065 = vmax.f32 %v7049, 0.0
      %v7066 = vmax.f32 %v7050, 0.0
      %v7067 = vmax.f32 %v7051, 0.0
      %v7068 = vmax.f32 %v7052, 0.0
      %v7069 = vmax.f32 %v7053, 0.0
      %v7070 = vmax.f32 %v7054, 0.0
      %7071 = vst.msk [vmem:[%s1007] sm:$0xff] %vm4065, %v7055
      %7072 = vst.msk [vmem:[%s1007 + $0x8] sm:$0xff] %vm4065, %v7056
      %7073 = vst.msk [vmem:[%s1007 + $0x10] sm:$0xff] %vm4065, %v7057
      %7074 = vst.msk [vmem:[%s1007 + $0x18] sm:$0xff] %vm4065, %v7058
      %7075 = vst.msk [vmem:[%s1007 + $0x20] sm:$0xff] %vm4065, %v7059
      %7076 = vst.msk [vmem:[%s1007 + $0x28] sm:$0xff] %vm4065, %v7060
      %7077 = vst.msk [vmem:[%s1007 + $0x30] sm:$0xff] %vm4065, %v7061
      %7078 = vst.msk [vmem:[%s1007 + $0x38] sm:$0xff] %vm4065, %v7062
      %7079 = vst.msk [vmem:[%s1007 + $0x40] sm:$0xff] %vm4065, %v7063
      %7080 = vst.msk [vmem:[%s1007 + $0x48] sm:$0xff] %vm4065, %v7064
      %7081 = vst.msk [vmem:[%s1007 + $0x50] sm:$0xff] %vm4065, %v7065
      %7082 = vst.msk [vmem:[%s1007 + $0x58] sm:$0xff] %vm4065, %v7066
      %7083 = vst.msk [vmem:[%s1007 + $0x60] sm:$0xff] %vm4065, %v7067
      %7084 = vst.msk [vmem:[%s1007 + $0x68] sm:$0xff] %vm4065, %v7068
      %7085 = vst.msk [vmem:[%s1007 + $0x70] sm:$0xff] %vm4065, %v7069
      %7086 = vst.msk [vmem:[%s1007 + $0x78] sm:$0xff] %vm4065, %v7070
      %p7087 = scmp.lt.s32.totalorder %s81, 1
      %s7088 = scalar_select %p7087, %s81, 1
      %s7089 = smul.addr %s7088, 4
      %s7090 = smul.addr %s7089, 8
      %s7091 = scalar_lea.vmem %s53, %s7090
      %p7092 = scmp.lt.s32.totalorder %s81, 1
      %s7093 = scalar_select %p7092, %s81, 1
      %s7094 = smul.addr %s7093, 4
      %s7095 = smul.addr %s7094, 8
      %s7096 = scalar_lea.vmem %s55, %s7095
      %p7097 = scmp.lt.s32.totalorder %s81, 1
      %s7098 = scalar_select %p7097, %s81, 1
      %s7099 = smul.addr %s7098, 4
      %s7100 = smul.addr %s7099, 8
      %s7101 = scalar_lea.vmem %s57, %s7100
      %p7102 = scmp.lt.s32.totalorder %s81, 1
      %s7103 = scalar_select %p7102, %s81, 1
      %s7104 = smul.addr %s7103, 16
      %s7105 = smul.addr %s7104, 8
      %s7106 = scalar_lea.vmem %s59, %s7105
      %p7107 = scmp.lt.s32.totalorder %s81, 1
      %s7108 = scalar_select %p7107, %s81, 1
      %s7109 = smul.addr %s7108, 16
      %s7110 = smul.addr %s7109, 8
      %s7111 = scalar_lea.vmem %s61, %s7110
      // Predicated region
      $region125: #{rom_vae_dilated_forward.1} parent=123 // pred_check
        %p7112 = pneg %p655
      $region126: #{rom_vae_dilated_forward.1} parent=123 // pred_check_branch
        %7114 = sbr.rel (%p7112) target = $region128
      $region127: #{rom_vae_dilated_forward.1} parent=123 // pred_region
        _
      $region128: #{rom_vae_dilated_forward.1} parent=123 // pred_fallthru
        _
      // Predicated region
      $region129: #{rom_vae_dilated_forward.1} parent=123 // pred_check
        %p7115 = pneg %p681
      $region130: #{rom_vae_dilated_forward.1} parent=123 // pred_check_branch
        %7117 = sbr.rel (%p7115) target = $region132
      $region131: #{rom_vae_dilated_forward.1} parent=123 // pred_region
        _
      $region132: #{rom_vae_dilated_forward.1} parent=123 // pred_fallthru
        _
      // Predicated region
      $region133: #{rom_vae_dilated_forward.1} parent=123 // pred_check
        %p7118 = pneg %p707
      $region134: #{rom_vae_dilated_forward.1} parent=123 // pred_check_branch
        %7120 = sbr.rel (%p7118) target = $region136
      $region135: #{rom_vae_dilated_forward.1} parent=123 // pred_region
        _
      $region136: #{rom_vae_dilated_forward.1} parent=123 // pred_fallthru
        _
      // Predicated region
      $region137: #{rom_vae_dilated_forward.1} parent=123 // pred_check
        %p7121 = pneg %p733
      $region138: #{rom_vae_dilated_forward.1} parent=123 // pred_check_branch
        %7123 = sbr.rel (%p7121) target = $region140
      $region139: #{rom_vae_dilated_forward.1} parent=123 // pred_region
        _
      $region140: #{rom_vae_dilated_forward.1} parent=123 // pred_fallthru
        _
      // Predicated region
      $region141: #{rom_vae_dilated_forward.1} parent=123 // pred_check
        %p7124 = pneg %p759
      $region142: #{rom_vae_dilated_forward.1} parent=123 // pred_check_branch
        %7126 = sbr.rel (%p7124) target = $region144
      $region143: #{rom_vae_dilated_forward.1} parent=123 // pred_region
        _
      $region144: #{rom_vae_dilated_forward.1} parent=123 // pred_fallthru
        _
    $region124: #{rom_vae_dilated_forward.1} parent=5 // pred_fallthru
      _
    %p7127 = scmp.le.s32.totalorder 2, %s76
    // Predicated region
    $region145: #{rom_vae_dilated_forward.1} parent=5 // pred_check
      %p7128 = pneg %p7127
    $region146: #{rom_vae_dilated_forward.1} parent=5 // pred_check_branch
      %7130 = sbr.rel (%p7128) target = $region148
    $region147: #{rom_vae_dilated_forward.1} parent=5 // pred_region
      %s7131 = ssub.s32 %s76, 2
      // Predicated region
      $region149: #{rom_vae_dilated_forward.1} parent=147 // pred_check
        %p7132 = pneg %p661
      $region150: #{rom_vae_dilated_forward.1} parent=147 // pred_check_branch
        %7134 = sbr.rel (%p7132) target = $region152
      $region151: #{rom_vae_dilated_forward.1} parent=147 // pred_region
        %p7135 = scmp.lt.s32.totalorder %s82, 1
        %s7136 = scalar_select %p7135, %s82, 1
        %s7137 = smul.addr %s7136, 4
        %s7138 = smul.addr %s7137, 8
        %s7139 = scalar_lea.vmem %s53, %s7138
      $region152: #{rom_vae_dilated_forward.1} parent=147 // pred_fallthru
        _
      // Predicated region
      $region153: #{rom_vae_dilated_forward.1} parent=147 // pred_check
        %p7140 = pneg %p687
      $region154: #{rom_vae_dilated_forward.1} parent=147 // pred_check_branch
        %7142 = sbr.rel (%p7140) target = $region156
      $region155: #{rom_vae_dilated_forward.1} parent=147 // pred_region
        %p7143 = scmp.lt.s32.totalorder %s82, 1
        %s7144 = scalar_select %p7143, %s82, 1
        %s7145 = smul.addr %s7144, 4
        %s7146 = smul.addr %s7145, 8
        %s7147 = scalar_lea.vmem %s55, %s7146
      $region156: #{rom_vae_dilated_forward.1} parent=147 // pred_fallthru
        _
      // Predicated region
      $region157: #{rom_vae_dilated_forward.1} parent=147 // pred_check
        %p7148 = pneg %p713
      $region158: #{rom_vae_dilated_forward.1} parent=147 // pred_check_branch
        %7150 = sbr.rel (%p7148) target = $region160
      $region159: #{rom_vae_dilated_forward.1} parent=147 // pred_region
        %p7151 = scmp.lt.s32.totalorder %s82, 1
        %s7152 = scalar_select %p7151, %s82, 1
        %s7153 = smul.addr %s7152, 4
        %s7154 = smul.addr %s7153, 8
        %s7155 = scalar_lea.vmem %s57, %s7154
      $region160: #{rom_vae_dilated_forward.1} parent=147 // pred_fallthru
        _
      // Predicated region
      $region161: #{rom_vae_dilated_forward.1} parent=147 // pred_check
        %p7156 = pneg %p739
      $region162: #{rom_vae_dilated_forward.1} parent=147 // pred_check_branch
        %7158 = sbr.rel (%p7156) target = $region164
      $region163: #{rom_vae_dilated_forward.1} parent=147 // pred_region
        %p7159 = scmp.lt.s32.totalorder %s82, 1
        %s7160 = scalar_select %p7159, %s82, 1
        %s7161 = smul.addr %s7160, 16
        %s7162 = smul.addr %s7161, 8
        %s7163 = scalar_lea.vmem %s59, %s7162
      $region164: #{rom_vae_dilated_forward.1} parent=147 // pred_fallthru
        _
      // Predicated region
      $region165: #{rom_vae_dilated_forward.1} parent=147 // pred_check
        %p7164 = pneg %p765
      $region166: #{rom_vae_dilated_forward.1} parent=147 // pred_check_branch
        %7166 = sbr.rel (%p7164) target = $region168
      $region167: #{rom_vae_dilated_forward.1} parent=147 // pred_region
        %p7167 = scmp.lt.s32.totalorder %s82, 1
        %s7168 = scalar_select %p7167, %s82, 1
        %s7169 = smul.addr %s7168, 16
        %s7170 = smul.addr %s7169, 8
        %s7171 = scalar_lea.vmem %s61, %s7170
      $region168: #{rom_vae_dilated_forward.1} parent=147 // pred_fallthru
        _
    $region148: #{rom_vae_dilated_forward.1} parent=5 // pred_fallthru
      _
  $region6: #{rom_vae_dilated_forward.1} parent=0 // loop_footer
    %s80 = sadd.s32 1, %s76
  $region7: #{rom_vae_dilated_forward.1} parent=0 // loop_footer_branch
    %75 = sbr.rel target = $region3
  $region8: #{rom_vae_dilated_forward.1} parent=0 // loop_exit
    _

</llo_original>
